<compile_context>
chip_gen: v7x
topology: tpu7x:2x2x1
jax: 0.10.0
libtpu: 0.0.40
codegen_flags: <defaults>
</compile_context>

<pallas_src>
import functools

import jax
import jax.numpy as jnp
from jax.experimental import pallas as pl
from jax.experimental.pallas import tpu as pltpu

SAMPLE_RATE = 16000

# ----------------- small synthetic config -----------------
HIDDEN = 32
HEADS = 4
HEAD_DIM = HIDDEN // HEADS
FFN = 64
LAYERS = 2
CONV_LAYERS = [(1, 32, 10, 5), (32, 32, 3, 2)]    # (Cin, Cout, kernel, stride)
POS_CONV_K = 5
TDNN_LAYERS = [(32, 32, 5, 1), (32, 32, 3, 2)]    # (Cin, Cout, kernel, dilation)
XVEC_DIM = 32
LN_EPS = 1e-5


# ======================= in-kernel helpers =======================

def _gelu(x):
    # TODO(synk): torch.nn.GELU defaults to the exact erf form; the tanh
    # approximation is used here for Mosaic-friendly lowering.
    return jax.nn.gelu(x, approximate=True)


def _mm(x, w):
    """bf16 MXU matmul with f32 accumulation."""
    return jnp.dot(x.astype(jnp.bfloat16), w.astype(jnp.bfloat16),
                   preferred_element_type=jnp.float32)


def _ln(x, g, b, eps):
    """LayerNorm over the last axis; g, b broadcast as (1, C)."""
    mu = jnp.mean(x, axis=-1, keepdims=True)
    var = jnp.mean((x - mu) ** 2, axis=-1, keepdims=True)
    return (x - mu) * jax.lax.rsqrt(var + eps) * g + b


def _conv_taps(x, w_ref, b_ref, taps, cin, t_out):
    """Stride-1 1-D conv as shifted matmuls.

    x: (T_in, cin) value; taps: static row offsets; w_ref: (len(taps)*cin, Cout)
    tap-major; b_ref: (1, Cout).  Returns (t_out, Cout) f32.
    """
    cout = w_ref.shape[-1]
    acc = jnp.zeros((t_out, cout), jnp.float32)
    for q, off in enumerate(taps):
        acc = acc + _mm(x[off:off + t_out, :], w_ref[q * cin:(q + 1) * cin, :])
    return acc + b_ref[...]


# ======================= Pallas kernels =======================

def _conv0_gn_kernel(x_ref, w_ref, b_ref, g_ref, gb_ref, o_ref,
                     *, taps, cin, t_out, eps):
    """conv0 (phase-packed, stride folded away) + GroupNorm(groups=C) + GELU."""
    y = _conv_taps(x_ref[0], w_ref, b_ref, taps, cin, t_out)       # (t_out, C)
    # per-channel GroupNorm: normalize each channel over time
    mu = jnp.mean(y, axis=0, keepdims=True)
    var = jnp.mean((y - mu) ** 2, axis=0, keepdims=True)
    y = (y - mu) * jax.lax.rsqrt(var + eps) * g_ref[...] + gb_ref[...]
    o_ref[0] = _gelu(y).astype(o_ref.dtype)


def _conv1_fp_kernel(x_ref, w_ref, b_ref, lng_ref, lnb_ref, pw_ref, pb_ref,
                     o_ref, *, taps, cin, t_out, eps):
    """conv1 + GELU + feature-projection LayerNorm + Linear(conv_dim->hidden)."""
    y = _gelu(_conv_taps(x_ref[0], w_ref, b_ref, taps, cin, t_out))
    y = _ln(y, lng_ref[...], lnb_ref[...], eps)
    o_ref[0] = (_mm(y, pw_ref[...]) + pb_ref[...]).astype(o_ref.dtype)


def _posconv_ln_kernel(hp_ref, w_ref, b_ref, g_ref, gb_ref, o_ref,
                       *, taps, cin, t_out, pad, eps):
    """same-padded positional conv + GELU + residual add + encoder LayerNorm."""
    hp = hp_ref[0]                                                 # (T+2*pad, H)
    pos = _gelu(_conv_taps(hp, w_ref, b_ref, taps, cin, t_out))
    res = hp[pad:pad + t_out, :]
    o_ref[0] = _ln(pos + res, g_ref[...], gb_ref[...], eps).astype(o_ref.dtype)


def _encoder_kernel(h_ref, wqkv_ref, bqkv_ref, wo_ref, bo_ref, g1_ref, b1_ref,
                    wf1_ref, bf1_ref, wf2_ref, bf2_ref, g2_ref, b2_ref,
                    o_ref, h_scr, *, heads, head_dim, eps):
    """One grid step = (batch b, layer l); hidden state lives in VMEM scratch.

    TODO(synk): WavLM's gated relative position bias inside attention is not
    implemented (matches the synthetic reference).
    """
    layer = pl.program_id(1)

    @pl.when(layer == 0)
    def _():
        h_scr[...] = h_ref[0]

    h = h_scr[...]                                                 # (T, H) f32
    hidden = h.shape[-1]
    scale = 1.0 / float(head_dim) ** 0.5

    # --- self-attention: fused QKV, per-head softmax, head-wise O projection ---
    qkv = _mm(h, wqkv_ref[0]) + bqkv_ref[0]                        # (T, 3H)
    attn = jnp.zeros_like(h)
    for hh in range(heads):
        lo = hh * head_dim
        qh = qkv[:, lo:lo + head_dim] * scale
        kh = qkv[:, hidden + lo:hidden + lo + head_dim]
        vh = qkv[:, 2 * hidden + lo:2 * hidden + lo + head_dim]
        s = jax.lax.dot_general(qh.astype(jnp.bfloat16), kh.astype(jnp.bfloat16),
                                (((1,), (1,)), ((), ())),
                                preferred_element_type=jnp.float32)   # (T, T)
        s = s - jnp.max(s, axis=-1, keepdims=True)
        p = jnp.exp(s)
        p = p * pl.reciprocal(jnp.sum(p, axis=-1, keepdims=True), approx=True)
        oh = _mm(p, vh)                                            # (T, head_dim)
        # accumulate the O-projection per head: avoids a lane-axis concat
        attn = attn + _mm(oh, wo_ref[0, lo:lo + head_dim, :])
    h1 = _ln(attn + bo_ref[0] + h, g1_ref[0], b1_ref[0], eps)

    # --- feed-forward (post-norm) ---
    f = _gelu(_mm(h1, wf1_ref[0]) + bf1_ref[0])
    h2 = _ln(_mm(f, wf2_ref[0]) + bf2_ref[0] + h1, g2_ref[0], b2_ref[0], eps)

    h_scr[...] = h2
    o_ref[0] = h2.astype(o_ref.dtype)   # writeback happens when b changes


def _xvector_kernel(h_ref, pw_ref, pb_ref, w0_ref, b0_ref, w1_ref, b1_ref,
                    few_ref, feb_ref, o_ref, *, t, c, k0, d0, k1, d1):
    """Projector + TDNN0 + TDNN1 + statistics pooling + embedding linear."""
    x = _mm(h_ref[0], pw_ref[...]) + pb_ref[...]                   # (t, c)
    t0 = t - d0 * (k0 - 1)
    x = jnp.maximum(
        _conv_taps(x, w0_ref, b0_ref, tuple(q * d0 for q in range(k0)), c, t0),
        0.0)
    t1 = t0 - d1 * (k1 - 1)
    x = jnp.maximum(
        _conv_taps(x, w1_ref, b1_ref, tuple(q * d1 for q in range(k1)), c, t1),
        0.0)                                                       # (t1, c)
    # statistics pooling: mean + unbiased std over time (torch.std default)
    mu = jnp.mean(x, axis=0, keepdims=True)                        # (1, c)
    var = jnp.sum((x - mu) ** 2, axis=0, keepdims=True) / float(t1 - 1)
    std = jnp.sqrt(var)
    # embedding linear on concat(mean, std) without a lane-axis concatenate
    emb = _mm(mu, few_ref[0:c, :]) + _mm(std, few_ref[c:2 * c, :]) + feb_ref[...]
    o_ref[0] = emb.astype(o_ref.dtype)


# ======================= plain-JAX glue =======================

def _pack_strided_conv(x, w, kernel, stride):
    """Rewrite a stride-s conv as a stride-1 conv over phase-interleaved input.

    x: (B, T, Cin); w: (kernel*Cin, Cout) tap-major.
    Returns (xp, w_eff, n_taps, cin_eff, t_out); the Pallas kernel then only
    needs contiguous shifted slices (no strided loads, no im2col duplication).
    """
    B, T, Cin = x.shape
    Cout = w.shape[-1]
    t_out = (T - kernel) // stride + 1
    if stride == 1:
        return x, w, kernel, Cin, t_out
    n_taps = -(-kernel // stride)                     # ceil(kernel / stride)
    t_pad = (t_out - 1 + n_taps) * stride
    if t_pad > T:
        x = jnp.pad(x, ((0, 0), (0, t_pad - T), (0, 0)))
    else:
        x = x[:, :t_pad, :]
    xp = x.reshape(B, t_pad // stride, stride * Cin)  # pure reshape (1x data)
    w3 = w.reshape(kernel, Cin, Cout)
    w3 = jnp.pad(w3, ((0, n_taps * stride - kernel), (0, 0), (0, 0)))
    w_eff = w3.reshape(n_taps * stride * Cin, Cout)
    return xp, w_eff, n_taps, stride * Cin, t_out


# ======================= parameters =======================

def init_params(key):
    keys = iter(jax.random.split(key, 128))

    def nrm(shape, scale=0.05):
        return scale * jax.random.normal(next(keys), shape, dtype=jnp.float32)

    p = {}
    # conv feature extractor (conv_bias=False in WavLM -> zero biases)
    for i, (cin, cout, k, _s) in enumerate(CONV_LAYERS):
        p[f"conv{i}_w"] = nrm((k * cin, cout))
        p[f"conv{i}_b"] = jnp.zeros((cout,), jnp.float32)
    p["gn_g"] = jnp.ones((CONV_LAYERS[0][1],), jnp.float32)
    p["gn_b"] = jnp.zeros((CONV_LAYERS[0][1],), jnp.float32)
    # feature projection: LayerNorm + Linear(conv_dim -> hidden)
    cdim = CONV_LAYERS[-1][1]
    p["fp_ln_g"] = jnp.ones((cdim,), jnp.float32)
    p["fp_ln_b"] = jnp.zeros((cdim,), jnp.float32)
    p["fp_w"] = nrm((cdim, HIDDEN))
    p["fp_b"] = jnp.zeros((HIDDEN,), jnp.float32)
    # positional conv embedding (same-padded conv + GELU)
    p["pos_w"] = nrm((POS_CONV_K * HIDDEN, HIDDEN))
    p["pos_b"] = jnp.zeros((HIDDEN,), jnp.float32)
    # encoder pre layer norm
    p["enc_ln_g"] = jnp.ones((HIDDEN,), jnp.float32)
    p["enc_ln_b"] = jnp.zeros((HIDDEN,), jnp.float32)
    # transformer layers (post-norm, as do_stable_layer_norm=False)
    for l in range(LAYERS):
        for name in ("q", "k", "v", "o"):
            p[f"l{l}_{name}_w"] = nrm((HIDDEN, HIDDEN))
            p[f"l{l}_{name}_b"] = jnp.zeros((HIDDEN,), jnp.float32)
        p[f"l{l}_ln1_g"] = jnp.ones((HIDDEN,), jnp.float32)
        p[f"l{l}_ln1_b"] = jnp.zeros((HIDDEN,), jnp.float32)
        p[f"l{l}_ff1_w"] = nrm((HIDDEN, FFN))
        p[f"l{l}_ff1_b"] = jnp.zeros((FFN,), jnp.float32)
        p[f"l{l}_ff2_w"] = nrm((FFN, HIDDEN))
        p[f"l{l}_ff2_b"] = jnp.zeros((HIDDEN,), jnp.float32)
        p[f"l{l}_ln2_g"] = jnp.ones((HIDDEN,), jnp.float32)
        p[f"l{l}_ln2_b"] = jnp.zeros((HIDDEN,), jnp.float32)
    # X-Vector head
    p["proj_w"] = nrm((HIDDEN, TDNN_LAYERS[0][0]))
    p["proj_b"] = jnp.zeros((TDNN_LAYERS[0][0],), jnp.float32)
    for i, (cin, cout, k, _d) in enumerate(TDNN_LAYERS):
        p[f"tdnn{i}_w"] = nrm((k * cin, cout))
        p[f"tdnn{i}_b"] = jnp.zeros((cout,), jnp.float32)
    p["fe_w"] = nrm((2 * TDNN_LAYERS[-1][1], XVEC_DIM))
    p["fe_b"] = jnp.zeros((XVEC_DIM,), jnp.float32)
    return p


# ======================= forward pass =======================

def wavlm_forward(params, sig, lens=None, pool=True, sample_rate=SAMPLE_RATE):
    """sig: (B, T_samples) f32. Returns (B, XVEC_DIM) if pool else (B, T, HIDDEN)."""
    # torchaudio resample: identity when sample_rate == SAMPLE_RATE.
    # TODO(synk): general sinc-interpolation resampling not implemented.
    assert sample_rate == SAMPLE_RATE
    # TODO(synk): attention_mask built from `lens` is not supported (lens=None only).
    assert lens is None

    B = sig.shape[0]
    parallel = pltpu.CompilerParams(dimension_semantics=("parallel",))
    x = sig[:, :, None].astype(jnp.float32)                         # (B, T, 1)

    # --- conv0 + GroupNorm(groups=C) + GELU (fused) ---
    _cin, cout0, k0c, s0c = CONV_LAYERS[0]
    xp, w_eff, n_taps, cin_eff, t_out = _pack_strided_conv(
        x, params["conv0_w"], k0c, s0c)
    x = pl.pallas_call(
        functools.partial(_conv0_gn_kernel, taps=tuple(range(n_taps)),
                          cin=cin_eff, t_out=t_out, eps=LN_EPS),
        out_shape=jax.ShapeDtypeStruct((B, t_out, cout0), jnp.float32),
        grid=(B,),
        in_specs=[pl.BlockSpec((1,) + xp.shape[1:], lambda b: (b, 0, 0)),
                  pl.BlockSpec(w_eff.shape, lambda b: (0, 0)),
                  pl.BlockSpec((1, cout0), lambda b: (0, 0)),
                  pl.BlockSpec((1, cout0), lambda b: (0, 0)),
                  pl.BlockSpec((1, cout0), lambda b: (0, 0))],
        out_specs=pl.BlockSpec((1, t_out, cout0), lambda b: (b, 0, 0)),
        compiler_params=parallel,
    )(xp, w_eff, params["conv0_b"][None, :],
      params["gn_g"][None, :], params["gn_b"][None, :])

    # --- conv1 + GELU + feature-projection LN + Linear (fused) ---
    _cin, cout1, k1c, s1c = CONV_LAYERS[1]
    xp, w_eff, n_taps, cin_eff, T = _pack_strided_conv(
        x, params["conv1_w"], k1c, s1c)
    h = pl.pallas_call(
        functools.partial(_conv1_fp_kernel, taps=tuple(range(n_taps)),
                          cin=cin_eff, t_out=T, eps=LN_EPS),
        out_shape=jax.ShapeDtypeStruct((B, T, HIDDEN), jnp.float32),
        grid=(B,),
        in_specs=[pl.BlockSpec((1,) + xp.shape[1:], lambda b: (b, 0, 0)),
                  pl.BlockSpec(w_eff.shape, lambda b: (0, 0)),
                  pl.BlockSpec((1, cout1), lambda b: (0, 0)),
                  pl.BlockSpec((1, cout1), lambda b: (0, 0)),
                  pl.BlockSpec((1, cout1), lambda b: (0, 0)),
                  pl.BlockSpec((cout1, HIDDEN), lambda b: (0, 0)),
                  pl.BlockSpec((1, HIDDEN), lambda b: (0, 0))],
        out_specs=pl.BlockSpec((1, T, HIDDEN), lambda b: (b, 0, 0)),
        compiler_params=parallel,
    )(xp, w_eff, params["conv1_b"][None, :],
      params["fp_ln_g"][None, :], params["fp_ln_b"][None, :],
      params["fp_w"].astype(jnp.bfloat16), params["fp_b"][None, :])

    # --- positional conv + GELU + residual + encoder LayerNorm (fused) ---
    pad = POS_CONV_K // 2
    hp = jnp.pad(h, ((0, 0), (pad, pad), (0, 0)))
    h = pl.pallas_call(
        functools.partial(_posconv_ln_kernel, taps=tuple(range(POS_CONV_K)),
                          cin=HIDDEN, t_out=T, pad=pad, eps=LN_EPS),
        out_shape=jax.ShapeDtypeStruct((B, T, HIDDEN), jnp.float32),
        grid=(B,),
        in_specs=[pl.BlockSpec((1, T + 2 * pad, HIDDEN), lambda b: (b, 0, 0)),
                  pl.BlockSpec((POS_CONV_K * HIDDEN, HIDDEN), lambda b: (0, 0)),
                  pl.BlockSpec((1, HIDDEN), lambda b: (0, 0)),
                  pl.BlockSpec((1, HIDDEN), lambda b: (0, 0)),
                  pl.BlockSpec((1, HIDDEN), lambda b: (0, 0))],
        out_specs=pl.BlockSpec((1, T, HIDDEN), lambda b: (b, 0, 0)),
        compiler_params=parallel,
    )(hp, params["pos_w"], params["pos_b"][None, :],
      params["enc_ln_g"][None, :], params["enc_ln_b"][None, :])

    # --- whole transformer encoder in one pallas_call ---
    wqkv = jnp.stack([jnp.concatenate([params[f"l{l}_q_w"], params[f"l{l}_k_w"],
                                       params[f"l{l}_v_w"]], axis=1)
                      for l in range(LAYERS)])                       # (L, H, 3H)
    bqkv = jnp.stack([jnp.concatenate([params[f"l{l}_q_b"], params[f"l{l}_k_b"],
                                       params[f"l{l}_v_b"]])[None, :]
                      for l in range(LAYERS)])                       # (L, 1, 3H)
    wo = jnp.stack([params[f"l{l}_o_w"] for l in range(LAYERS)])
    bo = jnp.stack([params[f"l{l}_o_b"][None, :] for l in range(LAYERS)])
    g1 = jnp.stack([params[f"l{l}_ln1_g"][None, :] for l in range(LAYERS)])
    b1 = jnp.stack([params[f"l{l}_ln1_b"][None, :] for l in range(LAYERS)])
    wf1 = jnp.stack([params[f"l{l}_ff1_w"] for l in range(LAYERS)])
    bf1 = jnp.stack([params[f"l{l}_ff1_b"][None, :] for l in range(LAYERS)])
    wf2 = jnp.stack([params[f"l{l}_ff2_w"] for l in range(LAYERS)])
    bf2 = jnp.stack([params[f"l{l}_ff2_b"][None, :] for l in range(LAYERS)])
    g2 = jnp.stack([params[f"l{l}_ln2_g"][None, :] for l in range(LAYERS)])
    b2 = jnp.stack([params[f"l{l}_ln2_b"][None, :] for l in range(LAYERS)])

    def _w3(shape):
        return pl.BlockSpec((1,) + shape, lambda b, l: (l, 0, 0))

    h = pl.pallas_call(
        functools.partial(_encoder_kernel, heads=HEADS, head_dim=HEAD_DIM,
                          eps=LN_EPS),
        out_shape=jax.ShapeDtypeStruct((B, T, HIDDEN), jnp.float32),
        grid=(B, LAYERS),
        in_specs=[pl.BlockSpec((1, T, HIDDEN), lambda b, l: (b, 0, 0)),
                  _w3((HIDDEN, 3 * HIDDEN)), _w3((1, 3 * HIDDEN)),
                  _w3((HIDDEN, HIDDEN)), _w3((1, HIDDEN)),
                  _w3((1, HIDDEN)), _w3((1, HIDDEN)),
                  _w3((HIDDEN, FFN)), _w3((1, FFN)),
                  _w3((FFN, HIDDEN)), _w3((1, HIDDEN)),
                  _w3((1, HIDDEN)), _w3((1, HIDDEN))],
        out_specs=pl.BlockSpec((1, T, HIDDEN), lambda b, l: (b, 0, 0)),
        scratch_shapes=[pltpu.VMEM((T, HIDDEN), jnp.float32)],
        compiler_params=pltpu.CompilerParams(
            dimension_semantics=("parallel", "arbitrary")),
    )(h, wqkv.astype(jnp.bfloat16), bqkv, wo, bo, g1, b1,
      wf1.astype(jnp.bfloat16), bf1, wf2.astype(jnp.bfloat16), bf2, g2, b2)

    if not pool:
        return h                                    # last hidden state (B, T, H)

    # --- X-Vector head: projector + TDNN + stat pooling + embedding (fused) ---
    c = TDNN_LAYERS[0][1]
    k0, d0 = TDNN_LAYERS[0][2], TDNN_LAYERS[0][3]
    k1, d1 = TDNN_LAYERS[1][2], TDNN_LAYERS[1][3]
    emb = pl.pallas_call(
        functools.partial(_xvector_kernel, t=T, c=c, k0=k0, d0=d0, k1=k1, d1=d1),
        out_shape=jax.ShapeDtypeStruct((B, 1, XVEC_DIM), jnp.float32),
        grid=(B,),
        in_specs=[pl.BlockSpec((1, T, HIDDEN), lambda b: (b, 0, 0)),
                  pl.BlockSpec((HIDDEN, c), lambda b: (0, 0)),
                  pl.BlockSpec((1, c), lambda b: (0, 0)),
                  pl.BlockSpec((k0 * c, c), lambda b: (0, 0)),
                  pl.BlockSpec((1, c), lambda b: (0, 0)),
                  pl.BlockSpec((k1 * c, c), lambda b: (0, 0)),
                  pl.BlockSpec((1, c), lambda b: (0, 0)),
                  pl.BlockSpec((2 * c, XVEC_DIM), lambda b: (0, 0)),
                  pl.BlockSpec((1, XVEC_DIM), lambda b: (0, 0))],
        out_specs=pl.BlockSpec((1, 1, XVEC_DIM), lambda b: (b, 0, 0)),
        compiler_params=parallel,
    )(h, params["proj_w"].astype(jnp.bfloat16), params["proj_b"][None, :],
      params["tdnn0_w"], params["tdnn0_b"][None, :],
      params["tdnn1_w"], params["tdnn1_b"][None, :],
      params["fe_w"], params["fe_b"][None, :])
    return emb.reshape(B, XVEC_DIM)


if __name__ == "__main__":
    key = jax.random.PRNGKey(0)
    pkey, skey = jax.random.split(key)
    params = init_params(pkey)

    B, T_AUDIO = 2, 400
    sig = jax.random.normal(skey, (B, T_AUDIO), dtype=jnp.float32)

    fwd = jax.jit(lambda p, s: wavlm_forward(p, s, lens=None, pool=True))
    embs = fwd(params, sig)
    jax.block_until_ready(embs)
    assert embs.shape == (B, XVEC_DIM)
    print("KERNEL_OK")
</pallas_src>

<mosaic_0001>
module attributes {stable_mosaic.version = 11 : i64} {
  func.func @_conv0_gn_kernel(%arg0: i32, %arg1: memref<1x80x5xf32, #tpu.memory_space<vmem>>, %arg2: memref<10x32xf32, #tpu.memory_space<vmem>>, %arg3: memref<1x32xf32, #tpu.memory_space<vmem>>, %arg4: memref<1x32xf32, #tpu.memory_space<vmem>>, %arg5: memref<1x32xf32, #tpu.memory_space<vmem>>, %arg6: memref<1x79x32xf32, #tpu.memory_space<vmem>>) attributes {dimension_semantics = [#tpu.dimension_semantics<parallel>], iteration_bounds = array<i64: 2>, scalar_prefetch = 0 : i64, scratch_operands = 0 : i64, tpu.core_type = #tpu.core_type<tc>, window_params = [{transform_indices = @transform_0, window_bounds = array<i64: 1, 80, 5>}, {pipeline_mode = #tpu.pipeline_mode<synchronous>, transform_indices = @transform_1, window_bounds = array<i64: 10, 32>}, {pipeline_mode = #tpu.pipeline_mode<synchronous>, transform_indices = @transform_2, window_bounds = array<i64: 1, 32>}, {pipeline_mode = #tpu.pipeline_mode<synchronous>, transform_indices = @transform_3, window_bounds = array<i64: 1, 32>}, {pipeline_mode = #tpu.pipeline_mode<synchronous>, transform_indices = @transform_4, window_bounds = array<i64: 1, 32>}, {transform_indices = @transform_5, window_bounds = array<i64: 1, 79, 32>}]} {
    %c0 = arith.constant 0 : index
    %c0_0 = arith.constant 0 : index
    %c0_1 = arith.constant 0 : index
    %0 = vector.load %arg1[%c0, %c0_0, %c0_1] : memref<1x80x5xf32, #tpu.memory_space<vmem>>, vector<1x80x5xf32>
    %1 = vector.shape_cast %0 : vector<1x80x5xf32> to vector<80x5xf32>
    %cst = arith.constant 0.000000e+00 : f32
    %2 = vector.broadcast %cst : f32 to vector<79x32xf32>
    %3 = vector.extract_strided_slice %1 {offsets = [0, 0], sizes = [79, 5], strides = [1, 1]} : vector<80x5xf32> to vector<79x5xf32>
    %c0_2 = arith.constant 0 : index
    %c0_3 = arith.constant 0 : index
    %4 = vector.load %arg2[%c0_2, %c0_3] : memref<10x32xf32, #tpu.memory_space<vmem>>, vector<5x32xf32>
    %5 = arith.truncf %3 : vector<79x5xf32> to vector<79x5xbf16>
    %6 = arith.truncf %4 : vector<5x32xf32> to vector<5x32xbf16>
    %cst_4 = arith.constant dense<0.000000e+00> : vector<79x32xf32>
    %7 = tpu.matmul %5, %6, %cst_4 {dimension_numbers = #tpu.dot_dimension_numbers<[1], [0], [0], [1], [0, 0, 1, 1], [], []>} : vector<79x5xbf16>, vector<5x32xbf16>, vector<79x32xf32> -> vector<79x32xf32>
    %8 = arith.addf %2, %7 : vector<79x32xf32>
    %9 = vector.extract_strided_slice %1 {offsets = [1, 0], sizes = [79, 5], strides = [1, 1]} : vector<80x5xf32> to vector<79x5xf32>
    %c5 = arith.constant 5 : index
    %c0_5 = arith.constant 0 : index
    %10 = vector.load %arg2[%c5, %c0_5] : memref<10x32xf32, #tpu.memory_space<vmem>>, vector<5x32xf32>
    %11 = arith.truncf %9 : vector<79x5xf32> to vector<79x5xbf16>
    %12 = arith.truncf %10 : vector<5x32xf32> to vector<5x32xbf16>
    %cst_6 = arith.constant dense<0.000000e+00> : vector<79x32xf32>
    %13 = tpu.matmul %11, %12, %cst_6 {dimension_numbers = #tpu.dot_dimension_numbers<[1], [0], [0], [1], [0, 0, 1, 1], [], []>} : vector<79x5xbf16>, vector<5x32xbf16>, vector<79x32xf32> -> vector<79x32xf32>
    %14 = arith.addf %8, %13 : vector<79x32xf32>
    %c0_7 = arith.constant 0 : index
    %c0_8 = arith.constant 0 : index
    %15 = vector.load %arg3[%c0_7, %c0_8] : memref<1x32xf32, #tpu.memory_space<vmem>>, vector<1x32xf32>
    %16 = vector.broadcast %15 : vector<1x32xf32> to vector<79x32xf32>
    %17 = arith.addf %14, %16 : vector<79x32xf32>
    %cst_9 = arith.constant dense<0.000000e+00> : vector<32xf32>
    %18 = vector.multi_reduction <add>, %17, %cst_9 [0] : vector<79x32xf32> to vector<32xf32>
    %19 = vector.shape_cast %18 : vector<32xf32> to vector<1x32xf32>
    %cst_10 = arith.constant 7.900000e+01 : f32
    %20 = vector.broadcast %cst_10 : f32 to vector<1x32xf32>
    %21 = arith.divf %19, %20 : vector<1x32xf32>
    %22 = vector.broadcast %21 : vector<1x32xf32> to vector<79x32xf32>
    %23 = arith.subf %17, %22 : vector<79x32xf32>
    %24 = arith.mulf %23, %23 : vector<79x32xf32>
    %cst_11 = arith.constant dense<0.000000e+00> : vector<32xf32>
    %25 = vector.multi_reduction <add>, %24, %cst_11 [0] : vector<79x32xf32> to vector<32xf32>
    %26 = vector.shape_cast %25 : vector<32xf32> to vector<1x32xf32>
    %cst_12 = arith.constant 7.900000e+01 : f32
    %27 = vector.broadcast %cst_12 : f32 to vector<1x32xf32>
    %28 = arith.divf %26, %27 : vector<1x32xf32>
    %29 = vector.broadcast %21 : vector<1x32xf32> to vector<79x32xf32>
    %30 = arith.subf %17, %29 : vector<79x32xf32>
    %cst_13 = arith.constant 9.99999974E-6 : f32
    %31 = vector.broadcast %cst_13 : f32 to vector<1x32xf32>
    %32 = arith.addf %28, %31 : vector<1x32xf32>
    %33 = math.rsqrt %32 : vector<1x32xf32>
    %34 = vector.broadcast %33 : vector<1x32xf32> to vector<79x32xf32>
    %35 = arith.mulf %30, %34 : vector<79x32xf32>
    %c0_14 = arith.constant 0 : index
    %c0_15 = arith.constant 0 : index
    %36 = vector.load %arg4[%c0_14, %c0_15] : memref<1x32xf32, #tpu.memory_space<vmem>>, vector<1x32xf32>
    %37 = vector.broadcast %36 : vector<1x32xf32> to vector<79x32xf32>
    %38 = arith.mulf %35, %37 : vector<79x32xf32>
    %c0_16 = arith.constant 0 : index
    %c0_17 = arith.constant 0 : index
    %39 = vector.load %arg5[%c0_16, %c0_17] : memref<1x32xf32, #tpu.memory_space<vmem>>, vector<1x32xf32>
    %40 = vector.broadcast %39 : vector<1x32xf32> to vector<79x32xf32>
    %41 = arith.addf %38, %40 : vector<79x32xf32>
    %42 = arith.mulf %41, %41 : vector<79x32xf32>
    %43 = arith.mulf %41, %42 : vector<79x32xf32>
    %cst_18 = arith.constant 4.471500e-02 : f32
    %44 = vector.broadcast %cst_18 : f32 to vector<79x32xf32>
    %45 = arith.mulf %44, %43 : vector<79x32xf32>
    %46 = arith.addf %41, %45 : vector<79x32xf32>
    %cst_19 = arith.constant 0.797884583 : f32
    %47 = vector.broadcast %cst_19 : f32 to vector<79x32xf32>
    %48 = arith.mulf %47, %46 : vector<79x32xf32>
    %49 = math.tanh %48 : vector<79x32xf32>
    %cst_20 = arith.constant 1.000000e+00 : f32
    %50 = vector.broadcast %cst_20 : f32 to vector<79x32xf32>
    %51 = arith.addf %50, %49 : vector<79x32xf32>
    %cst_21 = arith.constant 5.000000e-01 : f32
    %52 = vector.broadcast %cst_21 : f32 to vector<79x32xf32>
    %53 = arith.mulf %52, %51 : vector<79x32xf32>
    %54 = arith.mulf %41, %53 : vector<79x32xf32>
    %c0_22 = arith.constant 0 : index
    %c0_23 = arith.constant 0 : index
    %c0_24 = arith.constant 0 : index
    %55 = vector.load %arg6[%c0_22, %c0_23, %c0_24] : memref<1x79x32xf32, #tpu.memory_space<vmem>>, vector<1x79x32xf32>
    %56 = vector.shape_cast %55 : vector<1x79x32xf32> to vector<79x32xf32>
    %57 = vector.shape_cast %54 : vector<79x32xf32> to vector<1x79x32xf32>
    tpu.vector_store %arg6[%c0_22, %c0_23, %c0_24], %57 {strides = array<i32>} : memref<1x79x32xf32, #tpu.memory_space<vmem>>, vector<1x79x32xf32>,
    return
  }
  func.func @transform_0(%arg0: i32) -> (i32, i32, i32) {
    %c0_i32 = arith.constant 0 : i32
    %c0_i32_0 = arith.constant 0 : i32
    %c0_i32_1 = arith.constant 0 : i32
    return %arg0, %c0_i32, %c0_i32_0 : i32, i32, i32
  }
  func.func @transform_1(%arg0: i32) -> (i32, i32) {
    %c0_i32 = arith.constant 0 : i32
    %c0_i32_0 = arith.constant 0 : i32
    %c0_i32_1 = arith.constant 0 : i32
    return %c0_i32, %c0_i32_0 : i32, i32
  }
  func.func @transform_2(%arg0: i32) -> (i32, i32) {
    %c0_i32 = arith.constant 0 : i32
    %c0_i32_0 = arith.constant 0 : i32
    %c0_i32_1 = arith.constant 0 : i32
    return %c0_i32, %c0_i32_0 : i32, i32
  }
  func.func @transform_3(%arg0: i32) -> (i32, i32) {
    %c0_i32 = arith.constant 0 : i32
    %c0_i32_0 = arith.constant 0 : i32
    %c0_i32_1 = arith.constant 0 : i32
    return %c0_i32, %c0_i32_0 : i32, i32
  }
  func.func @transform_4(%arg0: i32) -> (i32, i32) {
    %c0_i32 = arith.constant 0 : i32
    %c0_i32_0 = arith.constant 0 : i32
    %c0_i32_1 = arith.constant 0 : i32
    return %c0_i32, %c0_i32_0 : i32, i32
  }
  func.func @transform_5(%arg0: i32) -> (i32, i32, i32) {
    %c0_i32 = arith.constant 0 : i32
    %c0_i32_0 = arith.constant 0 : i32
    %c0_i32_1 = arith.constant 0 : i32
    return %arg0, %c0_i32, %c0_i32_0 : i32, i32, i32
  }
}

module attributes {stable_mosaic.version = 11 : i64} {
  func.func @_conv1_fp_kernel(%arg0: i32, %arg1: memref<1x40x64xf32, #tpu.memory_space<vmem>>, %arg2: memref<128x32xf32, #tpu.memory_space<vmem>>, %arg3: memref<1x32xf32, #tpu.memory_space<vmem>>, %arg4: memref<1x32xf32, #tpu.memory_space<vmem>>, %arg5: memref<1x32xf32, #tpu.memory_space<vmem>>, %arg6: memref<32x32xbf16, #tpu.memory_space<vmem>>, %arg7: memref<1x32xf32, #tpu.memory_space<vmem>>, %arg8: memref<1x39x32xf32, #tpu.memory_space<vmem>>) attributes {dimension_semantics = [#tpu.dimension_semantics<parallel>], iteration_bounds = array<i64: 2>, scalar_prefetch = 0 : i64, scratch_operands = 0 : i64, tpu.core_type = #tpu.core_type<tc>, window_params = [{transform_indices = @transform_0, window_bounds = array<i64: 1, 40, 64>}, {pipeline_mode = #tpu.pipeline_mode<synchronous>, transform_indices = @transform_1, window_bounds = array<i64: 128, 32>}, {pipeline_mode = #tpu.pipeline_mode<synchronous>, transform_indices = @transform_2, window_bounds = array<i64: 1, 32>}, {pipeline_mode = #tpu.pipeline_mode<synchronous>, transform_indices = @transform_3, window_bounds = array<i64: 1, 32>}, {pipeline_mode = #tpu.pipeline_mode<synchronous>, transform_indices = @transform_4, window_bounds = array<i64: 1, 32>}, {pipeline_mode = #tpu.pipeline_mode<synchronous>, transform_indices = @transform_5, window_bounds = array<i64: 32, 32>}, {pipeline_mode = #tpu.pipeline_mode<synchronous>, transform_indices = @transform_6, window_bounds = array<i64: 1, 32>}, {transform_indices = @transform_7, window_bounds = array<i64: 1, 39, 32>}]} {
    %c0 = arith.constant 0 : index
    %c0_0 = arith.constant 0 : index
    %c0_1 = arith.constant 0 : index
    %0 = vector.load %arg1[%c0, %c0_0, %c0_1] : memref<1x40x64xf32, #tpu.memory_space<vmem>>, vector<1x40x64xf32>
    %1 = vector.shape_cast %0 : vector<1x40x64xf32> to vector<40x64xf32>
    %cst = arith.constant 0.000000e+00 : f32
    %2 = vector.broadcast %cst : f32 to vector<39x32xf32>
    %3 = vector.extract_strided_slice %1 {offsets = [0, 0], sizes = [39, 64], strides = [1, 1]} : vector<40x64xf32> to vector<39x64xf32>
    %c0_2 = arith.constant 0 : index
    %c0_3 = arith.constant 0 : index
    %4 = vector.load %arg2[%c0_2, %c0_3] : memref<128x32xf32, #tpu.memory_space<vmem>>, vector<64x32xf32>
    %5 = arith.truncf %3 : vector<39x64xf32> to vector<39x64xbf16>
    %6 = arith.truncf %4 : vector<64x32xf32> to vector<64x32xbf16>
    %cst_4 = arith.constant dense<0.000000e+00> : vector<39x32xf32>
    %7 = tpu.matmul %5, %6, %cst_4 {dimension_numbers = #tpu.dot_dimension_numbers<[1], [0], [0], [1], [0, 0, 1, 1], [], []>} : vector<39x64xbf16>, vector<64x32xbf16>, vector<39x32xf32> -> vector<39x32xf32>
    %8 = arith.addf %2, %7 : vector<39x32xf32>
    %9 = vector.extract_strided_slice %1 {offsets = [1, 0], sizes = [39, 64], strides = [1, 1]} : vector<40x64xf32> to vector<39x64xf32>
    %c64 = arith.constant 64 : index
    %c0_5 = arith.constant 0 : index
    %10 = vector.load %arg2[%c64, %c0_5] : memref<128x32xf32, #tpu.memory_space<vmem>>, vector<64x32xf32>
    %11 = arith.truncf %9 : vector<39x64xf32> to vector<39x64xbf16>
    %12 = arith.truncf %10 : vector<64x32xf32> to vector<64x32xbf16>
    %cst_6 = arith.constant dense<0.000000e+00> : vector<39x32xf32>
    %13 = tpu.matmul %11, %12, %cst_6 {dimension_numbers = #tpu.dot_dimension_numbers<[1], [0], [0], [1], [0, 0, 1, 1], [], []>} : vector<39x64xbf16>, vector<64x32xbf16>, vector<39x32xf32> -> vector<39x32xf32>
    %14 = arith.addf %8, %13 : vector<39x32xf32>
    %c0_7 = arith.constant 0 : index
    %c0_8 = arith.constant 0 : index
    %15 = vector.load %arg3[%c0_7, %c0_8] : memref<1x32xf32, #tpu.memory_space<vmem>>, vector<1x32xf32>
    %16 = vector.broadcast %15 : vector<1x32xf32> to vector<39x32xf32>
    %17 = arith.addf %14, %16 : vector<39x32xf32>
    %18 = arith.mulf %17, %17 : vector<39x32xf32>
    %19 = arith.mulf %17, %18 : vector<39x32xf32>
    %cst_9 = arith.constant 4.471500e-02 : f32
    %20 = vector.broadcast %cst_9 : f32 to vector<39x32xf32>
    %21 = arith.mulf %20, %19 : vector<39x32xf32>
    %22 = arith.addf %17, %21 : vector<39x32xf32>
    %cst_10 = arith.constant 0.797884583 : f32
    %23 = vector.broadcast %cst_10 : f32 to vector<39x32xf32>
    %24 = arith.mulf %23, %22 : vector<39x32xf32>
    %25 = math.tanh %24 : vector<39x32xf32>
    %cst_11 = arith.constant 1.000000e+00 : f32
    %26 = vector.broadcast %cst_11 : f32 to vector<39x32xf32>
    %27 = arith.addf %26, %25 : vector<39x32xf32>
    %cst_12 = arith.constant 5.000000e-01 : f32
    %28 = vector.broadcast %cst_12 : f32 to vector<39x32xf32>
    %29 = arith.mulf %28, %27 : vector<39x32xf32>
    %30 = arith.mulf %17, %29 : vector<39x32xf32>
    %c0_13 = arith.constant 0 : index
    %c0_14 = arith.constant 0 : index
    %31 = vector.load %arg4[%c0_13, %c0_14] : memref<1x32xf32, #tpu.memory_space<vmem>>, vector<1x32xf32>
    %c0_15 = arith.constant 0 : index
    %c0_16 = arith.constant 0 : index
    %32 = vector.load %arg5[%c0_15, %c0_16] : memref<1x32xf32, #tpu.memory_space<vmem>>, vector<1x32xf32>
    %cst_17 = arith.constant dense<0.000000e+00> : vector<39xf32>
    %33 = vector.multi_reduction <add>, %30, %cst_17 [1] : vector<39x32xf32> to vector<39xf32>
    %34 = vector.shape_cast %33 : vector<39xf32> to vector<39x1xf32>
    %cst_18 = arith.constant 3.200000e+01 : f32
    %35 = vector.broadcast %cst_18 : f32 to vector<39x1xf32>
    %36 = arith.divf %34, %35 : vector<39x1xf32>
    %37 = vector.broadcast %36 : vector<39x1xf32> to vector<39x32xf32>
    %38 = arith.subf %30, %37 : vector<39x32xf32>
    %39 = arith.mulf %38, %38 : vector<39x32xf32>
    %cst_19 = arith.constant dense<0.000000e+00> : vector<39xf32>
    %40 = vector.multi_reduction <add>, %39, %cst_19 [1] : vector<39x32xf32> to vector<39xf32>
    %41 = vector.shape_cast %40 : vector<39xf32> to vector<39x1xf32>
    %cst_20 = arith.constant 3.200000e+01 : f32
    %42 = vector.broadcast %cst_20 : f32 to vector<39x1xf32>
    %43 = arith.divf %41, %42 : vector<39x1xf32>
    %44 = vector.broadcast %36 : vector<39x1xf32> to vector<39x32xf32>
    %45 = arith.subf %30, %44 : vector<39x32xf32>
    %cst_21 = arith.constant 9.99999974E-6 : f32
    %46 = vector.broadcast %cst_21 : f32 to vector<39x1xf32>
    %47 = arith.addf %43, %46 : vector<39x1xf32>
    %48 = math.rsqrt %47 : vector<39x1xf32>
    %49 = vector.broadcast %48 : vector<39x1xf32> to vector<39x32xf32>
    %50 = arith.mulf %45, %49 : vector<39x32xf32>
    %51 = vector.broadcast %31 : vector<1x32xf32> to vector<39x32xf32>
    %52 = arith.mulf %50, %51 : vector<39x32xf32>
    %53 = vector.broadcast %32 : vector<1x32xf32> to vector<39x32xf32>
    %54 = arith.addf %52, %53 : vector<39x32xf32>
    %c0_22 = arith.constant 0 : index
    %c0_23 = arith.constant 0 : index
    %55 = vector.load %arg6[%c0_22, %c0_23] : memref<32x32xbf16, #tpu.memory_space<vmem>>, vector<32x32xbf16>
    %56 = arith.truncf %54 : vector<39x32xf32> to vector<39x32xbf16>
    %cst_24 = arith.constant dense<0.000000e+00> : vector<39x32xf32>
    %57 = tpu.matmul %56, %55, %cst_24 {dimension_numbers = #tpu.dot_dimension_numbers<[1], [0], [0], [1], [0, 0, 1, 1], [], []>} : vector<39x32xbf16>, vector<32x32xbf16>, vector<39x32xf32> -> vector<39x32xf32>
    %c0_25 = arith.constant 0 : index
    %c0_26 = arith.constant 0 : index
    %58 = vector.load %arg7[%c0_25, %c0_26] : memref<1x32xf32, #tpu.memory_space<vmem>>, vector<1x32xf32>
    %59 = vector.broadcast %58 : vector<1x32xf32> to vector<39x32xf32>
    %60 = arith.addf %57, %59 : vector<39x32xf32>
    %c0_27 = arith.constant 0 : index
    %c0_28 = arith.constant 0 : index
    %c0_29 = arith.constant 0 : index
    %61 = vector.load %arg8[%c0_27, %c0_28, %c0_29] : memref<1x39x32xf32, #tpu.memory_space<vmem>>, vector<1x39x32xf32>
    %62 = vector.shape_cast %61 : vector<1x39x32xf32> to vector<39x32xf32>
    %63 = vector.shape_cast %60 : vector<39x32xf32> to vector<1x39x32xf32>
    tpu.vector_store %arg8[%c0_27, %c0_28, %c0_29], %63 {strides = array<i32>} : memref<1x39x32xf32, #tpu.memory_space<vmem>>, vector<1x39x32xf32>,
    return
  }
  func.func @transform_0(%arg0: i32) -> (i32, i32, i32) {
    %c0_i32 = arith.constant 0 : i32
    %c0_i32_0 = arith.constant 0 : i32
    %c0_i32_1 = arith.constant 0 : i32
    return %arg0, %c0_i32, %c0_i32_0 : i32, i32, i32
  }
  func.func @transform_1(%arg0: i32) -> (i32, i32) {
    %c0_i32 = arith.constant 0 : i32
    %c0_i32_0 = arith.constant 0 : i32
    %c0_i32_1 = arith.constant 0 : i32
    return %c0_i32, %c0_i32_0 : i32, i32
  }
  func.func @transform_2(%arg0: i32) -> (i32, i32) {
    %c0_i32 = arith.constant 0 : i32
    %c0_i32_0 = arith.constant 0 : i32
    %c0_i32_1 = arith.constant 0 : i32
    return %c0_i32, %c0_i32_0 : i32, i32
  }
  func.func @transform_3(%arg0: i32) -> (i32, i32) {
    %c0_i32 = arith.constant 0 : i32
    %c0_i32_0 = arith.constant 0 : i32
    %c0_i32_1 = arith.constant 0 : i32
    return %c0_i32, %c0_i32_0 : i32, i32
  }
  func.func @transform_4(%arg0: i32) -> (i32, i32) {
    %c0_i32 = arith.constant 0 : i32
    %c0_i32_0 = arith.constant 0 : i32
    %c0_i32_1 = arith.constant 0 : i32
    return %c0_i32, %c0_i32_0 : i32, i32
  }
  func.func @transform_5(%arg0: i32) -> (i32, i32) {
    %c0_i32 = arith.constant 0 : i32
    %c0_i32_0 = arith.constant 0 : i32
    %c0_i32_1 = arith.constant 0 : i32
    return %c0_i32, %c0_i32_0 : i32, i32
  }
  func.func @transform_6(%arg0: i32) -> (i32, i32) {
    %c0_i32 = arith.constant 0 : i32
    %c0_i32_0 = arith.constant 0 : i32
    %c0_i32_1 = arith.constant 0 : i32
    return %c0_i32, %c0_i32_0 : i32, i32
  }
  func.func @transform_7(%arg0: i32) -> (i32, i32, i32) {
    %c0_i32 = arith.constant 0 : i32
    %c0_i32_0 = arith.constant 0 : i32
    %c0_i32_1 = arith.constant 0 : i32
    return %arg0, %c0_i32, %c0_i32_0 : i32, i32, i32
  }
}

module attributes {stable_mosaic.version = 11 : i64} {
  func.func @_posconv_ln_kernel(%arg0: i32, %arg1: memref<1x43x32xf32, #tpu.memory_space<vmem>>, %arg2: memref<160x32xf32, #tpu.memory_space<vmem>>, %arg3: memref<1x32xf32, #tpu.memory_space<vmem>>, %arg4: memref<1x32xf32, #tpu.memory_space<vmem>>, %arg5: memref<1x32xf32, #tpu.memory_space<vmem>>, %arg6: memref<1x39x32xf32, #tpu.memory_space<vmem>>) attributes {dimension_semantics = [#tpu.dimension_semantics<parallel>], iteration_bounds = array<i64: 2>, scalar_prefetch = 0 : i64, scratch_operands = 0 : i64, tpu.core_type = #tpu.core_type<tc>, window_params = [{transform_indices = @transform_0, window_bounds = array<i64: 1, 43, 32>}, {pipeline_mode = #tpu.pipeline_mode<synchronous>, transform_indices = @transform_1, window_bounds = array<i64: 160, 32>}, {pipeline_mode = #tpu.pipeline_mode<synchronous>, transform_indices = @transform_2, window_bounds = array<i64: 1, 32>}, {pipeline_mode = #tpu.pipeline_mode<synchronous>, transform_indices = @transform_3, window_bounds = array<i64: 1, 32>}, {pipeline_mode = #tpu.pipeline_mode<synchronous>, transform_indices = @transform_4, window_bounds = array<i64: 1, 32>}, {transform_indices = @transform_5, window_bounds = array<i64: 1, 39, 32>}]} {
    %c0 = arith.constant 0 : index
    %c0_0 = arith.constant 0 : index
    %c0_1 = arith.constant 0 : index
    %0 = vector.load %arg1[%c0, %c0_0, %c0_1] : memref<1x43x32xf32, #tpu.memory_space<vmem>>, vector<1x43x32xf32>
    %1 = vector.shape_cast %0 : vector<1x43x32xf32> to vector<43x32xf32>
    %cst = arith.constant 0.000000e+00 : f32
    %2 = vector.broadcast %cst : f32 to vector<39x32xf32>
    %3 = vector.extract_strided_slice %1 {offsets = [0, 0], sizes = [39, 32], strides = [1, 1]} : vector<43x32xf32> to vector<39x32xf32>
    %c0_2 = arith.constant 0 : index
    %c0_3 = arith.constant 0 : index
    %4 = vector.load %arg2[%c0_2, %c0_3] : memref<160x32xf32, #tpu.memory_space<vmem>>, vector<32x32xf32>
    %5 = arith.truncf %3 : vector<39x32xf32> to vector<39x32xbf16>
    %6 = arith.truncf %4 : vector<32x32xf32> to vector<32x32xbf16>
    %cst_4 = arith.constant dense<0.000000e+00> : vector<39x32xf32>
    %7 = tpu.matmul %5, %6, %cst_4 {dimension_numbers = #tpu.dot_dimension_numbers<[1], [0], [0], [1], [0, 0, 1, 1], [], []>} : vector<39x32xbf16>, vector<32x32xbf16>, vector<39x32xf32> -> vector<39x32xf32>
    %8 = arith.addf %2, %7 : vector<39x32xf32>
    %9 = vector.extract_strided_slice %1 {offsets = [1, 0], sizes = [39, 32], strides = [1, 1]} : vector<43x32xf32> to vector<39x32xf32>
    %c32 = arith.constant 32 : index
    %c0_5 = arith.constant 0 : index
    %10 = vector.load %arg2[%c32, %c0_5] : memref<160x32xf32, #tpu.memory_space<vmem>>, vector<32x32xf32>
    %11 = arith.truncf %9 : vector<39x32xf32> to vector<39x32xbf16>
    %12 = arith.truncf %10 : vector<32x32xf32> to vector<32x32xbf16>
    %cst_6 = arith.constant dense<0.000000e+00> : vector<39x32xf32>
    %13 = tpu.matmul %11, %12, %cst_6 {dimension_numbers = #tpu.dot_dimension_numbers<[1], [0], [0], [1], [0, 0, 1, 1], [], []>} : vector<39x32xbf16>, vector<32x32xbf16>, vector<39x32xf32> -> vector<39x32xf32>
    %14 = arith.addf %8, %13 : vector<39x32xf32>
    %15 = vector.extract_strided_slice %1 {offsets = [2, 0], sizes = [39, 32], strides = [1, 1]} : vector<43x32xf32> to vector<39x32xf32>
    %c64 = arith.constant 64 : index
    %c0_7 = arith.constant 0 : index
    %16 = vector.load %arg2[%c64, %c0_7] : memref<160x32xf32, #tpu.memory_space<vmem>>, vector<32x32xf32>
    %17 = arith.truncf %15 : vector<39x32xf32> to vector<39x32xbf16>
    %18 = arith.truncf %16 : vector<32x32xf32> to vector<32x32xbf16>
    %cst_8 = arith.constant dense<0.000000e+00> : vector<39x32xf32>
    %19 = tpu.matmul %17, %18, %cst_8 {dimension_numbers = #tpu.dot_dimension_numbers<[1], [0], [0], [1], [0, 0, 1, 1], [], []>} : vector<39x32xbf16>, vector<32x32xbf16>, vector<39x32xf32> -> vector<39x32xf32>
    %20 = arith.addf %14, %19 : vector<39x32xf32>
    %21 = vector.extract_strided_slice %1 {offsets = [3, 0], sizes = [39, 32], strides = [1, 1]} : vector<43x32xf32> to vector<39x32xf32>
    %c96 = arith.constant 96 : index
    %c0_9 = arith.constant 0 : index
    %22 = vector.load %arg2[%c96, %c0_9] : memref<160x32xf32, #tpu.memory_space<vmem>>, vector<32x32xf32>
    %23 = arith.truncf %21 : vector<39x32xf32> to vector<39x32xbf16>
    %24 = arith.truncf %22 : vector<32x32xf32> to vector<32x32xbf16>
    %cst_10 = arith.constant dense<0.000000e+00> : vector<39x32xf32>
    %25 = tpu.matmul %23, %24, %cst_10 {dimension_numbers = #tpu.dot_dimension_numbers<[1], [0], [0], [1], [0, 0, 1, 1], [], []>} : vector<39x32xbf16>, vector<32x32xbf16>, vector<39x32xf32> -> vector<39x32xf32>
    %26 = arith.addf %20, %25 : vector<39x32xf32>
    %27 = vector.extract_strided_slice %1 {offsets = [4, 0], sizes = [39, 32], strides = [1, 1]} : vector<43x32xf32> to vector<39x32xf32>
    %c128 = arith.constant 128 : index
    %c0_11 = arith.constant 0 : index
    %28 = vector.load %arg2[%c128, %c0_11] : memref<160x32xf32, #tpu.memory_space<vmem>>, vector<32x32xf32>
    %29 = arith.truncf %27 : vector<39x32xf32> to vector<39x32xbf16>
    %30 = arith.truncf %28 : vector<32x32xf32> to vector<32x32xbf16>
    %cst_12 = arith.constant dense<0.000000e+00> : vector<39x32xf32>
    %31 = tpu.matmul %29, %30, %cst_12 {dimension_numbers = #tpu.dot_dimension_numbers<[1], [0], [0], [1], [0, 0, 1, 1], [], []>} : vector<39x32xbf16>, vector<32x32xbf16>, vector<39x32xf32> -> vector<39x32xf32>
    %32 = arith.addf %26, %31 : vector<39x32xf32>
    %c0_13 = arith.constant 0 : index
    %c0_14 = arith.constant 0 : index
    %33 = vector.load %arg3[%c0_13, %c0_14] : memref<1x32xf32, #tpu.memory_space<vmem>>, vector<1x32xf32>
    %34 = vector.broadcast %33 : vector<1x32xf32> to vector<39x32xf32>
    %35 = arith.addf %32, %34 : vector<39x32xf32>
    %36 = arith.mulf %35, %35 : vector<39x32xf32>
    %37 = arith.mulf %35, %36 : vector<39x32xf32>
    %cst_15 = arith.constant 4.471500e-02 : f32
    %38 = vector.broadcast %cst_15 : f32 to vector<39x32xf32>
    %39 = arith.mulf %38, %37 : vector<39x32xf32>
    %40 = arith.addf %35, %39 : vector<39x32xf32>
    %cst_16 = arith.constant 0.797884583 : f32
    %41 = vector.broadcast %cst_16 : f32 to vector<39x32xf32>
    %42 = arith.mulf %41, %40 : vector<39x32xf32>
    %43 = math.tanh %42 : vector<39x32xf32>
    %cst_17 = arith.constant 1.000000e+00 : f32
    %44 = vector.broadcast %cst_17 : f32 to vector<39x32xf32>
    %45 = arith.addf %44, %43 : vector<39x32xf32>
    %cst_18 = arith.constant 5.000000e-01 : f32
    %46 = vector.broadcast %cst_18 : f32 to vector<39x32xf32>
    %47 = arith.mulf %46, %45 : vector<39x32xf32>
    %48 = arith.mulf %35, %47 : vector<39x32xf32>
    %49 = vector.extract_strided_slice %1 {offsets = [2, 0], sizes = [39, 32], strides = [1, 1]} : vector<43x32xf32> to vector<39x32xf32>
    %50 = arith.addf %48, %49 : vector<39x32xf32>
    %c0_19 = arith.constant 0 : index
    %c0_20 = arith.constant 0 : index
    %51 = vector.load %arg4[%c0_19, %c0_20] : memref<1x32xf32, #tpu.memory_space<vmem>>, vector<1x32xf32>
    %c0_21 = arith.constant 0 : index
    %c0_22 = arith.constant 0 : index
    %52 = vector.load %arg5[%c0_21, %c0_22] : memref<1x32xf32, #tpu.memory_space<vmem>>, vector<1x32xf32>
    %cst_23 = arith.constant dense<0.000000e+00> : vector<39xf32>
    %53 = vector.multi_reduction <add>, %50, %cst_23 [1] : vector<39x32xf32> to vector<39xf32>
    %54 = vector.shape_cast %53 : vector<39xf32> to vector<39x1xf32>
    %cst_24 = arith.constant 3.200000e+01 : f32
    %55 = vector.broadcast %cst_24 : f32 to vector<39x1xf32>
    %56 = arith.divf %54, %55 : vector<39x1xf32>
    %57 = vector.broadcast %56 : vector<39x1xf32> to vector<39x32xf32>
    %58 = arith.subf %50, %57 : vector<39x32xf32>
    %59 = arith.mulf %58, %58 : vector<39x32xf32>
    %cst_25 = arith.constant dense<0.000000e+00> : vector<39xf32>
    %60 = vector.multi_reduction <add>, %59, %cst_25 [1] : vector<39x32xf32> to vector<39xf32>
    %61 = vector.shape_cast %60 : vector<39xf32> to vector<39x1xf32>
    %cst_26 = arith.constant 3.200000e+01 : f32
    %62 = vector.broadcast %cst_26 : f32 to vector<39x1xf32>
    %63 = arith.divf %61, %62 : vector<39x1xf32>
    %64 = vector.broadcast %56 : vector<39x1xf32> to vector<39x32xf32>
    %65 = arith.subf %50, %64 : vector<39x32xf32>
    %cst_27 = arith.constant 9.99999974E-6 : f32
    %66 = vector.broadcast %cst_27 : f32 to vector<39x1xf32>
    %67 = arith.addf %63, %66 : vector<39x1xf32>
    %68 = math.rsqrt %67 : vector<39x1xf32>
    %69 = vector.broadcast %68 : vector<39x1xf32> to vector<39x32xf32>
    %70 = arith.mulf %65, %69 : vector<39x32xf32>
    %71 = vector.broadcast %51 : vector<1x32xf32> to vector<39x32xf32>
    %72 = arith.mulf %70, %71 : vector<39x32xf32>
    %73 = vector.broadcast %52 : vector<1x32xf32> to vector<39x32xf32>
    %74 = arith.addf %72, %73 : vector<39x32xf32>
    %c0_28 = arith.constant 0 : index
    %c0_29 = arith.constant 0 : index
    %c0_30 = arith.constant 0 : index
    %75 = vector.load %arg6[%c0_28, %c0_29, %c0_30] : memref<1x39x32xf32, #tpu.memory_space<vmem>>, vector<1x39x32xf32>
    %76 = vector.shape_cast %75 : vector<1x39x32xf32> to vector<39x32xf32>
    %77 = vector.shape_cast %74 : vector<39x32xf32> to vector<1x39x32xf32>
    tpu.vector_store %arg6[%c0_28, %c0_29, %c0_30], %77 {strides = array<i32>} : memref<1x39x32xf32, #tpu.memory_space<vmem>>, vector<1x39x32xf32>,
    return
  }
  func.func @transform_0(%arg0: i32) -> (i32, i32, i32) {
    %c0_i32 = arith.constant 0 : i32
    %c0_i32_0 = arith.constant 0 : i32
    %c0_i32_1 = arith.constant 0 : i32
    return %arg0, %c0_i32, %c0_i32_0 : i32, i32, i32
  }
  func.func @transform_1(%arg0: i32) -> (i32, i32) {
    %c0_i32 = arith.constant 0 : i32
    %c0_i32_0 = arith.constant 0 : i32
    %c0_i32_1 = arith.constant 0 : i32
    return %c0_i32, %c0_i32_0 : i32, i32
  }
  func.func @transform_2(%arg0: i32) -> (i32, i32) {
    %c0_i32 = arith.constant 0 : i32
    %c0_i32_0 = arith.constant 0 : i32
    %c0_i32_1 = arith.constant 0 : i32
    return %c0_i32, %c0_i32_0 : i32, i32
  }
  func.func @transform_3(%arg0: i32) -> (i32, i32) {
    %c0_i32 = arith.constant 0 : i32
    %c0_i32_0 = arith.constant 0 : i32
    %c0_i32_1 = arith.constant 0 : i32
    return %c0_i32, %c0_i32_0 : i32, i32
  }
  func.func @transform_4(%arg0: i32) -> (i32, i32) {
    %c0_i32 = arith.constant 0 : i32
    %c0_i32_0 = arith.constant 0 : i32
    %c0_i32_1 = arith.constant 0 : i32
    return %c0_i32, %c0_i32_0 : i32, i32
  }
  func.func @transform_5(%arg0: i32) -> (i32, i32, i32) {
    %c0_i32 = arith.constant 0 : i32
    %c0_i32_0 = arith.constant 0 : i32
    %c0_i32_1 = arith.constant 0 : i32
    return %arg0, %c0_i32, %c0_i32_0 : i32, i32, i32
  }
}

module attributes {stable_mosaic.version = 11 : i64} {
  func.func @_encoder_kernel(%arg0: i32, %arg1: i32, %arg2: memref<1x39x32xf32, #tpu.memory_space<vmem>>, %arg3: memref<1x32x96xbf16, #tpu.memory_space<vmem>>, %arg4: memref<1x1x96xf32, #tpu.memory_space<vmem>>, %arg5: memref<1x32x32xf32, #tpu.memory_space<vmem>>, %arg6: memref<1x1x32xf32, #tpu.memory_space<vmem>>, %arg7: memref<1x1x32xf32, #tpu.memory_space<vmem>>, %arg8: memref<1x1x32xf32, #tpu.memory_space<vmem>>, %arg9: memref<1x32x64xbf16, #tpu.memory_space<vmem>>, %arg10: memref<1x1x64xf32, #tpu.memory_space<vmem>>, %arg11: memref<1x64x32xbf16, #tpu.memory_space<vmem>>, %arg12: memref<1x1x32xf32, #tpu.memory_space<vmem>>, %arg13: memref<1x1x32xf32, #tpu.memory_space<vmem>>, %arg14: memref<1x1x32xf32, #tpu.memory_space<vmem>>, %arg15: memref<1x39x32xf32, #tpu.memory_space<vmem>>, %arg16: memref<39x32xf32, #tpu.memory_space<vmem>>) attributes {dimension_semantics = [#tpu.dimension_semantics<parallel>, #tpu.dimension_semantics<arbitrary>], iteration_bounds = array<i64: 2, 2>, scalar_prefetch = 0 : i64, scratch_operands = 1 : i64, tpu.core_type = #tpu.core_type<tc>, window_params = [{transform_indices = @transform_0, window_bounds = array<i64: 1, 39, 32>}, {transform_indices = @transform_1, window_bounds = array<i64: 1, 32, 96>}, {transform_indices = @transform_2, window_bounds = array<i64: 1, 1, 96>}, {transform_indices = @transform_3, window_bounds = array<i64: 1, 32, 32>}, {transform_indices = @transform_4, window_bounds = array<i64: 1, 1, 32>}, {transform_indices = @transform_5, window_bounds = array<i64: 1, 1, 32>}, {transform_indices = @transform_6, window_bounds = array<i64: 1, 1, 32>}, {transform_indices = @transform_7, window_bounds = array<i64: 1, 32, 64>}, {transform_indices = @transform_8, window_bounds = array<i64: 1, 1, 64>}, {transform_indices = @transform_9, window_bounds = array<i64: 1, 64, 32>}, {transform_indices = @transform_10, window_bounds = array<i64: 1, 1, 32>}, {transform_indices = @transform_11, window_bounds = array<i64: 1, 1, 32>}, {transform_indices = @transform_12, window_bounds = array<i64: 1, 1, 32>}, {transform_indices = @transform_13, window_bounds = array<i64: 1, 39, 32>}]} {
    %c0_i32 = arith.constant 0 : i32
    %0 = arith.cmpi eq, %arg1, %c0_i32 : i32
    %1 = arith.extui %0 : i1 to i32
    %c0_i32_0 = arith.constant 0 : i32
    %2 = arith.cmpi ne, %1, %c0_i32_0 : i32
    scf.if %2 {
      %c0_90 = arith.constant 0 : index
      %c0_91 = arith.constant 0 : index
      %c0_92 = arith.constant 0 : index
      %212 = vector.load %arg2[%c0_90, %c0_91, %c0_92] : memref<1x39x32xf32, #tpu.memory_space<vmem>>, vector<1x39x32xf32>
      %213 = vector.shape_cast %212 : vector<1x39x32xf32> to vector<39x32xf32>
      %c0_93 = arith.constant 0 : index
      %c0_94 = arith.constant 0 : index
      %214 = vector.load %arg16[%c0_93, %c0_94] : memref<39x32xf32, #tpu.memory_space<vmem>>, vector<39x32xf32>
      tpu.vector_store %arg16[%c0_93, %c0_94], %213 {strides = array<i32>} : memref<39x32xf32, #tpu.memory_space<vmem>>, vector<39x32xf32>,
    } else {
    }
    %c0 = arith.constant 0 : index
    %c0_1 = arith.constant 0 : index
    %3 = vector.load %arg16[%c0, %c0_1] : memref<39x32xf32, #tpu.memory_space<vmem>>, vector<39x32xf32>
    %c0_2 = arith.constant 0 : index
    %c0_3 = arith.constant 0 : index
    %c0_4 = arith.constant 0 : index
    %4 = vector.load %arg3[%c0_2, %c0_3, %c0_4] : memref<1x32x96xbf16, #tpu.memory_space<vmem>>, vector<1x32x96xbf16>
    %5 = vector.shape_cast %4 : vector<1x32x96xbf16> to vector<32x96xbf16>
    %6 = arith.truncf %3 : vector<39x32xf32> to vector<39x32xbf16>
    %cst = arith.constant dense<0.000000e+00> : vector<39x96xf32>
    %7 = tpu.matmul %6, %5, %cst {dimension_numbers = #tpu.dot_dimension_numbers<[1], [0], [0], [1], [0, 0, 1, 1], [], []>} : vector<39x32xbf16>, vector<32x96xbf16>, vector<39x96xf32> -> vector<39x96xf32>
    %c0_5 = arith.constant 0 : index
    %c0_6 = arith.constant 0 : index
    %c0_7 = arith.constant 0 : index
    %8 = vector.load %arg4[%c0_5, %c0_6, %c0_7] : memref<1x1x96xf32, #tpu.memory_space<vmem>>, vector<1x1x96xf32>
    %9 = vector.shape_cast %8 : vector<1x1x96xf32> to vector<1x96xf32>
    %10 = vector.broadcast %9 : vector<1x96xf32> to vector<39x96xf32>
    %11 = arith.addf %7, %10 : vector<39x96xf32>
    %cst_8 = arith.constant 0.000000e+00 : f32
    %12 = vector.broadcast %cst_8 : f32 to vector<39x32xf32>
    %13 = vector.extract_strided_slice %11 {offsets = [0, 0], sizes = [39, 8], strides = [1, 1]} : vector<39x96xf32> to vector<39x8xf32>
    %cst_9 = arith.constant 0.353553385 : f32
    %14 = vector.broadcast %cst_9 : f32 to vector<39x8xf32>
    %15 = arith.mulf %13, %14 : vector<39x8xf32>
    %16 = vector.extract_strided_slice %11 {offsets = [0, 32], sizes = [39, 8], strides = [1, 1]} : vector<39x96xf32> to vector<39x8xf32>
    %17 = vector.extract_strided_slice %11 {offsets = [0, 64], sizes = [39, 8], strides = [1, 1]} : vector<39x96xf32> to vector<39x8xf32>
    %18 = arith.truncf %15 : vector<39x8xf32> to vector<39x8xbf16>
    %19 = arith.truncf %16 : vector<39x8xf32> to vector<39x8xbf16>
    %cst_10 = arith.constant dense<0.000000e+00> : vector<39x39xf32>
    %20 = tpu.matmul %18, %19, %cst_10 {dimension_numbers = #tpu.dot_dimension_numbers<[1], [1], [0], [0], [0, 0, 1, 0], [], []>} : vector<39x8xbf16>, vector<39x8xbf16>, vector<39x39xf32> -> vector<39x39xf32>
    %cst_11 = arith.constant dense<0xFF800000> : vector<39xf32>
    %21 = vector.multi_reduction <maximumf>, %20, %cst_11 [1] : vector<39x39xf32> to vector<39xf32>
    %22 = vector.shape_cast %21 : vector<39xf32> to vector<39x1xf32>
    %23 = vector.broadcast %22 : vector<39x1xf32> to vector<39x39xf32>
    %24 = arith.subf %20, %23 : vector<39x39xf32>
    %25 = math.exp %24 : vector<39x39xf32>
    %cst_12 = arith.constant dense<0.000000e+00> : vector<39xf32>
    %26 = vector.multi_reduction <add>, %25, %cst_12 [1] : vector<39x39xf32> to vector<39xf32>
    %27 = vector.shape_cast %26 : vector<39xf32> to vector<39x1xf32>
    %28 = tpu.reciprocal %27 {approx = true} : vector<39x1xf32> -> vector<39x1xf32>
    %29 = vector.broadcast %28 : vector<39x1xf32> to vector<39x39xf32>
    %30 = arith.mulf %25, %29 : vector<39x39xf32>
    %31 = arith.truncf %30 : vector<39x39xf32> to vector<39x39xbf16>
    %32 = arith.truncf %17 : vector<39x8xf32> to vector<39x8xbf16>
    %cst_13 = arith.constant dense<0.000000e+00> : vector<39x8xf32>
    %33 = tpu.matmul %31, %32, %cst_13 {dimension_numbers = #tpu.dot_dimension_numbers<[1], [0], [0], [1], [0, 0, 1, 1], [], []>} : vector<39x39xbf16>, vector<39x8xbf16>, vector<39x8xf32> -> vector<39x8xf32>
    %c0_14 = arith.constant 0 : index
    %c0_15 = arith.constant 0 : index
    %c0_16 = arith.constant 0 : index
    %34 = vector.load %arg5[%c0_14, %c0_15, %c0_16] : memref<1x32x32xf32, #tpu.memory_space<vmem>>, vector<1x8x32xf32>
    %35 = vector.shape_cast %34 : vector<1x8x32xf32> to vector<8x32xf32>
    %36 = arith.truncf %33 : vector<39x8xf32> to vector<39x8xbf16>
    %37 = arith.truncf %35 : vector<8x32xf32> to vector<8x32xbf16>
    %cst_17 = arith.constant dense<0.000000e+00> : vector<39x32xf32>
    %38 = tpu.matmul %36, %37, %cst_17 {dimension_numbers = #tpu.dot_dimension_numbers<[1], [0], [0], [1], [0, 0, 1, 1], [], []>} : vector<39x8xbf16>, vector<8x32xbf16>, vector<39x32xf32> -> vector<39x32xf32>
    %39 = arith.addf %12, %38 : vector<39x32xf32>
    %40 = vector.extract_strided_slice %11 {offsets = [0, 8], sizes = [39, 8], strides = [1, 1]} : vector<39x96xf32> to vector<39x8xf32>
    %cst_18 = arith.constant 0.353553385 : f32
    %41 = vector.broadcast %cst_18 : f32 to vector<39x8xf32>
    %42 = arith.mulf %40, %41 : vector<39x8xf32>
    %43 = vector.extract_strided_slice %11 {offsets = [0, 40], sizes = [39, 8], strides = [1, 1]} : vector<39x96xf32> to vector<39x8xf32>
    %44 = vector.extract_strided_slice %11 {offsets = [0, 72], sizes = [39, 8], strides = [1, 1]} : vector<39x96xf32> to vector<39x8xf32>
    %45 = arith.truncf %42 : vector<39x8xf32> to vector<39x8xbf16>
    %46 = arith.truncf %43 : vector<39x8xf32> to vector<39x8xbf16>
    %cst_19 = arith.constant dense<0.000000e+00> : vector<39x39xf32>
    %47 = tpu.matmul %45, %46, %cst_19 {dimension_numbers = #tpu.dot_dimension_numbers<[1], [1], [0], [0], [0, 0, 1, 0], [], []>} : vector<39x8xbf16>, vector<39x8xbf16>, vector<39x39xf32> -> vector<39x39xf32>
    %cst_20 = arith.constant dense<0xFF800000> : vector<39xf32>
    %48 = vector.multi_reduction <maximumf>, %47, %cst_20 [1] : vector<39x39xf32> to vector<39xf32>
    %49 = vector.shape_cast %48 : vector<39xf32> to vector<39x1xf32>
    %50 = vector.broadcast %49 : vector<39x1xf32> to vector<39x39xf32>
    %51 = arith.subf %47, %50 : vector<39x39xf32>
    %52 = math.exp %51 : vector<39x39xf32>
    %cst_21 = arith.constant dense<0.000000e+00> : vector<39xf32>
    %53 = vector.multi_reduction <add>, %52, %cst_21 [1] : vector<39x39xf32> to vector<39xf32>
    %54 = vector.shape_cast %53 : vector<39xf32> to vector<39x1xf32>
    %55 = tpu.reciprocal %54 {approx = true} : vector<39x1xf32> -> vector<39x1xf32>
    %56 = vector.broadcast %55 : vector<39x1xf32> to vector<39x39xf32>
    %57 = arith.mulf %52, %56 : vector<39x39xf32>
    %58 = arith.truncf %57 : vector<39x39xf32> to vector<39x39xbf16>
    %59 = arith.truncf %44 : vector<39x8xf32> to vector<39x8xbf16>
    %cst_22 = arith.constant dense<0.000000e+00> : vector<39x8xf32>
    %60 = tpu.matmul %58, %59, %cst_22 {dimension_numbers = #tpu.dot_dimension_numbers<[1], [0], [0], [1], [0, 0, 1, 1], [], []>} : vector<39x39xbf16>, vector<39x8xbf16>, vector<39x8xf32> -> vector<39x8xf32>
    %c0_23 = arith.constant 0 : index
    %c8 = arith.constant 8 : index
    %c0_24 = arith.constant 0 : index
    %61 = vector.load %arg5[%c0_23, %c8, %c0_24] : memref<1x32x32xf32, #tpu.memory_space<vmem>>, vector<1x8x32xf32>
    %62 = vector.shape_cast %61 : vector<1x8x32xf32> to vector<8x32xf32>
    %63 = arith.truncf %60 : vector<39x8xf32> to vector<39x8xbf16>
    %64 = arith.truncf %62 : vector<8x32xf32> to vector<8x32xbf16>
    %cst_25 = arith.constant dense<0.000000e+00> : vector<39x32xf32>
    %65 = tpu.matmul %63, %64, %cst_25 {dimension_numbers = #tpu.dot_dimension_numbers<[1], [0], [0], [1], [0, 0, 1, 1], [], []>} : vector<39x8xbf16>, vector<8x32xbf16>, vector<39x32xf32> -> vector<39x32xf32>
    %66 = arith.addf %39, %65 : vector<39x32xf32>
    %67 = vector.extract_strided_slice %11 {offsets = [0, 16], sizes = [39, 8], strides = [1, 1]} : vector<39x96xf32> to vector<39x8xf32>
    %cst_26 = arith.constant 0.353553385 : f32
    %68 = vector.broadcast %cst_26 : f32 to vector<39x8xf32>
    %69 = arith.mulf %67, %68 : vector<39x8xf32>
    %70 = vector.extract_strided_slice %11 {offsets = [0, 48], sizes = [39, 8], strides = [1, 1]} : vector<39x96xf32> to vector<39x8xf32>
    %71 = vector.extract_strided_slice %11 {offsets = [0, 80], sizes = [39, 8], strides = [1, 1]} : vector<39x96xf32> to vector<39x8xf32>
    %72 = arith.truncf %69 : vector<39x8xf32> to vector<39x8xbf16>
    %73 = arith.truncf %70 : vector<39x8xf32> to vector<39x8xbf16>
    %cst_27 = arith.constant dense<0.000000e+00> : vector<39x39xf32>
    %74 = tpu.matmul %72, %73, %cst_27 {dimension_numbers = #tpu.dot_dimension_numbers<[1], [1], [0], [0], [0, 0, 1, 0], [], []>} : vector<39x8xbf16>, vector<39x8xbf16>, vector<39x39xf32> -> vector<39x39xf32>
    %cst_28 = arith.constant dense<0xFF800000> : vector<39xf32>
    %75 = vector.multi_reduction <maximumf>, %74, %cst_28 [1] : vector<39x39xf32> to vector<39xf32>
    %76 = vector.shape_cast %75 : vector<39xf32> to vector<39x1xf32>
    %77 = vector.broadcast %76 : vector<39x1xf32> to vector<39x39xf32>
    %78 = arith.subf %74, %77 : vector<39x39xf32>
    %79 = math.exp %78 : vector<39x39xf32>
    %cst_29 = arith.constant dense<0.000000e+00> : vector<39xf32>
    %80 = vector.multi_reduction <add>, %79, %cst_29 [1] : vector<39x39xf32> to vector<39xf32>
    %81 = vector.shape_cast %80 : vector<39xf32> to vector<39x1xf32>
    %82 = tpu.reciprocal %81 {approx = true} : vector<39x1xf32> -> vector<39x1xf32>
    %83 = vector.broadcast %82 : vector<39x1xf32> to vector<39x39xf32>
    %84 = arith.mulf %79, %83 : vector<39x39xf32>
    %85 = arith.truncf %84 : vector<39x39xf32> to vector<39x39xbf16>
    %86 = arith.truncf %71 : vector<39x8xf32> to vector<39x8xbf16>
    %cst_30 = arith.constant dense<0.000000e+00> : vector<39x8xf32>
    %87 = tpu.matmul %85, %86, %cst_30 {dimension_numbers = #tpu.dot_dimension_numbers<[1], [0], [0], [1], [0, 0, 1, 1], [], []>} : vector<39x39xbf16>, vector<39x8xbf16>, vector<39x8xf32> -> vector<39x8xf32>
    %c0_31 = arith.constant 0 : index
    %c16 = arith.constant 16 : index
    %c0_32 = arith.constant 0 : index
    %88 = vector.load %arg5[%c0_31, %c16, %c0_32] : memref<1x32x32xf32, #tpu.memory_space<vmem>>, vector<1x8x32xf32>
    %89 = vector.shape_cast %88 : vector<1x8x32xf32> to vector<8x32xf32>
    %90 = arith.truncf %87 : vector<39x8xf32> to vector<39x8xbf16>
    %91 = arith.truncf %89 : vector<8x32xf32> to vector<8x32xbf16>
    %cst_33 = arith.constant dense<0.000000e+00> : vector<39x32xf32>
    %92 = tpu.matmul %90, %91, %cst_33 {dimension_numbers = #tpu.dot_dimension_numbers<[1], [0], [0], [1], [0, 0, 1, 1], [], []>} : vector<39x8xbf16>, vector<8x32xbf16>, vector<39x32xf32> -> vector<39x32xf32>
    %93 = arith.addf %66, %92 : vector<39x32xf32>
    %94 = vector.extract_strided_slice %11 {offsets = [0, 24], sizes = [39, 8], strides = [1, 1]} : vector<39x96xf32> to vector<39x8xf32>
    %cst_34 = arith.constant 0.353553385 : f32
    %95 = vector.broadcast %cst_34 : f32 to vector<39x8xf32>
    %96 = arith.mulf %94, %95 : vector<39x8xf32>
    %97 = vector.extract_strided_slice %11 {offsets = [0, 56], sizes = [39, 8], strides = [1, 1]} : vector<39x96xf32> to vector<39x8xf32>
    %98 = vector.extract_strided_slice %11 {offsets = [0, 88], sizes = [39, 8], strides = [1, 1]} : vector<39x96xf32> to vector<39x8xf32>
    %99 = arith.truncf %96 : vector<39x8xf32> to vector<39x8xbf16>
    %100 = arith.truncf %97 : vector<39x8xf32> to vector<39x8xbf16>
    %cst_35 = arith.constant dense<0.000000e+00> : vector<39x39xf32>
    %101 = tpu.matmul %99, %100, %cst_35 {dimension_numbers = #tpu.dot_dimension_numbers<[1], [1], [0], [0], [0, 0, 1, 0], [], []>} : vector<39x8xbf16>, vector<39x8xbf16>, vector<39x39xf32> -> vector<39x39xf32>
    %cst_36 = arith.constant dense<0xFF800000> : vector<39xf32>
    %102 = vector.multi_reduction <maximumf>, %101, %cst_36 [1] : vector<39x39xf32> to vector<39xf32>
    %103 = vector.shape_cast %102 : vector<39xf32> to vector<39x1xf32>
    %104 = vector.broadcast %103 : vector<39x1xf32> to vector<39x39xf32>
    %105 = arith.subf %101, %104 : vector<39x39xf32>
    %106 = math.exp %105 : vector<39x39xf32>
    %cst_37 = arith.constant dense<0.000000e+00> : vector<39xf32>
    %107 = vector.multi_reduction <add>, %106, %cst_37 [1] : vector<39x39xf32> to vector<39xf32>
    %108 = vector.shape_cast %107 : vector<39xf32> to vector<39x1xf32>
    %109 = tpu.reciprocal %108 {approx = true} : vector<39x1xf32> -> vector<39x1xf32>
    %110 = vector.broadcast %109 : vector<39x1xf32> to vector<39x39xf32>
    %111 = arith.mulf %106, %110 : vector<39x39xf32>
    %112 = arith.truncf %111 : vector<39x39xf32> to vector<39x39xbf16>
    %113 = arith.truncf %98 : vector<39x8xf32> to vector<39x8xbf16>
    %cst_38 = arith.constant dense<0.000000e+00> : vector<39x8xf32>
    %114 = tpu.matmul %112, %113, %cst_38 {dimension_numbers = #tpu.dot_dimension_numbers<[1], [0], [0], [1], [0, 0, 1, 1], [], []>} : vector<39x39xbf16>, vector<39x8xbf16>, vector<39x8xf32> -> vector<39x8xf32>
    %c0_39 = arith.constant 0 : index
    %c24 = arith.constant 24 : index
    %c0_40 = arith.constant 0 : index
    %115 = vector.load %arg5[%c0_39, %c24, %c0_40] : memref<1x32x32xf32, #tpu.memory_space<vmem>>, vector<1x8x32xf32>
    %116 = vector.shape_cast %115 : vector<1x8x32xf32> to vector<8x32xf32>
    %117 = arith.truncf %114 : vector<39x8xf32> to vector<39x8xbf16>
    %118 = arith.truncf %116 : vector<8x32xf32> to vector<8x32xbf16>
    %cst_41 = arith.constant dense<0.000000e+00> : vector<39x32xf32>
    %119 = tpu.matmul %117, %118, %cst_41 {dimension_numbers = #tpu.dot_dimension_numbers<[1], [0], [0], [1], [0, 0, 1, 1], [], []>} : vector<39x8xbf16>, vector<8x32xbf16>, vector<39x32xf32> -> vector<39x32xf32>
    %120 = arith.addf %93, %119 : vector<39x32xf32>
    %c0_42 = arith.constant 0 : index
    %c0_43 = arith.constant 0 : index
    %c0_44 = arith.constant 0 : index
    %121 = vector.load %arg6[%c0_42, %c0_43, %c0_44] : memref<1x1x32xf32, #tpu.memory_space<vmem>>, vector<1x1x32xf32>
    %122 = vector.shape_cast %121 : vector<1x1x32xf32> to vector<1x32xf32>
    %123 = vector.broadcast %122 : vector<1x32xf32> to vector<39x32xf32>
    %124 = arith.addf %120, %123 : vector<39x32xf32>
    %125 = arith.addf %124, %3 : vector<39x32xf32>
    %c0_45 = arith.constant 0 : index
    %c0_46 = arith.constant 0 : index
    %c0_47 = arith.constant 0 : index
    %126 = vector.load %arg7[%c0_45, %c0_46, %c0_47] : memref<1x1x32xf32, #tpu.memory_space<vmem>>, vector<1x1x32xf32>
    %127 = vector.shape_cast %126 : vector<1x1x32xf32> to vector<1x32xf32>
    %c0_48 = arith.constant 0 : index
    %c0_49 = arith.constant 0 : index
    %c0_50 = arith.constant 0 : index
    %128 = vector.load %arg8[%c0_48, %c0_49, %c0_50] : memref<1x1x32xf32, #tpu.memory_space<vmem>>, vector<1x1x32xf32>
    %129 = vector.shape_cast %128 : vector<1x1x32xf32> to vector<1x32xf32>
    %cst_51 = arith.constant dense<0.000000e+00> : vector<39xf32>
    %130 = vector.multi_reduction <add>, %125, %cst_51 [1] : vector<39x32xf32> to vector<39xf32>
    %131 = vector.shape_cast %130 : vector<39xf32> to vector<39x1xf32>
    %cst_52 = arith.constant 3.200000e+01 : f32
    %132 = vector.broadcast %cst_52 : f32 to vector<39x1xf32>
    %133 = arith.divf %131, %132 : vector<39x1xf32>
    %134 = vector.broadcast %133 : vector<39x1xf32> to vector<39x32xf32>
    %135 = arith.subf %125, %134 : vector<39x32xf32>
    %136 = arith.mulf %135, %135 : vector<39x32xf32>
    %cst_53 = arith.constant dense<0.000000e+00> : vector<39xf32>
    %137 = vector.multi_reduction <add>, %136, %cst_53 [1] : vector<39x32xf32> to vector<39xf32>
    %138 = vector.shape_cast %137 : vector<39xf32> to vector<39x1xf32>
    %cst_54 = arith.constant 3.200000e+01 : f32
    %139 = vector.broadcast %cst_54 : f32 to vector<39x1xf32>
    %140 = arith.divf %138, %139 : vector<39x1xf32>
    %141 = vector.broadcast %133 : vector<39x1xf32> to vector<39x32xf32>
    %142 = arith.subf %125, %141 : vector<39x32xf32>
    %cst_55 = arith.constant 9.99999974E-6 : f32
    %143 = vector.broadcast %cst_55 : f32 to vector<39x1xf32>
    %144 = arith.addf %140, %143 : vector<39x1xf32>
    %145 = math.rsqrt %144 : vector<39x1xf32>
    %146 = vector.broadcast %145 : vector<39x1xf32> to vector<39x32xf32>
    %147 = arith.mulf %142, %146 : vector<39x32xf32>
    %148 = vector.broadcast %127 : vector<1x32xf32> to vector<39x32xf32>
    %149 = arith.mulf %147, %148 : vector<39x32xf32>
    %150 = vector.broadcast %129 : vector<1x32xf32> to vector<39x32xf32>
    %151 = arith.addf %149, %150 : vector<39x32xf32>
    %c0_56 = arith.constant 0 : index
    %c0_57 = arith.constant 0 : index
    %c0_58 = arith.constant 0 : index
    %152 = vector.load %arg9[%c0_56, %c0_57, %c0_58] : memref<1x32x64xbf16, #tpu.memory_space<vmem>>, vector<1x32x64xbf16>
    %153 = vector.shape_cast %152 : vector<1x32x64xbf16> to vector<32x64xbf16>
    %154 = arith.truncf %151 : vector<39x32xf32> to vector<39x32xbf16>
    %cst_59 = arith.constant dense<0.000000e+00> : vector<39x64xf32>
    %155 = tpu.matmul %154, %153, %cst_59 {dimension_numbers = #tpu.dot_dimension_numbers<[1], [0], [0], [1], [0, 0, 1, 1], [], []>} : vector<39x32xbf16>, vector<32x64xbf16>, vector<39x64xf32> -> vector<39x64xf32>
    %c0_60 = arith.constant 0 : index
    %c0_61 = arith.constant 0 : index
    %c0_62 = arith.constant 0 : index
    %156 = vector.load %arg10[%c0_60, %c0_61, %c0_62] : memref<1x1x64xf32, #tpu.memory_space<vmem>>, vector<1x1x64xf32>
    %157 = vector.shape_cast %156 : vector<1x1x64xf32> to vector<1x64xf32>
    %158 = vector.broadcast %157 : vector<1x64xf32> to vector<39x64xf32>
    %159 = arith.addf %155, %158 : vector<39x64xf32>
    %160 = arith.mulf %159, %159 : vector<39x64xf32>
    %161 = arith.mulf %159, %160 : vector<39x64xf32>
    %cst_63 = arith.constant 4.471500e-02 : f32
    %162 = vector.broadcast %cst_63 : f32 to vector<39x64xf32>
    %163 = arith.mulf %162, %161 : vector<39x64xf32>
    %164 = arith.addf %159, %163 : vector<39x64xf32>
    %cst_64 = arith.constant 0.797884583 : f32
    %165 = vector.broadcast %cst_64 : f32 to vector<39x64xf32>
    %166 = arith.mulf %165, %164 : vector<39x64xf32>
    %167 = math.tanh %166 : vector<39x64xf32>
    %cst_65 = arith.constant 1.000000e+00 : f32
    %168 = vector.broadcast %cst_65 : f32 to vector<39x64xf32>
    %169 = arith.addf %168, %167 : vector<39x64xf32>
    %cst_66 = arith.constant 5.000000e-01 : f32
    %170 = vector.broadcast %cst_66 : f32 to vector<39x64xf32>
    %171 = arith.mulf %170, %169 : vector<39x64xf32>
    %172 = arith.mulf %159, %171 : vector<39x64xf32>
    %c0_67 = arith.constant 0 : index
    %c0_68 = arith.constant 0 : index
    %c0_69 = arith.constant 0 : index
    %173 = vector.load %arg11[%c0_67, %c0_68, %c0_69] : memref<1x64x32xbf16, #tpu.memory_space<vmem>>, vector<1x64x32xbf16>
    %174 = vector.shape_cast %173 : vector<1x64x32xbf16> to vector<64x32xbf16>
    %175 = arith.truncf %172 : vector<39x64xf32> to vector<39x64xbf16>
    %cst_70 = arith.constant dense<0.000000e+00> : vector<39x32xf32>
    %176 = tpu.matmul %175, %174, %cst_70 {dimension_numbers = #tpu.dot_dimension_numbers<[1], [0], [0], [1], [0, 0, 1, 1], [], []>} : vector<39x64xbf16>, vector<64x32xbf16>, vector<39x32xf32> -> vector<39x32xf32>
    %c0_71 = arith.constant 0 : index
    %c0_72 = arith.constant 0 : index
    %c0_73 = arith.constant 0 : index
    %177 = vector.load %arg12[%c0_71, %c0_72, %c0_73] : memref<1x1x32xf32, #tpu.memory_space<vmem>>, vector<1x1x32xf32>
    %178 = vector.shape_cast %177 : vector<1x1x32xf32> to vector<1x32xf32>
    %179 = vector.broadcast %178 : vector<1x32xf32> to vector<39x32xf32>
    %180 = arith.addf %176, %179 : vector<39x32xf32>
    %181 = arith.addf %180, %151 : vector<39x32xf32>
    %c0_74 = arith.constant 0 : index
    %c0_75 = arith.constant 0 : index
    %c0_76 = arith.constant 0 : index
    %182 = vector.load %arg13[%c0_74, %c0_75, %c0_76] : memref<1x1x32xf32, #tpu.memory_space<vmem>>, vector<1x1x32xf32>
    %183 = vector.shape_cast %182 : vector<1x1x32xf32> to vector<1x32xf32>
    %c0_77 = arith.constant 0 : index
    %c0_78 = arith.constant 0 : index
    %c0_79 = arith.constant 0 : index
    %184 = vector.load %arg14[%c0_77, %c0_78, %c0_79] : memref<1x1x32xf32, #tpu.memory_space<vmem>>, vector<1x1x32xf32>
    %185 = vector.shape_cast %184 : vector<1x1x32xf32> to vector<1x32xf32>
    %cst_80 = arith.constant dense<0.000000e+00> : vector<39xf32>
    %186 = vector.multi_reduction <add>, %181, %cst_80 [1] : vector<39x32xf32> to vector<39xf32>
    %187 = vector.shape_cast %186 : vector<39xf32> to vector<39x1xf32>
    %cst_81 = arith.constant 3.200000e+01 : f32
    %188 = vector.broadcast %cst_81 : f32 to vector<39x1xf32>
    %189 = arith.divf %187, %188 : vector<39x1xf32>
    %190 = vector.broadcast %189 : vector<39x1xf32> to vector<39x32xf32>
    %191 = arith.subf %181, %190 : vector<39x32xf32>
    %192 = arith.mulf %191, %191 : vector<39x32xf32>
    %cst_82 = arith.constant dense<0.000000e+00> : vector<39xf32>
    %193 = vector.multi_reduction <add>, %192, %cst_82 [1] : vector<39x32xf32> to vector<39xf32>
    %194 = vector.shape_cast %193 : vector<39xf32> to vector<39x1xf32>
    %cst_83 = arith.constant 3.200000e+01 : f32
    %195 = vector.broadcast %cst_83 : f32 to vector<39x1xf32>
    %196 = arith.divf %194, %195 : vector<39x1xf32>
    %197 = vector.broadcast %189 : vector<39x1xf32> to vector<39x32xf32>
    %198 = arith.subf %181, %197 : vector<39x32xf32>
    %cst_84 = arith.constant 9.99999974E-6 : f32
    %199 = vector.broadcast %cst_84 : f32 to vector<39x1xf32>
    %200 = arith.addf %196, %199 : vector<39x1xf32>
    %201 = math.rsqrt %200 : vector<39x1xf32>
    %202 = vector.broadcast %201 : vector<39x1xf32> to vector<39x32xf32>
    %203 = arith.mulf %198, %202 : vector<39x32xf32>
    %204 = vector.broadcast %183 : vector<1x32xf32> to vector<39x32xf32>
    %205 = arith.mulf %203, %204 : vector<39x32xf32>
    %206 = vector.broadcast %185 : vector<1x32xf32> to vector<39x32xf32>
    %207 = arith.addf %205, %206 : vector<39x32xf32>
    %c0_85 = arith.constant 0 : index
    %c0_86 = arith.constant 0 : index
    %208 = vector.load %arg16[%c0_85, %c0_86] : memref<39x32xf32, #tpu.memory_space<vmem>>, vector<39x32xf32>
    tpu.vector_store %arg16[%c0_85, %c0_86], %207 {strides = array<i32>} : memref<39x32xf32, #tpu.memory_space<vmem>>, vector<39x32xf32>,
    %c0_87 = arith.constant 0 : index
    %c0_88 = arith.constant 0 : index
    %c0_89 = arith.constant 0 : index
    %209 = vector.load %arg15[%c0_87, %c0_88, %c0_89] : memref<1x39x32xf32, #tpu.memory_space<vmem>>, vector<1x39x32xf32>
    %210 = vector.shape_cast %209 : vector<1x39x32xf32> to vector<39x32xf32>
    %211 = vector.shape_cast %207 : vector<39x32xf32> to vector<1x39x32xf32>
    tpu.vector_store %arg15[%c0_87, %c0_88, %c0_89], %211 {strides = array<i32>} : memref<1x39x32xf32, #tpu.memory_space<vmem>>, vector<1x39x32xf32>,
    return
  }
  func.func @transform_0(%arg0: i32, %arg1: i32) -> (i32, i32, i32) {
    %c0_i32 = arith.constant 0 : i32
    %c0_i32_0 = arith.constant 0 : i32
    %c0_i32_1 = arith.constant 0 : i32
    return %arg0, %c0_i32, %c0_i32_0 : i32, i32, i32
  }
  func.func @transform_1(%arg0: i32, %arg1: i32) -> (i32, i32, i32) {
    %c0_i32 = arith.constant 0 : i32
    %c0_i32_0 = arith.constant 0 : i32
    %c0_i32_1 = arith.constant 0 : i32
    return %arg1, %c0_i32, %c0_i32_0 : i32, i32, i32
  }
  func.func @transform_2(%arg0: i32, %arg1: i32) -> (i32, i32, i32) {
    %c0_i32 = arith.constant 0 : i32
    %c0_i32_0 = arith.constant 0 : i32
    %c0_i32_1 = arith.constant 0 : i32
    return %arg1, %c0_i32, %c0_i32_0 : i32, i32, i32
  }
  func.func @transform_3(%arg0: i32, %arg1: i32) -> (i32, i32, i32) {
    %c0_i32 = arith.constant 0 : i32
    %c0_i32_0 = arith.constant 0 : i32
    %c0_i32_1 = arith.constant 0 : i32
    return %arg1, %c0_i32, %c0_i32_0 : i32, i32, i32
  }
  func.func @transform_4(%arg0: i32, %arg1: i32) -> (i32, i32, i32) {
    %c0_i32 = arith.constant 0 : i32
    %c0_i32_0 = arith.constant 0 : i32
    %c0_i32_1 = arith.constant 0 : i32
    return %arg1, %c0_i32, %c0_i32_0 : i32, i32, i32
  }
  func.func @transform_5(%arg0: i32, %arg1: i32) -> (i32, i32, i32) {
    %c0_i32 = arith.constant 0 : i32
    %c0_i32_0 = arith.constant 0 : i32
    %c0_i32_1 = arith.constant 0 : i32
    return %arg1, %c0_i32, %c0_i32_0 : i32, i32, i32
  }
  func.func @transform_6(%arg0: i32, %arg1: i32) -> (i32, i32, i32) {
    %c0_i32 = arith.constant 0 : i32
    %c0_i32_0 = arith.constant 0 : i32
    %c0_i32_1 = arith.constant 0 : i32
    return %arg1, %c0_i32, %c0_i32_0 : i32, i32, i32
  }
  func.func @transform_7(%arg0: i32, %arg1: i32) -> (i32, i32, i32) {
    %c0_i32 = arith.constant 0 : i32
    %c0_i32_0 = arith.constant 0 : i32
    %c0_i32_1 = arith.constant 0 : i32
    return %arg1, %c0_i32, %c0_i32_0 : i32, i32, i32
  }
  func.func @transform_8(%arg0: i32, %arg1: i32) -> (i32, i32, i32) {
    %c0_i32 = arith.constant 0 : i32
    %c0_i32_0 = arith.constant 0 : i32
    %c0_i32_1 = arith.constant 0 : i32
    return %arg1, %c0_i32, %c0_i32_0 : i32, i32, i32
  }
  func.func @transform_9(%arg0: i32, %arg1: i32) -> (i32, i32, i32) {
    %c0_i32 = arith.constant 0 : i32
    %c0_i32_0 = arith.constant 0 : i32
    %c0_i32_1 = arith.constant 0 : i32
    return %arg1, %c0_i32, %c0_i32_0 : i32, i32, i32
  }
  func.func @transform_10(%arg0: i32, %arg1: i32) -> (i32, i32, i32) {
    %c0_i32 = arith.constant 0 : i32
    %c0_i32_0 = arith.constant 0 : i32
    %c0_i32_1 = arith.constant 0 : i32
    return %arg1, %c0_i32, %c0_i32_0 : i32, i32, i32
  }
  func.func @transform_11(%arg0: i32, %arg1: i32) -> (i32, i32, i32) {
    %c0_i32 = arith.constant 0 : i32
    %c0_i32_0 = arith.constant 0 : i32
    %c0_i32_1 = arith.constant 0 : i32
    return %arg1, %c0_i32, %c0_i32_0 : i32, i32, i32
  }
  func.func @transform_12(%arg0: i32, %arg1: i32) -> (i32, i32, i32) {
    %c0_i32 = arith.constant 0 : i32
    %c0_i32_0 = arith.constant 0 : i32
    %c0_i32_1 = arith.constant 0 : i32
    return %arg1, %c0_i32, %c0_i32_0 : i32, i32, i32
  }
  func.func @transform_13(%arg0: i32, %arg1: i32) -> (i32, i32, i32) {
    %c0_i32 = arith.constant 0 : i32
    %c0_i32_0 = arith.constant 0 : i32
    %c0_i32_1 = arith.constant 0 : i32
    return %arg0, %c0_i32, %c0_i32_0 : i32, i32, i32
  }
}

module attributes {stable_mosaic.version = 11 : i64} {
  func.func @_xvector_kernel(%arg0: i32, %arg1: memref<1x39x32xf32, #tpu.memory_space<vmem>>, %arg2: memref<32x32xbf16, #tpu.memory_space<vmem>>, %arg3: memref<1x32xf32, #tpu.memory_space<vmem>>, %arg4: memref<160x32xf32, #tpu.memory_space<vmem>>, %arg5: memref<1x32xf32, #tpu.memory_space<vmem>>, %arg6: memref<96x32xf32, #tpu.memory_space<vmem>>, %arg7: memref<1x32xf32, #tpu.memory_space<vmem>>, %arg8: memref<64x32xf32, #tpu.memory_space<vmem>>, %arg9: memref<1x32xf32, #tpu.memory_space<vmem>>, %arg10: memref<1x1x32xf32, #tpu.memory_space<vmem>>) attributes {dimension_semantics = [#tpu.dimension_semantics<parallel>], iteration_bounds = array<i64: 2>, scalar_prefetch = 0 : i64, scratch_operands = 0 : i64, tpu.core_type = #tpu.core_type<tc>, window_params = [{transform_indices = @transform_0, window_bounds = array<i64: 1, 39, 32>}, {pipeline_mode = #tpu.pipeline_mode<synchronous>, transform_indices = @transform_1, window_bounds = array<i64: 32, 32>}, {pipeline_mode = #tpu.pipeline_mode<synchronous>, transform_indices = @transform_2, window_bounds = array<i64: 1, 32>}, {pipeline_mode = #tpu.pipeline_mode<synchronous>, transform_indices = @transform_3, window_bounds = array<i64: 160, 32>}, {pipeline_mode = #tpu.pipeline_mode<synchronous>, transform_indices = @transform_4, window_bounds = array<i64: 1, 32>}, {pipeline_mode = #tpu.pipeline_mode<synchronous>, transform_indices = @transform_5, window_bounds = array<i64: 96, 32>}, {pipeline_mode = #tpu.pipeline_mode<synchronous>, transform_indices = @transform_6, window_bounds = array<i64: 1, 32>}, {pipeline_mode = #tpu.pipeline_mode<synchronous>, transform_indices = @transform_7, window_bounds = array<i64: 64, 32>}, {pipeline_mode = #tpu.pipeline_mode<synchronous>, transform_indices = @transform_8, window_bounds = array<i64: 1, 32>}, {transform_indices = @transform_9, window_bounds = array<i64: 1, 1, 32>}]} {
    %c0 = arith.constant 0 : index
    %c0_0 = arith.constant 0 : index
    %c0_1 = arith.constant 0 : index
    %0 = vector.load %arg1[%c0, %c0_0, %c0_1] : memref<1x39x32xf32, #tpu.memory_space<vmem>>, vector<1x39x32xf32>
    %1 = vector.shape_cast %0 : vector<1x39x32xf32> to vector<39x32xf32>
    %c0_2 = arith.constant 0 : index
    %c0_3 = arith.constant 0 : index
    %2 = vector.load %arg2[%c0_2, %c0_3] : memref<32x32xbf16, #tpu.memory_space<vmem>>, vector<32x32xbf16>
    %3 = arith.truncf %1 : vector<39x32xf32> to vector<39x32xbf16>
    %cst = arith.constant dense<0.000000e+00> : vector<39x32xf32>
    %4 = tpu.matmul %3, %2, %cst {dimension_numbers = #tpu.dot_dimension_numbers<[1], [0], [0], [1], [0, 0, 1, 1], [], []>} : vector<39x32xbf16>, vector<32x32xbf16>, vector<39x32xf32> -> vector<39x32xf32>
    %c0_4 = arith.constant 0 : index
    %c0_5 = arith.constant 0 : index
    %5 = vector.load %arg3[%c0_4, %c0_5] : memref<1x32xf32, #tpu.memory_space<vmem>>, vector<1x32xf32>
    %6 = vector.broadcast %5 : vector<1x32xf32> to vector<39x32xf32>
    %7 = arith.addf %4, %6 : vector<39x32xf32>
    %cst_6 = arith.constant 0.000000e+00 : f32
    %8 = vector.broadcast %cst_6 : f32 to vector<35x32xf32>
    %9 = vector.extract_strided_slice %7 {offsets = [0, 0], sizes = [35, 32], strides = [1, 1]} : vector<39x32xf32> to vector<35x32xf32>
    %c0_7 = arith.constant 0 : index
    %c0_8 = arith.constant 0 : index
    %10 = vector.load %arg4[%c0_7, %c0_8] : memref<160x32xf32, #tpu.memory_space<vmem>>, vector<32x32xf32>
    %11 = arith.truncf %9 : vector<35x32xf32> to vector<35x32xbf16>
    %12 = arith.truncf %10 : vector<32x32xf32> to vector<32x32xbf16>
    %cst_9 = arith.constant dense<0.000000e+00> : vector<35x32xf32>
    %13 = tpu.matmul %11, %12, %cst_9 {dimension_numbers = #tpu.dot_dimension_numbers<[1], [0], [0], [1], [0, 0, 1, 1], [], []>} : vector<35x32xbf16>, vector<32x32xbf16>, vector<35x32xf32> -> vector<35x32xf32>
    %14 = arith.addf %8, %13 : vector<35x32xf32>
    %15 = vector.extract_strided_slice %7 {offsets = [1, 0], sizes = [35, 32], strides = [1, 1]} : vector<39x32xf32> to vector<35x32xf32>
    %c32 = arith.constant 32 : index
    %c0_10 = arith.constant 0 : index
    %16 = vector.load %arg4[%c32, %c0_10] : memref<160x32xf32, #tpu.memory_space<vmem>>, vector<32x32xf32>
    %17 = arith.truncf %15 : vector<35x32xf32> to vector<35x32xbf16>
    %18 = arith.truncf %16 : vector<32x32xf32> to vector<32x32xbf16>
    %cst_11 = arith.constant dense<0.000000e+00> : vector<35x32xf32>
    %19 = tpu.matmul %17, %18, %cst_11 {dimension_numbers = #tpu.dot_dimension_numbers<[1], [0], [0], [1], [0, 0, 1, 1], [], []>} : vector<35x32xbf16>, vector<32x32xbf16>, vector<35x32xf32> -> vector<35x32xf32>
    %20 = arith.addf %14, %19 : vector<35x32xf32>
    %21 = vector.extract_strided_slice %7 {offsets = [2, 0], sizes = [35, 32], strides = [1, 1]} : vector<39x32xf32> to vector<35x32xf32>
    %c64 = arith.constant 64 : index
    %c0_12 = arith.constant 0 : index
    %22 = vector.load %arg4[%c64, %c0_12] : memref<160x32xf32, #tpu.memory_space<vmem>>, vector<32x32xf32>
    %23 = arith.truncf %21 : vector<35x32xf32> to vector<35x32xbf16>
    %24 = arith.truncf %22 : vector<32x32xf32> to vector<32x32xbf16>
    %cst_13 = arith.constant dense<0.000000e+00> : vector<35x32xf32>
    %25 = tpu.matmul %23, %24, %cst_13 {dimension_numbers = #tpu.dot_dimension_numbers<[1], [0], [0], [1], [0, 0, 1, 1], [], []>} : vector<35x32xbf16>, vector<32x32xbf16>, vector<35x32xf32> -> vector<35x32xf32>
    %26 = arith.addf %20, %25 : vector<35x32xf32>
    %27 = vector.extract_strided_slice %7 {offsets = [3, 0], sizes = [35, 32], strides = [1, 1]} : vector<39x32xf32> to vector<35x32xf32>
    %c96 = arith.constant 96 : index
    %c0_14 = arith.constant 0 : index
    %28 = vector.load %arg4[%c96, %c0_14] : memref<160x32xf32, #tpu.memory_space<vmem>>, vector<32x32xf32>
    %29 = arith.truncf %27 : vector<35x32xf32> to vector<35x32xbf16>
    %30 = arith.truncf %28 : vector<32x32xf32> to vector<32x32xbf16>
    %cst_15 = arith.constant dense<0.000000e+00> : vector<35x32xf32>
    %31 = tpu.matmul %29, %30, %cst_15 {dimension_numbers = #tpu.dot_dimension_numbers<[1], [0], [0], [1], [0, 0, 1, 1], [], []>} : vector<35x32xbf16>, vector<32x32xbf16>, vector<35x32xf32> -> vector<35x32xf32>
    %32 = arith.addf %26, %31 : vector<35x32xf32>
    %33 = vector.extract_strided_slice %7 {offsets = [4, 0], sizes = [35, 32], strides = [1, 1]} : vector<39x32xf32> to vector<35x32xf32>
    %c128 = arith.constant 128 : index
    %c0_16 = arith.constant 0 : index
    %34 = vector.load %arg4[%c128, %c0_16] : memref<160x32xf32, #tpu.memory_space<vmem>>, vector<32x32xf32>
    %35 = arith.truncf %33 : vector<35x32xf32> to vector<35x32xbf16>
    %36 = arith.truncf %34 : vector<32x32xf32> to vector<32x32xbf16>
    %cst_17 = arith.constant dense<0.000000e+00> : vector<35x32xf32>
    %37 = tpu.matmul %35, %36, %cst_17 {dimension_numbers = #tpu.dot_dimension_numbers<[1], [0], [0], [1], [0, 0, 1, 1], [], []>} : vector<35x32xbf16>, vector<32x32xbf16>, vector<35x32xf32> -> vector<35x32xf32>
    %38 = arith.addf %32, %37 : vector<35x32xf32>
    %c0_18 = arith.constant 0 : index
    %c0_19 = arith.constant 0 : index
    %39 = vector.load %arg5[%c0_18, %c0_19] : memref<1x32xf32, #tpu.memory_space<vmem>>, vector<1x32xf32>
    %40 = vector.broadcast %39 : vector<1x32xf32> to vector<35x32xf32>
    %41 = arith.addf %38, %40 : vector<35x32xf32>
    %cst_20 = arith.constant 0.000000e+00 : f32
    %42 = vector.broadcast %cst_20 : f32 to vector<35x32xf32>
    %43 = arith.maximumf %41, %42 : vector<35x32xf32>
    %cst_21 = arith.constant 0.000000e+00 : f32
    %44 = vector.broadcast %cst_21 : f32 to vector<31x32xf32>
    %45 = vector.extract_strided_slice %43 {offsets = [0, 0], sizes = [31, 32], strides = [1, 1]} : vector<35x32xf32> to vector<31x32xf32>
    %c0_22 = arith.constant 0 : index
    %c0_23 = arith.constant 0 : index
    %46 = vector.load %arg6[%c0_22, %c0_23] : memref<96x32xf32, #tpu.memory_space<vmem>>, vector<32x32xf32>
    %47 = arith.truncf %45 : vector<31x32xf32> to vector<31x32xbf16>
    %48 = arith.truncf %46 : vector<32x32xf32> to vector<32x32xbf16>
    %cst_24 = arith.constant dense<0.000000e+00> : vector<31x32xf32>
    %49 = tpu.matmul %47, %48, %cst_24 {dimension_numbers = #tpu.dot_dimension_numbers<[1], [0], [0], [1], [0, 0, 1, 1], [], []>} : vector<31x32xbf16>, vector<32x32xbf16>, vector<31x32xf32> -> vector<31x32xf32>
    %50 = arith.addf %44, %49 : vector<31x32xf32>
    %51 = vector.extract_strided_slice %43 {offsets = [2, 0], sizes = [31, 32], strides = [1, 1]} : vector<35x32xf32> to vector<31x32xf32>
    %c32_25 = arith.constant 32 : index
    %c0_26 = arith.constant 0 : index
    %52 = vector.load %arg6[%c32_25, %c0_26] : memref<96x32xf32, #tpu.memory_space<vmem>>, vector<32x32xf32>
    %53 = arith.truncf %51 : vector<31x32xf32> to vector<31x32xbf16>
    %54 = arith.truncf %52 : vector<32x32xf32> to vector<32x32xbf16>
    %cst_27 = arith.constant dense<0.000000e+00> : vector<31x32xf32>
    %55 = tpu.matmul %53, %54, %cst_27 {dimension_numbers = #tpu.dot_dimension_numbers<[1], [0], [0], [1], [0, 0, 1, 1], [], []>} : vector<31x32xbf16>, vector<32x32xbf16>, vector<31x32xf32> -> vector<31x32xf32>
    %56 = arith.addf %50, %55 : vector<31x32xf32>
    %57 = vector.extract_strided_slice %43 {offsets = [4, 0], sizes = [31, 32], strides = [1, 1]} : vector<35x32xf32> to vector<31x32xf32>
    %c64_28 = arith.constant 64 : index
    %c0_29 = arith.constant 0 : index
    %58 = vector.load %arg6[%c64_28, %c0_29] : memref<96x32xf32, #tpu.memory_space<vmem>>, vector<32x32xf32>
    %59 = arith.truncf %57 : vector<31x32xf32> to vector<31x32xbf16>
    %60 = arith.truncf %58 : vector<32x32xf32> to vector<32x32xbf16>
    %cst_30 = arith.constant dense<0.000000e+00> : vector<31x32xf32>
    %61 = tpu.matmul %59, %60, %cst_30 {dimension_numbers = #tpu.dot_dimension_numbers<[1], [0], [0], [1], [0, 0, 1, 1], [], []>} : vector<31x32xbf16>, vector<32x32xbf16>, vector<31x32xf32> -> vector<31x32xf32>
    %62 = arith.addf %56, %61 : vector<31x32xf32>
    %c0_31 = arith.constant 0 : index
    %c0_32 = arith.constant 0 : index
    %63 = vector.load %arg7[%c0_31, %c0_32] : memref<1x32xf32, #tpu.memory_space<vmem>>, vector<1x32xf32>
    %64 = vector.broadcast %63 : vector<1x32xf32> to vector<31x32xf32>
    %65 = arith.addf %62, %64 : vector<31x32xf32>
    %cst_33 = arith.constant 0.000000e+00 : f32
    %66 = vector.broadcast %cst_33 : f32 to vector<31x32xf32>
    %67 = arith.maximumf %65, %66 : vector<31x32xf32>
    %cst_34 = arith.constant dense<0.000000e+00> : vector<32xf32>
    %68 = vector.multi_reduction <add>, %67, %cst_34 [0] : vector<31x32xf32> to vector<32xf32>
    %69 = vector.shape_cast %68 : vector<32xf32> to vector<1x32xf32>
    %cst_35 = arith.constant 3.100000e+01 : f32
    %70 = vector.broadcast %cst_35 : f32 to vector<1x32xf32>
    %71 = arith.divf %69, %70 : vector<1x32xf32>
    %72 = vector.broadcast %71 : vector<1x32xf32> to vector<31x32xf32>
    %73 = arith.subf %67, %72 : vector<31x32xf32>
    %74 = arith.mulf %73, %73 : vector<31x32xf32>
    %cst_36 = arith.constant dense<0.000000e+00> : vector<32xf32>
    %75 = vector.multi_reduction <add>, %74, %cst_36 [0] : vector<31x32xf32> to vector<32xf32>
    %76 = vector.shape_cast %75 : vector<32xf32> to vector<1x32xf32>
    %cst_37 = arith.constant 3.000000e+01 : f32
    %77 = vector.broadcast %cst_37 : f32 to vector<1x32xf32>
    %78 = arith.divf %76, %77 : vector<1x32xf32>
    %79 = math.sqrt %78 : vector<1x32xf32>
    %c0_38 = arith.constant 0 : index
    %c0_39 = arith.constant 0 : index
    %80 = vector.load %arg8[%c0_38, %c0_39] : memref<64x32xf32, #tpu.memory_space<vmem>>, vector<32x32xf32>
    %81 = arith.truncf %71 : vector<1x32xf32> to vector<1x32xbf16>
    %82 = arith.truncf %80 : vector<32x32xf32> to vector<32x32xbf16>
    %cst_40 = arith.constant dense<0.000000e+00> : vector<1x32xf32>
    %83 = tpu.matmul %81, %82, %cst_40 {dimension_numbers = #tpu.dot_dimension_numbers<[1], [0], [0], [1], [0, 0, 1, 1], [], []>} : vector<1x32xbf16>, vector<32x32xbf16>, vector<1x32xf32> -> vector<1x32xf32>
    %c32_41 = arith.constant 32 : index
    %c0_42 = arith.constant 0 : index
    %84 = vector.load %arg8[%c32_41, %c0_42] : memref<64x32xf32, #tpu.memory_space<vmem>>, vector<32x32xf32>
    %85 = arith.truncf %79 : vector<1x32xf32> to vector<1x32xbf16>
    %86 = arith.truncf %84 : vector<32x32xf32> to vector<32x32xbf16>
    %cst_43 = arith.constant dense<0.000000e+00> : vector<1x32xf32>
    %87 = tpu.matmul %85, %86, %cst_43 {dimension_numbers = #tpu.dot_dimension_numbers<[1], [0], [0], [1], [0, 0, 1, 1], [], []>} : vector<1x32xbf16>, vector<32x32xbf16>, vector<1x32xf32> -> vector<1x32xf32>
    %88 = arith.addf %83, %87 : vector<1x32xf32>
    %c0_44 = arith.constant 0 : index
    %c0_45 = arith.constant 0 : index
    %89 = vector.load %arg9[%c0_44, %c0_45] : memref<1x32xf32, #tpu.memory_space<vmem>>, vector<1x32xf32>
    %90 = arith.addf %88, %89 : vector<1x32xf32>
    %c0_46 = arith.constant 0 : index
    %c0_47 = arith.constant 0 : index
    %c0_48 = arith.constant 0 : index
    %91 = vector.load %arg10[%c0_46, %c0_47, %c0_48] : memref<1x1x32xf32, #tpu.memory_space<vmem>>, vector<1x1x32xf32>
    %92 = vector.shape_cast %91 : vector<1x1x32xf32> to vector<1x32xf32>
    %93 = vector.shape_cast %90 : vector<1x32xf32> to vector<1x1x32xf32>
    tpu.vector_store %arg10[%c0_46, %c0_47, %c0_48], %93 {strides = array<i32>} : memref<1x1x32xf32, #tpu.memory_space<vmem>>, vector<1x1x32xf32>,
    return
  }
  func.func @transform_0(%arg0: i32) -> (i32, i32, i32) {
    %c0_i32 = arith.constant 0 : i32
    %c0_i32_0 = arith.constant 0 : i32
    %c0_i32_1 = arith.constant 0 : i32
    return %arg0, %c0_i32, %c0_i32_0 : i32, i32, i32
  }
  func.func @transform_1(%arg0: i32) -> (i32, i32) {
    %c0_i32 = arith.constant 0 : i32
    %c0_i32_0 = arith.constant 0 : i32
    %c0_i32_1 = arith.constant 0 : i32
    return %c0_i32, %c0_i32_0 : i32, i32
  }
  func.func @transform_2(%arg0: i32) -> (i32, i32) {
    %c0_i32 = arith.constant 0 : i32
    %c0_i32_0 = arith.constant 0 : i32
    %c0_i32_1 = arith.constant 0 : i32
    return %c0_i32, %c0_i32_0 : i32, i32
  }
  func.func @transform_3(%arg0: i32) -> (i32, i32) {
    %c0_i32 = arith.constant 0 : i32
    %c0_i32_0 = arith.constant 0 : i32
    %c0_i32_1 = arith.constant 0 : i32
    return %c0_i32, %c0_i32_0 : i32, i32
  }
  func.func @transform_4(%arg0: i32) -> (i32, i32) {
    %c0_i32 = arith.constant 0 : i32
    %c0_i32_0 = arith.constant 0 : i32
    %c0_i32_1 = arith.constant 0 : i32
    return %c0_i32, %c0_i32_0 : i32, i32
  }
  func.func @transform_5(%arg0: i32) -> (i32, i32) {
    %c0_i32 = arith.constant 0 : i32
    %c0_i32_0 = arith.constant 0 : i32
    %c0_i32_1 = arith.constant 0 : i32
    return %c0_i32, %c0_i32_0 : i32, i32
  }
  func.func @transform_6(%arg0: i32) -> (i32, i32) {
    %c0_i32 = arith.constant 0 : i32
    %c0_i32_0 = arith.constant 0 : i32
    %c0_i32_1 = arith.constant 0 : i32
    return %c0_i32, %c0_i32_0 : i32, i32
  }
  func.func @transform_7(%arg0: i32) -> (i32, i32) {
    %c0_i32 = arith.constant 0 : i32
    %c0_i32_0 = arith.constant 0 : i32
    %c0_i32_1 = arith.constant 0 : i32
    return %c0_i32, %c0_i32_0 : i32, i32
  }
  func.func @transform_8(%arg0: i32) -> (i32, i32) {
    %c0_i32 = arith.constant 0 : i32
    %c0_i32_0 = arith.constant 0 : i32
    %c0_i32_1 = arith.constant 0 : i32
    return %c0_i32, %c0_i32_0 : i32, i32
  }
  func.func @transform_9(%arg0: i32) -> (i32, i32, i32) {
    %c0_i32 = arith.constant 0 : i32
    %c0_i32_0 = arith.constant 0 : i32
    %c0_i32_1 = arith.constant 0 : i32
    return %arg0, %c0_i32, %c0_i32_0 : i32, i32, i32
  }
}

</mosaic_0001>

<llo_original>
// kernel: _lambda_.5
$region0: #{_lambda_.5}
  #allocation0 [shape = 'u32[]', space=smem, size = 0x4, offset = 0x4, fixed_abs, tag = 'smem constant byte address 0x4 - core index']
  #allocation1 [shape = 'u32[144,128]{1,0:T(1,128)}', space=vmem, size = 0x12000, scoped, tag = 'internal scratch']
  %s0 = inlined_call_operand.vmem [shape: f32[2,80,5], index: 0, kind: input, shape index: {}]
  %s1 = inlined_call_operand.vmem [shape: f32[10,32], index: 1, kind: input, shape index: {}]
  %s2 = inlined_call_operand.vmem [shape: f32[1,32], index: 2, kind: input, shape index: {}]
  %s3 = inlined_call_operand.vmem [shape: f32[1,32], index: 3, kind: input, shape index: {}]
  %s4 = inlined_call_operand.vmem [shape: f32[1,32], index: 4, kind: input, shape index: {}]
  %s5 = inlined_call_operand.vmem [shape: f32[2,79,32], index: 5, kind: output, shape index: {}]
  %s6 = sld [smem:[#allocation0]]
  $region53: #{_lambda_.5} parent=0
    _
  %s8 = ssub.s32 1, %s6
  %s9 = scalar_select 0, %s8, %s6
  loop: start=0, step=1, limit=4
  $region2: #{_lambda_.5} parent=0 // loop_pre_header
    _
  $region3: #{_lambda_.5} parent=0 // loop_header
    %s11 = sphi 0, %s15
    %p12 = scmp.ge.s32.totalorder %s11, 4
    %s21 = sphi 0, %s23
    %s24 = sphi 0, %s21
    %s25 = sphi 0, %s24
    %s41 = sphi 0, %s25
    %s45 = sphi 0, %s45
    %s47 = sphi 0, %s45
    %s48 = sphi 0, %s47
    %s62 = sphi 0, %s48
    %s66 = sphi 0, %s66
    %s68 = sphi 0, %s66
    %s69 = sphi 0, %s68
    %s83 = sphi 0, %s69
    %s87 = sphi 0, %s87
    %s89 = sphi 0, %s87
    %s90 = sphi 0, %s89
    %s104 = sphi 0, %s90
    %s108 = sphi 0, %s108
    %s110 = sphi 0, %s108
    %s111 = sphi 0, %s110
    %s125 = sphi 0, %s111
    %s131 = sphi 0, %s133
    %s134 = sphi 0, %s131
    %s135 = sphi 0, %s134
    %s151 = sphi 0, %s135
  $region4: #{_lambda_.5} parent=0 // loop_header_branch
    %14 = sbr.rel (%p12) target = $region8
  $region5: #{_lambda_.5} parent=0 // loop_body
    %s16 = ssub.s32 %s11, 1
    %s17 = ssub.s32 %s11, 2
    %s18 = sadd.s32 %s11, 1
    %s19 = ssub.s32 %s11, %s18
    %p20 = scmp.eq.s32.totalorder %s19, 0
    %s22 = sadd.s32 %s21, 1
    %s23 = scalar_select %p20, %s21, %s22
    %p26 = pneg %p20
    %p27 = scmp.eq.s32.totalorder %s11, 1
    %p28 = por %p26, %p27
    %p29 = scmp.ne.s32.totalorder %s21, %s24
    %p30 = scmp.eq.s32.totalorder %s11, 0
    %p31 = por %p29, %p30
    %p32 = scmp.ne.s32.totalorder %s21, %s24
    %p33 = scmp.eq.s32.totalorder %s16, 1
    %p34 = por %p32, %p33
    %p35 = scmp.ne.s32.totalorder %s24, %s25
    %p36 = scmp.eq.s32.totalorder %s16, 0
    %p37 = por %p35, %p36
    %p38 = scmp.ne.s32.totalorder %s24, %s25
    %p39 = scmp.eq.s32.totalorder %s17, 1
    %p40 = por %p38, %p39
    %p42 = scmp.ne.s32.totalorder %s25, %s41
    %p43 = scmp.eq.s32.totalorder %s17, 0
    %p44 = por %p42, %p43
    %s46 = sadd.s32 %s45, 1
    %p49 = scmp.eq.s32.totalorder %s11, 1
    %p50 = scmp.ne.s32.totalorder %s45, %s47
    %p51 = scmp.eq.s32.totalorder %s11, 0
    %p52 = por %p50, %p51
    %p53 = scmp.ne.s32.totalorder %s45, %s47
    %p54 = scmp.eq.s32.totalorder %s16, 1
    %p55 = por %p53, %p54
    %p56 = scmp.ne.s32.totalorder %s47, %s48
    %p57 = scmp.eq.s32.totalorder %s16, 0
    %p58 = por %p56, %p57
    %p59 = scmp.ne.s32.totalorder %s47, %s48
    %p60 = scmp.eq.s32.totalorder %s17, 1
    %p61 = por %p59, %p60
    %p63 = scmp.ne.s32.totalorder %s48, %s62
    %p64 = scmp.eq.s32.totalorder %s17, 0
    %p65 = por %p63, %p64
    %s67 = sadd.s32 %s66, 1
    %p70 = scmp.eq.s32.totalorder %s11, 1
    %p71 = scmp.ne.s32.totalorder %s66, %s68
    %p72 = scmp.eq.s32.totalorder %s11, 0
    %p73 = por %p71, %p72
    %p74 = scmp.ne.s32.totalorder %s66, %s68
    %p75 = scmp.eq.s32.totalorder %s16, 1
    %p76 = por %p74, %p75
    %p77 = scmp.ne.s32.totalorder %s68, %s69
    %p78 = scmp.eq.s32.totalorder %s16, 0
    %p79 = por %p77, %p78
    %p80 = scmp.ne.s32.totalorder %s68, %s69
    %p81 = scmp.eq.s32.totalorder %s17, 1
    %p82 = por %p80, %p81
    %p84 = scmp.ne.s32.totalorder %s69, %s83
    %p85 = scmp.eq.s32.totalorder %s17, 0
    %p86 = por %p84, %p85
    %s88 = sadd.s32 %s87, 1
    %p91 = scmp.eq.s32.totalorder %s11, 1
    %p92 = scmp.ne.s32.totalorder %s87, %s89
    %p93 = scmp.eq.s32.totalorder %s11, 0
    %p94 = por %p92, %p93
    %p95 = scmp.ne.s32.totalorder %s87, %s89
    %p96 = scmp.eq.s32.totalorder %s16, 1
    %p97 = por %p95, %p96
    %p98 = scmp.ne.s32.totalorder %s89, %s90
    %p99 = scmp.eq.s32.totalorder %s16, 0
    %p100 = por %p98, %p99
    %p101 = scmp.ne.s32.totalorder %s89, %s90
    %p102 = scmp.eq.s32.totalorder %s17, 1
    %p103 = por %p101, %p102
    %p105 = scmp.ne.s32.totalorder %s90, %s104
    %p106 = scmp.eq.s32.totalorder %s17, 0
    %p107 = por %p105, %p106
    %s109 = sadd.s32 %s108, 1
    %p112 = scmp.eq.s32.totalorder %s11, 1
    %p113 = scmp.ne.s32.totalorder %s108, %s110
    %p114 = scmp.eq.s32.totalorder %s11, 0
    %p115 = por %p113, %p114
    %p116 = scmp.ne.s32.totalorder %s108, %s110
    %p117 = scmp.eq.s32.totalorder %s16, 1
    %p118 = por %p116, %p117
    %p119 = scmp.ne.s32.totalorder %s110, %s111
    %p120 = scmp.eq.s32.totalorder %s16, 0
    %p121 = por %p119, %p120
    %p122 = scmp.ne.s32.totalorder %s110, %s111
    %p123 = scmp.eq.s32.totalorder %s17, 1
    %p124 = por %p122, %p123
    %p126 = scmp.ne.s32.totalorder %s111, %s125
    %p127 = scmp.eq.s32.totalorder %s17, 0
    %p128 = por %p126, %p127
    %s129 = ssub.s32 %s11, %s18
    %p130 = scmp.eq.s32.totalorder %s129, 0
    %s132 = sadd.s32 %s131, 1
    %s133 = scalar_select %p130, %s131, %s132
    %p136 = pneg %p130
    %p137 = scmp.eq.s32.totalorder %s11, 1
    %p138 = por %p136, %p137
    %p139 = scmp.ne.s32.totalorder %s131, %s134
    %p140 = scmp.eq.s32.totalorder %s11, 0
    %p141 = por %p139, %p140
    %p142 = scmp.ne.s32.totalorder %s131, %s134
    %p143 = scmp.eq.s32.totalorder %s16, 1
    %p144 = por %p142, %p143
    %p145 = scmp.ne.s32.totalorder %s134, %s135
    %p146 = scmp.eq.s32.totalorder %s16, 0
    %p147 = por %p145, %p146
    %p148 = scmp.ne.s32.totalorder %s134, %s135
    %p149 = scmp.eq.s32.totalorder %s17, 1
    %p150 = por %p148, %p149
    %p152 = scmp.ne.s32.totalorder %s135, %s151
    %p153 = scmp.eq.s32.totalorder %s17, 0
    %p154 = por %p152, %p153
    %p155 = scmp.le.s32.totalorder 1, %s11
    %p156 = scmp.lt.s32.totalorder %s11, 3
    %p157 = pnand %p155, %p156
    %p158 = pneg %p157
    // Predicated region
    $region9: #{_lambda_.5} parent=5 // pred_check
      _
    $region10: #{_lambda_.5} parent=5 // pred_check_branch
      %160 = sbr.rel (%p157) target = $region12
    $region11: #{_lambda_.5} parent=5 // pred_region
      %s161 = ssub.s32 %s11, 1
      // Predicated region
      $region13: #{_lambda_.5} parent=11 // pred_check
        %p162 = pneg %p58
      $region14: #{_lambda_.5} parent=11 // pred_check_branch
        %164 = sbr.rel (%p162) target = $region16
      $region15: #{_lambda_.5} parent=11 // pred_region
        _
      $region16: #{_lambda_.5} parent=11 // pred_fallthru
        _
      // Predicated region
      $region17: #{_lambda_.5} parent=11 // pred_check
        %p165 = pneg %p79
      $region18: #{_lambda_.5} parent=11 // pred_check_branch
        %167 = sbr.rel (%p165) target = $region20
      $region19: #{_lambda_.5} parent=11 // pred_region
        _
      $region20: #{_lambda_.5} parent=11 // pred_fallthru
        _
      // Predicated region
      $region21: #{_lambda_.5} parent=11 // pred_check
        %p168 = pneg %p100
      $region22: #{_lambda_.5} parent=11 // pred_check_branch
        %170 = sbr.rel (%p168) target = $region24
      $region23: #{_lambda_.5} parent=11 // pred_region
        _
      $region24: #{_lambda_.5} parent=11 // pred_fallthru
        _
      // Predicated region
      $region25: #{_lambda_.5} parent=11 // pred_check
        %p171 = pneg %p121
      $region26: #{_lambda_.5} parent=11 // pred_check_branch
        %173 = sbr.rel (%p171) target = $region28
      $region27: #{_lambda_.5} parent=11 // pred_region
        _
      $region28: #{_lambda_.5} parent=11 // pred_fallthru
        _
    $region12: #{_lambda_.5} parent=5 // pred_fallthru
      _
    %p174 = scmp.lt.s32.totalorder %s11, 2
    // Predicated region
    $region29: #{_lambda_.5} parent=5 // pred_check
      %p175 = pneg %p174
    $region30: #{_lambda_.5} parent=5 // pred_check_branch
      %177 = sbr.rel (%p175) target = $region32
    $region31: #{_lambda_.5} parent=5 // pred_region
      // Predicated region
      $region33: #{_lambda_.5} parent=31 // pred_check
        %p178 = pneg %p31
      $region34: #{_lambda_.5} parent=31 // pred_check_branch
        %180 = sbr.rel (%p178) target = $region36
      $region35: #{_lambda_.5} parent=31 // pred_region
        %p181 = scmp.lt.s32.totalorder %s11, 1
        %s182 = scalar_select %p181, %s11, 1
        %s183 = smul.addr %s182, 10
        %s184 = smul.addr %s183, 8
        %s185 = scalar_lea.vmem %s0, %s184
      $region36: #{_lambda_.5} parent=31 // pred_fallthru
        _
    $region32: #{_lambda_.5} parent=5 // pred_fallthru
      _
    %p186 = scmp.le.s32.totalorder 1, %s11
    %p187 = scmp.lt.s32.totalorder %s11, 3
    %p188 = pnand %p186, %p187
    %p189 = pneg %p188
    // Predicated region
    $region37: #{_lambda_.5} parent=5 // pred_check
      _
    $region38: #{_lambda_.5} parent=5 // pred_check_branch
      %191 = sbr.rel (%p188) target = $region40
    $region39: #{_lambda_.5} parent=5 // pred_region
      %s192 = ssub.s32 %s11, 1
      %p193 = scmp.lt.s32.totalorder %s16, 1
      %s194 = scalar_select %p193, %s16, 1
      %s195 = smul.addr %s194, 10
      %s196 = smul.addr %s195, 8
      %s197 = scalar_lea.vmem %s0, %s196
      %p198 = pneg %p37
      %p199 = pneg %p34
      %p200 = pneg %p58
      %p201 = pneg %p55
      %p202 = pneg %p79
      %p203 = pneg %p76
      %p204 = pneg %p100
      %p205 = pneg %p97
      %p206 = pneg %p121
      %p207 = pneg %p118
      %p208 = pneg %p147
      %p209 = pneg %p144
      %p210 = scmp.lt.s32.totalorder %s16, 1
      %s211 = scalar_select %p210, %s16, 1
      %s212 = smul.addr %s211, 10
      %s213 = smul.addr %s212, 8
      %s214 = scalar_lea.vmem %s5, %s213
      %p215 = scmp.lt.s32.totalorder %s16, 1
      %s216 = scalar_select %p215, %s16, 1
      %s217 = smul.addr %s216, 10
      %s218 = smul.addr %s217, 8
      %s219 = scalar_lea.vmem %s0, %s218
      %p220 = scmp.lt.s32.totalorder %s16, 1
      %s221 = scalar_select %p220, %s16, 1
      %s222 = smul.addr %s221, 10
      %s223 = smul.addr %s222, 8
      %s224 = scalar_lea.vmem %s5, %s223
      %v226 = vld [vmem:[%s219] sm:$0xff]
      %v227 = vld [vmem:[%s219 + $0x8] sm:$0xff]
      %v228 = vld [vmem:[%s219 + $0x10] sm:$0xff]
      %v229 = vld [vmem:[%s219 + $0x18] sm:$0xff]
      %v230 = vld [vmem:[%s219 + $0x20] sm:$0xff]
      %v231 = vld [vmem:[%s219 + $0x28] sm:$0xff]
      %v232 = vld [vmem:[%s219 + $0x30] sm:$0xff]
      %v233 = vld [vmem:[%s219 + $0x38] sm:$0xff]
      %v234 = vld [vmem:[%s219 + $0x40] sm:$0xff]
      %v235 = vld [vmem:[%s219 + $0x48] sm:$0xff]
      %v236 = vld [vmem:[%s1] sm:$0x1f]
      %v237 = vpack.c.bf16 %v227, %v226
      %v238 = vpack.c.bf16 %v229, %v228
      %v239 = vpack.c.bf16 %v231, %v230
      %v240 = vpack.c.bf16 %v233, %v232
      %v241 = vpack.c.bf16 %v235, %v234
      %v242 = vpack.c.bf16 %v236, %v236
      %v243 = vld [vmem:[%s1 + $0x5] sm:$0x1f]
      %v244 = vpack.c.bf16 %v243, %v243
      %vm245 = vsmask.f32 7424
      %v247 = vshrl.u32 %v237, 16
      %v249 = vshll.u32 %v237, 16
      %v251 = vrot.slane %v249, 1
      %v252 = vor.u32 %v247, %v251
      %v254 = vshll.u32 %v238, 16
      %v256 = vrot.slane %v254, 1
      %v257 = vsel %vm245, %v252, %v256
      %v258 = vshrl.u32 %v238, 16
      %v260 = vor.u32 %v258, %v256
      %v262 = vshll.u32 %v239, 16
      %v264 = vrot.slane %v262, 1
      %v265 = vsel %vm245, %v260, %v264
      %v266 = vshrl.u32 %v239, 16
      %v268 = vor.u32 %v266, %v264
      %v270 = vshll.u32 %v240, 16
      %v272 = vrot.slane %v270, 1
      %v273 = vsel %vm245, %v268, %v272
      %v274 = vshrl.u32 %v240, 16
      %v276 = vor.u32 %v274, %v272
      %v278 = vshll.u32 %v241, 16
      %v280 = vrot.slane %v278, 1
      %v281 = vsel %vm245, %v276, %v280
      %v282 = vshrl.u32 %v241, 16
      %v284 = vor.u32 %v282, %v280
      %vm285 = vcmask 39936
      %v287 = vsel %vm285, %v257, 0
      %v290 = vsel %vm285, %v265, 0
      %v293 = vsel %vm285, %v273, 0
      %v296 = vsel %vm285, %v281, 0
      %v299 = vsel %vm285, %v284, 0
      %vm301 = vcmask 1041408
      %vm302 = vcmask 1042432
      %v303 = vsel %vm301, 4294967295, 65535
      %v304 = vsel %vm302, %v303, 0
      %v306 = vand.u32 %v244, %v304
      %308 = vmatprep.subr.bf16.mxu0 0
      %309 = vmatpush1.bf16.msra.mxu0 %v306
      %310 = vmatprep.subr.bf16.mxu0 0
      %311 = vmatpush1.bf16.msra.mxu0 0
      %312 = vmatprep.subr.bf16.mxu0 0
      %313 = vmatpush1.bf16.msra.mxu0 0
      %314 = vmatprep.subr.bf16.mxu0 0
      %315 = vmatpush1.bf16.msra.mxu0 0
      %316 = vmatprep.subr.bf16.mxu0 0
      %317 = vmatpush1.bf16.msra.mxu0 0
      %318 = vmatprep.subr.bf16.mxu0 0
      %319 = vmatpush1.bf16.msra.mxu0 0
      %320 = vmatprep.subr.bf16.mxu0 0
      %321 = vmatpush1.bf16.msra.mxu0 0
      %322 = vmatprep.subr.bf16.mxu0 0
      %323 = vmatpush1.bf16.msra.mxu0 0
      %324 = vmatprep.subr.bf16.mxu0 0
      %325 = vmatpush1.bf16.msra.mxu0 0
      %326 = vmatprep.subr.bf16.mxu0 0
      %327 = vmatpush1.bf16.msra.mxu0 0
      %328 = vmatprep.subr.bf16.mxu0 0
      %329 = vmatpush1.bf16.msra.mxu0 0
      %330 = vmatprep.subr.bf16.mxu0 0
      %331 = vmatpush1.bf16.msra.mxu0 0
      %332 = vmatprep.subr.bf16.mxu0 0
      %333 = vmatpush1.bf16.msra.mxu0 0
      %334 = vmatprep.subr.bf16.mxu0 0
      %335 = vmatpush1.bf16.msra.mxu0 0
      %336 = vmatprep.subr.bf16.mxu0 0
      %337 = vmatpush1.bf16.msra.mxu0 0
      %338 = vmatprep.subr.bf16.mxu0 0
      %339 = vmatpush1.bf16.msra.mxu0 0
      %340 = vmatprep.mubr.bf16.mxu0 0
      %341 = vmatmul.mubr.bf16.gmra.mrb[0].mxu0 %v287
      %v342 = vpop.f32.mrb[0].mxu0
      %v343 = vadd.f32 0.0, %v342
      %v344 = vpop.f32.mrb[0].mxu0
      %v345 = vpop.f32.mrb[0].mxu0
      %v346 = vadd.f32 0.0, %v345
      %v347 = vpop.f32.mrb[0].mxu0
      %348 = vmatprep.mubr.bf16.mxu0 0
      %349 = vmatmul.mubr.bf16.gmra.mrb[0].mxu0 %v290
      %v350 = vpop.f32.mrb[0].mxu0
      %v351 = vadd.f32 0.0, %v350
      %v352 = vpop.f32.mrb[0].mxu0
      %v353 = vpop.f32.mrb[0].mxu0
      %v354 = vadd.f32 0.0, %v353
      %v355 = vpop.f32.mrb[0].mxu0
      %356 = vmatprep.mubr.bf16.mxu0 0
      %357 = vmatmul.mubr.bf16.gmra.mrb[0].mxu0 %v293
      %v358 = vpop.f32.mrb[0].mxu0
      %v359 = vadd.f32 0.0, %v358
      %v360 = vpop.f32.mrb[0].mxu0
      %v361 = vpop.f32.mrb[0].mxu0
      %v362 = vadd.f32 0.0, %v361
      %v363 = vpop.f32.mrb[0].mxu0
      %364 = vmatprep.mubr.bf16.mxu0 0
      %365 = vmatmul.mubr.bf16.gmra.mrb[0].mxu0 %v296
      %v366 = vpop.f32.mrb[0].mxu0
      %v367 = vadd.f32 0.0, %v366
      %v368 = vpop.f32.mrb[0].mxu0
      %v369 = vpop.f32.mrb[0].mxu0
      %v370 = vadd.f32 0.0, %v369
      %v371 = vpop.f32.mrb[0].mxu0
      %372 = vmatprep.mubr.bf16.mxu0 0
      %373 = vmatmul.mubr.bf16.gmra.mrb[0].mxu0 %v299
      %v374 = vpop.f32.mrb[0].mxu0
      %v375 = vadd.f32 0.0, %v374
      %v376 = vpop.f32.mrb[0].mxu0
      %v377 = vpop.f32.mrb[0].mxu0
      %v378 = vadd.f32 0.0, %v377
      %v379 = vpop.f32.mrb[0].mxu0
      %380 = vdwg.mxu0
      %v381 = vsel %vm285, %v237, 0
      %v383 = vsel %vm285, %v238, 0
      %v385 = vsel %vm285, %v239, 0
      %v387 = vsel %vm285, %v240, 0
      %v389 = vsel %vm285, %v241, 0
      %v392 = vand.u32 %v242, %v304
      %394 = vmatprep.subr.bf16.mxu0 0
      %395 = vmatpush1.bf16.msra.mxu0 %v392
      %396 = vmatprep.subr.bf16.mxu0 0
      %397 = vmatpush1.bf16.msra.mxu0 0
      %398 = vmatprep.subr.bf16.mxu0 0
      %399 = vmatpush1.bf16.msra.mxu0 0
      %400 = vmatprep.subr.bf16.mxu0 0
      %401 = vmatpush1.bf16.msra.mxu0 0
      %402 = vmatprep.subr.bf16.mxu0 0
      %403 = vmatpush1.bf16.msra.mxu0 0
      %404 = vmatprep.subr.bf16.mxu0 0
      %405 = vmatpush1.bf16.msra.mxu0 0
      %406 = vmatprep.subr.bf16.mxu0 0
      %407 = vmatpush1.bf16.msra.mxu0 0
      %408 = vmatprep.subr.bf16.mxu0 0
      %409 = vmatpush1.bf16.msra.mxu0 0
      %410 = vmatprep.subr.bf16.mxu0 0
      %411 = vmatpush1.bf16.msra.mxu0 0
      %412 = vmatprep.subr.bf16.mxu0 0
      %413 = vmatpush1.bf16.msra.mxu0 0
      %414 = vmatprep.subr.bf16.mxu0 0
      %415 = vmatpush1.bf16.msra.mxu0 0
      %416 = vmatprep.subr.bf16.mxu0 0
      %417 = vmatpush1.bf16.msra.mxu0 0
      %418 = vmatprep.subr.bf16.mxu0 0
      %419 = vmatpush1.bf16.msra.mxu0 0
      %420 = vmatprep.subr.bf16.mxu0 0
      %421 = vmatpush1.bf16.msra.mxu0 0
      %422 = vmatprep.subr.bf16.mxu0 0
      %423 = vmatpush1.bf16.msra.mxu0 0
      %424 = vmatprep.subr.bf16.mxu0 0
      %425 = vmatpush1.bf16.msra.mxu0 0
      %426 = vmatprep.mubr.bf16.mxu0 0
      %427 = vmatmul.mubr.bf16.gmra.mrb[0].mxu0 %v381
      %v428 = vpop.f32.mrb[0].mxu0
      %v429 = vadd.f32 %v343, %v428
      %v430 = vpop.f32.mrb[0].mxu0
      %v431 = vpop.f32.mrb[0].mxu0
      %v432 = vadd.f32 %v346, %v431
      %v433 = vpop.f32.mrb[0].mxu0
      %434 = vmatprep.mubr.bf16.mxu0 0
      %435 = vmatmul.mubr.bf16.gmra.mrb[0].mxu0 %v383
      %v436 = vpop.f32.mrb[0].mxu0
      %v437 = vadd.f32 %v351, %v436
      %v438 = vpop.f32.mrb[0].mxu0
      %v439 = vpop.f32.mrb[0].mxu0
      %v440 = vadd.f32 %v354, %v439
      %v441 = vpop.f32.mrb[0].mxu0
      %442 = vmatprep.mubr.bf16.mxu0 0
      %443 = vmatmul.mubr.bf16.gmra.mrb[0].mxu0 %v385
      %v444 = vpop.f32.mrb[0].mxu0
      %v445 = vadd.f32 %v359, %v444
      %v446 = vpop.f32.mrb[0].mxu0
      %v447 = vpop.f32.mrb[0].mxu0
      %v448 = vadd.f32 %v362, %v447
      %v449 = vpop.f32.mrb[0].mxu0
      %450 = vmatprep.mubr.bf16.mxu0 0
      %451 = vmatmul.mubr.bf16.gmra.mrb[0].mxu0 %v387
      %v452 = vpop.f32.mrb[0].mxu0
      %v453 = vadd.f32 %v367, %v452
      %v454 = vpop.f32.mrb[0].mxu0
      %v455 = vpop.f32.mrb[0].mxu0
      %v456 = vadd.f32 %v370, %v455
      %v457 = vpop.f32.mrb[0].mxu0
      %458 = vmatprep.mubr.bf16.mxu0 0
      %459 = vmatmul.mubr.bf16.gmra.mrb[0].mxu0 %v389
      %v460 = vpop.f32.mrb[0].mxu0
      %v461 = vadd.f32 %v375, %v460
      %v462 = vpop.f32.mrb[0].mxu0
      %v463 = vpop.f32.mrb[0].mxu0
      %v464 = vadd.f32 %v378, %v463
      %v465 = vpop.f32.mrb[0].mxu0
      %466 = vdwg.mxu0
      %v467 = vld [vmem:[%s2] sm:$0x1]
      %v469 = vlaneseq
      %v470 = vshrl.u32 %v469, 7
      %v471 = vsub.s32 0, %v470
      %v472 = vrot.slane %v467, %v471
      %v474 = vadd.f32 %v429, %v472
      %v475 = vadd.f32 %v432, %v472
      %v476 = vadd.f32 %v437, %v472
      %v477 = vadd.f32 %v440, %v472
      %v478 = vadd.f32 %v445, %v472
      %v479 = vadd.f32 %v448, %v472
      %v480 = vadd.f32 %v453, %v472
      %v481 = vadd.f32 %v456, %v472
      %v482 = vadd.f32 %v461, %v472
      %v483 = vadd.f32 %v464, %v472
      %vm484 = vcmask 261120
      %v485 = vsel %vm484, %v474, 0.0
      %v486 = vsel %vm484, %v475, 0.0
      %v487 = vadd.f32 %v485, %v486
      %v488 = vsel %vm484, %v476, 0.0
      %v489 = vadd.f32 %v487, %v488
      %v490 = vsel %vm484, %v477, 0.0
      %v491 = vadd.f32 %v489, %v490
      %v492 = vsel %vm484, %v478, 0.0
      %v493 = vadd.f32 %v491, %v492
      %v494 = vsel %vm484, %v479, 0.0
      %v495 = vadd.f32 %v493, %v494
      %v496 = vsel %vm484, %v480, 0.0
      %v497 = vadd.f32 %v495, %v496
      %v498 = vsel %vm484, %v481, 0.0
      %v499 = vadd.f32 %v497, %v498
      %v500 = vsel %vm484, %v482, 0.0
      %v501 = vadd.f32 %v499, %v500
      %vm502 = vcmask 260096
      %v503 = vsel %vm502, %v483, 0.0
      %v504 = vadd.f32 %v501, %v503
      %v505 = vrot.slane %v504, 4
      %v506 = vadd.f32 %v504, %v505
      %v507 = vrot.slane %v506, 2
      %v508 = vadd.f32 %v506, %v507
      %v509 = vrot.slane %v508, 1
      %v510 = vadd.f32 %v508, %v509
      %v511 = vrcp.pop 79.0
      %v512 = vmul.f32 %v510, %v511
      %v513 = vsub.f32 %v474, %v512
      %v514 = vsub.f32 %v475, %v512
      %v515 = vsub.f32 %v476, %v512
      %v516 = vsub.f32 %v477, %v512
      %v517 = vsub.f32 %v478, %v512
      %v518 = vsub.f32 %v479, %v512
      %v519 = vsub.f32 %v480, %v512
      %v520 = vsub.f32 %v481, %v512
      %v521 = vsub.f32 %v482, %v512
      %v522 = vsub.f32 %v483, %v512
      %v523 = vmul.f32 %v513, %v513
      %v524 = vmul.f32 %v514, %v514
      %v525 = vmul.f32 %v515, %v515
      %v526 = vmul.f32 %v516, %v516
      %v527 = vmul.f32 %v517, %v517
      %v528 = vmul.f32 %v518, %v518
      %v529 = vmul.f32 %v519, %v519
      %v530 = vmul.f32 %v520, %v520
      %v531 = vmul.f32 %v521, %v521
      %v532 = vmul.f32 %v522, %v522
      %v533 = vsel %vm484, %v523, 0.0
      %v534 = vsel %vm484, %v524, 0.0
      %v535 = vadd.f32 %v533, %v534
      %v536 = vsel %vm484, %v525, 0.0
      %v537 = vadd.f32 %v535, %v536
      %v538 = vsel %vm484, %v526, 0.0
      %v539 = vadd.f32 %v537, %v538
      %v540 = vsel %vm484, %v527, 0.0
      %v541 = vadd.f32 %v539, %v540
      %v542 = vsel %vm484, %v528, 0.0
      %v543 = vadd.f32 %v541, %v542
      %v544 = vsel %vm484, %v529, 0.0
      %v545 = vadd.f32 %v543, %v544
      %v546 = vsel %vm484, %v530, 0.0
      %v547 = vadd.f32 %v545, %v546
      %v548 = vsel %vm484, %v531, 0.0
      %v549 = vadd.f32 %v547, %v548
      %v550 = vsel %vm502, %v532, 0.0
      %v551 = vadd.f32 %v549, %v550
      %v552 = vrot.slane %v551, 4
      %v553 = vadd.f32 %v551, %v552
      %v554 = vrot.slane %v553, 2
      %v555 = vadd.f32 %v553, %v554
      %v556 = vrot.slane %v555, 1
      %v557 = vadd.f32 %v555, %v556
      %v558 = vmul.f32 %v557, %v511
      %v559 = vadd.f32 %v558, 1e-05
      %v560 = vrsqrt.pop %v559
      %v561 = vmul.f32 %v513, %v560
      %v562 = vmul.f32 %v514, %v560
      %v563 = vmul.f32 %v515, %v560
      %v564 = vmul.f32 %v516, %v560
      %v565 = vmul.f32 %v517, %v560
      %v566 = vmul.f32 %v518, %v560
      %v567 = vmul.f32 %v519, %v560
      %v568 = vmul.f32 %v520, %v560
      %v569 = vmul.f32 %v521, %v560
      %v570 = vmul.f32 %v522, %v560
      %v571 = vld [vmem:[%s3] sm:$0x1]
      %v573 = vlaneseq
      %v574 = vshrl.u32 %v573, 7
      %v575 = vsub.s32 0, %v574
      %v576 = vrot.slane %v571, %v575
      %v578 = vmul.f32 %v561, %v576
      %v579 = vmul.f32 %v562, %v576
      %v580 = vmul.f32 %v563, %v576
      %v581 = vmul.f32 %v564, %v576
      %v582 = vmul.f32 %v565, %v576
      %v583 = vmul.f32 %v566, %v576
      %v584 = vmul.f32 %v567, %v576
      %v585 = vmul.f32 %v568, %v576
      %v586 = vmul.f32 %v569, %v576
      %v587 = vmul.f32 %v570, %v576
      %v588 = vld [vmem:[%s4] sm:$0x1]
      %v590 = vlaneseq
      %v591 = vshrl.u32 %v590, 7
      %v592 = vsub.s32 0, %v591
      %v593 = vrot.slane %v588, %v592
      %v595 = vadd.f32 %v578, %v593
      %v596 = vadd.f32 %v579, %v593
      %v597 = vadd.f32 %v580, %v593
      %v598 = vadd.f32 %v581, %v593
      %v599 = vadd.f32 %v582, %v593
      %v600 = vadd.f32 %v583, %v593
      %v601 = vadd.f32 %v584, %v593
      %v602 = vadd.f32 %v585, %v593
      %v603 = vadd.f32 %v586, %v593
      %v604 = vadd.f32 %v587, %v593
      %v605 = vmul.f32 %v595, %v595
      %v606 = vmul.f32 %v596, %v596
      %v607 = vmul.f32 %v597, %v597
      %v608 = vmul.f32 %v598, %v598
      %v609 = vmul.f32 %v599, %v599
      %v610 = vmul.f32 %v600, %v600
      %v611 = vmul.f32 %v601, %v601
      %v612 = vmul.f32 %v602, %v602
      %v613 = vmul.f32 %v603, %v603
      %v614 = vmul.f32 %v604, %v604
      %v615 = vmul.f32 %v595, %v605
      %v616 = vmul.f32 %v596, %v606
      %v617 = vmul.f32 %v597, %v607
      %v618 = vmul.f32 %v598, %v608
      %v619 = vmul.f32 %v599, %v609
      %v620 = vmul.f32 %v600, %v610
      %v621 = vmul.f32 %v601, %v611
      %v622 = vmul.f32 %v602, %v612
      %v623 = vmul.f32 %v603, %v613
      %v624 = vmul.f32 %v604, %v614
      %v625 = vmul.f32 %v615, 0.044715
      %v626 = vmul.f32 %v616, 0.044715
      %v627 = vmul.f32 %v617, 0.044715
      %v628 = vmul.f32 %v618, 0.044715
      %v629 = vmul.f32 %v619, 0.044715
      %v630 = vmul.f32 %v620, 0.044715
      %v631 = vmul.f32 %v621, 0.044715
      %v632 = vmul.f32 %v622, 0.044715
      %v633 = vmul.f32 %v623, 0.044715
      %v634 = vmul.f32 %v624, 0.044715
      %v635 = vadd.f32 %v595, %v625
      %v636 = vadd.f32 %v596, %v626
      %v637 = vadd.f32 %v597, %v627
      %v638 = vadd.f32 %v598, %v628
      %v639 = vadd.f32 %v599, %v629
      %v640 = vadd.f32 %v600, %v630
      %v641 = vadd.f32 %v601, %v631
      %v642 = vadd.f32 %v602, %v632
      %v643 = vadd.f32 %v603, %v633
      %v644 = vadd.f32 %v604, %v634
      %v645 = vmul.f32 %v635, 0.7978846
      %v646 = vmul.f32 %v636, 0.7978846
      %v647 = vmul.f32 %v637, 0.7978846
      %v648 = vmul.f32 %v638, 0.7978846
      %v649 = vmul.f32 %v639, 0.7978846
      %v650 = vmul.f32 %v640, 0.7978846
      %v651 = vmul.f32 %v641, 0.7978846
      %v652 = vmul.f32 %v642, 0.7978846
      %v653 = vmul.f32 %v643, 0.7978846
      %v654 = vmul.f32 %v644, 0.7978846
      %v655 = vtanh.pop %v645
      %v656 = vtanh.pop %v646
      %v657 = vtanh.pop %v647
      %v658 = vtanh.pop %v648
      %v659 = vtanh.pop %v649
      %v660 = vtanh.pop %v650
      %v661 = vtanh.pop %v651
      %v662 = vtanh.pop %v652
      %v663 = vtanh.pop %v653
      %v664 = vtanh.pop %v654
      %v665 = vadd.f32 %v655, 1.0
      %v666 = vadd.f32 %v656, 1.0
      %v667 = vadd.f32 %v657, 1.0
      %v668 = vadd.f32 %v658, 1.0
      %v669 = vadd.f32 %v659, 1.0
      %v670 = vadd.f32 %v660, 1.0
      %v671 = vadd.f32 %v661, 1.0
      %v672 = vadd.f32 %v662, 1.0
      %v673 = vadd.f32 %v663, 1.0
      %v674 = vadd.f32 %v664, 1.0
      %v675 = vmul.f32 %v665, 0.5
      %v676 = vmul.f32 %v666, 0.5
      %v677 = vmul.f32 %v667, 0.5
      %v678 = vmul.f32 %v668, 0.5
      %v679 = vmul.f32 %v669, 0.5
      %v680 = vmul.f32 %v670, 0.5
      %v681 = vmul.f32 %v671, 0.5
      %v682 = vmul.f32 %v672, 0.5
      %v683 = vmul.f32 %v673, 0.5
      %v684 = vmul.f32 %v674, 0.5
      %v685 = vmul.f32 %v595, %v675
      %v686 = vmul.f32 %v596, %v676
      %v687 = vmul.f32 %v597, %v677
      %v688 = vmul.f32 %v598, %v678
      %v689 = vmul.f32 %v599, %v679
      %v690 = vmul.f32 %v600, %v680
      %v691 = vmul.f32 %v601, %v681
      %v692 = vmul.f32 %v602, %v682
      %v693 = vmul.f32 %v603, %v683
      %v694 = vmul.f32 %v604, %v684
      %695 = vst.msk [vmem:[%s224] sm:$0xff] %vm484, %v685
      %696 = vst.msk [vmem:[%s224 + $0x8] sm:$0xff] %vm484, %v686
      %697 = vst.msk [vmem:[%s224 + $0x10] sm:$0xff] %vm484, %v687
      %698 = vst.msk [vmem:[%s224 + $0x18] sm:$0xff] %vm484, %v688
      %699 = vst.msk [vmem:[%s224 + $0x20] sm:$0xff] %vm484, %v689
      %700 = vst.msk [vmem:[%s224 + $0x28] sm:$0xff] %vm484, %v690
      %701 = vst.msk [vmem:[%s224 + $0x30] sm:$0xff] %vm484, %v691
      %702 = vst.msk [vmem:[%s224 + $0x38] sm:$0xff] %vm484, %v692
      %703 = vst.msk [vmem:[%s224 + $0x40] sm:$0xff] %vm484, %v693
      %704 = vst.msk [vmem:[%s224 + $0x48] sm:$0x7f] %vm502, %v694
      %p705 = scmp.lt.s32.totalorder %s16, 1
      %s706 = scalar_select %p705, %s16, 1
      %s707 = smul.addr %s706, 10
      %s708 = smul.addr %s707, 8
      %s709 = scalar_lea.vmem %s5, %s708
      // Predicated region
      $region41: #{_lambda_.5} parent=39 // pred_check
        %p710 = pneg %p144
      $region42: #{_lambda_.5} parent=39 // pred_check_branch
        %712 = sbr.rel (%p710) target = $region44
      $region43: #{_lambda_.5} parent=39 // pred_region
        _
      $region44: #{_lambda_.5} parent=39 // pred_fallthru
        _
    $region40: #{_lambda_.5} parent=5 // pred_fallthru
      _
    %p713 = scmp.le.s32.totalorder 2, %s11
    // Predicated region
    $region45: #{_lambda_.5} parent=5 // pred_check
      %p714 = pneg %p713
    $region46: #{_lambda_.5} parent=5 // pred_check_branch
      %716 = sbr.rel (%p714) target = $region48
    $region47: #{_lambda_.5} parent=5 // pred_region
      %s717 = ssub.s32 %s11, 2
      // Predicated region
      $region49: #{_lambda_.5} parent=47 // pred_check
        %p718 = pneg %p150
      $region50: #{_lambda_.5} parent=47 // pred_check_branch
        %720 = sbr.rel (%p718) target = $region52
      $region51: #{_lambda_.5} parent=47 // pred_region
        %p721 = scmp.lt.s32.totalorder %s17, 1
        %s722 = scalar_select %p721, %s17, 1
        %s723 = smul.addr %s722, 10
        %s724 = smul.addr %s723, 8
        %s725 = scalar_lea.vmem %s5, %s724
      $region52: #{_lambda_.5} parent=47 // pred_fallthru
        _
    $region48: #{_lambda_.5} parent=5 // pred_fallthru
      _
  $region6: #{_lambda_.5} parent=0 // loop_footer
    %s15 = sadd.s32 1, %s11
  $region7: #{_lambda_.5} parent=0 // loop_footer_branch
    %10 = sbr.rel target = $region3
  $region8: #{_lambda_.5} parent=0 // loop_exit
    _

// kernel: _lambda_.6
$region0: #{_lambda_.6}
  #allocation0 [shape = 'u32[]', space=smem, size = 0x4, offset = 0x4, fixed_abs, tag = 'smem constant byte address 0x4 - core index']
  #allocation1 [shape = 'u32[144,128]{1,0:T(1,128)}', space=vmem, size = 0x12000, scoped, tag = 'internal scratch']
  %s0 = inlined_call_operand.vmem [shape: f32[2,40,64], index: 0, kind: input, shape index: {}]
  %s1 = inlined_call_operand.vmem [shape: f32[128,32], index: 1, kind: input, shape index: {}]
  %s2 = inlined_call_operand.vmem [shape: f32[1,32], index: 2, kind: input, shape index: {}]
  %s3 = inlined_call_operand.vmem [shape: f32[1,32], index: 3, kind: input, shape index: {}]
  %s4 = inlined_call_operand.vmem [shape: f32[1,32], index: 4, kind: input, shape index: {}]
  %s5 = inlined_call_operand.vmem [shape: bf16[32,32], index: 5, kind: input, shape index: {}]
  %s6 = inlined_call_operand.vmem [shape: f32[1,32], index: 6, kind: input, shape index: {}]
  %s7 = inlined_call_operand.vmem [shape: f32[2,39,32], index: 7, kind: output, shape index: {}]
  %s8 = sld [smem:[#allocation0]]
  $region61: #{_lambda_.6} parent=0
    _
  %s10 = ssub.s32 1, %s8
  %s11 = scalar_select 0, %s10, %s8
  loop: start=0, step=1, limit=4
  $region2: #{_lambda_.6} parent=0 // loop_pre_header
    _
  $region3: #{_lambda_.6} parent=0 // loop_header
    %s13 = sphi 0, %s17
    %p14 = scmp.ge.s32.totalorder %s13, 4
    %s23 = sphi 0, %s25
    %s26 = sphi 0, %s23
    %s27 = sphi 0, %s26
    %s43 = sphi 0, %s27
    %s47 = sphi 0, %s47
    %s49 = sphi 0, %s47
    %s50 = sphi 0, %s49
    %s64 = sphi 0, %s50
    %s68 = sphi 0, %s68
    %s70 = sphi 0, %s68
    %s71 = sphi 0, %s70
    %s85 = sphi 0, %s71
    %s89 = sphi 0, %s89
    %s91 = sphi 0, %s89
    %s92 = sphi 0, %s91
    %s106 = sphi 0, %s92
    %s110 = sphi 0, %s110
    %s112 = sphi 0, %s110
    %s113 = sphi 0, %s112
    %s127 = sphi 0, %s113
    %s131 = sphi 0, %s131
    %s133 = sphi 0, %s131
    %s134 = sphi 0, %s133
    %s148 = sphi 0, %s134
    %s152 = sphi 0, %s152
    %s154 = sphi 0, %s152
    %s155 = sphi 0, %s154
    %s169 = sphi 0, %s155
    %s175 = sphi 0, %s177
    %s178 = sphi 0, %s175
    %s179 = sphi 0, %s178
    %s195 = sphi 0, %s179
  $region4: #{_lambda_.6} parent=0 // loop_header_branch
    %16 = sbr.rel (%p14) target = $region8
  $region5: #{_lambda_.6} parent=0 // loop_body
    %s18 = ssub.s32 %s13, 1
    %s19 = ssub.s32 %s13, 2
    %s20 = sadd.s32 %s13, 1
    %s21 = ssub.s32 %s13, %s20
    %p22 = scmp.eq.s32.totalorder %s21, 0
    %s24 = sadd.s32 %s23, 1
    %s25 = scalar_select %p22, %s23, %s24
    %p28 = pneg %p22
    %p29 = scmp.eq.s32.totalorder %s13, 1
    %p30 = por %p28, %p29
    %p31 = scmp.ne.s32.totalorder %s23, %s26
    %p32 = scmp.eq.s32.totalorder %s13, 0
    %p33 = por %p31, %p32
    %p34 = scmp.ne.s32.totalorder %s23, %s26
    %p35 = scmp.eq.s32.totalorder %s18, 1
    %p36 = por %p34, %p35
    %p37 = scmp.ne.s32.totalorder %s26, %s27
    %p38 = scmp.eq.s32.totalorder %s18, 0
    %p39 = por %p37, %p38
    %p40 = scmp.ne.s32.totalorder %s26, %s27
    %p41 = scmp.eq.s32.totalorder %s19, 1
    %p42 = por %p40, %p41
    %p44 = scmp.ne.s32.totalorder %s27, %s43
    %p45 = scmp.eq.s32.totalorder %s19, 0
    %p46 = por %p44, %p45
    %s48 = sadd.s32 %s47, 1
    %p51 = scmp.eq.s32.totalorder %s13, 1
    %p52 = scmp.ne.s32.totalorder %s47, %s49
    %p53 = scmp.eq.s32.totalorder %s13, 0
    %p54 = por %p52, %p53
    %p55 = scmp.ne.s32.totalorder %s47, %s49
    %p56 = scmp.eq.s32.totalorder %s18, 1
    %p57 = por %p55, %p56
    %p58 = scmp.ne.s32.totalorder %s49, %s50
    %p59 = scmp.eq.s32.totalorder %s18, 0
    %p60 = por %p58, %p59
    %p61 = scmp.ne.s32.totalorder %s49, %s50
    %p62 = scmp.eq.s32.totalorder %s19, 1
    %p63 = por %p61, %p62
    %p65 = scmp.ne.s32.totalorder %s50, %s64
    %p66 = scmp.eq.s32.totalorder %s19, 0
    %p67 = por %p65, %p66
    %s69 = sadd.s32 %s68, 1
    %p72 = scmp.eq.s32.totalorder %s13, 1
    %p73 = scmp.ne.s32.totalorder %s68, %s70
    %p74 = scmp.eq.s32.totalorder %s13, 0
    %p75 = por %p73, %p74
    %p76 = scmp.ne.s32.totalorder %s68, %s70
    %p77 = scmp.eq.s32.totalorder %s18, 1
    %p78 = por %p76, %p77
    %p79 = scmp.ne.s32.totalorder %s70, %s71
    %p80 = scmp.eq.s32.totalorder %s18, 0
    %p81 = por %p79, %p80
    %p82 = scmp.ne.s32.totalorder %s70, %s71
    %p83 = scmp.eq.s32.totalorder %s19, 1
    %p84 = por %p82, %p83
    %p86 = scmp.ne.s32.totalorder %s71, %s85
    %p87 = scmp.eq.s32.totalorder %s19, 0
    %p88 = por %p86, %p87
    %s90 = sadd.s32 %s89, 1
    %p93 = scmp.eq.s32.totalorder %s13, 1
    %p94 = scmp.ne.s32.totalorder %s89, %s91
    %p95 = scmp.eq.s32.totalorder %s13, 0
    %p96 = por %p94, %p95
    %p97 = scmp.ne.s32.totalorder %s89, %s91
    %p98 = scmp.eq.s32.totalorder %s18, 1
    %p99 = por %p97, %p98
    %p100 = scmp.ne.s32.totalorder %s91, %s92
    %p101 = scmp.eq.s32.totalorder %s18, 0
    %p102 = por %p100, %p101
    %p103 = scmp.ne.s32.totalorder %s91, %s92
    %p104 = scmp.eq.s32.totalorder %s19, 1
    %p105 = por %p103, %p104
    %p107 = scmp.ne.s32.totalorder %s92, %s106
    %p108 = scmp.eq.s32.totalorder %s19, 0
    %p109 = por %p107, %p108
    %s111 = sadd.s32 %s110, 1
    %p114 = scmp.eq.s32.totalorder %s13, 1
    %p115 = scmp.ne.s32.totalorder %s110, %s112
    %p116 = scmp.eq.s32.totalorder %s13, 0
    %p117 = por %p115, %p116
    %p118 = scmp.ne.s32.totalorder %s110, %s112
    %p119 = scmp.eq.s32.totalorder %s18, 1
    %p120 = por %p118, %p119
    %p121 = scmp.ne.s32.totalorder %s112, %s113
    %p122 = scmp.eq.s32.totalorder %s18, 0
    %p123 = por %p121, %p122
    %p124 = scmp.ne.s32.totalorder %s112, %s113
    %p125 = scmp.eq.s32.totalorder %s19, 1
    %p126 = por %p124, %p125
    %p128 = scmp.ne.s32.totalorder %s113, %s127
    %p129 = scmp.eq.s32.totalorder %s19, 0
    %p130 = por %p128, %p129
    %s132 = sadd.s32 %s131, 1
    %p135 = scmp.eq.s32.totalorder %s13, 1
    %p136 = scmp.ne.s32.totalorder %s131, %s133
    %p137 = scmp.eq.s32.totalorder %s13, 0
    %p138 = por %p136, %p137
    %p139 = scmp.ne.s32.totalorder %s131, %s133
    %p140 = scmp.eq.s32.totalorder %s18, 1
    %p141 = por %p139, %p140
    %p142 = scmp.ne.s32.totalorder %s133, %s134
    %p143 = scmp.eq.s32.totalorder %s18, 0
    %p144 = por %p142, %p143
    %p145 = scmp.ne.s32.totalorder %s133, %s134
    %p146 = scmp.eq.s32.totalorder %s19, 1
    %p147 = por %p145, %p146
    %p149 = scmp.ne.s32.totalorder %s134, %s148
    %p150 = scmp.eq.s32.totalorder %s19, 0
    %p151 = por %p149, %p150
    %s153 = sadd.s32 %s152, 1
    %p156 = scmp.eq.s32.totalorder %s13, 1
    %p157 = scmp.ne.s32.totalorder %s152, %s154
    %p158 = scmp.eq.s32.totalorder %s13, 0
    %p159 = por %p157, %p158
    %p160 = scmp.ne.s32.totalorder %s152, %s154
    %p161 = scmp.eq.s32.totalorder %s18, 1
    %p162 = por %p160, %p161
    %p163 = scmp.ne.s32.totalorder %s154, %s155
    %p164 = scmp.eq.s32.totalorder %s18, 0
    %p165 = por %p163, %p164
    %p166 = scmp.ne.s32.totalorder %s154, %s155
    %p167 = scmp.eq.s32.totalorder %s19, 1
    %p168 = por %p166, %p167
    %p170 = scmp.ne.s32.totalorder %s155, %s169
    %p171 = scmp.eq.s32.totalorder %s19, 0
    %p172 = por %p170, %p171
    %s173 = ssub.s32 %s13, %s20
    %p174 = scmp.eq.s32.totalorder %s173, 0
    %s176 = sadd.s32 %s175, 1
    %s177 = scalar_select %p174, %s175, %s176
    %p180 = pneg %p174
    %p181 = scmp.eq.s32.totalorder %s13, 1
    %p182 = por %p180, %p181
    %p183 = scmp.ne.s32.totalorder %s175, %s178
    %p184 = scmp.eq.s32.totalorder %s13, 0
    %p185 = por %p183, %p184
    %p186 = scmp.ne.s32.totalorder %s175, %s178
    %p187 = scmp.eq.s32.totalorder %s18, 1
    %p188 = por %p186, %p187
    %p189 = scmp.ne.s32.totalorder %s178, %s179
    %p190 = scmp.eq.s32.totalorder %s18, 0
    %p191 = por %p189, %p190
    %p192 = scmp.ne.s32.totalorder %s178, %s179
    %p193 = scmp.eq.s32.totalorder %s19, 1
    %p194 = por %p192, %p193
    %p196 = scmp.ne.s32.totalorder %s179, %s195
    %p197 = scmp.eq.s32.totalorder %s19, 0
    %p198 = por %p196, %p197
    %p199 = scmp.le.s32.totalorder 1, %s13
    %p200 = scmp.lt.s32.totalorder %s13, 3
    %p201 = pnand %p199, %p200
    %p202 = pneg %p201
    // Predicated region
    $region9: #{_lambda_.6} parent=5 // pred_check
      _
    $region10: #{_lambda_.6} parent=5 // pred_check_branch
      %204 = sbr.rel (%p201) target = $region12
    $region11: #{_lambda_.6} parent=5 // pred_region
      %s205 = ssub.s32 %s13, 1
      // Predicated region
      $region13: #{_lambda_.6} parent=11 // pred_check
        %p206 = pneg %p60
      $region14: #{_lambda_.6} parent=11 // pred_check_branch
        %208 = sbr.rel (%p206) target = $region16
      $region15: #{_lambda_.6} parent=11 // pred_region
        _
      $region16: #{_lambda_.6} parent=11 // pred_fallthru
        _
      // Predicated region
      $region17: #{_lambda_.6} parent=11 // pred_check
        %p209 = pneg %p81
      $region18: #{_lambda_.6} parent=11 // pred_check_branch
        %211 = sbr.rel (%p209) target = $region20
      $region19: #{_lambda_.6} parent=11 // pred_region
        _
      $region20: #{_lambda_.6} parent=11 // pred_fallthru
        _
      // Predicated region
      $region21: #{_lambda_.6} parent=11 // pred_check
        %p212 = pneg %p102
      $region22: #{_lambda_.6} parent=11 // pred_check_branch
        %214 = sbr.rel (%p212) target = $region24
      $region23: #{_lambda_.6} parent=11 // pred_region
        _
      $region24: #{_lambda_.6} parent=11 // pred_fallthru
        _
      // Predicated region
      $region25: #{_lambda_.6} parent=11 // pred_check
        %p215 = pneg %p123
      $region26: #{_lambda_.6} parent=11 // pred_check_branch
        %217 = sbr.rel (%p215) target = $region28
      $region27: #{_lambda_.6} parent=11 // pred_region
        _
      $region28: #{_lambda_.6} parent=11 // pred_fallthru
        _
      // Predicated region
      $region29: #{_lambda_.6} parent=11 // pred_check
        %p218 = pneg %p144
      $region30: #{_lambda_.6} parent=11 // pred_check_branch
        %220 = sbr.rel (%p218) target = $region32
      $region31: #{_lambda_.6} parent=11 // pred_region
        _
      $region32: #{_lambda_.6} parent=11 // pred_fallthru
        _
      // Predicated region
      $region33: #{_lambda_.6} parent=11 // pred_check
        %p221 = pneg %p165
      $region34: #{_lambda_.6} parent=11 // pred_check_branch
        %223 = sbr.rel (%p221) target = $region36
      $region35: #{_lambda_.6} parent=11 // pred_region
        _
      $region36: #{_lambda_.6} parent=11 // pred_fallthru
        _
    $region12: #{_lambda_.6} parent=5 // pred_fallthru
      _
    %p224 = scmp.lt.s32.totalorder %s13, 2
    // Predicated region
    $region37: #{_lambda_.6} parent=5 // pred_check
      %p225 = pneg %p224
    $region38: #{_lambda_.6} parent=5 // pred_check_branch
      %227 = sbr.rel (%p225) target = $region40
    $region39: #{_lambda_.6} parent=5 // pred_region
      // Predicated region
      $region41: #{_lambda_.6} parent=39 // pred_check
        %p228 = pneg %p33
      $region42: #{_lambda_.6} parent=39 // pred_check_branch
        %230 = sbr.rel (%p228) target = $region44
      $region43: #{_lambda_.6} parent=39 // pred_region
        %p231 = scmp.lt.s32.totalorder %s13, 1
        %s232 = scalar_select %p231, %s13, 1
        %s233 = smul.addr %s232, 5
        %s234 = smul.addr %s233, 8
        %s235 = scalar_lea.vmem %s0, %s234
      $region44: #{_lambda_.6} parent=39 // pred_fallthru
        _
    $region40: #{_lambda_.6} parent=5 // pred_fallthru
      _
    %p236 = scmp.le.s32.totalorder 1, %s13
    %p237 = scmp.lt.s32.totalorder %s13, 3
    %p238 = pnand %p236, %p237
    %p239 = pneg %p238
    // Predicated region
    $region45: #{_lambda_.6} parent=5 // pred_check
      _
    $region46: #{_lambda_.6} parent=5 // pred_check_branch
      %241 = sbr.rel (%p238) target = $region48
    $region47: #{_lambda_.6} parent=5 // pred_region
      %s242 = ssub.s32 %s13, 1
      %p243 = scmp.lt.s32.totalorder %s18, 1
      %s244 = scalar_select %p243, %s18, 1
      %s245 = smul.addr %s244, 5
      %s246 = smul.addr %s245, 8
      %s247 = scalar_lea.vmem %s0, %s246
      %p248 = pneg %p39
      %p249 = pneg %p36
      %p250 = pneg %p60
      %p251 = pneg %p57
      %p252 = pneg %p81
      %p253 = pneg %p78
      %p254 = pneg %p102
      %p255 = pneg %p99
      %p256 = pneg %p123
      %p257 = pneg %p120
      %p258 = pneg %p144
      %p259 = pneg %p141
      %p260 = pneg %p165
      %p261 = pneg %p162
      %p262 = pneg %p191
      %p263 = pneg %p188
      %p264 = scmp.lt.s32.totalorder %s18, 1
      %s265 = scalar_select %p264, %s18, 1
      %s266 = smul.addr %s265, 5
      %s267 = smul.addr %s266, 8
      %s268 = scalar_lea.vmem %s7, %s267
      %p269 = scmp.lt.s32.totalorder %s18, 1
      %s270 = scalar_select %p269, %s18, 1
      %s271 = smul.addr %s270, 5
      %s272 = smul.addr %s271, 8
      %s273 = scalar_lea.vmem %s0, %s272
      %p274 = scmp.lt.s32.totalorder %s18, 1
      %s275 = scalar_select %p274, %s18, 1
      %s276 = smul.addr %s275, 5
      %s277 = smul.addr %s276, 8
      %s278 = scalar_lea.vmem %s7, %s277
      %v280 = vld [vmem:[%s273] sm:$0xff]
      %v281 = vld [vmem:[%s273 + $0x8] sm:$0xff]
      %v282 = vld [vmem:[%s273 + $0x10] sm:$0xff]
      %v283 = vld [vmem:[%s273 + $0x18] sm:$0xff]
      %v284 = vld [vmem:[%s273 + $0x20] sm:$0xff]
      %v285 = vld [vmem:[%s1] sm:$0xff]
      %v286 = vld [vmem:[%s1 + $0x8] sm:$0xff]
      %v287 = vld [vmem:[%s1 + $0x10] sm:$0xff]
      %v288 = vld [vmem:[%s1 + $0x18] sm:$0xff]
      %v289 = vld [vmem:[%s1 + $0x20] sm:$0xff]
      %v290 = vld [vmem:[%s1 + $0x28] sm:$0xff]
      %v291 = vld [vmem:[%s1 + $0x30] sm:$0xff]
      %v292 = vld [vmem:[%s1 + $0x38] sm:$0xff]
      %v293 = vpack.c.bf16 %v281, %v280
      %v294 = vpack.c.bf16 %v283, %v282
      %v295 = vpack.c.bf16 %v284, %v284
      %v296 = vpack.c.bf16 %v286, %v285
      %v297 = vpack.c.bf16 %v288, %v287
      %v298 = vpack.c.bf16 %v290, %v289
      %v299 = vpack.c.bf16 %v292, %v291
      %v300 = vld [vmem:[%s1 + $0x40] sm:$0xff]
      %v301 = vld [vmem:[%s1 + $0x48] sm:$0xff]
      %v302 = vld [vmem:[%s1 + $0x50] sm:$0xff]
      %v303 = vld [vmem:[%s1 + $0x58] sm:$0xff]
      %v304 = vld [vmem:[%s1 + $0x60] sm:$0xff]
      %v305 = vld [vmem:[%s1 + $0x68] sm:$0xff]
      %v306 = vld [vmem:[%s1 + $0x70] sm:$0xff]
      %v307 = vld [vmem:[%s1 + $0x78] sm:$0xff]
      %v308 = vpack.c.bf16 %v301, %v300
      %v309 = vpack.c.bf16 %v303, %v302
      %v310 = vpack.c.bf16 %v305, %v304
      %v311 = vpack.c.bf16 %v307, %v306
      %vm312 = vsmask.f32 7424
      %v314 = vshrl.u32 %v293, 16
      %v316 = vshll.u32 %v293, 16
      %v318 = vrot.slane %v316, 1
      %v319 = vor.u32 %v314, %v318
      %v321 = vshll.u32 %v294, 16
      %v323 = vrot.slane %v321, 1
      %v324 = vsel %vm312, %v319, %v323
      %v325 = vshrl.u32 %v294, 16
      %v327 = vor.u32 %v325, %v323
      %v329 = vshll.u32 %v295, 16
      %v331 = vrot.slane %v329, 1
      %v332 = vsel %vm312, %v327, %v331
      %v333 = vshrl.u32 %v295, 16
      %v335 = vor.u32 %v333, %v331
      %vm336 = vcmask 523264
      %v338 = vsel %vm336, %v324, 0
      %v341 = vsel %vm336, %v332, 0
      %v344 = vsel %vm336, %v335, 0
      %346 = vmatprep.subr.bf16.mxu0 0
      %347 = vmatpush1.bf16.msra.mxu0 %v308
      %348 = vmatprep.subr.bf16.mxu0 0
      %349 = vmatpush1.bf16.msra.mxu0 %v309
      %350 = vmatprep.subr.bf16.mxu0 0
      %351 = vmatpush1.bf16.msra.mxu0 %v310
      %352 = vmatprep.subr.bf16.mxu0 0
      %353 = vmatpush1.bf16.msra.mxu0 %v311
      %354 = vmatprep.subr.bf16.mxu0 0
      %355 = vmatpush1.bf16.msra.mxu0 0
      %356 = vmatprep.subr.bf16.mxu0 0
      %357 = vmatpush1.bf16.msra.mxu0 0
      %358 = vmatprep.subr.bf16.mxu0 0
      %359 = vmatpush1.bf16.msra.mxu0 0
      %360 = vmatprep.subr.bf16.mxu0 0
      %361 = vmatpush1.bf16.msra.mxu0 0
      %362 = vmatprep.subr.bf16.mxu0 0
      %363 = vmatpush1.bf16.msra.mxu0 0
      %364 = vmatprep.subr.bf16.mxu0 0
      %365 = vmatpush1.bf16.msra.mxu0 0
      %366 = vmatprep.subr.bf16.mxu0 0
      %367 = vmatpush1.bf16.msra.mxu0 0
      %368 = vmatprep.subr.bf16.mxu0 0
      %369 = vmatpush1.bf16.msra.mxu0 0
      %370 = vmatprep.subr.bf16.mxu0 0
      %371 = vmatpush1.bf16.msra.mxu0 0
      %372 = vmatprep.subr.bf16.mxu0 0
      %373 = vmatpush1.bf16.msra.mxu0 0
      %374 = vmatprep.subr.bf16.mxu0 0
      %375 = vmatpush1.bf16.msra.mxu0 0
      %376 = vmatprep.subr.bf16.mxu0 0
      %377 = vmatpush1.bf16.msra.mxu0 0
      %378 = vmatprep.mubr.bf16.mxu0 0
      %379 = vmatmul.mubr.bf16.gmra.mrb[0].mxu0 %v338
      %v380 = vpop.f32.mrb[0].mxu0
      %v381 = vadd.f32 0.0, %v380
      %v382 = vpop.f32.mrb[0].mxu0
      %v383 = vpop.f32.mrb[0].mxu0
      %v384 = vadd.f32 0.0, %v383
      %v385 = vpop.f32.mrb[0].mxu0
      %386 = vmatprep.mubr.bf16.mxu0 0
      %387 = vmatmul.mubr.bf16.gmra.mrb[0].mxu0 %v341
      %v388 = vpop.f32.mrb[0].mxu0
      %v389 = vadd.f32 0.0, %v388
      %v390 = vpop.f32.mrb[0].mxu0
      %v391 = vpop.f32.mrb[0].mxu0
      %v392 = vadd.f32 0.0, %v391
      %v393 = vpop.f32.mrb[0].mxu0
      %394 = vmatprep.mubr.bf16.mxu0 0
      %395 = vmatmul.mubr.bf16.gmra.mrb[0].mxu0 %v344
      %v396 = vpop.f32.mrb[0].mxu0
      %v397 = vadd.f32 0.0, %v396
      %v398 = vpop.f32.mrb[0].mxu0
      %v399 = vpop.f32.mrb[0].mxu0
      %v400 = vpop.f32.mrb[0].mxu0
      %401 = vdwg.mxu0
      %v402 = vsel %vm336, %v293, 0
      %v404 = vsel %vm336, %v294, 0
      %v406 = vsel %vm336, %v295, 0
      %408 = vmatprep.subr.bf16.mxu0 0
      %409 = vmatpush1.bf16.msra.mxu0 %v296
      %410 = vmatprep.subr.bf16.mxu0 0
      %411 = vmatpush1.bf16.msra.mxu0 %v297
      %412 = vmatprep.subr.bf16.mxu0 0
      %413 = vmatpush1.bf16.msra.mxu0 %v298
      %414 = vmatprep.subr.bf16.mxu0 0
      %415 = vmatpush1.bf16.msra.mxu0 %v299
      %416 = vmatprep.subr.bf16.mxu0 0
      %417 = vmatpush1.bf16.msra.mxu0 0
      %418 = vmatprep.subr.bf16.mxu0 0
      %419 = vmatpush1.bf16.msra.mxu0 0
      %420 = vmatprep.subr.bf16.mxu0 0
      %421 = vmatpush1.bf16.msra.mxu0 0
      %422 = vmatprep.subr.bf16.mxu0 0
      %423 = vmatpush1.bf16.msra.mxu0 0
      %424 = vmatprep.subr.bf16.mxu0 0
      %425 = vmatpush1.bf16.msra.mxu0 0
      %426 = vmatprep.subr.bf16.mxu0 0
      %427 = vmatpush1.bf16.msra.mxu0 0
      %428 = vmatprep.subr.bf16.mxu0 0
      %429 = vmatpush1.bf16.msra.mxu0 0
      %430 = vmatprep.subr.bf16.mxu0 0
      %431 = vmatpush1.bf16.msra.mxu0 0
      %432 = vmatprep.subr.bf16.mxu0 0
      %433 = vmatpush1.bf16.msra.mxu0 0
      %434 = vmatprep.subr.bf16.mxu0 0
      %435 = vmatpush1.bf16.msra.mxu0 0
      %436 = vmatprep.subr.bf16.mxu0 0
      %437 = vmatpush1.bf16.msra.mxu0 0
      %438 = vmatprep.subr.bf16.mxu0 0
      %439 = vmatpush1.bf16.msra.mxu0 0
      %440 = vmatprep.mubr.bf16.mxu0 0
      %441 = vmatmul.mubr.bf16.gmra.mrb[0].mxu0 %v402
      %v442 = vpop.f32.mrb[0].mxu0
      %v443 = vadd.f32 %v381, %v442
      %v444 = vpop.f32.mrb[0].mxu0
      %v445 = vpop.f32.mrb[0].mxu0
      %v446 = vadd.f32 %v384, %v445
      %v447 = vpop.f32.mrb[0].mxu0
      %448 = vmatprep.mubr.bf16.mxu0 0
      %449 = vmatmul.mubr.bf16.gmra.mrb[0].mxu0 %v404
      %v450 = vpop.f32.mrb[0].mxu0
      %v451 = vadd.f32 %v389, %v450
      %v452 = vpop.f32.mrb[0].mxu0
      %v453 = vpop.f32.mrb[0].mxu0
      %v454 = vadd.f32 %v392, %v453
      %v455 = vpop.f32.mrb[0].mxu0
      %456 = vmatprep.mubr.bf16.mxu0 0
      %457 = vmatmul.mubr.bf16.gmra.mrb[0].mxu0 %v406
      %v458 = vpop.f32.mrb[0].mxu0
      %v459 = vadd.f32 %v397, %v458
      %v460 = vpop.f32.mrb[0].mxu0
      %v461 = vpop.f32.mrb[0].mxu0
      %v462 = vpop.f32.mrb[0].mxu0
      %463 = vdwg.mxu0
      %v464 = vld [vmem:[%s2] sm:$0x1]
      %v466 = vlaneseq
      %v467 = vshrl.u32 %v466, 7
      %v468 = vsub.s32 0, %v467
      %v469 = vrot.slane %v464, %v468
      %v471 = vadd.f32 %v443, %v469
      %v472 = vadd.f32 %v446, %v469
      %v473 = vadd.f32 %v451, %v469
      %v474 = vadd.f32 %v454, %v469
      %v475 = vadd.f32 %v459, %v469
      %v476 = vmul.f32 %v471, %v471
      %v477 = vmul.f32 %v472, %v472
      %v478 = vmul.f32 %v473, %v473
      %v479 = vmul.f32 %v474, %v474
      %v480 = vmul.f32 %v475, %v475
      %v481 = vmul.f32 %v471, %v476
      %v482 = vmul.f32 %v472, %v477
      %v483 = vmul.f32 %v473, %v478
      %v484 = vmul.f32 %v474, %v479
      %v485 = vmul.f32 %v475, %v480
      %v486 = vmul.f32 %v481, 0.044715
      %v487 = vmul.f32 %v482, 0.044715
      %v488 = vmul.f32 %v483, 0.044715
      %v489 = vmul.f32 %v484, 0.044715
      %v490 = vmul.f32 %v485, 0.044715
      %v491 = vadd.f32 %v471, %v486
      %v492 = vadd.f32 %v472, %v487
      %v493 = vadd.f32 %v473, %v488
      %v494 = vadd.f32 %v474, %v489
      %v495 = vadd.f32 %v475, %v490
      %v496 = vmul.f32 %v491, 0.7978846
      %v497 = vmul.f32 %v492, 0.7978846
      %v498 = vmul.f32 %v493, 0.7978846
      %v499 = vmul.f32 %v494, 0.7978846
      %v500 = vmul.f32 %v495, 0.7978846
      %v501 = vtanh.pop %v496
      %v502 = vtanh.pop %v497
      %v503 = vtanh.pop %v498
      %v504 = vtanh.pop %v499
      %v505 = vtanh.pop %v500
      %v506 = vadd.f32 %v501, 1.0
      %v507 = vadd.f32 %v502, 1.0
      %v508 = vadd.f32 %v503, 1.0
      %v509 = vadd.f32 %v504, 1.0
      %v510 = vadd.f32 %v505, 1.0
      %v511 = vmul.f32 %v506, 0.5
      %v512 = vmul.f32 %v507, 0.5
      %v513 = vmul.f32 %v508, 0.5
      %v514 = vmul.f32 %v509, 0.5
      %v515 = vmul.f32 %v510, 0.5
      %v516 = vmul.f32 %v471, %v511
      %v517 = vmul.f32 %v472, %v512
      %v518 = vmul.f32 %v473, %v513
      %v519 = vmul.f32 %v474, %v514
      %v520 = vmul.f32 %v475, %v515
      %v521 = vld [vmem:[%s3] sm:$0x1]
      %v522 = vld [vmem:[%s4] sm:$0x1]
      %vm523 = vcmask 261120
      %v524 = vsel %vm523, %v516, 0.0
      %525 = vadd.xlane.f32.xlu0 %v524
      %v526 = vpop.xlane.xlu0 %525
      %v527 = vsel %vm523, %v517, 0.0
      %528 = vadd.xlane.f32.xlu0 %v527
      %v529 = vpop.xlane.xlu0 %528
      %v530 = vsel %vm523, %v518, 0.0
      %531 = vadd.xlane.f32.xlu0 %v530
      %v532 = vpop.xlane.xlu0 %531
      %v533 = vsel %vm523, %v519, 0.0
      %534 = vadd.xlane.f32.xlu0 %v533
      %v535 = vpop.xlane.xlu0 %534
      %vm536 = vcmask 260096
      %v537 = vsel %vm536, %v520, 0.0
      %538 = vadd.xlane.f32.xlu0 %v537
      %v539 = vpop.xlane.xlu0 %538
      %v540 = vrcp.pop 32.0
      %v541 = vmul.f32 %v526, %v540
      %v542 = vmul.f32 %v529, %v540
      %v543 = vmul.f32 %v532, %v540
      %v544 = vmul.f32 %v535, %v540
      %v545 = vmul.f32 %v539, %v540
      %v546 = vsub.f32 %v516, %v541
      %v547 = vsub.f32 %v517, %v542
      %v548 = vsub.f32 %v518, %v543
      %v549 = vsub.f32 %v519, %v544
      %v550 = vsub.f32 %v520, %v545
      %v551 = vmul.f32 %v546, %v546
      %v552 = vmul.f32 %v547, %v547
      %v553 = vmul.f32 %v548, %v548
      %v554 = vmul.f32 %v549, %v549
      %v555 = vmul.f32 %v550, %v550
      %v556 = vsel %vm523, %v551, 0.0
      %557 = vadd.xlane.f32.xlu0 %v556
      %v558 = vpop.xlane.xlu0 %557
      %v559 = vsel %vm523, %v552, 0.0
      %560 = vadd.xlane.f32.xlu0 %v559
      %v561 = vpop.xlane.xlu0 %560
      %v562 = vsel %vm523, %v553, 0.0
      %563 = vadd.xlane.f32.xlu0 %v562
      %v564 = vpop.xlane.xlu0 %563
      %v565 = vsel %vm523, %v554, 0.0
      %566 = vadd.xlane.f32.xlu0 %v565
      %v567 = vpop.xlane.xlu0 %566
      %v568 = vsel %vm536, %v555, 0.0
      %569 = vadd.xlane.f32.xlu0 %v568
      %v570 = vpop.xlane.xlu0 %569
      %v571 = vmul.f32 %v558, %v540
      %v572 = vmul.f32 %v561, %v540
      %v573 = vmul.f32 %v564, %v540
      %v574 = vmul.f32 %v567, %v540
      %v575 = vmul.f32 %v570, %v540
      %v576 = vadd.f32 %v571, 1e-05
      %v577 = vadd.f32 %v572, 1e-05
      %v578 = vadd.f32 %v573, 1e-05
      %v579 = vadd.f32 %v574, 1e-05
      %v580 = vadd.f32 %v575, 1e-05
      %v581 = vrsqrt.pop %v576
      %v582 = vrsqrt.pop %v577
      %v583 = vrsqrt.pop %v578
      %v584 = vrsqrt.pop %v579
      %v585 = vrsqrt.pop %v580
      %v586 = vmul.f32 %v546, %v581
      %v587 = vmul.f32 %v547, %v582
      %v588 = vmul.f32 %v548, %v583
      %v589 = vmul.f32 %v549, %v584
      %v590 = vmul.f32 %v550, %v585
      %v592 = vlaneseq
      %v593 = vshrl.u32 %v592, 7
      %v594 = vsub.s32 0, %v593
      %v595 = vrot.slane %v521, %v594
      %v597 = vmul.f32 %v586, %v595
      %v598 = vmul.f32 %v587, %v595
      %v599 = vmul.f32 %v588, %v595
      %v600 = vmul.f32 %v589, %v595
      %v601 = vmul.f32 %v590, %v595
      %v603 = vlaneseq
      %v604 = vshrl.u32 %v603, 7
      %v605 = vsub.s32 0, %v604
      %v606 = vrot.slane %v522, %v605
      %v608 = vadd.f32 %v597, %v606
      %v609 = vadd.f32 %v598, %v606
      %v610 = vadd.f32 %v599, %v606
      %v611 = vadd.f32 %v600, %v606
      %v612 = vadd.f32 %v601, %v606
      %v613 = vld [vmem:[%s5] sm:$0xf]
      %v614 = vld [vmem:[%s5 + $0x4] sm:$0xf]
      %v615 = vld [vmem:[%s5 + $0x8] sm:$0xf]
      %v616 = vld [vmem:[%s5 + $0xc] sm:$0xf]
      %v617 = vpack.c.bf16 %v609, %v608
      %v618 = vpack.c.bf16 %v611, %v610
      %v619 = vpack.c.bf16 %v612, %v612
      %v620 = vld [vmem:[%s6] sm:$0x1]
      %v622 = vlaneseq
      %v623 = vshrl.u32 %v622, 7
      %v624 = vsub.s32 0, %v623
      %v625 = vrot.slane %v620, %v624
      %v631 = vunpack.c.l.b16 %v613
      %v632 = vunpack.c.l.b16 %v614
      %v633 = vunpack.c.l.b16 %v615
      %v634 = vunpack.c.l.b16 %v616
      %v635 = vpack.c.b16 %v632, %v631
      %v636 = vpack.c.b16 %v634, %v633
      %v640 = vsel %vm523, %v617, 0
      %v643 = vsel %vm523, %v618, 0
      %v646 = vsel %vm523, %v619, 0
      %648 = vmatprep.subr.bf16.mxu0 0
      %649 = vmatpush1.bf16.msra.mxu0 %v635
      %650 = vmatprep.subr.bf16.mxu0 0
      %651 = vmatpush1.bf16.msra.mxu0 %v636
      %652 = vmatprep.subr.bf16.mxu0 0
      %653 = vmatpush1.bf16.msra.mxu0 0
      %654 = vmatprep.subr.bf16.mxu0 0
      %655 = vmatpush1.bf16.msra.mxu0 0
      %656 = vmatprep.subr.bf16.mxu0 0
      %657 = vmatpush1.bf16.msra.mxu0 0
      %658 = vmatprep.subr.bf16.mxu0 0
      %659 = vmatpush1.bf16.msra.mxu0 0
      %660 = vmatprep.subr.bf16.mxu0 0
      %661 = vmatpush1.bf16.msra.mxu0 0
      %662 = vmatprep.subr.bf16.mxu0 0
      %663 = vmatpush1.bf16.msra.mxu0 0
      %664 = vmatprep.subr.bf16.mxu0 0
      %665 = vmatpush1.bf16.msra.mxu0 0
      %666 = vmatprep.subr.bf16.mxu0 0
      %667 = vmatpush1.bf16.msra.mxu0 0
      %668 = vmatprep.subr.bf16.mxu0 0
      %669 = vmatpush1.bf16.msra.mxu0 0
      %670 = vmatprep.subr.bf16.mxu0 0
      %671 = vmatpush1.bf16.msra.mxu0 0
      %672 = vmatprep.subr.bf16.mxu0 0
      %673 = vmatpush1.bf16.msra.mxu0 0
      %674 = vmatprep.subr.bf16.mxu0 0
      %675 = vmatpush1.bf16.msra.mxu0 0
      %676 = vmatprep.subr.bf16.mxu0 0
      %677 = vmatpush1.bf16.msra.mxu0 0
      %678 = vmatprep.subr.bf16.mxu0 0
      %679 = vmatpush1.bf16.msra.mxu0 0
      %680 = vmatprep.mubr.bf16.mxu0 0
      %681 = vmatmul.mubr.bf16.gmra.mrb[0].mxu0 %v640
      %v682 = vpop.f32.mrb[0].mxu0
      %v683 = vadd.f32 %v625, %v682
      %v684 = vpop.f32.mrb[0].mxu0
      %v685 = vpop.f32.mrb[0].mxu0
      %v686 = vadd.f32 %v625, %v685
      %v687 = vpop.f32.mrb[0].mxu0
      %688 = vmatprep.mubr.bf16.mxu0 0
      %689 = vmatmul.mubr.bf16.gmra.mrb[0].mxu0 %v643
      %v690 = vpop.f32.mrb[0].mxu0
      %v691 = vadd.f32 %v625, %v690
      %v692 = vpop.f32.mrb[0].mxu0
      %v693 = vpop.f32.mrb[0].mxu0
      %v694 = vadd.f32 %v625, %v693
      %v695 = vpop.f32.mrb[0].mxu0
      %696 = vmatprep.mubr.bf16.mxu0 0
      %697 = vmatmul.mubr.bf16.gmra.mrb[0].mxu0 %v646
      %v698 = vpop.f32.mrb[0].mxu0
      %v699 = vadd.f32 %v625, %v698
      %v700 = vpop.f32.mrb[0].mxu0
      %v701 = vpop.f32.mrb[0].mxu0
      %v702 = vpop.f32.mrb[0].mxu0
      %703 = vdwg.mxu0
      %704 = vst.msk [vmem:[%s278] sm:$0xff] %vm523, %v683
      %705 = vst.msk [vmem:[%s278 + $0x8] sm:$0xff] %vm523, %v686
      %706 = vst.msk [vmem:[%s278 + $0x10] sm:$0xff] %vm523, %v691
      %707 = vst.msk [vmem:[%s278 + $0x18] sm:$0xff] %vm523, %v694
      %708 = vst.msk [vmem:[%s278 + $0x20] sm:$0x7f] %vm536, %v699
      %p709 = scmp.lt.s32.totalorder %s18, 1
      %s710 = scalar_select %p709, %s18, 1
      %s711 = smul.addr %s710, 5
      %s712 = smul.addr %s711, 8
      %s713 = scalar_lea.vmem %s7, %s712
      // Predicated region
      $region49: #{_lambda_.6} parent=47 // pred_check
        %p714 = pneg %p188
      $region50: #{_lambda_.6} parent=47 // pred_check_branch
        %716 = sbr.rel (%p714) target = $region52
      $region51: #{_lambda_.6} parent=47 // pred_region
        _
      $region52: #{_lambda_.6} parent=47 // pred_fallthru
        _
    $region48: #{_lambda_.6} parent=5 // pred_fallthru
      _
    %p717 = scmp.le.s32.totalorder 2, %s13
    // Predicated region
    $region53: #{_lambda_.6} parent=5 // pred_check
      %p718 = pneg %p717
    $region54: #{_lambda_.6} parent=5 // pred_check_branch
      %720 = sbr.rel (%p718) target = $region56
    $region55: #{_lambda_.6} parent=5 // pred_region
      %s721 = ssub.s32 %s13, 2
      // Predicated region
      $region57: #{_lambda_.6} parent=55 // pred_check
        %p722 = pneg %p194
      $region58: #{_lambda_.6} parent=55 // pred_check_branch
        %724 = sbr.rel (%p722) target = $region60
      $region59: #{_lambda_.6} parent=55 // pred_region
        %p725 = scmp.lt.s32.totalorder %s19, 1
        %s726 = scalar_select %p725, %s19, 1
        %s727 = smul.addr %s726, 5
        %s728 = smul.addr %s727, 8
        %s729 = scalar_lea.vmem %s7, %s728
      $region60: #{_lambda_.6} parent=55 // pred_fallthru
        _
    $region56: #{_lambda_.6} parent=5 // pred_fallthru
      _
  $region6: #{_lambda_.6} parent=0 // loop_footer
    %s17 = sadd.s32 1, %s13
  $region7: #{_lambda_.6} parent=0 // loop_footer_branch
    %12 = sbr.rel target = $region3
  $region8: #{_lambda_.6} parent=0 // loop_exit
    _

// kernel: _lambda_.7
$region0: #{_lambda_.7}
  #allocation0 [shape = 'u32[]', space=smem, size = 0x4, offset = 0x4, fixed_abs, tag = 'smem constant byte address 0x4 - core index']
  #allocation1 [shape = 'u32[144,128]{1,0:T(1,128)}', space=vmem, size = 0x12000, scoped, tag = 'internal scratch']
  %s0 = inlined_call_operand.vmem [shape: f32[2,43,32], index: 0, kind: input, shape index: {}]
  %s1 = inlined_call_operand.vmem [shape: f32[160,32], index: 1, kind: input, shape index: {}]
  %s2 = inlined_call_operand.vmem [shape: f32[1,32], index: 2, kind: input, shape index: {}]
  %s3 = inlined_call_operand.vmem [shape: f32[1,32], index: 3, kind: input, shape index: {}]
  %s4 = inlined_call_operand.vmem [shape: f32[1,32], index: 4, kind: input, shape index: {}]
  %s5 = inlined_call_operand.vmem [shape: f32[2,39,32], index: 5, kind: output, shape index: {}]
  %s6 = sld [smem:[#allocation0]]
  $region53: #{_lambda_.7} parent=0
    _
  %s8 = ssub.s32 1, %s6
  %s9 = scalar_select 0, %s8, %s6
  loop: start=0, step=1, limit=4
  $region2: #{_lambda_.7} parent=0 // loop_pre_header
    _
  $region3: #{_lambda_.7} parent=0 // loop_header
    %s11 = sphi 0, %s15
    %p12 = scmp.ge.s32.totalorder %s11, 4
    %s21 = sphi 0, %s23
    %s24 = sphi 0, %s21
    %s25 = sphi 0, %s24
    %s41 = sphi 0, %s25
    %s45 = sphi 0, %s45
    %s47 = sphi 0, %s45
    %s48 = sphi 0, %s47
    %s62 = sphi 0, %s48
    %s66 = sphi 0, %s66
    %s68 = sphi 0, %s66
    %s69 = sphi 0, %s68
    %s83 = sphi 0, %s69
    %s87 = sphi 0, %s87
    %s89 = sphi 0, %s87
    %s90 = sphi 0, %s89
    %s104 = sphi 0, %s90
    %s108 = sphi 0, %s108
    %s110 = sphi 0, %s108
    %s111 = sphi 0, %s110
    %s125 = sphi 0, %s111
    %s131 = sphi 0, %s133
    %s134 = sphi 0, %s131
    %s135 = sphi 0, %s134
    %s151 = sphi 0, %s135
  $region4: #{_lambda_.7} parent=0 // loop_header_branch
    %14 = sbr.rel (%p12) target = $region8
  $region5: #{_lambda_.7} parent=0 // loop_body
    %s16 = ssub.s32 %s11, 1
    %s17 = ssub.s32 %s11, 2
    %s18 = sadd.s32 %s11, 1
    %s19 = ssub.s32 %s11, %s18
    %p20 = scmp.eq.s32.totalorder %s19, 0
    %s22 = sadd.s32 %s21, 1
    %s23 = scalar_select %p20, %s21, %s22
    %p26 = pneg %p20
    %p27 = scmp.eq.s32.totalorder %s11, 1
    %p28 = por %p26, %p27
    %p29 = scmp.ne.s32.totalorder %s21, %s24
    %p30 = scmp.eq.s32.totalorder %s11, 0
    %p31 = por %p29, %p30
    %p32 = scmp.ne.s32.totalorder %s21, %s24
    %p33 = scmp.eq.s32.totalorder %s16, 1
    %p34 = por %p32, %p33
    %p35 = scmp.ne.s32.totalorder %s24, %s25
    %p36 = scmp.eq.s32.totalorder %s16, 0
    %p37 = por %p35, %p36
    %p38 = scmp.ne.s32.totalorder %s24, %s25
    %p39 = scmp.eq.s32.totalorder %s17, 1
    %p40 = por %p38, %p39
    %p42 = scmp.ne.s32.totalorder %s25, %s41
    %p43 = scmp.eq.s32.totalorder %s17, 0
    %p44 = por %p42, %p43
    %s46 = sadd.s32 %s45, 1
    %p49 = scmp.eq.s32.totalorder %s11, 1
    %p50 = scmp.ne.s32.totalorder %s45, %s47
    %p51 = scmp.eq.s32.totalorder %s11, 0
    %p52 = por %p50, %p51
    %p53 = scmp.ne.s32.totalorder %s45, %s47
    %p54 = scmp.eq.s32.totalorder %s16, 1
    %p55 = por %p53, %p54
    %p56 = scmp.ne.s32.totalorder %s47, %s48
    %p57 = scmp.eq.s32.totalorder %s16, 0
    %p58 = por %p56, %p57
    %p59 = scmp.ne.s32.totalorder %s47, %s48
    %p60 = scmp.eq.s32.totalorder %s17, 1
    %p61 = por %p59, %p60
    %p63 = scmp.ne.s32.totalorder %s48, %s62
    %p64 = scmp.eq.s32.totalorder %s17, 0
    %p65 = por %p63, %p64
    %s67 = sadd.s32 %s66, 1
    %p70 = scmp.eq.s32.totalorder %s11, 1
    %p71 = scmp.ne.s32.totalorder %s66, %s68
    %p72 = scmp.eq.s32.totalorder %s11, 0
    %p73 = por %p71, %p72
    %p74 = scmp.ne.s32.totalorder %s66, %s68
    %p75 = scmp.eq.s32.totalorder %s16, 1
    %p76 = por %p74, %p75
    %p77 = scmp.ne.s32.totalorder %s68, %s69
    %p78 = scmp.eq.s32.totalorder %s16, 0
    %p79 = por %p77, %p78
    %p80 = scmp.ne.s32.totalorder %s68, %s69
    %p81 = scmp.eq.s32.totalorder %s17, 1
    %p82 = por %p80, %p81
    %p84 = scmp.ne.s32.totalorder %s69, %s83
    %p85 = scmp.eq.s32.totalorder %s17, 0
    %p86 = por %p84, %p85
    %s88 = sadd.s32 %s87, 1
    %p91 = scmp.eq.s32.totalorder %s11, 1
    %p92 = scmp.ne.s32.totalorder %s87, %s89
    %p93 = scmp.eq.s32.totalorder %s11, 0
    %p94 = por %p92, %p93
    %p95 = scmp.ne.s32.totalorder %s87, %s89
    %p96 = scmp.eq.s32.totalorder %s16, 1
    %p97 = por %p95, %p96
    %p98 = scmp.ne.s32.totalorder %s89, %s90
    %p99 = scmp.eq.s32.totalorder %s16, 0
    %p100 = por %p98, %p99
    %p101 = scmp.ne.s32.totalorder %s89, %s90
    %p102 = scmp.eq.s32.totalorder %s17, 1
    %p103 = por %p101, %p102
    %p105 = scmp.ne.s32.totalorder %s90, %s104
    %p106 = scmp.eq.s32.totalorder %s17, 0
    %p107 = por %p105, %p106
    %s109 = sadd.s32 %s108, 1
    %p112 = scmp.eq.s32.totalorder %s11, 1
    %p113 = scmp.ne.s32.totalorder %s108, %s110
    %p114 = scmp.eq.s32.totalorder %s11, 0
    %p115 = por %p113, %p114
    %p116 = scmp.ne.s32.totalorder %s108, %s110
    %p117 = scmp.eq.s32.totalorder %s16, 1
    %p118 = por %p116, %p117
    %p119 = scmp.ne.s32.totalorder %s110, %s111
    %p120 = scmp.eq.s32.totalorder %s16, 0
    %p121 = por %p119, %p120
    %p122 = scmp.ne.s32.totalorder %s110, %s111
    %p123 = scmp.eq.s32.totalorder %s17, 1
    %p124 = por %p122, %p123
    %p126 = scmp.ne.s32.totalorder %s111, %s125
    %p127 = scmp.eq.s32.totalorder %s17, 0
    %p128 = por %p126, %p127
    %s129 = ssub.s32 %s11, %s18
    %p130 = scmp.eq.s32.totalorder %s129, 0
    %s132 = sadd.s32 %s131, 1
    %s133 = scalar_select %p130, %s131, %s132
    %p136 = pneg %p130
    %p137 = scmp.eq.s32.totalorder %s11, 1
    %p138 = por %p136, %p137
    %p139 = scmp.ne.s32.totalorder %s131, %s134
    %p140 = scmp.eq.s32.totalorder %s11, 0
    %p141 = por %p139, %p140
    %p142 = scmp.ne.s32.totalorder %s131, %s134
    %p143 = scmp.eq.s32.totalorder %s16, 1
    %p144 = por %p142, %p143
    %p145 = scmp.ne.s32.totalorder %s134, %s135
    %p146 = scmp.eq.s32.totalorder %s16, 0
    %p147 = por %p145, %p146
    %p148 = scmp.ne.s32.totalorder %s134, %s135
    %p149 = scmp.eq.s32.totalorder %s17, 1
    %p150 = por %p148, %p149
    %p152 = scmp.ne.s32.totalorder %s135, %s151
    %p153 = scmp.eq.s32.totalorder %s17, 0
    %p154 = por %p152, %p153
    %p155 = scmp.le.s32.totalorder 1, %s11
    %p156 = scmp.lt.s32.totalorder %s11, 3
    %p157 = pnand %p155, %p156
    %p158 = pneg %p157
    // Predicated region
    $region9: #{_lambda_.7} parent=5 // pred_check
      _
    $region10: #{_lambda_.7} parent=5 // pred_check_branch
      %160 = sbr.rel (%p157) target = $region12
    $region11: #{_lambda_.7} parent=5 // pred_region
      %s161 = ssub.s32 %s11, 1
      // Predicated region
      $region13: #{_lambda_.7} parent=11 // pred_check
        %p162 = pneg %p58
      $region14: #{_lambda_.7} parent=11 // pred_check_branch
        %164 = sbr.rel (%p162) target = $region16
      $region15: #{_lambda_.7} parent=11 // pred_region
        _
      $region16: #{_lambda_.7} parent=11 // pred_fallthru
        _
      // Predicated region
      $region17: #{_lambda_.7} parent=11 // pred_check
        %p165 = pneg %p79
      $region18: #{_lambda_.7} parent=11 // pred_check_branch
        %167 = sbr.rel (%p165) target = $region20
      $region19: #{_lambda_.7} parent=11 // pred_region
        _
      $region20: #{_lambda_.7} parent=11 // pred_fallthru
        _
      // Predicated region
      $region21: #{_lambda_.7} parent=11 // pred_check
        %p168 = pneg %p100
      $region22: #{_lambda_.7} parent=11 // pred_check_branch
        %170 = sbr.rel (%p168) target = $region24
      $region23: #{_lambda_.7} parent=11 // pred_region
        _
      $region24: #{_lambda_.7} parent=11 // pred_fallthru
        _
      // Predicated region
      $region25: #{_lambda_.7} parent=11 // pred_check
        %p171 = pneg %p121
      $region26: #{_lambda_.7} parent=11 // pred_check_branch
        %173 = sbr.rel (%p171) target = $region28
      $region27: #{_lambda_.7} parent=11 // pred_region
        _
      $region28: #{_lambda_.7} parent=11 // pred_fallthru
        _
    $region12: #{_lambda_.7} parent=5 // pred_fallthru
      _
    %p174 = scmp.lt.s32.totalorder %s11, 2
    // Predicated region
    $region29: #{_lambda_.7} parent=5 // pred_check
      %p175 = pneg %p174
    $region30: #{_lambda_.7} parent=5 // pred_check_branch
      %177 = sbr.rel (%p175) target = $region32
    $region31: #{_lambda_.7} parent=5 // pred_region
      // Predicated region
      $region33: #{_lambda_.7} parent=31 // pred_check
        %p178 = pneg %p31
      $region34: #{_lambda_.7} parent=31 // pred_check_branch
        %180 = sbr.rel (%p178) target = $region36
      $region35: #{_lambda_.7} parent=31 // pred_region
        %p181 = scmp.lt.s32.totalorder %s11, 1
        %s182 = scalar_select %p181, %s11, 1
        %s183 = smul.addr %s182, 6
        %s184 = smul.addr %s183, 8
        %s185 = scalar_lea.vmem %s0, %s184
      $region36: #{_lambda_.7} parent=31 // pred_fallthru
        _
    $region32: #{_lambda_.7} parent=5 // pred_fallthru
      _
    %p186 = scmp.le.s32.totalorder 1, %s11
    %p187 = scmp.lt.s32.totalorder %s11, 3
    %p188 = pnand %p186, %p187
    %p189 = pneg %p188
    // Predicated region
    $region37: #{_lambda_.7} parent=5 // pred_check
      _
    $region38: #{_lambda_.7} parent=5 // pred_check_branch
      %191 = sbr.rel (%p188) target = $region40
    $region39: #{_lambda_.7} parent=5 // pred_region
      %s192 = ssub.s32 %s11, 1
      %p193 = scmp.lt.s32.totalorder %s16, 1
      %s194 = scalar_select %p193, %s16, 1
      %s195 = smul.addr %s194, 6
      %s196 = smul.addr %s195, 8
      %s197 = scalar_lea.vmem %s0, %s196
      %p198 = pneg %p37
      %p199 = pneg %p34
      %p200 = pneg %p58
      %p201 = pneg %p55
      %p202 = pneg %p79
      %p203 = pneg %p76
      %p204 = pneg %p100
      %p205 = pneg %p97
      %p206 = pneg %p121
      %p207 = pneg %p118
      %p208 = pneg %p147
      %p209 = pneg %p144
      %p210 = scmp.lt.s32.totalorder %s16, 1
      %s211 = scalar_select %p210, %s16, 1
      %s212 = smul.addr %s211, 5
      %s213 = smul.addr %s212, 8
      %s214 = scalar_lea.vmem %s5, %s213
      %p215 = scmp.lt.s32.totalorder %s16, 1
      %s216 = scalar_select %p215, %s16, 1
      %s217 = smul.addr %s216, 6
      %s218 = smul.addr %s217, 8
      %s219 = scalar_lea.vmem %s0, %s218
      %p220 = scmp.lt.s32.totalorder %s16, 1
      %s221 = scalar_select %p220, %s16, 1
      %s222 = smul.addr %s221, 5
      %s223 = smul.addr %s222, 8
      %s224 = scalar_lea.vmem %s5, %s223
      %v226 = vld [vmem:[%s219] sm:$0xff]
      %v227 = vld [vmem:[%s219 + $0x8] sm:$0xff]
      %v228 = vld [vmem:[%s219 + $0x10] sm:$0xff]
      %v229 = vld [vmem:[%s219 + $0x18] sm:$0xff]
      %v230 = vld [vmem:[%s219 + $0x20] sm:$0xff]
      %v231 = vld [vmem:[%s219 + $0x28] sm:$0x7]
      %v232 = vld [vmem:[%s1] sm:$0xff]
      %v233 = vld [vmem:[%s1 + $0x8] sm:$0xff]
      %v234 = vld [vmem:[%s1 + $0x10] sm:$0xff]
      %v235 = vld [vmem:[%s1 + $0x18] sm:$0xff]
      %v236 = vpack.c.bf16 %v227, %v226
      %v237 = vpack.c.bf16 %v229, %v228
      %v238 = vpack.c.bf16 %v230, %v230
      %v239 = vpack.c.bf16 %v233, %v232
      %v240 = vpack.c.bf16 %v235, %v234
      %v241 = vld [vmem:[%s1 + $0x20] sm:$0xff]
      %v242 = vld [vmem:[%s1 + $0x28] sm:$0xff]
      %v243 = vld [vmem:[%s1 + $0x30] sm:$0xff]
      %v244 = vld [vmem:[%s1 + $0x38] sm:$0xff]
      %v245 = vpack.c.bf16 %v242, %v241
      %v246 = vpack.c.bf16 %v244, %v243
      %vm247 = vsmask.f32 7424
      %v249 = vshrl.u32 %v236, 16
      %v251 = vshll.u32 %v236, 16
      %v253 = vrot.slane %v251, 1
      %v254 = vor.u32 %v249, %v253
      %v256 = vshll.u32 %v237, 16
      %v258 = vrot.slane %v256, 1
      %v259 = vsel %vm247, %v254, %v258
      %v260 = vshrl.u32 %v237, 16
      %v262 = vor.u32 %v260, %v258
      %v264 = vshll.u32 %v238, 16
      %v266 = vrot.slane %v264, 1
      %v267 = vsel %vm247, %v262, %v266
      %v268 = vshrl.u32 %v238, 16
      %v270 = vor.u32 %v268, %v266
      %vm271 = vcmask 261120
      %v273 = vsel %vm271, %v259, 0
      %v276 = vsel %vm271, %v267, 0
      %v279 = vsel %vm271, %v270, 0
      %281 = vmatprep.subr.bf16.mxu0 0
      %282 = vmatpush1.bf16.msra.mxu0 %v245
      %283 = vmatprep.subr.bf16.mxu0 0
      %284 = vmatpush1.bf16.msra.mxu0 %v246
      %285 = vmatprep.subr.bf16.mxu0 0
      %286 = vmatpush1.bf16.msra.mxu0 0
      %287 = vmatprep.subr.bf16.mxu0 0
      %288 = vmatpush1.bf16.msra.mxu0 0
      %289 = vmatprep.subr.bf16.mxu0 0
      %290 = vmatpush1.bf16.msra.mxu0 0
      %291 = vmatprep.subr.bf16.mxu0 0
      %292 = vmatpush1.bf16.msra.mxu0 0
      %293 = vmatprep.subr.bf16.mxu0 0
      %294 = vmatpush1.bf16.msra.mxu0 0
      %295 = vmatprep.subr.bf16.mxu0 0
      %296 = vmatpush1.bf16.msra.mxu0 0
      %297 = vmatprep.subr.bf16.mxu0 0
      %298 = vmatpush1.bf16.msra.mxu0 0
      %299 = vmatprep.subr.bf16.mxu0 0
      %300 = vmatpush1.bf16.msra.mxu0 0
      %301 = vmatprep.subr.bf16.mxu0 0
      %302 = vmatpush1.bf16.msra.mxu0 0
      %303 = vmatprep.subr.bf16.mxu0 0
      %304 = vmatpush1.bf16.msra.mxu0 0
      %305 = vmatprep.subr.bf16.mxu0 0
      %306 = vmatpush1.bf16.msra.mxu0 0
      %307 = vmatprep.subr.bf16.mxu0 0
      %308 = vmatpush1.bf16.msra.mxu0 0
      %309 = vmatprep.subr.bf16.mxu0 0
      %310 = vmatpush1.bf16.msra.mxu0 0
      %311 = vmatprep.subr.bf16.mxu0 0
      %312 = vmatpush1.bf16.msra.mxu0 0
      %313 = vmatprep.mubr.bf16.mxu0 0
      %314 = vmatmul.mubr.bf16.gmra.mrb[0].mxu0 %v273
      %v315 = vpop.f32.mrb[0].mxu0
      %v316 = vadd.f32 0.0, %v315
      %v317 = vpop.f32.mrb[0].mxu0
      %v318 = vpop.f32.mrb[0].mxu0
      %v319 = vadd.f32 0.0, %v318
      %v320 = vpop.f32.mrb[0].mxu0
      %321 = vmatprep.mubr.bf16.mxu0 0
      %322 = vmatmul.mubr.bf16.gmra.mrb[0].mxu0 %v276
      %v323 = vpop.f32.mrb[0].mxu0
      %v324 = vadd.f32 0.0, %v323
      %v325 = vpop.f32.mrb[0].mxu0
      %v326 = vpop.f32.mrb[0].mxu0
      %v327 = vadd.f32 0.0, %v326
      %v328 = vpop.f32.mrb[0].mxu0
      %329 = vmatprep.mubr.bf16.mxu0 0
      %330 = vmatmul.mubr.bf16.gmra.mrb[0].mxu0 %v279
      %v331 = vpop.f32.mrb[0].mxu0
      %v332 = vadd.f32 0.0, %v331
      %v333 = vpop.f32.mrb[0].mxu0
      %v334 = vpop.f32.mrb[0].mxu0
      %v335 = vpop.f32.mrb[0].mxu0
      %336 = vdwg.mxu0
      %v337 = vsel %vm271, %v236, 0
      %v339 = vsel %vm271, %v237, 0
      %v341 = vsel %vm271, %v238, 0
      %343 = vmatprep.subr.bf16.mxu0 0
      %344 = vmatpush1.bf16.msra.mxu0 %v239
      %345 = vmatprep.subr.bf16.mxu0 0
      %346 = vmatpush1.bf16.msra.mxu0 %v240
      %347 = vmatprep.subr.bf16.mxu0 0
      %348 = vmatpush1.bf16.msra.mxu0 0
      %349 = vmatprep.subr.bf16.mxu0 0
      %350 = vmatpush1.bf16.msra.mxu0 0
      %351 = vmatprep.subr.bf16.mxu0 0
      %352 = vmatpush1.bf16.msra.mxu0 0
      %353 = vmatprep.subr.bf16.mxu0 0
      %354 = vmatpush1.bf16.msra.mxu0 0
      %355 = vmatprep.subr.bf16.mxu0 0
      %356 = vmatpush1.bf16.msra.mxu0 0
      %357 = vmatprep.subr.bf16.mxu0 0
      %358 = vmatpush1.bf16.msra.mxu0 0
      %359 = vmatprep.subr.bf16.mxu0 0
      %360 = vmatpush1.bf16.msra.mxu0 0
      %361 = vmatprep.subr.bf16.mxu0 0
      %362 = vmatpush1.bf16.msra.mxu0 0
      %363 = vmatprep.subr.bf16.mxu0 0
      %364 = vmatpush1.bf16.msra.mxu0 0
      %365 = vmatprep.subr.bf16.mxu0 0
      %366 = vmatpush1.bf16.msra.mxu0 0
      %367 = vmatprep.subr.bf16.mxu0 0
      %368 = vmatpush1.bf16.msra.mxu0 0
      %369 = vmatprep.subr.bf16.mxu0 0
      %370 = vmatpush1.bf16.msra.mxu0 0
      %371 = vmatprep.subr.bf16.mxu0 0
      %372 = vmatpush1.bf16.msra.mxu0 0
      %373 = vmatprep.subr.bf16.mxu0 0
      %374 = vmatpush1.bf16.msra.mxu0 0
      %375 = vmatprep.mubr.bf16.mxu0 0
      %376 = vmatmul.mubr.bf16.gmra.mrb[0].mxu0 %v337
      %v377 = vpop.f32.mrb[0].mxu0
      %v378 = vadd.f32 %v316, %v377
      %v379 = vpop.f32.mrb[0].mxu0
      %v380 = vpop.f32.mrb[0].mxu0
      %v381 = vadd.f32 %v319, %v380
      %v382 = vpop.f32.mrb[0].mxu0
      %383 = vmatprep.mubr.bf16.mxu0 0
      %384 = vmatmul.mubr.bf16.gmra.mrb[0].mxu0 %v339
      %v385 = vpop.f32.mrb[0].mxu0
      %v386 = vadd.f32 %v324, %v385
      %v387 = vpop.f32.mrb[0].mxu0
      %v388 = vpop.f32.mrb[0].mxu0
      %v389 = vadd.f32 %v327, %v388
      %v390 = vpop.f32.mrb[0].mxu0
      %391 = vmatprep.mubr.bf16.mxu0 0
      %392 = vmatmul.mubr.bf16.gmra.mrb[0].mxu0 %v341
      %v393 = vpop.f32.mrb[0].mxu0
      %v394 = vadd.f32 %v332, %v393
      %v395 = vpop.f32.mrb[0].mxu0
      %v396 = vpop.f32.mrb[0].mxu0
      %v397 = vpop.f32.mrb[0].mxu0
      %398 = vdwg.mxu0
      %v399 = vld [vmem:[%s1 + $0x40] sm:$0xff]
      %v400 = vld [vmem:[%s1 + $0x48] sm:$0xff]
      %v401 = vld [vmem:[%s1 + $0x50] sm:$0xff]
      %v402 = vld [vmem:[%s1 + $0x58] sm:$0xff]
      %v403 = vpack.c.bf16 %v231, %v230
      %v404 = vpack.c.bf16 %v400, %v399
      %v405 = vpack.c.bf16 %v402, %v401
      %vm409 = vcmask 1046528
      %v410 = vrot.slane %v236, 1
      %v411 = vrot.slane %v237, 1
      %v412 = vsel %vm409, %v410, %v411
      %v413 = vrot.slane %v403, 1
      %v414 = vsel %vm409, %v411, %v413
      %v416 = vsel %vm271, %v412, 0
      %v419 = vsel %vm271, %v414, 0
      %v422 = vsel %vm271, %v413, 0
      %424 = vmatprep.subr.bf16.mxu0 0
      %425 = vmatpush1.bf16.msra.mxu0 %v404
      %426 = vmatprep.subr.bf16.mxu0 0
      %427 = vmatpush1.bf16.msra.mxu0 %v405
      %428 = vmatprep.subr.bf16.mxu0 0
      %429 = vmatpush1.bf16.msra.mxu0 0
      %430 = vmatprep.subr.bf16.mxu0 0
      %431 = vmatpush1.bf16.msra.mxu0 0
      %432 = vmatprep.subr.bf16.mxu0 0
      %433 = vmatpush1.bf16.msra.mxu0 0
      %434 = vmatprep.subr.bf16.mxu0 0
      %435 = vmatpush1.bf16.msra.mxu0 0
      %436 = vmatprep.subr.bf16.mxu0 0
      %437 = vmatpush1.bf16.msra.mxu0 0
      %438 = vmatprep.subr.bf16.mxu0 0
      %439 = vmatpush1.bf16.msra.mxu0 0
      %440 = vmatprep.subr.bf16.mxu0 0
      %441 = vmatpush1.bf16.msra.mxu0 0
      %442 = vmatprep.subr.bf16.mxu0 0
      %443 = vmatpush1.bf16.msra.mxu0 0
      %444 = vmatprep.subr.bf16.mxu0 0
      %445 = vmatpush1.bf16.msra.mxu0 0
      %446 = vmatprep.subr.bf16.mxu0 0
      %447 = vmatpush1.bf16.msra.mxu0 0
      %448 = vmatprep.subr.bf16.mxu0 0
      %449 = vmatpush1.bf16.msra.mxu0 0
      %450 = vmatprep.subr.bf16.mxu0 0
      %451 = vmatpush1.bf16.msra.mxu0 0
      %452 = vmatprep.subr.bf16.mxu0 0
      %453 = vmatpush1.bf16.msra.mxu0 0
      %454 = vmatprep.subr.bf16.mxu0 0
      %455 = vmatpush1.bf16.msra.mxu0 0
      %456 = vmatprep.mubr.bf16.mxu0 0
      %457 = vmatmul.mubr.bf16.gmra.mrb[0].mxu0 %v416
      %v458 = vpop.f32.mrb[0].mxu0
      %v459 = vadd.f32 0.0, %v458
      %v460 = vpop.f32.mrb[0].mxu0
      %v461 = vpop.f32.mrb[0].mxu0
      %v462 = vadd.f32 0.0, %v461
      %v463 = vpop.f32.mrb[0].mxu0
      %464 = vmatprep.mubr.bf16.mxu0 0
      %465 = vmatmul.mubr.bf16.gmra.mrb[0].mxu0 %v419
      %v466 = vpop.f32.mrb[0].mxu0
      %v467 = vadd.f32 0.0, %v466
      %v468 = vpop.f32.mrb[0].mxu0
      %v469 = vpop.f32.mrb[0].mxu0
      %v470 = vadd.f32 0.0, %v469
      %v471 = vpop.f32.mrb[0].mxu0
      %472 = vmatprep.mubr.bf16.mxu0 0
      %473 = vmatmul.mubr.bf16.gmra.mrb[0].mxu0 %v422
      %v474 = vpop.f32.mrb[0].mxu0
      %v475 = vadd.f32 0.0, %v474
      %v476 = vpop.f32.mrb[0].mxu0
      %v477 = vpop.f32.mrb[0].mxu0
      %v478 = vpop.f32.mrb[0].mxu0
      %479 = vdwg.mxu0
      %v480 = vadd.f32 %v378, %v459
      %v481 = vadd.f32 %v381, %v462
      %v482 = vadd.f32 %v386, %v467
      %v483 = vadd.f32 %v389, %v470
      %v484 = vadd.f32 %v394, %v475
      %v485 = vld [vmem:[%s1 + $0x60] sm:$0xff]
      %v486 = vld [vmem:[%s1 + $0x68] sm:$0xff]
      %v487 = vld [vmem:[%s1 + $0x70] sm:$0xff]
      %v488 = vld [vmem:[%s1 + $0x78] sm:$0xff]
      %v489 = vpack.c.bf16 %v486, %v485
      %v490 = vpack.c.bf16 %v488, %v487
      %vm491 = vsmask.f32 6400
      %v492 = vrot.slane %v249, 1
      %v493 = vrot.slane %v251, 2
      %v494 = vor.u32 %v492, %v493
      %v495 = vrot.slane %v260, 1
      %v496 = vrot.slane %v256, 2
      %v497 = vor.u32 %v495, %v496
      %v498 = vsel %vm491, %v494, %v497
      %v500 = vshrl.u32 %v403, 16
      %v502 = vrot.slane %v500, 1
      %v503 = vshll.u32 %v403, 16
      %v505 = vrot.slane %v503, 2
      %v506 = vor.u32 %v502, %v505
      %v507 = vsel %vm491, %v497, %v506
      %v509 = vsel %vm271, %v498, 0
      %v512 = vsel %vm271, %v507, 0
      %v515 = vsel %vm271, %v506, 0
      %517 = vmatprep.subr.bf16.mxu0 0
      %518 = vmatpush1.bf16.msra.mxu0 %v489
      %519 = vmatprep.subr.bf16.mxu0 0
      %520 = vmatpush1.bf16.msra.mxu0 %v490
      %521 = vmatprep.subr.bf16.mxu0 0
      %522 = vmatpush1.bf16.msra.mxu0 0
      %523 = vmatprep.subr.bf16.mxu0 0
      %524 = vmatpush1.bf16.msra.mxu0 0
      %525 = vmatprep.subr.bf16.mxu0 0
      %526 = vmatpush1.bf16.msra.mxu0 0
      %527 = vmatprep.subr.bf16.mxu0 0
      %528 = vmatpush1.bf16.msra.mxu0 0
      %529 = vmatprep.subr.bf16.mxu0 0
      %530 = vmatpush1.bf16.msra.mxu0 0
      %531 = vmatprep.subr.bf16.mxu0 0
      %532 = vmatpush1.bf16.msra.mxu0 0
      %533 = vmatprep.subr.bf16.mxu0 0
      %534 = vmatpush1.bf16.msra.mxu0 0
      %535 = vmatprep.subr.bf16.mxu0 0
      %536 = vmatpush1.bf16.msra.mxu0 0
      %537 = vmatprep.subr.bf16.mxu0 0
      %538 = vmatpush1.bf16.msra.mxu0 0
      %539 = vmatprep.subr.bf16.mxu0 0
      %540 = vmatpush1.bf16.msra.mxu0 0
      %541 = vmatprep.subr.bf16.mxu0 0
      %542 = vmatpush1.bf16.msra.mxu0 0
      %543 = vmatprep.subr.bf16.mxu0 0
      %544 = vmatpush1.bf16.msra.mxu0 0
      %545 = vmatprep.subr.bf16.mxu0 0
      %546 = vmatpush1.bf16.msra.mxu0 0
      %547 = vmatprep.subr.bf16.mxu0 0
      %548 = vmatpush1.bf16.msra.mxu0 0
      %549 = vmatprep.mubr.bf16.mxu0 0
      %550 = vmatmul.mubr.bf16.gmra.mrb[0].mxu0 %v509
      %v551 = vpop.f32.mrb[0].mxu0
      %v552 = vadd.f32 0.0, %v551
      %v553 = vpop.f32.mrb[0].mxu0
      %v554 = vpop.f32.mrb[0].mxu0
      %v555 = vadd.f32 0.0, %v554
      %v556 = vpop.f32.mrb[0].mxu0
      %557 = vmatprep.mubr.bf16.mxu0 0
      %558 = vmatmul.mubr.bf16.gmra.mrb[0].mxu0 %v512
      %v559 = vpop.f32.mrb[0].mxu0
      %v560 = vadd.f32 0.0, %v559
      %v561 = vpop.f32.mrb[0].mxu0
      %v562 = vpop.f32.mrb[0].mxu0
      %v563 = vadd.f32 0.0, %v562
      %v564 = vpop.f32.mrb[0].mxu0
      %565 = vmatprep.mubr.bf16.mxu0 0
      %566 = vmatmul.mubr.bf16.gmra.mrb[0].mxu0 %v515
      %v567 = vpop.f32.mrb[0].mxu0
      %v568 = vadd.f32 0.0, %v567
      %v569 = vpop.f32.mrb[0].mxu0
      %v570 = vpop.f32.mrb[0].mxu0
      %v571 = vpop.f32.mrb[0].mxu0
      %572 = vdwg.mxu0
      %v573 = vadd.f32 %v480, %v552
      %v574 = vadd.f32 %v481, %v555
      %v575 = vadd.f32 %v482, %v560
      %v576 = vadd.f32 %v483, %v563
      %v577 = vadd.f32 %v484, %v568
      %v578 = vld [vmem:[%s1 + $0x80] sm:$0xff]
      %v579 = vld [vmem:[%s1 + $0x88] sm:$0xff]
      %v580 = vld [vmem:[%s1 + $0x90] sm:$0xff]
      %v581 = vld [vmem:[%s1 + $0x98] sm:$0xff]
      %v582 = vpack.c.bf16 %v579, %v578
      %v583 = vpack.c.bf16 %v581, %v580
      %vm584 = vcmask 1045504
      %v585 = vrot.slane %v236, 2
      %v586 = vrot.slane %v237, 2
      %v587 = vsel %vm584, %v585, %v586
      %v588 = vrot.slane %v403, 2
      %v589 = vsel %vm584, %v586, %v588
      %v591 = vsel %vm271, %v587, 0
      %v594 = vsel %vm271, %v589, 0
      %v597 = vsel %vm271, %v588, 0
      %599 = vmatprep.subr.bf16.mxu0 0
      %600 = vmatpush1.bf16.msra.mxu0 %v582
      %601 = vmatprep.subr.bf16.mxu0 0
      %602 = vmatpush1.bf16.msra.mxu0 %v583
      %603 = vmatprep.subr.bf16.mxu0 0
      %604 = vmatpush1.bf16.msra.mxu0 0
      %605 = vmatprep.subr.bf16.mxu0 0
      %606 = vmatpush1.bf16.msra.mxu0 0
      %607 = vmatprep.subr.bf16.mxu0 0
      %608 = vmatpush1.bf16.msra.mxu0 0
      %609 = vmatprep.subr.bf16.mxu0 0
      %610 = vmatpush1.bf16.msra.mxu0 0
      %611 = vmatprep.subr.bf16.mxu0 0
      %612 = vmatpush1.bf16.msra.mxu0 0
      %613 = vmatprep.subr.bf16.mxu0 0
      %614 = vmatpush1.bf16.msra.mxu0 0
      %615 = vmatprep.subr.bf16.mxu0 0
      %616 = vmatpush1.bf16.msra.mxu0 0
      %617 = vmatprep.subr.bf16.mxu0 0
      %618 = vmatpush1.bf16.msra.mxu0 0
      %619 = vmatprep.subr.bf16.mxu0 0
      %620 = vmatpush1.bf16.msra.mxu0 0
      %621 = vmatprep.subr.bf16.mxu0 0
      %622 = vmatpush1.bf16.msra.mxu0 0
      %623 = vmatprep.subr.bf16.mxu0 0
      %624 = vmatpush1.bf16.msra.mxu0 0
      %625 = vmatprep.subr.bf16.mxu0 0
      %626 = vmatpush1.bf16.msra.mxu0 0
      %627 = vmatprep.subr.bf16.mxu0 0
      %628 = vmatpush1.bf16.msra.mxu0 0
      %629 = vmatprep.subr.bf16.mxu0 0
      %630 = vmatpush1.bf16.msra.mxu0 0
      %631 = vmatprep.mubr.bf16.mxu0 0
      %632 = vmatmul.mubr.bf16.gmra.mrb[0].mxu0 %v591
      %v633 = vpop.f32.mrb[0].mxu0
      %v634 = vadd.f32 0.0, %v633
      %v635 = vpop.f32.mrb[0].mxu0
      %v636 = vpop.f32.mrb[0].mxu0
      %v637 = vadd.f32 0.0, %v636
      %v638 = vpop.f32.mrb[0].mxu0
      %639 = vmatprep.mubr.bf16.mxu0 0
      %640 = vmatmul.mubr.bf16.gmra.mrb[0].mxu0 %v594
      %v641 = vpop.f32.mrb[0].mxu0
      %v642 = vadd.f32 0.0, %v641
      %v643 = vpop.f32.mrb[0].mxu0
      %v644 = vpop.f32.mrb[0].mxu0
      %v645 = vadd.f32 0.0, %v644
      %v646 = vpop.f32.mrb[0].mxu0
      %647 = vmatprep.mubr.bf16.mxu0 0
      %648 = vmatmul.mubr.bf16.gmra.mrb[0].mxu0 %v597
      %v649 = vpop.f32.mrb[0].mxu0
      %v650 = vadd.f32 0.0, %v649
      %v651 = vpop.f32.mrb[0].mxu0
      %v652 = vpop.f32.mrb[0].mxu0
      %v653 = vpop.f32.mrb[0].mxu0
      %654 = vdwg.mxu0
      %v655 = vadd.f32 %v573, %v634
      %v656 = vadd.f32 %v574, %v637
      %v657 = vadd.f32 %v575, %v642
      %v658 = vadd.f32 %v576, %v645
      %v659 = vadd.f32 %v577, %v650
      %v660 = vld [vmem:[%s2] sm:$0x1]
      %v662 = vlaneseq
      %v663 = vshrl.u32 %v662, 7
      %v664 = vsub.s32 0, %v663
      %v665 = vrot.slane %v660, %v664
      %v667 = vadd.f32 %v655, %v665
      %v668 = vadd.f32 %v656, %v665
      %v669 = vadd.f32 %v657, %v665
      %v670 = vadd.f32 %v658, %v665
      %v671 = vadd.f32 %v659, %v665
      %v672 = vmul.f32 %v667, %v667
      %v673 = vmul.f32 %v668, %v668
      %v674 = vmul.f32 %v669, %v669
      %v675 = vmul.f32 %v670, %v670
      %v676 = vmul.f32 %v671, %v671
      %v677 = vmul.f32 %v667, %v672
      %v678 = vmul.f32 %v668, %v673
      %v679 = vmul.f32 %v669, %v674
      %v680 = vmul.f32 %v670, %v675
      %v681 = vmul.f32 %v671, %v676
      %v682 = vmul.f32 %v677, 0.044715
      %v683 = vmul.f32 %v678, 0.044715
      %v684 = vmul.f32 %v679, 0.044715
      %v685 = vmul.f32 %v680, 0.044715
      %v686 = vmul.f32 %v681, 0.044715
      %v687 = vadd.f32 %v667, %v682
      %v688 = vadd.f32 %v668, %v683
      %v689 = vadd.f32 %v669, %v684
      %v690 = vadd.f32 %v670, %v685
      %v691 = vadd.f32 %v671, %v686
      %v692 = vmul.f32 %v687, 0.7978846
      %v693 = vmul.f32 %v688, 0.7978846
      %v694 = vmul.f32 %v689, 0.7978846
      %v695 = vmul.f32 %v690, 0.7978846
      %v696 = vmul.f32 %v691, 0.7978846
      %v697 = vtanh.pop %v692
      %v698 = vtanh.pop %v693
      %v699 = vtanh.pop %v694
      %v700 = vtanh.pop %v695
      %v701 = vtanh.pop %v696
      %v702 = vadd.f32 %v697, 1.0
      %v703 = vadd.f32 %v698, 1.0
      %v704 = vadd.f32 %v699, 1.0
      %v705 = vadd.f32 %v700, 1.0
      %v706 = vadd.f32 %v701, 1.0
      %v707 = vmul.f32 %v702, 0.5
      %v708 = vmul.f32 %v703, 0.5
      %v709 = vmul.f32 %v704, 0.5
      %v710 = vmul.f32 %v705, 0.5
      %v711 = vmul.f32 %v706, 0.5
      %v712 = vmul.f32 %v667, %v707
      %v713 = vmul.f32 %v668, %v708
      %v714 = vmul.f32 %v669, %v709
      %v715 = vmul.f32 %v670, %v710
      %v716 = vmul.f32 %v671, %v711
      %vm723 = vcmask 1045504
      %v724 = vrot.slane %v226, 2
      %v725 = vrot.slane %v227, 2
      %v726 = vsel %vm723, %v724, %v725
      %v727 = vrot.slane %v228, 2
      %v728 = vsel %vm723, %v725, %v727
      %v729 = vrot.slane %v229, 2
      %v730 = vsel %vm723, %v727, %v729
      %v731 = vrot.slane %v230, 2
      %v732 = vsel %vm723, %v729, %v731
      %v733 = vrot.slane %v231, 2
      %v734 = vsel %vm723, %v731, %v733
      %v740 = vadd.f32 %v712, %v726
      %v741 = vadd.f32 %v713, %v728
      %v742 = vadd.f32 %v714, %v730
      %v743 = vadd.f32 %v715, %v732
      %v744 = vadd.f32 %v716, %v734
      %v745 = vld [vmem:[%s3] sm:$0x1]
      %v746 = vld [vmem:[%s4] sm:$0x1]
      %v747 = vsel %vm271, %v740, 0.0
      %748 = vadd.xlane.f32.xlu0 %v747
      %v749 = vpop.xlane.xlu0 %748
      %v750 = vsel %vm271, %v741, 0.0
      %751 = vadd.xlane.f32.xlu0 %v750
      %v752 = vpop.xlane.xlu0 %751
      %v753 = vsel %vm271, %v742, 0.0
      %754 = vadd.xlane.f32.xlu0 %v753
      %v755 = vpop.xlane.xlu0 %754
      %v756 = vsel %vm271, %v743, 0.0
      %757 = vadd.xlane.f32.xlu0 %v756
      %v758 = vpop.xlane.xlu0 %757
      %vm759 = vcmask 260096
      %v760 = vsel %vm759, %v744, 0.0
      %761 = vadd.xlane.f32.xlu0 %v760
      %v762 = vpop.xlane.xlu0 %761
      %v763 = vrcp.pop 32.0
      %v764 = vmul.f32 %v749, %v763
      %v765 = vmul.f32 %v752, %v763
      %v766 = vmul.f32 %v755, %v763
      %v767 = vmul.f32 %v758, %v763
      %v768 = vmul.f32 %v762, %v763
      %v769 = vsub.f32 %v740, %v764
      %v770 = vsub.f32 %v741, %v765
      %v771 = vsub.f32 %v742, %v766
      %v772 = vsub.f32 %v743, %v767
      %v773 = vsub.f32 %v744, %v768
      %v774 = vmul.f32 %v769, %v769
      %v775 = vmul.f32 %v770, %v770
      %v776 = vmul.f32 %v771, %v771
      %v777 = vmul.f32 %v772, %v772
      %v778 = vmul.f32 %v773, %v773
      %v779 = vsel %vm271, %v774, 0.0
      %780 = vadd.xlane.f32.xlu0 %v779
      %v781 = vpop.xlane.xlu0 %780
      %v782 = vsel %vm271, %v775, 0.0
      %783 = vadd.xlane.f32.xlu0 %v782
      %v784 = vpop.xlane.xlu0 %783
      %v785 = vsel %vm271, %v776, 0.0
      %786 = vadd.xlane.f32.xlu0 %v785
      %v787 = vpop.xlane.xlu0 %786
      %v788 = vsel %vm271, %v777, 0.0
      %789 = vadd.xlane.f32.xlu0 %v788
      %v790 = vpop.xlane.xlu0 %789
      %v791 = vsel %vm759, %v778, 0.0
      %792 = vadd.xlane.f32.xlu0 %v791
      %v793 = vpop.xlane.xlu0 %792
      %v794 = vmul.f32 %v781, %v763
      %v795 = vmul.f32 %v784, %v763
      %v796 = vmul.f32 %v787, %v763
      %v797 = vmul.f32 %v790, %v763
      %v798 = vmul.f32 %v793, %v763
      %v799 = vadd.f32 %v794, 1e-05
      %v800 = vadd.f32 %v795, 1e-05
      %v801 = vadd.f32 %v796, 1e-05
      %v802 = vadd.f32 %v797, 1e-05
      %v803 = vadd.f32 %v798, 1e-05
      %v804 = vrsqrt.pop %v799
      %v805 = vrsqrt.pop %v800
      %v806 = vrsqrt.pop %v801
      %v807 = vrsqrt.pop %v802
      %v808 = vrsqrt.pop %v803
      %v809 = vmul.f32 %v769, %v804
      %v810 = vmul.f32 %v770, %v805
      %v811 = vmul.f32 %v771, %v806
      %v812 = vmul.f32 %v772, %v807
      %v813 = vmul.f32 %v773, %v808
      %v815 = vlaneseq
      %v816 = vshrl.u32 %v815, 7
      %v817 = vsub.s32 0, %v816
      %v818 = vrot.slane %v745, %v817
      %v820 = vmul.f32 %v809, %v818
      %v821 = vmul.f32 %v810, %v818
      %v822 = vmul.f32 %v811, %v818
      %v823 = vmul.f32 %v812, %v818
      %v824 = vmul.f32 %v813, %v818
      %v826 = vlaneseq
      %v827 = vshrl.u32 %v826, 7
      %v828 = vsub.s32 0, %v827
      %v829 = vrot.slane %v746, %v828
      %v831 = vadd.f32 %v820, %v829
      %v832 = vadd.f32 %v821, %v829
      %v833 = vadd.f32 %v822, %v829
      %v834 = vadd.f32 %v823, %v829
      %v835 = vadd.f32 %v824, %v829
      %836 = vst.msk [vmem:[%s224] sm:$0xff] %vm271, %v831
      %837 = vst.msk [vmem:[%s224 + $0x8] sm:$0xff] %vm271, %v832
      %838 = vst.msk [vmem:[%s224 + $0x10] sm:$0xff] %vm271, %v833
      %839 = vst.msk [vmem:[%s224 + $0x18] sm:$0xff] %vm271, %v834
      %840 = vst.msk [vmem:[%s224 + $0x20] sm:$0x7f] %vm759, %v835
      %p841 = scmp.lt.s32.totalorder %s16, 1
      %s842 = scalar_select %p841, %s16, 1
      %s843 = smul.addr %s842, 5
      %s844 = smul.addr %s843, 8
      %s845 = scalar_lea.vmem %s5, %s844
      // Predicated region
      $region41: #{_lambda_.7} parent=39 // pred_check
        %p846 = pneg %p144
      $region42: #{_lambda_.7} parent=39 // pred_check_branch
        %848 = sbr.rel (%p846) target = $region44
      $region43: #{_lambda_.7} parent=39 // pred_region
        _
      $region44: #{_lambda_.7} parent=39 // pred_fallthru
        _
    $region40: #{_lambda_.7} parent=5 // pred_fallthru
      _
    %p849 = scmp.le.s32.totalorder 2, %s11
    // Predicated region
    $region45: #{_lambda_.7} parent=5 // pred_check
      %p850 = pneg %p849
    $region46: #{_lambda_.7} parent=5 // pred_check_branch
      %852 = sbr.rel (%p850) target = $region48
    $region47: #{_lambda_.7} parent=5 // pred_region
      %s853 = ssub.s32 %s11, 2
      // Predicated region
      $region49: #{_lambda_.7} parent=47 // pred_check
        %p854 = pneg %p150
      $region50: #{_lambda_.7} parent=47 // pred_check_branch
        %856 = sbr.rel (%p854) target = $region52
      $region51: #{_lambda_.7} parent=47 // pred_region
        %p857 = scmp.lt.s32.totalorder %s17, 1
        %s858 = scalar_select %p857, %s17, 1
        %s859 = smul.addr %s858, 5
        %s860 = smul.addr %s859, 8
        %s861 = scalar_lea.vmem %s5, %s860
      $region52: #{_lambda_.7} parent=47 // pred_fallthru
        _
    $region48: #{_lambda_.7} parent=5 // pred_fallthru
      _
  $region6: #{_lambda_.7} parent=0 // loop_footer
    %s15 = sadd.s32 1, %s11
  $region7: #{_lambda_.7} parent=0 // loop_footer_branch
    %10 = sbr.rel target = $region3
  $region8: #{_lambda_.7} parent=0 // loop_exit
    _

// kernel: _lambda_.8
$region0: #{_lambda_.8}
  #allocation0 [shape = 'u32[]', space=smem, size = 0x4, offset = 0x4, fixed_abs, tag = 'smem constant byte address 0x4 - core index']
  #allocation1 [shape = 'u32[144,128]{1,0:T(1,128)}', space=vmem, size = 0x12000, scoped, tag = 'internal scratch']
  #allocation2 [shape = 'f32[39,32]{1,0:T(8,128)}', space=vmem, size = 0x5000, scoped, tag = 'scratch operand']
  %s0 = inlined_call_operand.vmem [shape: f32[2,39,32], index: 0, kind: input, shape index: {}]
  %s1 = inlined_call_operand.vmem [shape: bf16[2,32,96], index: 1, kind: input, shape index: {}]
  %s2 = inlined_call_operand.vmem [shape: f32[2,1,96], index: 2, kind: input, shape index: {}]
  %s3 = inlined_call_operand.vmem [shape: f32[2,32,32], index: 3, kind: input, shape index: {}]
  %s4 = inlined_call_operand.vmem [shape: f32[2,1,32], index: 4, kind: input, shape index: {}]
  %s5 = inlined_call_operand.vmem [shape: f32[2,1,32], index: 5, kind: input, shape index: {}]
  %s6 = inlined_call_operand.vmem [shape: f32[2,1,32], index: 6, kind: input, shape index: {}]
  %s7 = inlined_call_operand.vmem [shape: bf16[2,32,64], index: 7, kind: input, shape index: {}]
  %s8 = inlined_call_operand.vmem [shape: f32[2,1,64], index: 8, kind: input, shape index: {}]
  %s9 = inlined_call_operand.vmem [shape: bf16[2,64,32], index: 9, kind: input, shape index: {}]
  %s10 = inlined_call_operand.vmem [shape: f32[2,1,32], index: 10, kind: input, shape index: {}]
  %s11 = inlined_call_operand.vmem [shape: f32[2,1,32], index: 11, kind: input, shape index: {}]
  %s12 = inlined_call_operand.vmem [shape: f32[2,1,32], index: 12, kind: input, shape index: {}]
  %s13 = inlined_call_operand.vmem [shape: f32[2,39,32], index: 13, kind: output, shape index: {}]
  %s14 = sld [smem:[#allocation0]]
  $region89: #{_lambda_.8} parent=0
    _
  %s16 = ssub.s32 1, %s14
  %s17 = scalar_select 0, %s16, %s14
  loop: start=0, step=1, limit=6
  $region2: #{_lambda_.8} parent=0 // loop_pre_header
    _
  $region3: #{_lambda_.8} parent=0 // loop_header
    %s19 = sphi 0, %s23
    %p20 = scmp.ge.s32.totalorder %s19, 6
    %s26 = sphi 0, %s38
    %s27 = sphi 0, %s34
    %s28 = sphi 0, %s26
    %s29 = sphi 0, %s27
    %s30 = sphi 0, %s28
    %s31 = sphi 0, %s29
    %s41 = sphi 0, %s43
    %s44 = sphi 0, %s41
    %s45 = sphi 0, %s44
    %s61 = sphi 0, %s45
    %s67 = sphi 0, %s69
    %s70 = sphi 0, %s67
    %s71 = sphi 0, %s70
    %s87 = sphi 0, %s71
    %s93 = sphi 0, %s95
    %s96 = sphi 0, %s93
    %s97 = sphi 0, %s96
    %s113 = sphi 0, %s97
    %s119 = sphi 0, %s121
    %s122 = sphi 0, %s119
    %s123 = sphi 0, %s122
    %s139 = sphi 0, %s123
    %s145 = sphi 0, %s147
    %s148 = sphi 0, %s145
    %s149 = sphi 0, %s148
    %s165 = sphi 0, %s149
    %s171 = sphi 0, %s173
    %s174 = sphi 0, %s171
    %s175 = sphi 0, %s174
    %s191 = sphi 0, %s175
    %s197 = sphi 0, %s199
    %s200 = sphi 0, %s197
    %s201 = sphi 0, %s200
    %s217 = sphi 0, %s201
    %s223 = sphi 0, %s225
    %s226 = sphi 0, %s223
    %s227 = sphi 0, %s226
    %s243 = sphi 0, %s227
    %s249 = sphi 0, %s251
    %s252 = sphi 0, %s249
    %s253 = sphi 0, %s252
    %s269 = sphi 0, %s253
    %s275 = sphi 0, %s277
    %s278 = sphi 0, %s275
    %s279 = sphi 0, %s278
    %s295 = sphi 0, %s279
    %s301 = sphi 0, %s303
    %s304 = sphi 0, %s301
    %s305 = sphi 0, %s304
    %s321 = sphi 0, %s305
    %s327 = sphi 0, %s329
    %s330 = sphi 0, %s327
    %s331 = sphi 0, %s330
    %s347 = sphi 0, %s331
    %s353 = sphi 0, %s355
    %s356 = sphi 0, %s353
    %s357 = sphi 0, %s356
    %s373 = sphi 0, %s357
    %s379 = sphi 0, %s381
    %s382 = sphi 0, %s379
    %s383 = sphi 0, %s382
    %s399 = sphi 0, %s383
  $region4: #{_lambda_.8} parent=0 // loop_header_branch
    %22 = sbr.rel (%p20) target = $region8
  $region5: #{_lambda_.8} parent=0 // loop_body
    %s24 = ssub.s32 %s19, 1
    %s25 = ssub.s32 %s19, 2
    %s32 = sadd.s32 1, %s27
    %p33 = scmp.ge.s32.totalorder %s32, 2
    %s34 = scalar_select %p33, 0, %s32
    %s35 = sadd.s32 1, %s26
    %s36 = scalar_select %p33, %s35, %s26
    %p37 = scmp.ge.s32.totalorder %s36, 2
    %s38 = scalar_select %p37, 0, %s36
    %s39 = ssub.s32 %s26, %s38
    %p40 = scmp.eq.s32.totalorder %s39, 0
    %s42 = sadd.s32 %s41, 1
    %s43 = scalar_select %p40, %s41, %s42
    %p46 = pneg %p40
    %p47 = scmp.eq.s32.totalorder %s19, 3
    %p48 = por %p46, %p47
    %p49 = scmp.ne.s32.totalorder %s41, %s44
    %p50 = scmp.eq.s32.totalorder %s19, 0
    %p51 = por %p49, %p50
    %p52 = scmp.ne.s32.totalorder %s41, %s44
    %p53 = scmp.eq.s32.totalorder %s24, 3
    %p54 = por %p52, %p53
    %p55 = scmp.ne.s32.totalorder %s44, %s45
    %p56 = scmp.eq.s32.totalorder %s24, 0
    %p57 = por %p55, %p56
    %p58 = scmp.ne.s32.totalorder %s44, %s45
    %p59 = scmp.eq.s32.totalorder %s25, 3
    %p60 = por %p58, %p59
    %p62 = scmp.ne.s32.totalorder %s45, %s61
    %p63 = scmp.eq.s32.totalorder %s25, 0
    %p64 = por %p62, %p63
    %s65 = ssub.s32 %s27, %s34
    %p66 = scmp.eq.s32.totalorder %s65, 0
    %s68 = sadd.s32 %s67, 1
    %s69 = scalar_select %p66, %s67, %s68
    %p72 = pneg %p66
    %p73 = scmp.eq.s32.totalorder %s19, 3
    %p74 = por %p72, %p73
    %p75 = scmp.ne.s32.totalorder %s67, %s70
    %p76 = scmp.eq.s32.totalorder %s19, 0
    %p77 = por %p75, %p76
    %p78 = scmp.ne.s32.totalorder %s67, %s70
    %p79 = scmp.eq.s32.totalorder %s24, 3
    %p80 = por %p78, %p79
    %p81 = scmp.ne.s32.totalorder %s70, %s71
    %p82 = scmp.eq.s32.totalorder %s24, 0
    %p83 = por %p81, %p82
    %p84 = scmp.ne.s32.totalorder %s70, %s71
    %p85 = scmp.eq.s32.totalorder %s25, 3
    %p86 = por %p84, %p85
    %p88 = scmp.ne.s32.totalorder %s71, %s87
    %p89 = scmp.eq.s32.totalorder %s25, 0
    %p90 = por %p88, %p89
    %s91 = ssub.s32 %s27, %s34
    %p92 = scmp.eq.s32.totalorder %s91, 0
    %s94 = sadd.s32 %s93, 1
    %s95 = scalar_select %p92, %s93, %s94
    %p98 = pneg %p92
    %p99 = scmp.eq.s32.totalorder %s19, 3
    %p100 = por %p98, %p99
    %p101 = scmp.ne.s32.totalorder %s93, %s96
    %p102 = scmp.eq.s32.totalorder %s19, 0
    %p103 = por %p101, %p102
    %p104 = scmp.ne.s32.totalorder %s93, %s96
    %p105 = scmp.eq.s32.totalorder %s24, 3
    %p106 = por %p104, %p105
    %p107 = scmp.ne.s32.totalorder %s96, %s97
    %p108 = scmp.eq.s32.totalorder %s24, 0
    %p109 = por %p107, %p108
    %p110 = scmp.ne.s32.totalorder %s96, %s97
    %p111 = scmp.eq.s32.totalorder %s25, 3
    %p112 = por %p110, %p111
    %p114 = scmp.ne.s32.totalorder %s97, %s113
    %p115 = scmp.eq.s32.totalorder %s25, 0
    %p116 = por %p114, %p115
    %s117 = ssub.s32 %s27, %s34
    %p118 = scmp.eq.s32.totalorder %s117, 0
    %s120 = sadd.s32 %s119, 1
    %s121 = scalar_select %p118, %s119, %s120
    %p124 = pneg %p118
    %p125 = scmp.eq.s32.totalorder %s19, 3
    %p126 = por %p124, %p125
    %p127 = scmp.ne.s32.totalorder %s119, %s122
    %p128 = scmp.eq.s32.totalorder %s19, 0
    %p129 = por %p127, %p128
    %p130 = scmp.ne.s32.totalorder %s119, %s122
    %p131 = scmp.eq.s32.totalorder %s24, 3
    %p132 = por %p130, %p131
    %p133 = scmp.ne.s32.totalorder %s122, %s123
    %p134 = scmp.eq.s32.totalorder %s24, 0
    %p135 = por %p133, %p134
    %p136 = scmp.ne.s32.totalorder %s122, %s123
    %p137 = scmp.eq.s32.totalorder %s25, 3
    %p138 = por %p136, %p137
    %p140 = scmp.ne.s32.totalorder %s123, %s139
    %p141 = scmp.eq.s32.totalorder %s25, 0
    %p142 = por %p140, %p141
    %s143 = ssub.s32 %s27, %s34
    %p144 = scmp.eq.s32.totalorder %s143, 0
    %s146 = sadd.s32 %s145, 1
    %s147 = scalar_select %p144, %s145, %s146
    %p150 = pneg %p144
    %p151 = scmp.eq.s32.totalorder %s19, 3
    %p152 = por %p150, %p151
    %p153 = scmp.ne.s32.totalorder %s145, %s148
    %p154 = scmp.eq.s32.totalorder %s19, 0
    %p155 = por %p153, %p154
    %p156 = scmp.ne.s32.totalorder %s145, %s148
    %p157 = scmp.eq.s32.totalorder %s24, 3
    %p158 = por %p156, %p157
    %p159 = scmp.ne.s32.totalorder %s148, %s149
    %p160 = scmp.eq.s32.totalorder %s24, 0
    %p161 = por %p159, %p160
    %p162 = scmp.ne.s32.totalorder %s148, %s149
    %p163 = scmp.eq.s32.totalorder %s25, 3
    %p164 = por %p162, %p163
    %p166 = scmp.ne.s32.totalorder %s149, %s165
    %p167 = scmp.eq.s32.totalorder %s25, 0
    %p168 = por %p166, %p167
    %s169 = ssub.s32 %s27, %s34
    %p170 = scmp.eq.s32.totalorder %s169, 0
    %s172 = sadd.s32 %s171, 1
    %s173 = scalar_select %p170, %s171, %s172
    %p176 = pneg %p170
    %p177 = scmp.eq.s32.totalorder %s19, 3
    %p178 = por %p176, %p177
    %p179 = scmp.ne.s32.totalorder %s171, %s174
    %p180 = scmp.eq.s32.totalorder %s19, 0
    %p181 = por %p179, %p180
    %p182 = scmp.ne.s32.totalorder %s171, %s174
    %p183 = scmp.eq.s32.totalorder %s24, 3
    %p184 = por %p182, %p183
    %p185 = scmp.ne.s32.totalorder %s174, %s175
    %p186 = scmp.eq.s32.totalorder %s24, 0
    %p187 = por %p185, %p186
    %p188 = scmp.ne.s32.totalorder %s174, %s175
    %p189 = scmp.eq.s32.totalorder %s25, 3
    %p190 = por %p188, %p189
    %p192 = scmp.ne.s32.totalorder %s175, %s191
    %p193 = scmp.eq.s32.totalorder %s25, 0
    %p194 = por %p192, %p193
    %s195 = ssub.s32 %s27, %s34
    %p196 = scmp.eq.s32.totalorder %s195, 0
    %s198 = sadd.s32 %s197, 1
    %s199 = scalar_select %p196, %s197, %s198
    %p202 = pneg %p196
    %p203 = scmp.eq.s32.totalorder %s19, 3
    %p204 = por %p202, %p203
    %p205 = scmp.ne.s32.totalorder %s197, %s200
    %p206 = scmp.eq.s32.totalorder %s19, 0
    %p207 = por %p205, %p206
    %p208 = scmp.ne.s32.totalorder %s197, %s200
    %p209 = scmp.eq.s32.totalorder %s24, 3
    %p210 = por %p208, %p209
    %p211 = scmp.ne.s32.totalorder %s200, %s201
    %p212 = scmp.eq.s32.totalorder %s24, 0
    %p213 = por %p211, %p212
    %p214 = scmp.ne.s32.totalorder %s200, %s201
    %p215 = scmp.eq.s32.totalorder %s25, 3
    %p216 = por %p214, %p215
    %p218 = scmp.ne.s32.totalorder %s201, %s217
    %p219 = scmp.eq.s32.totalorder %s25, 0
    %p220 = por %p218, %p219
    %s221 = ssub.s32 %s27, %s34
    %p222 = scmp.eq.s32.totalorder %s221, 0
    %s224 = sadd.s32 %s223, 1
    %s225 = scalar_select %p222, %s223, %s224
    %p228 = pneg %p222
    %p229 = scmp.eq.s32.totalorder %s19, 3
    %p230 = por %p228, %p229
    %p231 = scmp.ne.s32.totalorder %s223, %s226
    %p232 = scmp.eq.s32.totalorder %s19, 0
    %p233 = por %p231, %p232
    %p234 = scmp.ne.s32.totalorder %s223, %s226
    %p235 = scmp.eq.s32.totalorder %s24, 3
    %p236 = por %p234, %p235
    %p237 = scmp.ne.s32.totalorder %s226, %s227
    %p238 = scmp.eq.s32.totalorder %s24, 0
    %p239 = por %p237, %p238
    %p240 = scmp.ne.s32.totalorder %s226, %s227
    %p241 = scmp.eq.s32.totalorder %s25, 3
    %p242 = por %p240, %p241
    %p244 = scmp.ne.s32.totalorder %s227, %s243
    %p245 = scmp.eq.s32.totalorder %s25, 0
    %p246 = por %p244, %p245
    %s247 = ssub.s32 %s27, %s34
    %p248 = scmp.eq.s32.totalorder %s247, 0
    %s250 = sadd.s32 %s249, 1
    %s251 = scalar_select %p248, %s249, %s250
    %p254 = pneg %p248
    %p255 = scmp.eq.s32.totalorder %s19, 3
    %p256 = por %p254, %p255
    %p257 = scmp.ne.s32.totalorder %s249, %s252
    %p258 = scmp.eq.s32.totalorder %s19, 0
    %p259 = por %p257, %p258
    %p260 = scmp.ne.s32.totalorder %s249, %s252
    %p261 = scmp.eq.s32.totalorder %s24, 3
    %p262 = por %p260, %p261
    %p263 = scmp.ne.s32.totalorder %s252, %s253
    %p264 = scmp.eq.s32.totalorder %s24, 0
    %p265 = por %p263, %p264
    %p266 = scmp.ne.s32.totalorder %s252, %s253
    %p267 = scmp.eq.s32.totalorder %s25, 3
    %p268 = por %p266, %p267
    %p270 = scmp.ne.s32.totalorder %s253, %s269
    %p271 = scmp.eq.s32.totalorder %s25, 0
    %p272 = por %p270, %p271
    %s273 = ssub.s32 %s27, %s34
    %p274 = scmp.eq.s32.totalorder %s273, 0
    %s276 = sadd.s32 %s275, 1
    %s277 = scalar_select %p274, %s275, %s276
    %p280 = pneg %p274
    %p281 = scmp.eq.s32.totalorder %s19, 3
    %p282 = por %p280, %p281
    %p283 = scmp.ne.s32.totalorder %s275, %s278
    %p284 = scmp.eq.s32.totalorder %s19, 0
    %p285 = por %p283, %p284
    %p286 = scmp.ne.s32.totalorder %s275, %s278
    %p287 = scmp.eq.s32.totalorder %s24, 3
    %p288 = por %p286, %p287
    %p289 = scmp.ne.s32.totalorder %s278, %s279
    %p290 = scmp.eq.s32.totalorder %s24, 0
    %p291 = por %p289, %p290
    %p292 = scmp.ne.s32.totalorder %s278, %s279
    %p293 = scmp.eq.s32.totalorder %s25, 3
    %p294 = por %p292, %p293
    %p296 = scmp.ne.s32.totalorder %s279, %s295
    %p297 = scmp.eq.s32.totalorder %s25, 0
    %p298 = por %p296, %p297
    %s299 = ssub.s32 %s27, %s34
    %p300 = scmp.eq.s32.totalorder %s299, 0
    %s302 = sadd.s32 %s301, 1
    %s303 = scalar_select %p300, %s301, %s302
    %p306 = pneg %p300
    %p307 = scmp.eq.s32.totalorder %s19, 3
    %p308 = por %p306, %p307
    %p309 = scmp.ne.s32.totalorder %s301, %s304
    %p310 = scmp.eq.s32.totalorder %s19, 0
    %p311 = por %p309, %p310
    %p312 = scmp.ne.s32.totalorder %s301, %s304
    %p313 = scmp.eq.s32.totalorder %s24, 3
    %p314 = por %p312, %p313
    %p315 = scmp.ne.s32.totalorder %s304, %s305
    %p316 = scmp.eq.s32.totalorder %s24, 0
    %p317 = por %p315, %p316
    %p318 = scmp.ne.s32.totalorder %s304, %s305
    %p319 = scmp.eq.s32.totalorder %s25, 3
    %p320 = por %p318, %p319
    %p322 = scmp.ne.s32.totalorder %s305, %s321
    %p323 = scmp.eq.s32.totalorder %s25, 0
    %p324 = por %p322, %p323
    %s325 = ssub.s32 %s27, %s34
    %p326 = scmp.eq.s32.totalorder %s325, 0
    %s328 = sadd.s32 %s327, 1
    %s329 = scalar_select %p326, %s327, %s328
    %p332 = pneg %p326
    %p333 = scmp.eq.s32.totalorder %s19, 3
    %p334 = por %p332, %p333
    %p335 = scmp.ne.s32.totalorder %s327, %s330
    %p336 = scmp.eq.s32.totalorder %s19, 0
    %p337 = por %p335, %p336
    %p338 = scmp.ne.s32.totalorder %s327, %s330
    %p339 = scmp.eq.s32.totalorder %s24, 3
    %p340 = por %p338, %p339
    %p341 = scmp.ne.s32.totalorder %s330, %s331
    %p342 = scmp.eq.s32.totalorder %s24, 0
    %p343 = por %p341, %p342
    %p344 = scmp.ne.s32.totalorder %s330, %s331
    %p345 = scmp.eq.s32.totalorder %s25, 3
    %p346 = por %p344, %p345
    %p348 = scmp.ne.s32.totalorder %s331, %s347
    %p349 = scmp.eq.s32.totalorder %s25, 0
    %p350 = por %p348, %p349
    %s351 = ssub.s32 %s27, %s34
    %p352 = scmp.eq.s32.totalorder %s351, 0
    %s354 = sadd.s32 %s353, 1
    %s355 = scalar_select %p352, %s353, %s354
    %p358 = pneg %p352
    %p359 = scmp.eq.s32.totalorder %s19, 3
    %p360 = por %p358, %p359
    %p361 = scmp.ne.s32.totalorder %s353, %s356
    %p362 = scmp.eq.s32.totalorder %s19, 0
    %p363 = por %p361, %p362
    %p364 = scmp.ne.s32.totalorder %s353, %s356
    %p365 = scmp.eq.s32.totalorder %s24, 3
    %p366 = por %p364, %p365
    %p367 = scmp.ne.s32.totalorder %s356, %s357
    %p368 = scmp.eq.s32.totalorder %s24, 0
    %p369 = por %p367, %p368
    %p370 = scmp.ne.s32.totalorder %s356, %s357
    %p371 = scmp.eq.s32.totalorder %s25, 3
    %p372 = por %p370, %p371
    %p374 = scmp.ne.s32.totalorder %s357, %s373
    %p375 = scmp.eq.s32.totalorder %s25, 0
    %p376 = por %p374, %p375
    %s377 = ssub.s32 %s26, %s38
    %p378 = scmp.eq.s32.totalorder %s377, 0
    %s380 = sadd.s32 %s379, 1
    %s381 = scalar_select %p378, %s379, %s380
    %p384 = pneg %p378
    %p385 = scmp.eq.s32.totalorder %s19, 3
    %p386 = por %p384, %p385
    %p387 = scmp.ne.s32.totalorder %s379, %s382
    %p388 = scmp.eq.s32.totalorder %s19, 0
    %p389 = por %p387, %p388
    %p390 = scmp.ne.s32.totalorder %s379, %s382
    %p391 = scmp.eq.s32.totalorder %s24, 3
    %p392 = por %p390, %p391
    %p393 = scmp.ne.s32.totalorder %s382, %s383
    %p394 = scmp.eq.s32.totalorder %s24, 0
    %p395 = por %p393, %p394
    %p396 = scmp.ne.s32.totalorder %s382, %s383
    %p397 = scmp.eq.s32.totalorder %s25, 3
    %p398 = por %p396, %p397
    %p400 = scmp.ne.s32.totalorder %s383, %s399
    %p401 = scmp.eq.s32.totalorder %s25, 0
    %p402 = por %p400, %p401
    %p403 = scmp.le.s32.totalorder 1, %s19
    %p404 = scmp.lt.s32.totalorder %s19, 5
    %p405 = pnand %p403, %p404
    %p406 = pneg %p405
    // Predicated region
    $region9: #{_lambda_.8} parent=5 // pred_check
      _
    $region10: #{_lambda_.8} parent=5 // pred_check_branch
      %408 = sbr.rel (%p405) target = $region12
    $region11: #{_lambda_.8} parent=5 // pred_region
      %s409 = ssub.s32 %s19, 1
    $region12: #{_lambda_.8} parent=5 // pred_fallthru
      _
    %p410 = scmp.lt.s32.totalorder %s19, 4
    // Predicated region
    $region13: #{_lambda_.8} parent=5 // pred_check
      %p411 = pneg %p410
    $region14: #{_lambda_.8} parent=5 // pred_check_branch
      %413 = sbr.rel (%p411) target = $region16
    $region15: #{_lambda_.8} parent=5 // pred_region
      // Predicated region
      $region17: #{_lambda_.8} parent=15 // pred_check
        %p414 = pneg %p51
      $region18: #{_lambda_.8} parent=15 // pred_check_branch
        %416 = sbr.rel (%p414) target = $region20
      $region19: #{_lambda_.8} parent=15 // pred_region
        %p417 = scmp.lt.s32.totalorder %s26, 1
        %s418 = scalar_select %p417, %s26, 1
        %s419 = smul.addr %s418, 5
        %s420 = smul.addr %s419, 8
        %s421 = scalar_lea.vmem %s0, %s420
      $region20: #{_lambda_.8} parent=15 // pred_fallthru
        _
      // Predicated region
      $region21: #{_lambda_.8} parent=15 // pred_check
        %p422 = pneg %p77
      $region22: #{_lambda_.8} parent=15 // pred_check_branch
        %424 = sbr.rel (%p422) target = $region24
      $region23: #{_lambda_.8} parent=15 // pred_region
        %p425 = scmp.lt.s32.totalorder %s27, 1
        %s426 = scalar_select %p425, %s27, 1
        %s427 = smul.addr %s426, 4
        %s428 = smul.addr %s427, 4
        %s429 = scalar_lea.vmem %s1, %s428
      $region24: #{_lambda_.8} parent=15 // pred_fallthru
        _
      // Predicated region
      $region25: #{_lambda_.8} parent=15 // pred_check
        %p430 = pneg %p103
      $region26: #{_lambda_.8} parent=15 // pred_check_branch
        %432 = sbr.rel (%p430) target = $region28
      $region27: #{_lambda_.8} parent=15 // pred_region
        %p433 = scmp.lt.s32.totalorder %s27, 1
        %s434 = scalar_select %p433, %s27, 1
        %s435 = scalar_lea.vmem %s2, %s434
      $region28: #{_lambda_.8} parent=15 // pred_fallthru
        _
      // Predicated region
      $region29: #{_lambda_.8} parent=15 // pred_check
        %p436 = pneg %p129
      $region30: #{_lambda_.8} parent=15 // pred_check_branch
        %438 = sbr.rel (%p436) target = $region32
      $region31: #{_lambda_.8} parent=15 // pred_region
        %p439 = scmp.lt.s32.totalorder %s27, 1
        %s440 = scalar_select %p439, %s27, 1
        %s441 = smul.addr %s440, 4
        %s442 = smul.addr %s441, 8
        %s443 = scalar_lea.vmem %s3, %s442
      $region32: #{_lambda_.8} parent=15 // pred_fallthru
        _
      // Predicated region
      $region33: #{_lambda_.8} parent=15 // pred_check
        %p444 = pneg %p155
      $region34: #{_lambda_.8} parent=15 // pred_check_branch
        %446 = sbr.rel (%p444) target = $region36
      $region35: #{_lambda_.8} parent=15 // pred_region
        %p447 = scmp.lt.s32.totalorder %s27, 1
        %s448 = scalar_select %p447, %s27, 1
        %s449 = scalar_lea.vmem %s4, %s448
      $region36: #{_lambda_.8} parent=15 // pred_fallthru
        _
      // Predicated region
      $region37: #{_lambda_.8} parent=15 // pred_check
        %p450 = pneg %p181
      $region38: #{_lambda_.8} parent=15 // pred_check_branch
        %452 = sbr.rel (%p450) target = $region40
      $region39: #{_lambda_.8} parent=15 // pred_region
        %p453 = scmp.lt.s32.totalorder %s27, 1
        %s454 = scalar_select %p453, %s27, 1
        %s455 = scalar_lea.vmem %s5, %s454
      $region40: #{_lambda_.8} parent=15 // pred_fallthru
        _
      // Predicated region
      $region41: #{_lambda_.8} parent=15 // pred_check
        %p456 = pneg %p207
      $region42: #{_lambda_.8} parent=15 // pred_check_branch
        %458 = sbr.rel (%p456) target = $region44
      $region43: #{_lambda_.8} parent=15 // pred_region
        %p459 = scmp.lt.s32.totalorder %s27, 1
        %s460 = scalar_select %p459, %s27, 1
        %s461 = scalar_lea.vmem %s6, %s460
      $region44: #{_lambda_.8} parent=15 // pred_fallthru
        _
      // Predicated region
      $region45: #{_lambda_.8} parent=15 // pred_check
        %p462 = pneg %p233
      $region46: #{_lambda_.8} parent=15 // pred_check_branch
        %464 = sbr.rel (%p462) target = $region48
      $region47: #{_lambda_.8} parent=15 // pred_region
        %p465 = scmp.lt.s32.totalorder %s27, 1
        %s466 = scalar_select %p465, %s27, 1
        %s467 = smul.addr %s466, 4
        %s468 = smul.addr %s467, 4
        %s469 = scalar_lea.vmem %s7, %s468
      $region48: #{_lambda_.8} parent=15 // pred_fallthru
        _
      // Predicated region
      $region49: #{_lambda_.8} parent=15 // pred_check
        %p470 = pneg %p259
      $region50: #{_lambda_.8} parent=15 // pred_check_branch
        %472 = sbr.rel (%p470) target = $region52
      $region51: #{_lambda_.8} parent=15 // pred_region
        %p473 = scmp.lt.s32.totalorder %s27, 1
        %s474 = scalar_select %p473, %s27, 1
        %s475 = scalar_lea.vmem %s8, %s474
      $region52: #{_lambda_.8} parent=15 // pred_fallthru
        _
      // Predicated region
      $region53: #{_lambda_.8} parent=15 // pred_check
        %p476 = pneg %p285
      $region54: #{_lambda_.8} parent=15 // pred_check_branch
        %478 = sbr.rel (%p476) target = $region56
      $region55: #{_lambda_.8} parent=15 // pred_region
        %p479 = scmp.lt.s32.totalorder %s27, 1
        %s480 = scalar_select %p479, %s27, 1
        %s481 = smul.addr %s480, 8
        %s482 = smul.addr %s481, 4
        %s483 = scalar_lea.vmem %s9, %s482
      $region56: #{_lambda_.8} parent=15 // pred_fallthru
        _
      // Predicated region
      $region57: #{_lambda_.8} parent=15 // pred_check
        %p484 = pneg %p311
      $region58: #{_lambda_.8} parent=15 // pred_check_branch
        %486 = sbr.rel (%p484) target = $region60
      $region59: #{_lambda_.8} parent=15 // pred_region
        %p487 = scmp.lt.s32.totalorder %s27, 1
        %s488 = scalar_select %p487, %s27, 1
        %s489 = scalar_lea.vmem %s10, %s488
      $region60: #{_lambda_.8} parent=15 // pred_fallthru
        _
      // Predicated region
      $region61: #{_lambda_.8} parent=15 // pred_check
        %p490 = pneg %p337
      $region62: #{_lambda_.8} parent=15 // pred_check_branch
        %492 = sbr.rel (%p490) target = $region64
      $region63: #{_lambda_.8} parent=15 // pred_region
        %p493 = scmp.lt.s32.totalorder %s27, 1
        %s494 = scalar_select %p493, %s27, 1
        %s495 = scalar_lea.vmem %s11, %s494
      $region64: #{_lambda_.8} parent=15 // pred_fallthru
        _
      // Predicated region
      $region65: #{_lambda_.8} parent=15 // pred_check
        %p496 = pneg %p363
      $region66: #{_lambda_.8} parent=15 // pred_check_branch
        %498 = sbr.rel (%p496) target = $region68
      $region67: #{_lambda_.8} parent=15 // pred_region
        %p499 = scmp.lt.s32.totalorder %s27, 1
        %s500 = scalar_select %p499, %s27, 1
        %s501 = scalar_lea.vmem %s12, %s500
      $region68: #{_lambda_.8} parent=15 // pred_fallthru
        _
    $region16: #{_lambda_.8} parent=5 // pred_fallthru
      _
    %p502 = scmp.le.s32.totalorder 1, %s19
    %p503 = scmp.lt.s32.totalorder %s19, 5
    %p504 = pnand %p502, %p503
    %p505 = pneg %p504
    // Predicated region
    $region69: #{_lambda_.8} parent=5 // pred_check
      _
    $region70: #{_lambda_.8} parent=5 // pred_check_branch
      %507 = sbr.rel (%p504) target = $region72
    $region71: #{_lambda_.8} parent=5 // pred_region
      %s508 = ssub.s32 %s19, 1
      %p509 = scmp.lt.s32.totalorder %s28, 1
      %s510 = scalar_select %p509, %s28, 1
      %s511 = smul.addr %s510, 5
      %s512 = smul.addr %s511, 8
      %s513 = scalar_lea.vmem %s0, %s512
      %p514 = pneg %p57
      %p515 = pneg %p54
      %p516 = scmp.lt.s32.totalorder %s29, 1
      %s517 = scalar_select %p516, %s29, 1
      %s518 = smul.addr %s517, 4
      %s519 = smul.addr %s518, 4
      %s520 = scalar_lea.vmem %s1, %s519
      %p521 = pneg %p83
      %p522 = pneg %p80
      %p523 = scmp.lt.s32.totalorder %s29, 1
      %s524 = scalar_select %p523, %s29, 1
      %s525 = scalar_lea.vmem %s2, %s524
      %p526 = pneg %p109
      %p527 = pneg %p106
      %p528 = scmp.lt.s32.totalorder %s29, 1
      %s529 = scalar_select %p528, %s29, 1
      %s530 = smul.addr %s529, 4
      %s531 = smul.addr %s530, 8
      %s532 = scalar_lea.vmem %s3, %s531
      %p533 = pneg %p135
      %p534 = pneg %p132
      %p535 = scmp.lt.s32.totalorder %s29, 1
      %s536 = scalar_select %p535, %s29, 1
      %s537 = scalar_lea.vmem %s4, %s536
      %p538 = pneg %p161
      %p539 = pneg %p158
      %p540 = scmp.lt.s32.totalorder %s29, 1
      %s541 = scalar_select %p540, %s29, 1
      %s542 = scalar_lea.vmem %s5, %s541
      %p543 = pneg %p187
      %p544 = pneg %p184
      %p545 = scmp.lt.s32.totalorder %s29, 1
      %s546 = scalar_select %p545, %s29, 1
      %s547 = scalar_lea.vmem %s6, %s546
      %p548 = pneg %p213
      %p549 = pneg %p210
      %p550 = scmp.lt.s32.totalorder %s29, 1
      %s551 = scalar_select %p550, %s29, 1
      %s552 = smul.addr %s551, 4
      %s553 = smul.addr %s552, 4
      %s554 = scalar_lea.vmem %s7, %s553
      %p555 = pneg %p239
      %p556 = pneg %p236
      %p557 = scmp.lt.s32.totalorder %s29, 1
      %s558 = scalar_select %p557, %s29, 1
      %s559 = scalar_lea.vmem %s8, %s558
      %p560 = pneg %p265
      %p561 = pneg %p262
      %p562 = scmp.lt.s32.totalorder %s29, 1
      %s563 = scalar_select %p562, %s29, 1
      %s564 = smul.addr %s563, 8
      %s565 = smul.addr %s564, 4
      %s566 = scalar_lea.vmem %s9, %s565
      %p567 = pneg %p291
      %p568 = pneg %p288
      %p569 = scmp.lt.s32.totalorder %s29, 1
      %s570 = scalar_select %p569, %s29, 1
      %s571 = scalar_lea.vmem %s10, %s570
      %p572 = pneg %p317
      %p573 = pneg %p314
      %p574 = scmp.lt.s32.totalorder %s29, 1
      %s575 = scalar_select %p574, %s29, 1
      %s576 = scalar_lea.vmem %s11, %s575
      %p577 = pneg %p343
      %p578 = pneg %p340
      %p579 = scmp.lt.s32.totalorder %s29, 1
      %s580 = scalar_select %p579, %s29, 1
      %s581 = scalar_lea.vmem %s12, %s580
      %p582 = pneg %p369
      %p583 = pneg %p366
      %p584 = pneg %p395
      %p585 = pneg %p392
      %p586 = scmp.lt.s32.totalorder %s28, 1
      %s587 = scalar_select %p586, %s28, 1
      %s588 = smul.addr %s587, 5
      %s589 = smul.addr %s588, 8
      %s590 = scalar_lea.vmem %s13, %s589
      %p591 = scmp.lt.s32.totalorder %s28, 1
      %s592 = scalar_select %p591, %s28, 1
      %s593 = smul.addr %s592, 5
      %s594 = smul.addr %s593, 8
      %s595 = scalar_lea.vmem %s0, %s594
      %p596 = scmp.lt.s32.totalorder %s29, 1
      %s597 = scalar_select %p596, %s29, 1
      %s598 = smul.addr %s597, 4
      %s599 = smul.addr %s598, 4
      %s600 = scalar_lea.vmem %s1, %s599
      %p601 = scmp.lt.s32.totalorder %s29, 1
      %s602 = scalar_select %p601, %s29, 1
      %s603 = scalar_lea.vmem %s2, %s602
      %p604 = scmp.lt.s32.totalorder %s29, 1
      %s605 = scalar_select %p604, %s29, 1
      %s606 = smul.addr %s605, 4
      %s607 = smul.addr %s606, 8
      %s608 = scalar_lea.vmem %s3, %s607
      %p609 = scmp.lt.s32.totalorder %s29, 1
      %s610 = scalar_select %p609, %s29, 1
      %s611 = scalar_lea.vmem %s4, %s610
      %p612 = scmp.lt.s32.totalorder %s29, 1
      %s613 = scalar_select %p612, %s29, 1
      %s614 = scalar_lea.vmem %s5, %s613
      %p615 = scmp.lt.s32.totalorder %s29, 1
      %s616 = scalar_select %p615, %s29, 1
      %s617 = scalar_lea.vmem %s6, %s616
      %p618 = scmp.lt.s32.totalorder %s29, 1
      %s619 = scalar_select %p618, %s29, 1
      %s620 = smul.addr %s619, 4
      %s621 = smul.addr %s620, 4
      %s622 = scalar_lea.vmem %s7, %s621
      %p623 = scmp.lt.s32.totalorder %s29, 1
      %s624 = scalar_select %p623, %s29, 1
      %s625 = scalar_lea.vmem %s8, %s624
      %p626 = scmp.lt.s32.totalorder %s29, 1
      %s627 = scalar_select %p626, %s29, 1
      %s628 = smul.addr %s627, 8
      %s629 = smul.addr %s628, 4
      %s630 = scalar_lea.vmem %s9, %s629
      %p631 = scmp.lt.s32.totalorder %s29, 1
      %s632 = scalar_select %p631, %s29, 1
      %s633 = scalar_lea.vmem %s10, %s632
      %p634 = scmp.lt.s32.totalorder %s29, 1
      %s635 = scalar_select %p634, %s29, 1
      %s636 = scalar_lea.vmem %s11, %s635
      %p637 = scmp.lt.s32.totalorder %s29, 1
      %s638 = scalar_select %p637, %s29, 1
      %s639 = scalar_lea.vmem %s12, %s638
      %p640 = scmp.lt.s32.totalorder %s28, 1
      %s641 = scalar_select %p640, %s28, 1
      %s642 = smul.addr %s641, 5
      %s643 = smul.addr %s642, 8
      %s644 = scalar_lea.vmem %s13, %s643
      %p646 = scmp.eq.s32.totalorder %s29, 0
      // Predicated region
      $region73: #{_lambda_.8} parent=71 // pred_check
        %p647 = pneg %p646
      $region74: #{_lambda_.8} parent=71 // pred_check_branch
        %649 = sbr.rel (%p647) target = $region76
      $region75: #{_lambda_.8} parent=71 // pred_region
        %v650 = vld [vmem:[%s595] sm:$0xff]
        %v651 = vld [vmem:[%s595 + $0x8] sm:$0xff]
        %v652 = vld [vmem:[%s595 + $0x10] sm:$0xff]
        %v653 = vld [vmem:[%s595 + $0x18] sm:$0xff]
        %v654 = vld [vmem:[%s595 + $0x20] sm:$0x7f]
        %vm655 = vcmask 261120
        %656 = vst.msk [vmem:[#allocation2] sm:$0xff] %vm655, %v650
        %657 = vst.msk [vmem:[#allocation2 + $0x8] sm:$0xff] %vm655, %v651
        %658 = vst.msk [vmem:[#allocation2 + $0x10] sm:$0xff] %vm655, %v652
        %659 = vst.msk [vmem:[#allocation2 + $0x18] sm:$0xff] %vm655, %v653
        %vm660 = vcmask 260096
        %661 = vst.msk [vmem:[#allocation2 + $0x20] sm:$0x7f] %vm660, %v654
      $region76: #{_lambda_.8} parent=71 // pred_fallthru
        _
      %v662 = vld [vmem:[#allocation2] sm:$0xff]
      %v663 = vld [vmem:[#allocation2 + $0x8] sm:$0xff]
      %v664 = vld [vmem:[#allocation2 + $0x10] sm:$0xff]
      %v665 = vld [vmem:[#allocation2 + $0x18] sm:$0xff]
      %v666 = vld [vmem:[#allocation2 + $0x20] sm:$0x7f]
      %v667 = vld [vmem:[%s600] sm:$0xf]
      %v668 = vld [vmem:[%s600 + $0x4] sm:$0xf]
      %v669 = vld [vmem:[%s600 + $0x8] sm:$0xf]
      %v670 = vld [vmem:[%s600 + $0xc] sm:$0xf]
      %v671 = vpack.c.bf16 %v663, %v662
      %v672 = vpack.c.bf16 %v665, %v664
      %v673 = vpack.c.bf16 %v666, %v666
      %v674 = vld [vmem:[%s603] sm:$0x1]
      %v676 = vlaneseq
      %v677 = vshrl.u32 %v676, 7
      %v678 = vsub.s32 0, %v677
      %v679 = vrot.slane %v674, %v678
      %v685 = vunpack.c.l.b16 %v667
      %v686 = vunpack.c.l.b16 %v668
      %v687 = vunpack.c.l.b16 %v669
      %v688 = vunpack.c.l.b16 %v670
      %v689 = vpack.c.b16 %v686, %v685
      %v690 = vpack.c.b16 %v688, %v687
      %vm693 = vcmask 261120
      %v695 = vsel %vm693, %v671, 0
      %v698 = vsel %vm693, %v672, 0
      %v701 = vsel %vm693, %v673, 0
      %703 = vmatprep.subr.bf16.mxu0 0
      %704 = vmatpush1.bf16.msra.mxu0 %v689
      %705 = vmatprep.subr.bf16.mxu0 0
      %706 = vmatpush1.bf16.msra.mxu0 %v690
      %707 = vmatprep.subr.bf16.mxu0 0
      %708 = vmatpush1.bf16.msra.mxu0 0
      %709 = vmatprep.subr.bf16.mxu0 0
      %710 = vmatpush1.bf16.msra.mxu0 0
      %711 = vmatprep.subr.bf16.mxu0 0
      %712 = vmatpush1.bf16.msra.mxu0 0
      %713 = vmatprep.subr.bf16.mxu0 0
      %714 = vmatpush1.bf16.msra.mxu0 0
      %715 = vmatprep.subr.bf16.mxu0 0
      %716 = vmatpush1.bf16.msra.mxu0 0
      %717 = vmatprep.subr.bf16.mxu0 0
      %718 = vmatpush1.bf16.msra.mxu0 0
      %719 = vmatprep.subr.bf16.mxu0 0
      %720 = vmatpush1.bf16.msra.mxu0 0
      %721 = vmatprep.subr.bf16.mxu0 0
      %722 = vmatpush1.bf16.msra.mxu0 0
      %723 = vmatprep.subr.bf16.mxu0 0
      %724 = vmatpush1.bf16.msra.mxu0 0
      %725 = vmatprep.subr.bf16.mxu0 0
      %726 = vmatpush1.bf16.msra.mxu0 0
      %727 = vmatprep.subr.bf16.mxu0 0
      %728 = vmatpush1.bf16.msra.mxu0 0
      %729 = vmatprep.subr.bf16.mxu0 0
      %730 = vmatpush1.bf16.msra.mxu0 0
      %731 = vmatprep.subr.bf16.mxu0 0
      %732 = vmatpush1.bf16.msra.mxu0 0
      %733 = vmatprep.subr.bf16.mxu0 0
      %734 = vmatpush1.bf16.msra.mxu0 0
      %735 = vmatprep.mubr.bf16.mxu0 0
      %736 = vmatmul.mubr.bf16.gmra.mrb[0].mxu0 %v695
      %v737 = vpop.f32.mrb[0].mxu0
      %v738 = vadd.f32 %v679, %v737
      %v739 = vpop.f32.mrb[0].mxu0
      %v740 = vpop.f32.mrb[0].mxu0
      %v741 = vadd.f32 %v679, %v740
      %v742 = vpop.f32.mrb[0].mxu0
      %743 = vmatprep.mubr.bf16.mxu0 0
      %744 = vmatmul.mubr.bf16.gmra.mrb[0].mxu0 %v698
      %v745 = vpop.f32.mrb[0].mxu0
      %v746 = vadd.f32 %v679, %v745
      %v747 = vpop.f32.mrb[0].mxu0
      %v748 = vpop.f32.mrb[0].mxu0
      %v749 = vadd.f32 %v679, %v748
      %v750 = vpop.f32.mrb[0].mxu0
      %751 = vmatprep.mubr.bf16.mxu0 0
      %752 = vmatmul.mubr.bf16.gmra.mrb[0].mxu0 %v701
      %v753 = vpop.f32.mrb[0].mxu0
      %v754 = vadd.f32 %v679, %v753
      %v755 = vpop.f32.mrb[0].mxu0
      %v756 = vpop.f32.mrb[0].mxu0
      %v757 = vpop.f32.mrb[0].mxu0
      %758 = vdwg.mxu0
      %v759 = vmul.f32 %v738, 0.35355338
      %v760 = vmul.f32 %v741, 0.35355338
      %v761 = vmul.f32 %v746, 0.35355338
      %v762 = vmul.f32 %v749, 0.35355338
      %v763 = vmul.f32 %v754, 0.35355338
      %v764 = vpack.c.bf16 %v760, %v759
      %v765 = vpack.c.bf16 %v762, %v761
      %v766 = vpack.c.bf16 %v763, %v763
      %v767 = vpack.c.bf16 %v741, %v738
      %v768 = vpack.c.bf16 %v749, %v746
      %v769 = vpack.c.bf16 %v754, %v754
      %773 = vrot.lane.b32.xlu0 %v767, 96
      %v774 = vpop.permute.xlu0 %773
      %775 = vrot.lane.b32.xlu0 %v768, 96
      %v776 = vpop.permute.xlu0 %775
      %777 = vrot.lane.b32.xlu0 %v769, 96
      %v778 = vpop.permute.xlu0 %777
      %vm779 = vcmask 64512
      %v781 = vsel %vm779, %v764, 0
      %v784 = vsel %vm779, %v765, 0
      %v787 = vsel %vm779, %v766, 0
      %v790 = vsel %vm779, %v774, 0
      %v793 = vsel %vm779, %v776, 0
      %v796 = vsel %vm779, %v778, 0
      %798 = vmatprep.subr.bf16.mxu0 0
      %799 = vmatpush1.bf16.xpose.msra.mxu0 %v790
      %800 = vmatprep.subr.bf16.mxu0 0
      %801 = vmatpush1.bf16.xpose.msra.mxu0 %v793
      %802 = vmatprep.subr.bf16.mxu0 0
      %803 = vmatpush1.bf16.xpose.msra.mxu0 %v796
      %804 = vmatprep.subr.bf16.mxu0 0
      %805 = vmatpush1.bf16.xpose.msra.mxu0 0
      %806 = vmatprep.subr.bf16.mxu0 0
      %807 = vmatpush1.bf16.xpose.msra.mxu0 0
      %808 = vmatprep.subr.bf16.mxu0 0
      %809 = vmatpush1.bf16.xpose.msra.mxu0 0
      %810 = vmatprep.subr.bf16.mxu0 0
      %811 = vmatpush1.bf16.xpose.msra.mxu0 0
      %812 = vmatprep.subr.bf16.mxu0 0
      %813 = vmatpush1.bf16.xpose.msra.mxu0 0
      %814 = vmatprep.subr.bf16.mxu0 0
      %815 = vmatpush1.bf16.xpose.msra.mxu0 0
      %816 = vmatprep.subr.bf16.mxu0 0
      %817 = vmatpush1.bf16.xpose.msra.mxu0 0
      %818 = vmatprep.subr.bf16.mxu0 0
      %819 = vmatpush1.bf16.xpose.msra.mxu0 0
      %820 = vmatprep.subr.bf16.mxu0 0
      %821 = vmatpush1.bf16.xpose.msra.mxu0 0
      %822 = vmatprep.subr.bf16.mxu0 0
      %823 = vmatpush1.bf16.xpose.msra.mxu0 0
      %824 = vmatprep.subr.bf16.mxu0 0
      %825 = vmatpush1.bf16.xpose.msra.mxu0 0
      %826 = vmatprep.subr.bf16.mxu0 0
      %827 = vmatpush1.bf16.xpose.msra.mxu0 0
      %828 = vmatprep.subr.bf16.mxu0 0
      %829 = vmatpush1.bf16.xpose.msra.mxu0 0
      %830 = vmatprep.mubr.bf16.mxu0 0
      %831 = vmatmul.mubr.bf16.gmra.mrb[0].mxu0 %v781
      %v832 = vpop.f32.mrb[0].mxu0
      %v833 = vadd.f32 0.0, %v832
      %v834 = vpop.f32.mrb[0].mxu0
      %v835 = vpop.f32.mrb[0].mxu0
      %v836 = vadd.f32 0.0, %v835
      %v837 = vpop.f32.mrb[0].mxu0
      %838 = vmatprep.mubr.bf16.mxu0 0
      %839 = vmatmul.mubr.bf16.gmra.mrb[0].mxu0 %v784
      %v840 = vpop.f32.mrb[0].mxu0
      %v841 = vadd.f32 0.0, %v840
      %v842 = vpop.f32.mrb[0].mxu0
      %v843 = vpop.f32.mrb[0].mxu0
      %v844 = vadd.f32 0.0, %v843
      %v845 = vpop.f32.mrb[0].mxu0
      %846 = vmatprep.mubr.bf16.mxu0 0
      %847 = vmatmul.mubr.bf16.gmra.mrb[0].mxu0 %v787
      %v848 = vpop.f32.mrb[0].mxu0
      %v849 = vadd.f32 0.0, %v848
      %v850 = vpop.f32.mrb[0].mxu0
      %v851 = vpop.f32.mrb[0].mxu0
      %v852 = vpop.f32.mrb[0].mxu0
      %853 = vdwg.mxu0
      %vm854 = vcmask 318464
      %v855 = vsel %vm854, %v833, -inf
      %856 = vmax.xlane.f32.xlu0 %v855
      %v857 = vpop.xlane.xlu0 %856
      %v858 = vsel %vm854, %v836, -inf
      %859 = vmax.xlane.f32.xlu0 %v858
      %v860 = vpop.xlane.xlu0 %859
      %v861 = vsel %vm854, %v841, -inf
      %862 = vmax.xlane.f32.xlu0 %v861
      %v863 = vpop.xlane.xlu0 %862
      %v864 = vsel %vm854, %v844, -inf
      %865 = vmax.xlane.f32.xlu0 %v864
      %v866 = vpop.xlane.xlu0 %865
      %vm867 = vcmask 317440
      %v868 = vsel %vm867, %v849, -inf
      %869 = vmax.xlane.f32.xlu0 %v868
      %v870 = vpop.xlane.xlu0 %869
      %v871 = vsub.f32 %v833, %v857
      %v872 = vsub.f32 %v836, %v860
      %v873 = vsub.f32 %v841, %v863
      %v874 = vsub.f32 %v844, %v866
      %v875 = vsub.f32 %v849, %v870
      %v876 = vmul.f32 %v871, 1.442695
      %v877 = vpow.pop %v876
      %v878 = vmul.f32 %v872, 1.442695
      %v879 = vpow.pop %v878
      %v880 = vmul.f32 %v873, 1.442695
      %v881 = vpow.pop %v880
      %v882 = vmul.f32 %v874, 1.442695
      %v883 = vpow.pop %v882
      %v884 = vmul.f32 %v875, 1.442695
      %v885 = vpow.pop %v884
      %v886 = vsel %vm854, %v877, 0.0
      %887 = vadd.xlane.f32.xlu0 %v886
      %v888 = vpop.xlane.xlu0 %887
      %v889 = vsel %vm854, %v879, 0.0
      %890 = vadd.xlane.f32.xlu0 %v889
      %v891 = vpop.xlane.xlu0 %890
      %v892 = vsel %vm854, %v881, 0.0
      %893 = vadd.xlane.f32.xlu0 %v892
      %v894 = vpop.xlane.xlu0 %893
      %v895 = vsel %vm854, %v883, 0.0
      %896 = vadd.xlane.f32.xlu0 %v895
      %v897 = vpop.xlane.xlu0 %896
      %v898 = vsel %vm867, %v885, 0.0
      %899 = vadd.xlane.f32.xlu0 %v898
      %v900 = vpop.xlane.xlu0 %899
      %v901 = vrcp.pop %v888
      %v902 = vrcp.pop %v891
      %v903 = vrcp.pop %v894
      %v904 = vrcp.pop %v897
      %v905 = vrcp.pop %v900
      %v906 = vmul.f32 %v877, %v901
      %v907 = vmul.f32 %v879, %v902
      %v908 = vmul.f32 %v881, %v903
      %v909 = vmul.f32 %v883, %v904
      %v910 = vmul.f32 %v885, %v905
      %v911 = vpack.c.bf16 %v907, %v906
      %v912 = vpack.c.bf16 %v909, %v908
      %v913 = vpack.c.bf16 %v910, %v910
      %914 = vrot.lane.b32.xlu0 %v767, 64
      %v915 = vpop.permute.xlu0 %914
      %916 = vrot.lane.b32.xlu0 %v768, 64
      %v917 = vpop.permute.xlu0 %916
      %918 = vrot.lane.b32.xlu0 %v769, 64
      %v919 = vpop.permute.xlu0 %918
      %v923 = vsel %vm854, %v911, 0
      %v926 = vsel %vm854, %v912, 0
      %v929 = vsel %vm854, %v913, 0
      %vm931 = vcmask 1042432
      %vm932 = vcmask 1043456
      %v933 = vsel %vm931, 4294967295, 65535
      %v934 = vsel %vm932, %v933, 0
      %v936 = vand.u32 %v919, %v934
      %938 = vmatprep.subr.bf16.mxu0 0
      %939 = vmatpush1.bf16.msra.mxu0 %v915
      %940 = vmatprep.subr.bf16.mxu0 0
      %941 = vmatpush1.bf16.msra.mxu0 %v917
      %942 = vmatprep.subr.bf16.mxu0 0
      %943 = vmatpush1.bf16.msra.mxu0 %v936
      %944 = vmatprep.subr.bf16.mxu0 0
      %945 = vmatpush1.bf16.msra.mxu0 0
      %946 = vmatprep.subr.bf16.mxu0 0
      %947 = vmatpush1.bf16.msra.mxu0 0
      %948 = vmatprep.subr.bf16.mxu0 0
      %949 = vmatpush1.bf16.msra.mxu0 0
      %950 = vmatprep.subr.bf16.mxu0 0
      %951 = vmatpush1.bf16.msra.mxu0 0
      %952 = vmatprep.subr.bf16.mxu0 0
      %953 = vmatpush1.bf16.msra.mxu0 0
      %954 = vmatprep.subr.bf16.mxu0 0
      %955 = vmatpush1.bf16.msra.mxu0 0
      %956 = vmatprep.subr.bf16.mxu0 0
      %957 = vmatpush1.bf16.msra.mxu0 0
      %958 = vmatprep.subr.bf16.mxu0 0
      %959 = vmatpush1.bf16.msra.mxu0 0
      %960 = vmatprep.subr.bf16.mxu0 0
      %961 = vmatpush1.bf16.msra.mxu0 0
      %962 = vmatprep.subr.bf16.mxu0 0
      %963 = vmatpush1.bf16.msra.mxu0 0
      %964 = vmatprep.subr.bf16.mxu0 0
      %965 = vmatpush1.bf16.msra.mxu0 0
      %966 = vmatprep.subr.bf16.mxu0 0
      %967 = vmatpush1.bf16.msra.mxu0 0
      %968 = vmatprep.subr.bf16.mxu0 0
      %969 = vmatpush1.bf16.msra.mxu0 0
      %970 = vmatprep.mubr.bf16.mxu0 0
      %971 = vmatmul.mubr.bf16.gmra.mrb[0].mxu0 %v923
      %v972 = vpop.f32.mrb[0].mxu0
      %v973 = vadd.f32 0.0, %v972
      %v974 = vpop.f32.mrb[0].mxu0
      %v975 = vpop.f32.mrb[0].mxu0
      %v976 = vadd.f32 0.0, %v975
      %v977 = vpop.f32.mrb[0].mxu0
      %978 = vmatprep.mubr.bf16.mxu0 0
      %979 = vmatmul.mubr.bf16.gmra.mrb[0].mxu0 %v926
      %v980 = vpop.f32.mrb[0].mxu0
      %v981 = vadd.f32 0.0, %v980
      %v982 = vpop.f32.mrb[0].mxu0
      %v983 = vpop.f32.mrb[0].mxu0
      %v984 = vadd.f32 0.0, %v983
      %v985 = vpop.f32.mrb[0].mxu0
      %986 = vmatprep.mubr.bf16.mxu0 0
      %987 = vmatmul.mubr.bf16.gmra.mrb[0].mxu0 %v929
      %v988 = vpop.f32.mrb[0].mxu0
      %v989 = vadd.f32 0.0, %v988
      %v990 = vpop.f32.mrb[0].mxu0
      %v991 = vpop.f32.mrb[0].mxu0
      %v992 = vpop.f32.mrb[0].mxu0
      %993 = vdwg.mxu0
      %v994 = vld [vmem:[%s608] sm:$0xff]
      %v995 = vpack.c.bf16 %v976, %v973
      %v996 = vpack.c.bf16 %v984, %v981
      %v997 = vpack.c.bf16 %v989, %v989
      %v998 = vpack.c.bf16 %v994, %v994
      %1002 = vrot.lane.b32.xlu0 %v764, 120
      %v1003 = vpop.permute.xlu0 %1002
      %1004 = vrot.lane.b32.xlu0 %v765, 120
      %v1005 = vpop.permute.xlu0 %1004
      %1006 = vrot.lane.b32.xlu0 %v766, 120
      %v1007 = vpop.permute.xlu0 %1006
      %1008 = vrot.lane.b32.xlu0 %v767, 88
      %v1009 = vpop.permute.xlu0 %1008
      %1010 = vrot.lane.b32.xlu0 %v768, 88
      %v1011 = vpop.permute.xlu0 %1010
      %1012 = vrot.lane.b32.xlu0 %v769, 88
      %v1013 = vpop.permute.xlu0 %1012
      %v1015 = vsel %vm779, %v1003, 0
      %v1018 = vsel %vm779, %v1005, 0
      %v1021 = vsel %vm779, %v1007, 0
      %v1024 = vsel %vm779, %v1009, 0
      %v1027 = vsel %vm779, %v1011, 0
      %v1030 = vsel %vm779, %v1013, 0
      %1032 = vmatprep.subr.bf16.mxu0 0
      %1033 = vmatpush1.bf16.xpose.msra.mxu0 %v1024
      %1034 = vmatprep.subr.bf16.mxu0 0
      %1035 = vmatpush1.bf16.xpose.msra.mxu0 %v1027
      %1036 = vmatprep.subr.bf16.mxu0 0
      %1037 = vmatpush1.bf16.xpose.msra.mxu0 %v1030
      %1038 = vmatprep.subr.bf16.mxu0 0
      %1039 = vmatpush1.bf16.xpose.msra.mxu0 0
      %1040 = vmatprep.subr.bf16.mxu0 0
      %1041 = vmatpush1.bf16.xpose.msra.mxu0 0
      %1042 = vmatprep.subr.bf16.mxu0 0
      %1043 = vmatpush1.bf16.xpose.msra.mxu0 0
      %1044 = vmatprep.subr.bf16.mxu0 0
      %1045 = vmatpush1.bf16.xpose.msra.mxu0 0
      %1046 = vmatprep.subr.bf16.mxu0 0
      %1047 = vmatpush1.bf16.xpose.msra.mxu0 0
      %1048 = vmatprep.subr.bf16.mxu0 0
      %1049 = vmatpush1.bf16.xpose.msra.mxu0 0
      %1050 = vmatprep.subr.bf16.mxu0 0
      %1051 = vmatpush1.bf16.xpose.msra.mxu0 0
      %1052 = vmatprep.subr.bf16.mxu0 0
      %1053 = vmatpush1.bf16.xpose.msra.mxu0 0
      %1054 = vmatprep.subr.bf16.mxu0 0
      %1055 = vmatpush1.bf16.xpose.msra.mxu0 0
      %1056 = vmatprep.subr.bf16.mxu0 0
      %1057 = vmatpush1.bf16.xpose.msra.mxu0 0
      %1058 = vmatprep.subr.bf16.mxu0 0
      %1059 = vmatpush1.bf16.xpose.msra.mxu0 0
      %1060 = vmatprep.subr.bf16.mxu0 0
      %1061 = vmatpush1.bf16.xpose.msra.mxu0 0
      %1062 = vmatprep.subr.bf16.mxu0 0
      %1063 = vmatpush1.bf16.xpose.msra.mxu0 0
      %1064 = vmatprep.mubr.bf16.mxu0 0
      %1065 = vmatmul.mubr.bf16.gmra.mrb[0].mxu0 %v1015
      %v1066 = vpop.f32.mrb[0].mxu0
      %v1067 = vadd.f32 0.0, %v1066
      %v1068 = vpop.f32.mrb[0].mxu0
      %v1069 = vpop.f32.mrb[0].mxu0
      %v1070 = vadd.f32 0.0, %v1069
      %v1071 = vpop.f32.mrb[0].mxu0
      %1072 = vmatprep.mubr.bf16.mxu0 0
      %1073 = vmatmul.mubr.bf16.gmra.mrb[0].mxu0 %v1018
      %v1074 = vpop.f32.mrb[0].mxu0
      %v1075 = vadd.f32 0.0, %v1074
      %v1076 = vpop.f32.mrb[0].mxu0
      %v1077 = vpop.f32.mrb[0].mxu0
      %v1078 = vadd.f32 0.0, %v1077
      %v1079 = vpop.f32.mrb[0].mxu0
      %1080 = vmatprep.mubr.bf16.mxu0 0
      %1081 = vmatmul.mubr.bf16.gmra.mrb[0].mxu0 %v1021
      %v1082 = vpop.f32.mrb[0].mxu0
      %v1083 = vadd.f32 0.0, %v1082
      %v1084 = vpop.f32.mrb[0].mxu0
      %v1085 = vpop.f32.mrb[0].mxu0
      %v1086 = vpop.f32.mrb[0].mxu0
      %1087 = vdwg.mxu0
      %v1088 = vsel %vm854, %v1067, -inf
      %1089 = vmax.xlane.f32.xlu0 %v1088
      %v1090 = vpop.xlane.xlu0 %1089
      %v1091 = vsel %vm854, %v1070, -inf
      %1092 = vmax.xlane.f32.xlu0 %v1091
      %v1093 = vpop.xlane.xlu0 %1092
      %v1094 = vsel %vm854, %v1075, -inf
      %1095 = vmax.xlane.f32.xlu0 %v1094
      %v1096 = vpop.xlane.xlu0 %1095
      %v1097 = vsel %vm854, %v1078, -inf
      %1098 = vmax.xlane.f32.xlu0 %v1097
      %v1099 = vpop.xlane.xlu0 %1098
      %v1100 = vsel %vm867, %v1083, -inf
      %1101 = vmax.xlane.f32.xlu0 %v1100
      %v1102 = vpop.xlane.xlu0 %1101
      %v1103 = vsub.f32 %v1067, %v1090
      %v1104 = vsub.f32 %v1070, %v1093
      %v1105 = vsub.f32 %v1075, %v1096
      %v1106 = vsub.f32 %v1078, %v1099
      %v1107 = vsub.f32 %v1083, %v1102
      %v1108 = vmul.f32 %v1103, 1.442695
      %v1109 = vpow.pop %v1108
      %v1110 = vmul.f32 %v1104, 1.442695
      %v1111 = vpow.pop %v1110
      %v1112 = vmul.f32 %v1105, 1.442695
      %v1113 = vpow.pop %v1112
      %v1114 = vmul.f32 %v1106, 1.442695
      %v1115 = vpow.pop %v1114
      %v1116 = vmul.f32 %v1107, 1.442695
      %v1117 = vpow.pop %v1116
      %v1118 = vsel %vm854, %v1109, 0.0
      %1119 = vadd.xlane.f32.xlu0 %v1118
      %v1120 = vpop.xlane.xlu0 %1119
      %v1121 = vsel %vm854, %v1111, 0.0
      %1122 = vadd.xlane.f32.xlu0 %v1121
      %v1123 = vpop.xlane.xlu0 %1122
      %v1124 = vsel %vm854, %v1113, 0.0
      %1125 = vadd.xlane.f32.xlu0 %v1124
      %v1126 = vpop.xlane.xlu0 %1125
      %v1127 = vsel %vm854, %v1115, 0.0
      %1128 = vadd.xlane.f32.xlu0 %v1127
      %v1129 = vpop.xlane.xlu0 %1128
      %v1130 = vsel %vm867, %v1117, 0.0
      %1131 = vadd.xlane.f32.xlu0 %v1130
      %v1132 = vpop.xlane.xlu0 %1131
      %v1133 = vrcp.pop %v1120
      %v1134 = vrcp.pop %v1123
      %v1135 = vrcp.pop %v1126
      %v1136 = vrcp.pop %v1129
      %v1137 = vrcp.pop %v1132
      %v1138 = vmul.f32 %v1109, %v1133
      %v1139 = vmul.f32 %v1111, %v1134
      %v1140 = vmul.f32 %v1113, %v1135
      %v1141 = vmul.f32 %v1115, %v1136
      %v1142 = vmul.f32 %v1117, %v1137
      %v1143 = vpack.c.bf16 %v1139, %v1138
      %v1144 = vpack.c.bf16 %v1141, %v1140
      %v1145 = vpack.c.bf16 %v1142, %v1142
      %1146 = vrot.lane.b32.xlu0 %v767, 56
      %v1147 = vpop.permute.xlu0 %1146
      %1148 = vrot.lane.b32.xlu0 %v768, 56
      %v1149 = vpop.permute.xlu0 %1148
      %1150 = vrot.lane.b32.xlu0 %v769, 56
      %v1151 = vpop.permute.xlu0 %1150
      %v1155 = vsel %vm854, %v1143, 0
      %v1158 = vsel %vm854, %v1144, 0
      %v1161 = vsel %vm854, %v1145, 0
      %v1164 = vand.u32 %v1151, %v934
      %1166 = vmatprep.subr.bf16.mxu0 0
      %1167 = vmatpush1.bf16.msra.mxu0 %v1147
      %1168 = vmatprep.subr.bf16.mxu0 0
      %1169 = vmatpush1.bf16.msra.mxu0 %v1149
      %1170 = vmatprep.subr.bf16.mxu0 0
      %1171 = vmatpush1.bf16.msra.mxu0 %v1164
      %1172 = vmatprep.subr.bf16.mxu0 0
      %1173 = vmatpush1.bf16.msra.mxu0 0
      %1174 = vmatprep.subr.bf16.mxu0 0
      %1175 = vmatpush1.bf16.msra.mxu0 0
      %1176 = vmatprep.subr.bf16.mxu0 0
      %1177 = vmatpush1.bf16.msra.mxu0 0
      %1178 = vmatprep.subr.bf16.mxu0 0
      %1179 = vmatpush1.bf16.msra.mxu0 0
      %1180 = vmatprep.subr.bf16.mxu0 0
      %1181 = vmatpush1.bf16.msra.mxu0 0
      %1182 = vmatprep.subr.bf16.mxu0 0
      %1183 = vmatpush1.bf16.msra.mxu0 0
      %1184 = vmatprep.subr.bf16.mxu0 0
      %1185 = vmatpush1.bf16.msra.mxu0 0
      %1186 = vmatprep.subr.bf16.mxu0 0
      %1187 = vmatpush1.bf16.msra.mxu0 0
      %1188 = vmatprep.subr.bf16.mxu0 0
      %1189 = vmatpush1.bf16.msra.mxu0 0
      %1190 = vmatprep.subr.bf16.mxu0 0
      %1191 = vmatpush1.bf16.msra.mxu0 0
      %1192 = vmatprep.subr.bf16.mxu0 0
      %1193 = vmatpush1.bf16.msra.mxu0 0
      %1194 = vmatprep.subr.bf16.mxu0 0
      %1195 = vmatpush1.bf16.msra.mxu0 0
      %1196 = vmatprep.subr.bf16.mxu0 0
      %1197 = vmatpush1.bf16.msra.mxu0 0
      %1198 = vmatprep.mubr.bf16.mxu0 0
      %1199 = vmatmul.mubr.bf16.gmra.mrb[0].mxu0 %v1155
      %v1200 = vpop.f32.mrb[0].mxu0
      %v1201 = vadd.f32 0.0, %v1200
      %v1202 = vpop.f32.mrb[0].mxu0
      %v1203 = vpop.f32.mrb[0].mxu0
      %v1204 = vadd.f32 0.0, %v1203
      %v1205 = vpop.f32.mrb[0].mxu0
      %1206 = vmatprep.mubr.bf16.mxu0 0
      %1207 = vmatmul.mubr.bf16.gmra.mrb[0].mxu0 %v1158
      %v1208 = vpop.f32.mrb[0].mxu0
      %v1209 = vadd.f32 0.0, %v1208
      %v1210 = vpop.f32.mrb[0].mxu0
      %v1211 = vpop.f32.mrb[0].mxu0
      %v1212 = vadd.f32 0.0, %v1211
      %v1213 = vpop.f32.mrb[0].mxu0
      %1214 = vmatprep.mubr.bf16.mxu0 0
      %1215 = vmatmul.mubr.bf16.gmra.mrb[0].mxu0 %v1161
      %v1216 = vpop.f32.mrb[0].mxu0
      %v1217 = vadd.f32 0.0, %v1216
      %v1218 = vpop.f32.mrb[0].mxu0
      %v1219 = vpop.f32.mrb[0].mxu0
      %v1220 = vpop.f32.mrb[0].mxu0
      %1221 = vdwg.mxu0
      %v1222 = vld [vmem:[%s608 + $0x8] sm:$0xff]
      %v1223 = vpack.c.bf16 %v1204, %v1201
      %v1224 = vpack.c.bf16 %v1212, %v1209
      %v1225 = vpack.c.bf16 %v1217, %v1217
      %v1226 = vpack.c.bf16 %v1222, %v1222
      %v1228 = vsel %vm779, %v1223, 0
      %v1231 = vsel %vm779, %v1224, 0
      %v1234 = vsel %vm779, %v1225, 0
      %v1237 = vsel %vm932, %v1226, 0
      %1239 = vmatprep.subr.bf16.mxu0 0
      %1240 = vmatpush1.bf16.msra.mxu0 %v1237
      %1241 = vmatprep.subr.bf16.mxu0 0
      %1242 = vmatpush1.bf16.msra.mxu0 0
      %1243 = vmatprep.subr.bf16.mxu0 0
      %1244 = vmatpush1.bf16.msra.mxu0 0
      %1245 = vmatprep.subr.bf16.mxu0 0
      %1246 = vmatpush1.bf16.msra.mxu0 0
      %1247 = vmatprep.subr.bf16.mxu0 0
      %1248 = vmatpush1.bf16.msra.mxu0 0
      %1249 = vmatprep.subr.bf16.mxu0 0
      %1250 = vmatpush1.bf16.msra.mxu0 0
      %1251 = vmatprep.subr.bf16.mxu0 0
      %1252 = vmatpush1.bf16.msra.mxu0 0
      %1253 = vmatprep.subr.bf16.mxu0 0
      %1254 = vmatpush1.bf16.msra.mxu0 0
      %1255 = vmatprep.subr.bf16.mxu0 0
      %1256 = vmatpush1.bf16.msra.mxu0 0
      %1257 = vmatprep.subr.bf16.mxu0 0
      %1258 = vmatpush1.bf16.msra.mxu0 0
      %1259 = vmatprep.subr.bf16.mxu0 0
      %1260 = vmatpush1.bf16.msra.mxu0 0
      %1261 = vmatprep.subr.bf16.mxu0 0
      %1262 = vmatpush1.bf16.msra.mxu0 0
      %1263 = vmatprep.subr.bf16.mxu0 0
      %1264 = vmatpush1.bf16.msra.mxu0 0
      %1265 = vmatprep.subr.bf16.mxu0 0
      %1266 = vmatpush1.bf16.msra.mxu0 0
      %1267 = vmatprep.subr.bf16.mxu0 0
      %1268 = vmatpush1.bf16.msra.mxu0 0
      %1269 = vmatprep.subr.bf16.mxu0 0
      %1270 = vmatpush1.bf16.msra.mxu0 0
      %1271 = vmatprep.mubr.bf16.mxu0 0
      %1272 = vmatmul.mubr.bf16.gmra.mrb[0].mxu0 %v1228
      %v1273 = vpop.f32.mrb[0].mxu0
      %v1274 = vadd.f32 0.0, %v1273
      %v1275 = vpop.f32.mrb[0].mxu0
      %v1276 = vpop.f32.mrb[0].mxu0
      %v1277 = vadd.f32 0.0, %v1276
      %v1278 = vpop.f32.mrb[0].mxu0
      %1279 = vmatprep.mubr.bf16.mxu0 0
      %1280 = vmatmul.mubr.bf16.gmra.mrb[0].mxu0 %v1231
      %v1281 = vpop.f32.mrb[0].mxu0
      %v1282 = vadd.f32 0.0, %v1281
      %v1283 = vpop.f32.mrb[0].mxu0
      %v1284 = vpop.f32.mrb[0].mxu0
      %v1285 = vadd.f32 0.0, %v1284
      %v1286 = vpop.f32.mrb[0].mxu0
      %1287 = vmatprep.mubr.bf16.mxu0 0
      %1288 = vmatmul.mubr.bf16.gmra.mrb[0].mxu0 %v1234
      %v1289 = vpop.f32.mrb[0].mxu0
      %v1290 = vadd.f32 0.0, %v1289
      %v1291 = vpop.f32.mrb[0].mxu0
      %v1292 = vpop.f32.mrb[0].mxu0
      %v1293 = vpop.f32.mrb[0].mxu0
      %1294 = vdwg.mxu0
      %v1296 = vsel %vm779, %v995, 0
      %v1299 = vsel %vm779, %v996, 0
      %v1302 = vsel %vm779, %v997, 0
      %v1305 = vsel %vm932, %v998, 0
      %1307 = vmatprep.subr.bf16.mxu0 0
      %1308 = vmatpush1.bf16.msra.mxu0 %v1305
      %1309 = vmatprep.subr.bf16.mxu0 0
      %1310 = vmatpush1.bf16.msra.mxu0 0
      %1311 = vmatprep.subr.bf16.mxu0 0
      %1312 = vmatpush1.bf16.msra.mxu0 0
      %1313 = vmatprep.subr.bf16.mxu0 0
      %1314 = vmatpush1.bf16.msra.mxu0 0
      %1315 = vmatprep.subr.bf16.mxu0 0
      %1316 = vmatpush1.bf16.msra.mxu0 0
      %1317 = vmatprep.subr.bf16.mxu0 0
      %1318 = vmatpush1.bf16.msra.mxu0 0
      %1319 = vmatprep.subr.bf16.mxu0 0
      %1320 = vmatpush1.bf16.msra.mxu0 0
      %1321 = vmatprep.subr.bf16.mxu0 0
      %1322 = vmatpush1.bf16.msra.mxu0 0
      %1323 = vmatprep.subr.bf16.mxu0 0
      %1324 = vmatpush1.bf16.msra.mxu0 0
      %1325 = vmatprep.subr.bf16.mxu0 0
      %1326 = vmatpush1.bf16.msra.mxu0 0
      %1327 = vmatprep.subr.bf16.mxu0 0
      %1328 = vmatpush1.bf16.msra.mxu0 0
      %1329 = vmatprep.subr.bf16.mxu0 0
      %1330 = vmatpush1.bf16.msra.mxu0 0
      %1331 = vmatprep.subr.bf16.mxu0 0
      %1332 = vmatpush1.bf16.msra.mxu0 0
      %1333 = vmatprep.subr.bf16.mxu0 0
      %1334 = vmatpush1.bf16.msra.mxu0 0
      %1335 = vmatprep.subr.bf16.mxu0 0
      %1336 = vmatpush1.bf16.msra.mxu0 0
      %1337 = vmatprep.subr.bf16.mxu0 0
      %1338 = vmatpush1.bf16.msra.mxu0 0
      %1339 = vmatprep.mubr.bf16.mxu0 0
      %1340 = vmatmul.mubr.bf16.gmra.mrb[0].mxu0 %v1296
      %v1341 = vpop.f32.mrb[0].mxu0
      %v1342 = vadd.f32 %v1274, %v1341
      %v1343 = vpop.f32.mrb[0].mxu0
      %v1344 = vpop.f32.mrb[0].mxu0
      %v1345 = vadd.f32 %v1277, %v1344
      %v1346 = vpop.f32.mrb[0].mxu0
      %1347 = vmatprep.mubr.bf16.mxu0 0
      %1348 = vmatmul.mubr.bf16.gmra.mrb[0].mxu0 %v1299
      %v1349 = vpop.f32.mrb[0].mxu0
      %v1350 = vadd.f32 %v1282, %v1349
      %v1351 = vpop.f32.mrb[0].mxu0
      %v1352 = vpop.f32.mrb[0].mxu0
      %v1353 = vadd.f32 %v1285, %v1352
      %v1354 = vpop.f32.mrb[0].mxu0
      %1355 = vmatprep.mubr.bf16.mxu0 0
      %1356 = vmatmul.mubr.bf16.gmra.mrb[0].mxu0 %v1302
      %v1357 = vpop.f32.mrb[0].mxu0
      %v1358 = vadd.f32 %v1290, %v1357
      %v1359 = vpop.f32.mrb[0].mxu0
      %v1360 = vpop.f32.mrb[0].mxu0
      %v1361 = vpop.f32.mrb[0].mxu0
      %1362 = vdwg.mxu0
      %1363 = vrot.lane.b32.xlu0 %v764, 112
      %v1364 = vpop.permute.xlu0 %1363
      %1365 = vrot.lane.b32.xlu0 %v765, 112
      %v1366 = vpop.permute.xlu0 %1365
      %1367 = vrot.lane.b32.xlu0 %v766, 112
      %v1368 = vpop.permute.xlu0 %1367
      %1369 = vrot.lane.b32.xlu0 %v767, 80
      %v1370 = vpop.permute.xlu0 %1369
      %1371 = vrot.lane.b32.xlu0 %v768, 80
      %v1372 = vpop.permute.xlu0 %1371
      %1373 = vrot.lane.b32.xlu0 %v769, 80
      %v1374 = vpop.permute.xlu0 %1373
      %v1376 = vsel %vm779, %v1364, 0
      %v1379 = vsel %vm779, %v1366, 0
      %v1382 = vsel %vm779, %v1368, 0
      %v1385 = vsel %vm779, %v1370, 0
      %v1388 = vsel %vm779, %v1372, 0
      %v1391 = vsel %vm779, %v1374, 0
      %1393 = vmatprep.subr.bf16.mxu0 0
      %1394 = vmatpush1.bf16.xpose.msra.mxu0 %v1385
      %1395 = vmatprep.subr.bf16.mxu0 0
      %1396 = vmatpush1.bf16.xpose.msra.mxu0 %v1388
      %1397 = vmatprep.subr.bf16.mxu0 0
      %1398 = vmatpush1.bf16.xpose.msra.mxu0 %v1391
      %1399 = vmatprep.subr.bf16.mxu0 0
      %1400 = vmatpush1.bf16.xpose.msra.mxu0 0
      %1401 = vmatprep.subr.bf16.mxu0 0
      %1402 = vmatpush1.bf16.xpose.msra.mxu0 0
      %1403 = vmatprep.subr.bf16.mxu0 0
      %1404 = vmatpush1.bf16.xpose.msra.mxu0 0
      %1405 = vmatprep.subr.bf16.mxu0 0
      %1406 = vmatpush1.bf16.xpose.msra.mxu0 0
      %1407 = vmatprep.subr.bf16.mxu0 0
      %1408 = vmatpush1.bf16.xpose.msra.mxu0 0
      %1409 = vmatprep.subr.bf16.mxu0 0
      %1410 = vmatpush1.bf16.xpose.msra.mxu0 0
      %1411 = vmatprep.subr.bf16.mxu0 0
      %1412 = vmatpush1.bf16.xpose.msra.mxu0 0
      %1413 = vmatprep.subr.bf16.mxu0 0
      %1414 = vmatpush1.bf16.xpose.msra.mxu0 0
      %1415 = vmatprep.subr.bf16.mxu0 0
      %1416 = vmatpush1.bf16.xpose.msra.mxu0 0
      %1417 = vmatprep.subr.bf16.mxu0 0
      %1418 = vmatpush1.bf16.xpose.msra.mxu0 0
      %1419 = vmatprep.subr.bf16.mxu0 0
      %1420 = vmatpush1.bf16.xpose.msra.mxu0 0
      %1421 = vmatprep.subr.bf16.mxu0 0
      %1422 = vmatpush1.bf16.xpose.msra.mxu0 0
      %1423 = vmatprep.subr.bf16.mxu0 0
      %1424 = vmatpush1.bf16.xpose.msra.mxu0 0
      %1425 = vmatprep.mubr.bf16.mxu0 0
      %1426 = vmatmul.mubr.bf16.gmra.mrb[0].mxu0 %v1376
      %v1427 = vpop.f32.mrb[0].mxu0
      %v1428 = vadd.f32 0.0, %v1427
      %v1429 = vpop.f32.mrb[0].mxu0
      %v1430 = vpop.f32.mrb[0].mxu0
      %v1431 = vadd.f32 0.0, %v1430
      %v1432 = vpop.f32.mrb[0].mxu0
      %1433 = vmatprep.mubr.bf16.mxu0 0
      %1434 = vmatmul.mubr.bf16.gmra.mrb[0].mxu0 %v1379
      %v1435 = vpop.f32.mrb[0].mxu0
      %v1436 = vadd.f32 0.0, %v1435
      %v1437 = vpop.f32.mrb[0].mxu0
      %v1438 = vpop.f32.mrb[0].mxu0
      %v1439 = vadd.f32 0.0, %v1438
      %v1440 = vpop.f32.mrb[0].mxu0
      %1441 = vmatprep.mubr.bf16.mxu0 0
      %1442 = vmatmul.mubr.bf16.gmra.mrb[0].mxu0 %v1382
      %v1443 = vpop.f32.mrb[0].mxu0
      %v1444 = vadd.f32 0.0, %v1443
      %v1445 = vpop.f32.mrb[0].mxu0
      %v1446 = vpop.f32.mrb[0].mxu0
      %v1447 = vpop.f32.mrb[0].mxu0
      %1448 = vdwg.mxu0
      %v1449 = vsel %vm854, %v1428, -inf
      %1450 = vmax.xlane.f32.xlu0 %v1449
      %v1451 = vpop.xlane.xlu0 %1450
      %v1452 = vsel %vm854, %v1431, -inf
      %1453 = vmax.xlane.f32.xlu0 %v1452
      %v1454 = vpop.xlane.xlu0 %1453
      %v1455 = vsel %vm854, %v1436, -inf
      %1456 = vmax.xlane.f32.xlu0 %v1455
      %v1457 = vpop.xlane.xlu0 %1456
      %v1458 = vsel %vm854, %v1439, -inf
      %1459 = vmax.xlane.f32.xlu0 %v1458
      %v1460 = vpop.xlane.xlu0 %1459
      %v1461 = vsel %vm867, %v1444, -inf
      %1462 = vmax.xlane.f32.xlu0 %v1461
      %v1463 = vpop.xlane.xlu0 %1462
      %v1464 = vsub.f32 %v1428, %v1451
      %v1465 = vsub.f32 %v1431, %v1454
      %v1466 = vsub.f32 %v1436, %v1457
      %v1467 = vsub.f32 %v1439, %v1460
      %v1468 = vsub.f32 %v1444, %v1463
      %v1469 = vmul.f32 %v1464, 1.442695
      %v1470 = vpow.pop %v1469
      %v1471 = vmul.f32 %v1465, 1.442695
      %v1472 = vpow.pop %v1471
      %v1473 = vmul.f32 %v1466, 1.442695
      %v1474 = vpow.pop %v1473
      %v1475 = vmul.f32 %v1467, 1.442695
      %v1476 = vpow.pop %v1475
      %v1477 = vmul.f32 %v1468, 1.442695
      %v1478 = vpow.pop %v1477
      %v1479 = vsel %vm854, %v1470, 0.0
      %1480 = vadd.xlane.f32.xlu0 %v1479
      %v1481 = vpop.xlane.xlu0 %1480
      %v1482 = vsel %vm854, %v1472, 0.0
      %1483 = vadd.xlane.f32.xlu0 %v1482
      %v1484 = vpop.xlane.xlu0 %1483
      %v1485 = vsel %vm854, %v1474, 0.0
      %1486 = vadd.xlane.f32.xlu0 %v1485
      %v1487 = vpop.xlane.xlu0 %1486
      %v1488 = vsel %vm854, %v1476, 0.0
      %1489 = vadd.xlane.f32.xlu0 %v1488
      %v1490 = vpop.xlane.xlu0 %1489
      %v1491 = vsel %vm867, %v1478, 0.0
      %1492 = vadd.xlane.f32.xlu0 %v1491
      %v1493 = vpop.xlane.xlu0 %1492
      %v1494 = vrcp.pop %v1481
      %v1495 = vrcp.pop %v1484
      %v1496 = vrcp.pop %v1487
      %v1497 = vrcp.pop %v1490
      %v1498 = vrcp.pop %v1493
      %v1499 = vmul.f32 %v1470, %v1494
      %v1500 = vmul.f32 %v1472, %v1495
      %v1501 = vmul.f32 %v1474, %v1496
      %v1502 = vmul.f32 %v1476, %v1497
      %v1503 = vmul.f32 %v1478, %v1498
      %v1504 = vpack.c.bf16 %v1500, %v1499
      %v1505 = vpack.c.bf16 %v1502, %v1501
      %v1506 = vpack.c.bf16 %v1503, %v1503
      %1507 = vrot.lane.b32.xlu0 %v767, 48
      %v1508 = vpop.permute.xlu0 %1507
      %1509 = vrot.lane.b32.xlu0 %v768, 48
      %v1510 = vpop.permute.xlu0 %1509
      %1511 = vrot.lane.b32.xlu0 %v769, 48
      %v1512 = vpop.permute.xlu0 %1511
      %v1516 = vsel %vm854, %v1504, 0
      %v1519 = vsel %vm854, %v1505, 0
      %v1522 = vsel %vm854, %v1506, 0
      %v1525 = vand.u32 %v1512, %v934
      %1527 = vmatprep.subr.bf16.mxu0 0
      %1528 = vmatpush1.bf16.msra.mxu0 %v1508
      %1529 = vmatprep.subr.bf16.mxu0 0
      %1530 = vmatpush1.bf16.msra.mxu0 %v1510
      %1531 = vmatprep.subr.bf16.mxu0 0
      %1532 = vmatpush1.bf16.msra.mxu0 %v1525
      %1533 = vmatprep.subr.bf16.mxu0 0
      %1534 = vmatpush1.bf16.msra.mxu0 0
      %1535 = vmatprep.subr.bf16.mxu0 0
      %1536 = vmatpush1.bf16.msra.mxu0 0
      %1537 = vmatprep.subr.bf16.mxu0 0
      %1538 = vmatpush1.bf16.msra.mxu0 0
      %1539 = vmatprep.subr.bf16.mxu0 0
      %1540 = vmatpush1.bf16.msra.mxu0 0
      %1541 = vmatprep.subr.bf16.mxu0 0
      %1542 = vmatpush1.bf16.msra.mxu0 0
      %1543 = vmatprep.subr.bf16.mxu0 0
      %1544 = vmatpush1.bf16.msra.mxu0 0
      %1545 = vmatprep.subr.bf16.mxu0 0
      %1546 = vmatpush1.bf16.msra.mxu0 0
      %1547 = vmatprep.subr.bf16.mxu0 0
      %1548 = vmatpush1.bf16.msra.mxu0 0
      %1549 = vmatprep.subr.bf16.mxu0 0
      %1550 = vmatpush1.bf16.msra.mxu0 0
      %1551 = vmatprep.subr.bf16.mxu0 0
      %1552 = vmatpush1.bf16.msra.mxu0 0
      %1553 = vmatprep.subr.bf16.mxu0 0
      %1554 = vmatpush1.bf16.msra.mxu0 0
      %1555 = vmatprep.subr.bf16.mxu0 0
      %1556 = vmatpush1.bf16.msra.mxu0 0
      %1557 = vmatprep.subr.bf16.mxu0 0
      %1558 = vmatpush1.bf16.msra.mxu0 0
      %1559 = vmatprep.mubr.bf16.mxu0 0
      %1560 = vmatmul.mubr.bf16.gmra.mrb[0].mxu0 %v1516
      %v1561 = vpop.f32.mrb[0].mxu0
      %v1562 = vadd.f32 0.0, %v1561
      %v1563 = vpop.f32.mrb[0].mxu0
      %v1564 = vpop.f32.mrb[0].mxu0
      %v1565 = vadd.f32 0.0, %v1564
      %v1566 = vpop.f32.mrb[0].mxu0
      %1567 = vmatprep.mubr.bf16.mxu0 0
      %1568 = vmatmul.mubr.bf16.gmra.mrb[0].mxu0 %v1519
      %v1569 = vpop.f32.mrb[0].mxu0
      %v1570 = vadd.f32 0.0, %v1569
      %v1571 = vpop.f32.mrb[0].mxu0
      %v1572 = vpop.f32.mrb[0].mxu0
      %v1573 = vadd.f32 0.0, %v1572
      %v1574 = vpop.f32.mrb[0].mxu0
      %1575 = vmatprep.mubr.bf16.mxu0 0
      %1576 = vmatmul.mubr.bf16.gmra.mrb[0].mxu0 %v1522
      %v1577 = vpop.f32.mrb[0].mxu0
      %v1578 = vadd.f32 0.0, %v1577
      %v1579 = vpop.f32.mrb[0].mxu0
      %v1580 = vpop.f32.mrb[0].mxu0
      %v1581 = vpop.f32.mrb[0].mxu0
      %1582 = vdwg.mxu0
      %v1583 = vld [vmem:[%s608 + $0x10] sm:$0xff]
      %v1584 = vpack.c.bf16 %v1565, %v1562
      %v1585 = vpack.c.bf16 %v1573, %v1570
      %v1586 = vpack.c.bf16 %v1578, %v1578
      %v1587 = vpack.c.bf16 %v1583, %v1583
      %v1589 = vsel %vm779, %v1584, 0
      %v1592 = vsel %vm779, %v1585, 0
      %v1595 = vsel %vm779, %v1586, 0
      %v1598 = vsel %vm932, %v1587, 0
      %1600 = vmatprep.subr.bf16.mxu0 0
      %1601 = vmatpush1.bf16.msra.mxu0 %v1598
      %1602 = vmatprep.subr.bf16.mxu0 0
      %1603 = vmatpush1.bf16.msra.mxu0 0
      %1604 = vmatprep.subr.bf16.mxu0 0
      %1605 = vmatpush1.bf16.msra.mxu0 0
      %1606 = vmatprep.subr.bf16.mxu0 0
      %1607 = vmatpush1.bf16.msra.mxu0 0
      %1608 = vmatprep.subr.bf16.mxu0 0
      %1609 = vmatpush1.bf16.msra.mxu0 0
      %1610 = vmatprep.subr.bf16.mxu0 0
      %1611 = vmatpush1.bf16.msra.mxu0 0
      %1612 = vmatprep.subr.bf16.mxu0 0
      %1613 = vmatpush1.bf16.msra.mxu0 0
      %1614 = vmatprep.subr.bf16.mxu0 0
      %1615 = vmatpush1.bf16.msra.mxu0 0
      %1616 = vmatprep.subr.bf16.mxu0 0
      %1617 = vmatpush1.bf16.msra.mxu0 0
      %1618 = vmatprep.subr.bf16.mxu0 0
      %1619 = vmatpush1.bf16.msra.mxu0 0
      %1620 = vmatprep.subr.bf16.mxu0 0
      %1621 = vmatpush1.bf16.msra.mxu0 0
      %1622 = vmatprep.subr.bf16.mxu0 0
      %1623 = vmatpush1.bf16.msra.mxu0 0
      %1624 = vmatprep.subr.bf16.mxu0 0
      %1625 = vmatpush1.bf16.msra.mxu0 0
      %1626 = vmatprep.subr.bf16.mxu0 0
      %1627 = vmatpush1.bf16.msra.mxu0 0
      %1628 = vmatprep.subr.bf16.mxu0 0
      %1629 = vmatpush1.bf16.msra.mxu0 0
      %1630 = vmatprep.subr.bf16.mxu0 0
      %1631 = vmatpush1.bf16.msra.mxu0 0
      %1632 = vmatprep.mubr.bf16.mxu0 0
      %1633 = vmatmul.mubr.bf16.gmra.mrb[0].mxu0 %v1589
      %v1634 = vpop.f32.mrb[0].mxu0
      %v1635 = vadd.f32 0.0, %v1634
      %v1636 = vpop.f32.mrb[0].mxu0
      %v1637 = vpop.f32.mrb[0].mxu0
      %v1638 = vadd.f32 0.0, %v1637
      %v1639 = vpop.f32.mrb[0].mxu0
      %1640 = vmatprep.mubr.bf16.mxu0 0
      %1641 = vmatmul.mubr.bf16.gmra.mrb[0].mxu0 %v1592
      %v1642 = vpop.f32.mrb[0].mxu0
      %v1643 = vadd.f32 0.0, %v1642
      %v1644 = vpop.f32.mrb[0].mxu0
      %v1645 = vpop.f32.mrb[0].mxu0
      %v1646 = vadd.f32 0.0, %v1645
      %v1647 = vpop.f32.mrb[0].mxu0
      %1648 = vmatprep.mubr.bf16.mxu0 0
      %1649 = vmatmul.mubr.bf16.gmra.mrb[0].mxu0 %v1595
      %v1650 = vpop.f32.mrb[0].mxu0
      %v1651 = vadd.f32 0.0, %v1650
      %v1652 = vpop.f32.mrb[0].mxu0
      %v1653 = vpop.f32.mrb[0].mxu0
      %v1654 = vpop.f32.mrb[0].mxu0
      %1655 = vdwg.mxu0
      %v1656 = vadd.f32 %v1342, %v1635
      %v1657 = vadd.f32 %v1345, %v1638
      %v1658 = vadd.f32 %v1350, %v1643
      %v1659 = vadd.f32 %v1353, %v1646
      %v1660 = vadd.f32 %v1358, %v1651
      %1661 = vrot.lane.b32.xlu0 %v764, 104
      %v1662 = vpop.permute.xlu0 %1661
      %1663 = vrot.lane.b32.xlu0 %v765, 104
      %v1664 = vpop.permute.xlu0 %1663
      %1665 = vrot.lane.b32.xlu0 %v766, 104
      %v1666 = vpop.permute.xlu0 %1665
      %1667 = vrot.lane.b32.xlu0 %v767, 72
      %v1668 = vpop.permute.xlu0 %1667
      %1669 = vrot.lane.b32.xlu0 %v768, 72
      %v1670 = vpop.permute.xlu0 %1669
      %1671 = vrot.lane.b32.xlu0 %v769, 72
      %v1672 = vpop.permute.xlu0 %1671
      %v1674 = vsel %vm779, %v1662, 0
      %v1677 = vsel %vm779, %v1664, 0
      %v1680 = vsel %vm779, %v1666, 0
      %v1683 = vsel %vm779, %v1668, 0
      %v1686 = vsel %vm779, %v1670, 0
      %v1689 = vsel %vm779, %v1672, 0
      %1691 = vmatprep.subr.bf16.mxu0 0
      %1692 = vmatpush1.bf16.xpose.msra.mxu0 %v1683
      %1693 = vmatprep.subr.bf16.mxu0 0
      %1694 = vmatpush1.bf16.xpose.msra.mxu0 %v1686
      %1695 = vmatprep.subr.bf16.mxu0 0
      %1696 = vmatpush1.bf16.xpose.msra.mxu0 %v1689
      %1697 = vmatprep.subr.bf16.mxu0 0
      %1698 = vmatpush1.bf16.xpose.msra.mxu0 0
      %1699 = vmatprep.subr.bf16.mxu0 0
      %1700 = vmatpush1.bf16.xpose.msra.mxu0 0
      %1701 = vmatprep.subr.bf16.mxu0 0
      %1702 = vmatpush1.bf16.xpose.msra.mxu0 0
      %1703 = vmatprep.subr.bf16.mxu0 0
      %1704 = vmatpush1.bf16.xpose.msra.mxu0 0
      %1705 = vmatprep.subr.bf16.mxu0 0
      %1706 = vmatpush1.bf16.xpose.msra.mxu0 0
      %1707 = vmatprep.subr.bf16.mxu0 0
      %1708 = vmatpush1.bf16.xpose.msra.mxu0 0
      %1709 = vmatprep.subr.bf16.mxu0 0
      %1710 = vmatpush1.bf16.xpose.msra.mxu0 0
      %1711 = vmatprep.subr.bf16.mxu0 0
      %1712 = vmatpush1.bf16.xpose.msra.mxu0 0
      %1713 = vmatprep.subr.bf16.mxu0 0
      %1714 = vmatpush1.bf16.xpose.msra.mxu0 0
      %1715 = vmatprep.subr.bf16.mxu0 0
      %1716 = vmatpush1.bf16.xpose.msra.mxu0 0
      %1717 = vmatprep.subr.bf16.mxu0 0
      %1718 = vmatpush1.bf16.xpose.msra.mxu0 0
      %1719 = vmatprep.subr.bf16.mxu0 0
      %1720 = vmatpush1.bf16.xpose.msra.mxu0 0
      %1721 = vmatprep.subr.bf16.mxu0 0
      %1722 = vmatpush1.bf16.xpose.msra.mxu0 0
      %1723 = vmatprep.mubr.bf16.mxu0 0
      %1724 = vmatmul.mubr.bf16.gmra.mrb[0].mxu0 %v1674
      %v1725 = vpop.f32.mrb[0].mxu0
      %v1726 = vadd.f32 0.0, %v1725
      %v1727 = vpop.f32.mrb[0].mxu0
      %v1728 = vpop.f32.mrb[0].mxu0
      %v1729 = vadd.f32 0.0, %v1728
      %v1730 = vpop.f32.mrb[0].mxu0
      %1731 = vmatprep.mubr.bf16.mxu0 0
      %1732 = vmatmul.mubr.bf16.gmra.mrb[0].mxu0 %v1677
      %v1733 = vpop.f32.mrb[0].mxu0
      %v1734 = vadd.f32 0.0, %v1733
      %v1735 = vpop.f32.mrb[0].mxu0
      %v1736 = vpop.f32.mrb[0].mxu0
      %v1737 = vadd.f32 0.0, %v1736
      %v1738 = vpop.f32.mrb[0].mxu0
      %1739 = vmatprep.mubr.bf16.mxu0 0
      %1740 = vmatmul.mubr.bf16.gmra.mrb[0].mxu0 %v1680
      %v1741 = vpop.f32.mrb[0].mxu0
      %v1742 = vadd.f32 0.0, %v1741
      %v1743 = vpop.f32.mrb[0].mxu0
      %v1744 = vpop.f32.mrb[0].mxu0
      %v1745 = vpop.f32.mrb[0].mxu0
      %1746 = vdwg.mxu0
      %v1747 = vsel %vm854, %v1726, -inf
      %1748 = vmax.xlane.f32.xlu0 %v1747
      %v1749 = vpop.xlane.xlu0 %1748
      %v1750 = vsel %vm854, %v1729, -inf
      %1751 = vmax.xlane.f32.xlu0 %v1750
      %v1752 = vpop.xlane.xlu0 %1751
      %v1753 = vsel %vm854, %v1734, -inf
      %1754 = vmax.xlane.f32.xlu0 %v1753
      %v1755 = vpop.xlane.xlu0 %1754
      %v1756 = vsel %vm854, %v1737, -inf
      %1757 = vmax.xlane.f32.xlu0 %v1756
      %v1758 = vpop.xlane.xlu0 %1757
      %v1759 = vsel %vm867, %v1742, -inf
      %1760 = vmax.xlane.f32.xlu0 %v1759
      %v1761 = vpop.xlane.xlu0 %1760
      %v1762 = vsub.f32 %v1726, %v1749
      %v1763 = vsub.f32 %v1729, %v1752
      %v1764 = vsub.f32 %v1734, %v1755
      %v1765 = vsub.f32 %v1737, %v1758
      %v1766 = vsub.f32 %v1742, %v1761
      %v1767 = vmul.f32 %v1762, 1.442695
      %v1768 = vpow.pop %v1767
      %v1769 = vmul.f32 %v1763, 1.442695
      %v1770 = vpow.pop %v1769
      %v1771 = vmul.f32 %v1764, 1.442695
      %v1772 = vpow.pop %v1771
      %v1773 = vmul.f32 %v1765, 1.442695
      %v1774 = vpow.pop %v1773
      %v1775 = vmul.f32 %v1766, 1.442695
      %v1776 = vpow.pop %v1775
      %v1777 = vsel %vm854, %v1768, 0.0
      %1778 = vadd.xlane.f32.xlu0 %v1777
      %v1779 = vpop.xlane.xlu0 %1778
      %v1780 = vsel %vm854, %v1770, 0.0
      %1781 = vadd.xlane.f32.xlu0 %v1780
      %v1782 = vpop.xlane.xlu0 %1781
      %v1783 = vsel %vm854, %v1772, 0.0
      %1784 = vadd.xlane.f32.xlu0 %v1783
      %v1785 = vpop.xlane.xlu0 %1784
      %v1786 = vsel %vm854, %v1774, 0.0
      %1787 = vadd.xlane.f32.xlu0 %v1786
      %v1788 = vpop.xlane.xlu0 %1787
      %v1789 = vsel %vm867, %v1776, 0.0
      %1790 = vadd.xlane.f32.xlu0 %v1789
      %v1791 = vpop.xlane.xlu0 %1790
      %v1792 = vrcp.pop %v1779
      %v1793 = vrcp.pop %v1782
      %v1794 = vrcp.pop %v1785
      %v1795 = vrcp.pop %v1788
      %v1796 = vrcp.pop %v1791
      %v1797 = vmul.f32 %v1768, %v1792
      %v1798 = vmul.f32 %v1770, %v1793
      %v1799 = vmul.f32 %v1772, %v1794
      %v1800 = vmul.f32 %v1774, %v1795
      %v1801 = vmul.f32 %v1776, %v1796
      %v1802 = vpack.c.bf16 %v1798, %v1797
      %v1803 = vpack.c.bf16 %v1800, %v1799
      %v1804 = vpack.c.bf16 %v1801, %v1801
      %1805 = vrot.lane.b32.xlu0 %v767, 40
      %v1806 = vpop.permute.xlu0 %1805
      %1807 = vrot.lane.b32.xlu0 %v768, 40
      %v1808 = vpop.permute.xlu0 %1807
      %1809 = vrot.lane.b32.xlu0 %v769, 40
      %v1810 = vpop.permute.xlu0 %1809
      %v1814 = vsel %vm854, %v1802, 0
      %v1817 = vsel %vm854, %v1803, 0
      %v1820 = vsel %vm854, %v1804, 0
      %v1823 = vand.u32 %v1810, %v934
      %1825 = vmatprep.subr.bf16.mxu0 0
      %1826 = vmatpush1.bf16.msra.mxu0 %v1806
      %1827 = vmatprep.subr.bf16.mxu0 0
      %1828 = vmatpush1.bf16.msra.mxu0 %v1808
      %1829 = vmatprep.subr.bf16.mxu0 0
      %1830 = vmatpush1.bf16.msra.mxu0 %v1823
      %1831 = vmatprep.subr.bf16.mxu0 0
      %1832 = vmatpush1.bf16.msra.mxu0 0
      %1833 = vmatprep.subr.bf16.mxu0 0
      %1834 = vmatpush1.bf16.msra.mxu0 0
      %1835 = vmatprep.subr.bf16.mxu0 0
      %1836 = vmatpush1.bf16.msra.mxu0 0
      %1837 = vmatprep.subr.bf16.mxu0 0
      %1838 = vmatpush1.bf16.msra.mxu0 0
      %1839 = vmatprep.subr.bf16.mxu0 0
      %1840 = vmatpush1.bf16.msra.mxu0 0
      %1841 = vmatprep.subr.bf16.mxu0 0
      %1842 = vmatpush1.bf16.msra.mxu0 0
      %1843 = vmatprep.subr.bf16.mxu0 0
      %1844 = vmatpush1.bf16.msra.mxu0 0
      %1845 = vmatprep.subr.bf16.mxu0 0
      %1846 = vmatpush1.bf16.msra.mxu0 0
      %1847 = vmatprep.subr.bf16.mxu0 0
      %1848 = vmatpush1.bf16.msra.mxu0 0
      %1849 = vmatprep.subr.bf16.mxu0 0
      %1850 = vmatpush1.bf16.msra.mxu0 0
      %1851 = vmatprep.subr.bf16.mxu0 0
      %1852 = vmatpush1.bf16.msra.mxu0 0
      %1853 = vmatprep.subr.bf16.mxu0 0
      %1854 = vmatpush1.bf16.msra.mxu0 0
      %1855 = vmatprep.subr.bf16.mxu0 0
      %1856 = vmatpush1.bf16.msra.mxu0 0
      %1857 = vmatprep.mubr.bf16.mxu0 0
      %1858 = vmatmul.mubr.bf16.gmra.mrb[0].mxu0 %v1814
      %v1859 = vpop.f32.mrb[0].mxu0
      %v1860 = vadd.f32 0.0, %v1859
      %v1861 = vpop.f32.mrb[0].mxu0
      %v1862 = vpop.f32.mrb[0].mxu0
      %v1863 = vadd.f32 0.0, %v1862
      %v1864 = vpop.f32.mrb[0].mxu0
      %1865 = vmatprep.mubr.bf16.mxu0 0
      %1866 = vmatmul.mubr.bf16.gmra.mrb[0].mxu0 %v1817
      %v1867 = vpop.f32.mrb[0].mxu0
      %v1868 = vadd.f32 0.0, %v1867
      %v1869 = vpop.f32.mrb[0].mxu0
      %v1870 = vpop.f32.mrb[0].mxu0
      %v1871 = vadd.f32 0.0, %v1870
      %v1872 = vpop.f32.mrb[0].mxu0
      %1873 = vmatprep.mubr.bf16.mxu0 0
      %1874 = vmatmul.mubr.bf16.gmra.mrb[0].mxu0 %v1820
      %v1875 = vpop.f32.mrb[0].mxu0
      %v1876 = vadd.f32 0.0, %v1875
      %v1877 = vpop.f32.mrb[0].mxu0
      %v1878 = vpop.f32.mrb[0].mxu0
      %v1879 = vpop.f32.mrb[0].mxu0
      %1880 = vdwg.mxu0
      %v1881 = vld [vmem:[%s608 + $0x18] sm:$0xff]
      %v1882 = vpack.c.bf16 %v1863, %v1860
      %v1883 = vpack.c.bf16 %v1871, %v1868
      %v1884 = vpack.c.bf16 %v1876, %v1876
      %v1885 = vpack.c.bf16 %v1881, %v1881
      %v1887 = vsel %vm779, %v1882, 0
      %v1890 = vsel %vm779, %v1883, 0
      %v1893 = vsel %vm779, %v1884, 0
      %v1896 = vsel %vm932, %v1885, 0
      %1898 = vmatprep.subr.bf16.mxu0 0
      %1899 = vmatpush1.bf16.msra.mxu0 %v1896
      %1900 = vmatprep.subr.bf16.mxu0 0
      %1901 = vmatpush1.bf16.msra.mxu0 0
      %1902 = vmatprep.subr.bf16.mxu0 0
      %1903 = vmatpush1.bf16.msra.mxu0 0
      %1904 = vmatprep.subr.bf16.mxu0 0
      %1905 = vmatpush1.bf16.msra.mxu0 0
      %1906 = vmatprep.subr.bf16.mxu0 0
      %1907 = vmatpush1.bf16.msra.mxu0 0
      %1908 = vmatprep.subr.bf16.mxu0 0
      %1909 = vmatpush1.bf16.msra.mxu0 0
      %1910 = vmatprep.subr.bf16.mxu0 0
      %1911 = vmatpush1.bf16.msra.mxu0 0
      %1912 = vmatprep.subr.bf16.mxu0 0
      %1913 = vmatpush1.bf16.msra.mxu0 0
      %1914 = vmatprep.subr.bf16.mxu0 0
      %1915 = vmatpush1.bf16.msra.mxu0 0
      %1916 = vmatprep.subr.bf16.mxu0 0
      %1917 = vmatpush1.bf16.msra.mxu0 0
      %1918 = vmatprep.subr.bf16.mxu0 0
      %1919 = vmatpush1.bf16.msra.mxu0 0
      %1920 = vmatprep.subr.bf16.mxu0 0
      %1921 = vmatpush1.bf16.msra.mxu0 0
      %1922 = vmatprep.subr.bf16.mxu0 0
      %1923 = vmatpush1.bf16.msra.mxu0 0
      %1924 = vmatprep.subr.bf16.mxu0 0
      %1925 = vmatpush1.bf16.msra.mxu0 0
      %1926 = vmatprep.subr.bf16.mxu0 0
      %1927 = vmatpush1.bf16.msra.mxu0 0
      %1928 = vmatprep.subr.bf16.mxu0 0
      %1929 = vmatpush1.bf16.msra.mxu0 0
      %1930 = vmatprep.mubr.bf16.mxu0 0
      %1931 = vmatmul.mubr.bf16.gmra.mrb[0].mxu0 %v1887
      %v1932 = vpop.f32.mrb[0].mxu0
      %v1933 = vadd.f32 0.0, %v1932
      %v1934 = vpop.f32.mrb[0].mxu0
      %v1935 = vpop.f32.mrb[0].mxu0
      %v1936 = vadd.f32 0.0, %v1935
      %v1937 = vpop.f32.mrb[0].mxu0
      %1938 = vmatprep.mubr.bf16.mxu0 0
      %1939 = vmatmul.mubr.bf16.gmra.mrb[0].mxu0 %v1890
      %v1940 = vpop.f32.mrb[0].mxu0
      %v1941 = vadd.f32 0.0, %v1940
      %v1942 = vpop.f32.mrb[0].mxu0
      %v1943 = vpop.f32.mrb[0].mxu0
      %v1944 = vadd.f32 0.0, %v1943
      %v1945 = vpop.f32.mrb[0].mxu0
      %1946 = vmatprep.mubr.bf16.mxu0 0
      %1947 = vmatmul.mubr.bf16.gmra.mrb[0].mxu0 %v1893
      %v1948 = vpop.f32.mrb[0].mxu0
      %v1949 = vadd.f32 0.0, %v1948
      %v1950 = vpop.f32.mrb[0].mxu0
      %v1951 = vpop.f32.mrb[0].mxu0
      %v1952 = vpop.f32.mrb[0].mxu0
      %1953 = vdwg.mxu0
      %v1954 = vadd.f32 %v1656, %v1933
      %v1955 = vadd.f32 %v1657, %v1936
      %v1956 = vadd.f32 %v1658, %v1941
      %v1957 = vadd.f32 %v1659, %v1944
      %v1958 = vadd.f32 %v1660, %v1949
      %v1959 = vld [vmem:[%s611] sm:$0x1]
      %v1961 = vlaneseq
      %v1962 = vshrl.u32 %v1961, 7
      %v1963 = vsub.s32 0, %v1962
      %v1964 = vrot.slane %v1959, %v1963
      %v1966 = vadd.f32 %v1954, %v1964
      %v1967 = vadd.f32 %v1955, %v1964
      %v1968 = vadd.f32 %v1956, %v1964
      %v1969 = vadd.f32 %v1957, %v1964
      %v1970 = vadd.f32 %v1958, %v1964
      %v1971 = vadd.f32 %v1966, %v662
      %v1972 = vadd.f32 %v1967, %v663
      %v1973 = vadd.f32 %v1968, %v664
      %v1974 = vadd.f32 %v1969, %v665
      %v1975 = vadd.f32 %v1970, %v666
      %v1976 = vld [vmem:[%s614] sm:$0x1]
      %v1977 = vld [vmem:[%s617] sm:$0x1]
      %v1978 = vsel %vm693, %v1971, 0.0
      %1979 = vadd.xlane.f32.xlu0 %v1978
      %v1980 = vpop.xlane.xlu0 %1979
      %v1981 = vsel %vm693, %v1972, 0.0
      %1982 = vadd.xlane.f32.xlu0 %v1981
      %v1983 = vpop.xlane.xlu0 %1982
      %v1984 = vsel %vm693, %v1973, 0.0
      %1985 = vadd.xlane.f32.xlu0 %v1984
      %v1986 = vpop.xlane.xlu0 %1985
      %v1987 = vsel %vm693, %v1974, 0.0
      %1988 = vadd.xlane.f32.xlu0 %v1987
      %v1989 = vpop.xlane.xlu0 %1988
      %vm1990 = vcmask 260096
      %v1991 = vsel %vm1990, %v1975, 0.0
      %1992 = vadd.xlane.f32.xlu0 %v1991
      %v1993 = vpop.xlane.xlu0 %1992
      %v1994 = vrcp.pop 32.0
      %v1995 = vmul.f32 %v1980, %v1994
      %v1996 = vmul.f32 %v1983, %v1994
      %v1997 = vmul.f32 %v1986, %v1994
      %v1998 = vmul.f32 %v1989, %v1994
      %v1999 = vmul.f32 %v1993, %v1994
      %v2000 = vsub.f32 %v1971, %v1995
      %v2001 = vsub.f32 %v1972, %v1996
      %v2002 = vsub.f32 %v1973, %v1997
      %v2003 = vsub.f32 %v1974, %v1998
      %v2004 = vsub.f32 %v1975, %v1999
      %v2005 = vmul.f32 %v2000, %v2000
      %v2006 = vmul.f32 %v2001, %v2001
      %v2007 = vmul.f32 %v2002, %v2002
      %v2008 = vmul.f32 %v2003, %v2003
      %v2009 = vmul.f32 %v2004, %v2004
      %v2010 = vsel %vm693, %v2005, 0.0
      %2011 = vadd.xlane.f32.xlu0 %v2010
      %v2012 = vpop.xlane.xlu0 %2011
      %v2013 = vsel %vm693, %v2006, 0.0
      %2014 = vadd.xlane.f32.xlu0 %v2013
      %v2015 = vpop.xlane.xlu0 %2014
      %v2016 = vsel %vm693, %v2007, 0.0
      %2017 = vadd.xlane.f32.xlu0 %v2016
      %v2018 = vpop.xlane.xlu0 %2017
      %v2019 = vsel %vm693, %v2008, 0.0
      %2020 = vadd.xlane.f32.xlu0 %v2019
      %v2021 = vpop.xlane.xlu0 %2020
      %v2022 = vsel %vm1990, %v2009, 0.0
      %2023 = vadd.xlane.f32.xlu0 %v2022
      %v2024 = vpop.xlane.xlu0 %2023
      %v2025 = vmul.f32 %v2012, %v1994
      %v2026 = vmul.f32 %v2015, %v1994
      %v2027 = vmul.f32 %v2018, %v1994
      %v2028 = vmul.f32 %v2021, %v1994
      %v2029 = vmul.f32 %v2024, %v1994
      %v2030 = vadd.f32 %v2025, 1e-05
      %v2031 = vadd.f32 %v2026, 1e-05
      %v2032 = vadd.f32 %v2027, 1e-05
      %v2033 = vadd.f32 %v2028, 1e-05
      %v2034 = vadd.f32 %v2029, 1e-05
      %v2035 = vrsqrt.pop %v2030
      %v2036 = vrsqrt.pop %v2031
      %v2037 = vrsqrt.pop %v2032
      %v2038 = vrsqrt.pop %v2033
      %v2039 = vrsqrt.pop %v2034
      %v2040 = vmul.f32 %v2000, %v2035
      %v2041 = vmul.f32 %v2001, %v2036
      %v2042 = vmul.f32 %v2002, %v2037
      %v2043 = vmul.f32 %v2003, %v2038
      %v2044 = vmul.f32 %v2004, %v2039
      %v2046 = vlaneseq
      %v2047 = vshrl.u32 %v2046, 7
      %v2048 = vsub.s32 0, %v2047
      %v2049 = vrot.slane %v1976, %v2048
      %v2051 = vmul.f32 %v2040, %v2049
      %v2052 = vmul.f32 %v2041, %v2049
      %v2053 = vmul.f32 %v2042, %v2049
      %v2054 = vmul.f32 %v2043, %v2049
      %v2055 = vmul.f32 %v2044, %v2049
      %v2057 = vlaneseq
      %v2058 = vshrl.u32 %v2057, 7
      %v2059 = vsub.s32 0, %v2058
      %v2060 = vrot.slane %v1977, %v2059
      %v2062 = vadd.f32 %v2051, %v2060
      %v2063 = vadd.f32 %v2052, %v2060
      %v2064 = vadd.f32 %v2053, %v2060
      %v2065 = vadd.f32 %v2054, %v2060
      %v2066 = vadd.f32 %v2055, %v2060
      %v2067 = vld [vmem:[%s622] sm:$0xf]
      %v2068 = vld [vmem:[%s622 + $0x4] sm:$0xf]
      %v2069 = vld [vmem:[%s622 + $0x8] sm:$0xf]
      %v2070 = vld [vmem:[%s622 + $0xc] sm:$0xf]
      %v2071 = vpack.c.bf16 %v2063, %v2062
      %v2072 = vpack.c.bf16 %v2065, %v2064
      %v2073 = vpack.c.bf16 %v2066, %v2066
      %v2074 = vld [vmem:[%s625] sm:$0x1]
      %v2076 = vlaneseq
      %v2077 = vshrl.u32 %v2076, 7
      %v2078 = vsub.s32 0, %v2077
      %v2079 = vrot.slane %v2074, %v2078
      %v2085 = vunpack.c.l.b16 %v2067
      %v2086 = vunpack.c.l.b16 %v2068
      %v2087 = vunpack.c.l.b16 %v2069
      %v2088 = vunpack.c.l.b16 %v2070
      %v2089 = vpack.c.b16 %v2086, %v2085
      %v2090 = vpack.c.b16 %v2088, %v2087
      %v2094 = vsel %vm693, %v2071, 0
      %v2097 = vsel %vm693, %v2072, 0
      %v2100 = vsel %vm693, %v2073, 0
      %2102 = vmatprep.subr.bf16.mxu0 0
      %2103 = vmatpush1.bf16.msra.mxu0 %v2089
      %2104 = vmatprep.subr.bf16.mxu0 0
      %2105 = vmatpush1.bf16.msra.mxu0 %v2090
      %2106 = vmatprep.subr.bf16.mxu0 0
      %2107 = vmatpush1.bf16.msra.mxu0 0
      %2108 = vmatprep.subr.bf16.mxu0 0
      %2109 = vmatpush1.bf16.msra.mxu0 0
      %2110 = vmatprep.subr.bf16.mxu0 0
      %2111 = vmatpush1.bf16.msra.mxu0 0
      %2112 = vmatprep.subr.bf16.mxu0 0
      %2113 = vmatpush1.bf16.msra.mxu0 0
      %2114 = vmatprep.subr.bf16.mxu0 0
      %2115 = vmatpush1.bf16.msra.mxu0 0
      %2116 = vmatprep.subr.bf16.mxu0 0
      %2117 = vmatpush1.bf16.msra.mxu0 0
      %2118 = vmatprep.subr.bf16.mxu0 0
      %2119 = vmatpush1.bf16.msra.mxu0 0
      %2120 = vmatprep.subr.bf16.mxu0 0
      %2121 = vmatpush1.bf16.msra.mxu0 0
      %2122 = vmatprep.subr.bf16.mxu0 0
      %2123 = vmatpush1.bf16.msra.mxu0 0
      %2124 = vmatprep.subr.bf16.mxu0 0
      %2125 = vmatpush1.bf16.msra.mxu0 0
      %2126 = vmatprep.subr.bf16.mxu0 0
      %2127 = vmatpush1.bf16.msra.mxu0 0
      %2128 = vmatprep.subr.bf16.mxu0 0
      %2129 = vmatpush1.bf16.msra.mxu0 0
      %2130 = vmatprep.subr.bf16.mxu0 0
      %2131 = vmatpush1.bf16.msra.mxu0 0
      %2132 = vmatprep.subr.bf16.mxu0 0
      %2133 = vmatpush1.bf16.msra.mxu0 0
      %2134 = vmatprep.mubr.bf16.mxu0 0
      %2135 = vmatmul.mubr.bf16.gmra.mrb[0].mxu0 %v2094
      %v2136 = vpop.f32.mrb[0].mxu0
      %v2137 = vadd.f32 %v2079, %v2136
      %v2138 = vpop.f32.mrb[0].mxu0
      %v2139 = vpop.f32.mrb[0].mxu0
      %v2140 = vadd.f32 %v2079, %v2139
      %v2141 = vpop.f32.mrb[0].mxu0
      %2142 = vmatprep.mubr.bf16.mxu0 0
      %2143 = vmatmul.mubr.bf16.gmra.mrb[0].mxu0 %v2097
      %v2144 = vpop.f32.mrb[0].mxu0
      %v2145 = vadd.f32 %v2079, %v2144
      %v2146 = vpop.f32.mrb[0].mxu0
      %v2147 = vpop.f32.mrb[0].mxu0
      %v2148 = vadd.f32 %v2079, %v2147
      %v2149 = vpop.f32.mrb[0].mxu0
      %2150 = vmatprep.mubr.bf16.mxu0 0
      %2151 = vmatmul.mubr.bf16.gmra.mrb[0].mxu0 %v2100
      %v2152 = vpop.f32.mrb[0].mxu0
      %v2153 = vadd.f32 %v2079, %v2152
      %v2154 = vpop.f32.mrb[0].mxu0
      %v2155 = vpop.f32.mrb[0].mxu0
      %v2156 = vpop.f32.mrb[0].mxu0
      %2157 = vdwg.mxu0
      %v2158 = vmul.f32 %v2137, %v2137
      %v2159 = vmul.f32 %v2140, %v2140
      %v2160 = vmul.f32 %v2145, %v2145
      %v2161 = vmul.f32 %v2148, %v2148
      %v2162 = vmul.f32 %v2153, %v2153
      %v2163 = vmul.f32 %v2137, %v2158
      %v2164 = vmul.f32 %v2140, %v2159
      %v2165 = vmul.f32 %v2145, %v2160
      %v2166 = vmul.f32 %v2148, %v2161
      %v2167 = vmul.f32 %v2153, %v2162
      %v2168 = vmul.f32 %v2163, 0.044715
      %v2169 = vmul.f32 %v2164, 0.044715
      %v2170 = vmul.f32 %v2165, 0.044715
      %v2171 = vmul.f32 %v2166, 0.044715
      %v2172 = vmul.f32 %v2167, 0.044715
      %v2173 = vadd.f32 %v2137, %v2168
      %v2174 = vadd.f32 %v2140, %v2169
      %v2175 = vadd.f32 %v2145, %v2170
      %v2176 = vadd.f32 %v2148, %v2171
      %v2177 = vadd.f32 %v2153, %v2172
      %v2178 = vmul.f32 %v2173, 0.7978846
      %v2179 = vmul.f32 %v2174, 0.7978846
      %v2180 = vmul.f32 %v2175, 0.7978846
      %v2181 = vmul.f32 %v2176, 0.7978846
      %v2182 = vmul.f32 %v2177, 0.7978846
      %v2183 = vtanh.pop %v2178
      %v2184 = vtanh.pop %v2179
      %v2185 = vtanh.pop %v2180
      %v2186 = vtanh.pop %v2181
      %v2187 = vtanh.pop %v2182
      %v2188 = vadd.f32 %v2183, 1.0
      %v2189 = vadd.f32 %v2184, 1.0
      %v2190 = vadd.f32 %v2185, 1.0
      %v2191 = vadd.f32 %v2186, 1.0
      %v2192 = vadd.f32 %v2187, 1.0
      %v2193 = vmul.f32 %v2188, 0.5
      %v2194 = vmul.f32 %v2189, 0.5
      %v2195 = vmul.f32 %v2190, 0.5
      %v2196 = vmul.f32 %v2191, 0.5
      %v2197 = vmul.f32 %v2192, 0.5
      %v2198 = vmul.f32 %v2137, %v2193
      %v2199 = vmul.f32 %v2140, %v2194
      %v2200 = vmul.f32 %v2145, %v2195
      %v2201 = vmul.f32 %v2148, %v2196
      %v2202 = vmul.f32 %v2153, %v2197
      %v2203 = vld [vmem:[%s630] sm:$0xf]
      %v2204 = vld [vmem:[%s630 + $0x4] sm:$0xf]
      %v2205 = vld [vmem:[%s630 + $0x8] sm:$0xf]
      %v2206 = vld [vmem:[%s630 + $0xc] sm:$0xf]
      %v2207 = vld [vmem:[%s630 + $0x10] sm:$0xf]
      %v2208 = vld [vmem:[%s630 + $0x14] sm:$0xf]
      %v2209 = vld [vmem:[%s630 + $0x18] sm:$0xf]
      %v2210 = vld [vmem:[%s630 + $0x1c] sm:$0xf]
      %v2211 = vpack.c.bf16 %v2199, %v2198
      %v2212 = vpack.c.bf16 %v2201, %v2200
      %v2213 = vpack.c.bf16 %v2202, %v2202
      %v2214 = vld [vmem:[%s633] sm:$0x1]
      %v2216 = vlaneseq
      %v2217 = vshrl.u32 %v2216, 7
      %v2218 = vsub.s32 0, %v2217
      %v2219 = vrot.slane %v2214, %v2218
      %v2229 = vunpack.c.l.b16 %v2203
      %v2230 = vunpack.c.l.b16 %v2204
      %v2231 = vunpack.c.l.b16 %v2205
      %v2232 = vunpack.c.l.b16 %v2206
      %v2233 = vunpack.c.l.b16 %v2207
      %v2234 = vunpack.c.l.b16 %v2208
      %v2235 = vunpack.c.l.b16 %v2209
      %v2236 = vunpack.c.l.b16 %v2210
      %v2237 = vpack.c.b16 %v2230, %v2229
      %v2238 = vpack.c.b16 %v2232, %v2231
      %v2239 = vpack.c.b16 %v2234, %v2233
      %v2240 = vpack.c.b16 %v2236, %v2235
      %vm2245 = vcmask 523264
      %v2247 = vsel %vm2245, %v2211, 0
      %v2250 = vsel %vm2245, %v2212, 0
      %v2253 = vsel %vm2245, %v2213, 0
      %2255 = vmatprep.subr.bf16.mxu0 0
      %2256 = vmatpush1.bf16.msra.mxu0 %v2237
      %2257 = vmatprep.subr.bf16.mxu0 0
      %2258 = vmatpush1.bf16.msra.mxu0 %v2238
      %2259 = vmatprep.subr.bf16.mxu0 0
      %2260 = vmatpush1.bf16.msra.mxu0 %v2239
      %2261 = vmatprep.subr.bf16.mxu0 0
      %2262 = vmatpush1.bf16.msra.mxu0 %v2240
      %2263 = vmatprep.subr.bf16.mxu0 0
      %2264 = vmatpush1.bf16.msra.mxu0 0
      %2265 = vmatprep.subr.bf16.mxu0 0
      %2266 = vmatpush1.bf16.msra.mxu0 0
      %2267 = vmatprep.subr.bf16.mxu0 0
      %2268 = vmatpush1.bf16.msra.mxu0 0
      %2269 = vmatprep.subr.bf16.mxu0 0
      %2270 = vmatpush1.bf16.msra.mxu0 0
      %2271 = vmatprep.subr.bf16.mxu0 0
      %2272 = vmatpush1.bf16.msra.mxu0 0
      %2273 = vmatprep.subr.bf16.mxu0 0
      %2274 = vmatpush1.bf16.msra.mxu0 0
      %2275 = vmatprep.subr.bf16.mxu0 0
      %2276 = vmatpush1.bf16.msra.mxu0 0
      %2277 = vmatprep.subr.bf16.mxu0 0
      %2278 = vmatpush1.bf16.msra.mxu0 0
      %2279 = vmatprep.subr.bf16.mxu0 0
      %2280 = vmatpush1.bf16.msra.mxu0 0
      %2281 = vmatprep.subr.bf16.mxu0 0
      %2282 = vmatpush1.bf16.msra.mxu0 0
      %2283 = vmatprep.subr.bf16.mxu0 0
      %2284 = vmatpush1.bf16.msra.mxu0 0
      %2285 = vmatprep.subr.bf16.mxu0 0
      %2286 = vmatpush1.bf16.msra.mxu0 0
      %2287 = vmatprep.mubr.bf16.mxu0 0
      %2288 = vmatmul.mubr.bf16.gmra.mrb[0].mxu0 %v2247
      %v2289 = vpop.f32.mrb[0].mxu0
      %v2290 = vadd.f32 %v2219, %v2289
      %v2291 = vpop.f32.mrb[0].mxu0
      %v2292 = vpop.f32.mrb[0].mxu0
      %v2293 = vadd.f32 %v2219, %v2292
      %v2294 = vpop.f32.mrb[0].mxu0
      %2295 = vmatprep.mubr.bf16.mxu0 0
      %2296 = vmatmul.mubr.bf16.gmra.mrb[0].mxu0 %v2250
      %v2297 = vpop.f32.mrb[0].mxu0
      %v2298 = vadd.f32 %v2219, %v2297
      %v2299 = vpop.f32.mrb[0].mxu0
      %v2300 = vpop.f32.mrb[0].mxu0
      %v2301 = vadd.f32 %v2219, %v2300
      %v2302 = vpop.f32.mrb[0].mxu0
      %2303 = vmatprep.mubr.bf16.mxu0 0
      %2304 = vmatmul.mubr.bf16.gmra.mrb[0].mxu0 %v2253
      %v2305 = vpop.f32.mrb[0].mxu0
      %v2306 = vadd.f32 %v2219, %v2305
      %v2307 = vpop.f32.mrb[0].mxu0
      %v2308 = vpop.f32.mrb[0].mxu0
      %v2309 = vpop.f32.mrb[0].mxu0
      %2310 = vdwg.mxu0
      %v2311 = vadd.f32 %v2290, %v2062
      %v2312 = vadd.f32 %v2293, %v2063
      %v2313 = vadd.f32 %v2298, %v2064
      %v2314 = vadd.f32 %v2301, %v2065
      %v2315 = vadd.f32 %v2306, %v2066
      %v2316 = vld [vmem:[%s636] sm:$0x1]
      %v2317 = vld [vmem:[%s639] sm:$0x1]
      %v2318 = vsel %vm693, %v2311, 0.0
      %2319 = vadd.xlane.f32.xlu0 %v2318
      %v2320 = vpop.xlane.xlu0 %2319
      %v2321 = vsel %vm693, %v2312, 0.0
      %2322 = vadd.xlane.f32.xlu0 %v2321
      %v2323 = vpop.xlane.xlu0 %2322
      %v2324 = vsel %vm693, %v2313, 0.0
      %2325 = vadd.xlane.f32.xlu0 %v2324
      %v2326 = vpop.xlane.xlu0 %2325
      %v2327 = vsel %vm693, %v2314, 0.0
      %2328 = vadd.xlane.f32.xlu0 %v2327
      %v2329 = vpop.xlane.xlu0 %2328
      %v2330 = vsel %vm1990, %v2315, 0.0
      %2331 = vadd.xlane.f32.xlu0 %v2330
      %v2332 = vpop.xlane.xlu0 %2331
      %v2333 = vmul.f32 %v2320, %v1994
      %v2334 = vmul.f32 %v2323, %v1994
      %v2335 = vmul.f32 %v2326, %v1994
      %v2336 = vmul.f32 %v2329, %v1994
      %v2337 = vmul.f32 %v2332, %v1994
      %v2338 = vsub.f32 %v2311, %v2333
      %v2339 = vsub.f32 %v2312, %v2334
      %v2340 = vsub.f32 %v2313, %v2335
      %v2341 = vsub.f32 %v2314, %v2336
      %v2342 = vsub.f32 %v2315, %v2337
      %v2343 = vmul.f32 %v2338, %v2338
      %v2344 = vmul.f32 %v2339, %v2339
      %v2345 = vmul.f32 %v2340, %v2340
      %v2346 = vmul.f32 %v2341, %v2341
      %v2347 = vmul.f32 %v2342, %v2342
      %v2348 = vsel %vm693, %v2343, 0.0
      %2349 = vadd.xlane.f32.xlu0 %v2348
      %v2350 = vpop.xlane.xlu0 %2349
      %v2351 = vsel %vm693, %v2344, 0.0
      %2352 = vadd.xlane.f32.xlu0 %v2351
      %v2353 = vpop.xlane.xlu0 %2352
      %v2354 = vsel %vm693, %v2345, 0.0
      %2355 = vadd.xlane.f32.xlu0 %v2354
      %v2356 = vpop.xlane.xlu0 %2355
      %v2357 = vsel %vm693, %v2346, 0.0
      %2358 = vadd.xlane.f32.xlu0 %v2357
      %v2359 = vpop.xlane.xlu0 %2358
      %v2360 = vsel %vm1990, %v2347, 0.0
      %2361 = vadd.xlane.f32.xlu0 %v2360
      %v2362 = vpop.xlane.xlu0 %2361
      %v2363 = vmul.f32 %v2350, %v1994
      %v2364 = vmul.f32 %v2353, %v1994
      %v2365 = vmul.f32 %v2356, %v1994
      %v2366 = vmul.f32 %v2359, %v1994
      %v2367 = vmul.f32 %v2362, %v1994
      %v2368 = vadd.f32 %v2363, 1e-05
      %v2369 = vadd.f32 %v2364, 1e-05
      %v2370 = vadd.f32 %v2365, 1e-05
      %v2371 = vadd.f32 %v2366, 1e-05
      %v2372 = vadd.f32 %v2367, 1e-05
      %v2373 = vrsqrt.pop %v2368
      %v2374 = vrsqrt.pop %v2369
      %v2375 = vrsqrt.pop %v2370
      %v2376 = vrsqrt.pop %v2371
      %v2377 = vrsqrt.pop %v2372
      %v2378 = vmul.f32 %v2338, %v2373
      %v2379 = vmul.f32 %v2339, %v2374
      %v2380 = vmul.f32 %v2340, %v2375
      %v2381 = vmul.f32 %v2341, %v2376
      %v2382 = vmul.f32 %v2342, %v2377
      %v2384 = vlaneseq
      %v2385 = vshrl.u32 %v2384, 7
      %v2386 = vsub.s32 0, %v2385
      %v2387 = vrot.slane %v2316, %v2386
      %v2389 = vmul.f32 %v2378, %v2387
      %v2390 = vmul.f32 %v2379, %v2387
      %v2391 = vmul.f32 %v2380, %v2387
      %v2392 = vmul.f32 %v2381, %v2387
      %v2393 = vmul.f32 %v2382, %v2387
      %v2395 = vlaneseq
      %v2396 = vshrl.u32 %v2395, 7
      %v2397 = vsub.s32 0, %v2396
      %v2398 = vrot.slane %v2317, %v2397
      %v2400 = vadd.f32 %v2389, %v2398
      %v2401 = vadd.f32 %v2390, %v2398
      %v2402 = vadd.f32 %v2391, %v2398
      %v2403 = vadd.f32 %v2392, %v2398
      %v2404 = vadd.f32 %v2393, %v2398
      %2405 = vst.msk [vmem:[#allocation2] sm:$0xff] %vm693, %v2400
      %2406 = vst.msk [vmem:[#allocation2 + $0x8] sm:$0xff] %vm693, %v2401
      %2407 = vst.msk [vmem:[#allocation2 + $0x10] sm:$0xff] %vm693, %v2402
      %2408 = vst.msk [vmem:[#allocation2 + $0x18] sm:$0xff] %vm693, %v2403
      %2409 = vst.msk [vmem:[#allocation2 + $0x20] sm:$0x7f] %vm1990, %v2404
      %2410 = vst.msk [vmem:[%s644] sm:$0xff] %vm693, %v2400
      %2411 = vst.msk [vmem:[%s644 + $0x8] sm:$0xff] %vm693, %v2401
      %2412 = vst.msk [vmem:[%s644 + $0x10] sm:$0xff] %vm693, %v2402
      %2413 = vst.msk [vmem:[%s644 + $0x18] sm:$0xff] %vm693, %v2403
      %2414 = vst.msk [vmem:[%s644 + $0x20] sm:$0x7f] %vm1990, %v2404
      %p2415 = scmp.lt.s32.totalorder %s28, 1
      %s2416 = scalar_select %p2415, %s28, 1
      %s2417 = smul.addr %s2416, 5
      %s2418 = smul.addr %s2417, 8
      %s2419 = scalar_lea.vmem %s13, %s2418
      // Predicated region
      $region77: #{_lambda_.8} parent=71 // pred_check
        %p2420 = pneg %p392
      $region78: #{_lambda_.8} parent=71 // pred_check_branch
        %2422 = sbr.rel (%p2420) target = $region80
      $region79: #{_lambda_.8} parent=71 // pred_region
        _
      $region80: #{_lambda_.8} parent=71 // pred_fallthru
        _
    $region72: #{_lambda_.8} parent=5 // pred_fallthru
      _
    %p2423 = scmp.le.s32.totalorder 2, %s19
    // Predicated region
    $region81: #{_lambda_.8} parent=5 // pred_check
      %p2424 = pneg %p2423
    $region82: #{_lambda_.8} parent=5 // pred_check_branch
      %2426 = sbr.rel (%p2424) target = $region84
    $region83: #{_lambda_.8} parent=5 // pred_region
      %s2427 = ssub.s32 %s19, 2
      // Predicated region
      $region85: #{_lambda_.8} parent=83 // pred_check
        %p2428 = pneg %p398
      $region86: #{_lambda_.8} parent=83 // pred_check_branch
        %2430 = sbr.rel (%p2428) target = $region88
      $region87: #{_lambda_.8} parent=83 // pred_region
        %p2431 = scmp.lt.s32.totalorder %s30, 1
        %s2432 = scalar_select %p2431, %s30, 1
        %s2433 = smul.addr %s2432, 5
        %s2434 = smul.addr %s2433, 8
        %s2435 = scalar_lea.vmem %s13, %s2434
      $region88: #{_lambda_.8} parent=83 // pred_fallthru
        _
    $region84: #{_lambda_.8} parent=5 // pred_fallthru
      _
  $region6: #{_lambda_.8} parent=0 // loop_footer
    %s23 = sadd.s32 1, %s19
  $region7: #{_lambda_.8} parent=0 // loop_footer_branch
    %18 = sbr.rel target = $region3
  $region8: #{_lambda_.8} parent=0 // loop_exit
    _

// kernel: _lambda_.9
$region0: #{_lambda_.9}
  #allocation0 [shape = 'u32[]', space=smem, size = 0x4, offset = 0x4, fixed_abs, tag = 'smem constant byte address 0x4 - core index']
  #allocation1 [shape = 'u32[144,128]{1,0:T(1,128)}', space=vmem, size = 0x12000, scoped, tag = 'internal scratch']
  %s0 = inlined_call_operand.vmem [shape: f32[2,39,32], index: 0, kind: input, shape index: {}]
  %s1 = inlined_call_operand.vmem [shape: bf16[32,32], index: 1, kind: input, shape index: {}]
  %s2 = inlined_call_operand.vmem [shape: f32[1,32], index: 2, kind: input, shape index: {}]
  %s3 = inlined_call_operand.vmem [shape: f32[160,32], index: 3, kind: input, shape index: {}]
  %s4 = inlined_call_operand.vmem [shape: f32[1,32], index: 4, kind: input, shape index: {}]
  %s5 = inlined_call_operand.vmem [shape: f32[96,32], index: 5, kind: input, shape index: {}]
  %s6 = inlined_call_operand.vmem [shape: f32[1,32], index: 6, kind: input, shape index: {}]
  %s7 = inlined_call_operand.vmem [shape: f32[64,32], index: 7, kind: input, shape index: {}]
  %s8 = inlined_call_operand.vmem [shape: f32[1,32], index: 8, kind: input, shape index: {}]
  %s9 = inlined_call_operand.hbm [shape: f32[2,1,32], index: 9, kind: output, shape index: {}]
  %s10 = sld [smem:[#allocation0]]
  $region69: #{_lambda_.9} parent=0
    _
  %s12 = ssub.s32 1, %s10
  %s13 = scalar_select 0, %s12, %s10
  $region1: #{_lambda_.9} parent=0
    #allocation2 [shape = 'u8[1024]{0}', space=vmem, size = 0x400, scoped, tag = 'output window, operand 0']
    #allocation3 [shape = 's32[2]{0}', space=sflag, size = 0x8, scoped, tag = 'scoped memory for _lambda_.9']
    %14 = vsyncpa [#allocation3], 0
    %s15 = scalar_lea.sflag [#allocation3], 1
    %16 = vsyncpa %s15, 0
    loop: start=0, step=1, limit=4
    $region2: #{_lambda_.9} parent=1 // loop_pre_header
      _
    $region3: #{_lambda_.9} parent=1 // loop_header
      %s18 = sphi 0, %s22
      %p19 = scmp.ge.s32.totalorder %s18, 4
      %s28 = sphi 0, %s30
      %s31 = sphi 0, %s28
      %s32 = sphi 0, %s31
      %s48 = sphi 0, %s32
      %s52 = sphi 0, %s52
      %s54 = sphi 0, %s52
      %s55 = sphi 0, %s54
      %s69 = sphi 0, %s55
      %s73 = sphi 0, %s73
      %s75 = sphi 0, %s73
      %s76 = sphi 0, %s75
      %s90 = sphi 0, %s76
      %s94 = sphi 0, %s94
      %s96 = sphi 0, %s94
      %s97 = sphi 0, %s96
      %s111 = sphi 0, %s97
      %s115 = sphi 0, %s115
      %s117 = sphi 0, %s115
      %s118 = sphi 0, %s117
      %s132 = sphi 0, %s118
      %s136 = sphi 0, %s136
      %s138 = sphi 0, %s136
      %s139 = sphi 0, %s138
      %s153 = sphi 0, %s139
      %s157 = sphi 0, %s157
      %s159 = sphi 0, %s157
      %s160 = sphi 0, %s159
      %s174 = sphi 0, %s160
      %s178 = sphi 0, %s178
      %s180 = sphi 0, %s178
      %s181 = sphi 0, %s180
      %s195 = sphi 0, %s181
      %s199 = sphi 0, %s199
      %s201 = sphi 0, %s199
      %s202 = sphi 0, %s201
      %s216 = sphi 0, %s202
      %s222 = sphi 0, %s224
      %s225 = sphi 0, %s222
      %s226 = sphi 0, %s225
      %s242 = sphi 0, %s226
    $region4: #{_lambda_.9} parent=1 // loop_header_branch
      %21 = sbr.rel (%p19) target = $region8
    $region5: #{_lambda_.9} parent=1 // loop_body
      %s23 = ssub.s32 %s18, 1
      %s24 = ssub.s32 %s18, 2
      %s25 = sadd.s32 %s18, 1
      %s26 = ssub.s32 %s18, %s25
      %p27 = scmp.eq.s32.totalorder %s26, 0
      %s29 = sadd.s32 %s28, 1
      %s30 = scalar_select %p27, %s28, %s29
      %p33 = pneg %p27
      %p34 = scmp.eq.s32.totalorder %s18, 1
      %p35 = por %p33, %p34
      %p36 = scmp.ne.s32.totalorder %s28, %s31
      %p37 = scmp.eq.s32.totalorder %s18, 0
      %p38 = por %p36, %p37
      %p39 = scmp.ne.s32.totalorder %s28, %s31
      %p40 = scmp.eq.s32.totalorder %s23, 1
      %p41 = por %p39, %p40
      %p42 = scmp.ne.s32.totalorder %s31, %s32
      %p43 = scmp.eq.s32.totalorder %s23, 0
      %p44 = por %p42, %p43
      %p45 = scmp.ne.s32.totalorder %s31, %s32
      %p46 = scmp.eq.s32.totalorder %s24, 1
      %p47 = por %p45, %p46
      %p49 = scmp.ne.s32.totalorder %s32, %s48
      %p50 = scmp.eq.s32.totalorder %s24, 0
      %p51 = por %p49, %p50
      %s53 = sadd.s32 %s52, 1
      %p56 = scmp.eq.s32.totalorder %s18, 1
      %p57 = scmp.ne.s32.totalorder %s52, %s54
      %p58 = scmp.eq.s32.totalorder %s18, 0
      %p59 = por %p57, %p58
      %p60 = scmp.ne.s32.totalorder %s52, %s54
      %p61 = scmp.eq.s32.totalorder %s23, 1
      %p62 = por %p60, %p61
      %p63 = scmp.ne.s32.totalorder %s54, %s55
      %p64 = scmp.eq.s32.totalorder %s23, 0
      %p65 = por %p63, %p64
      %p66 = scmp.ne.s32.totalorder %s54, %s55
      %p67 = scmp.eq.s32.totalorder %s24, 1
      %p68 = por %p66, %p67
      %p70 = scmp.ne.s32.totalorder %s55, %s69
      %p71 = scmp.eq.s32.totalorder %s24, 0
      %p72 = por %p70, %p71
      %s74 = sadd.s32 %s73, 1
      %p77 = scmp.eq.s32.totalorder %s18, 1
      %p78 = scmp.ne.s32.totalorder %s73, %s75
      %p79 = scmp.eq.s32.totalorder %s18, 0
      %p80 = por %p78, %p79
      %p81 = scmp.ne.s32.totalorder %s73, %s75
      %p82 = scmp.eq.s32.totalorder %s23, 1
      %p83 = por %p81, %p82
      %p84 = scmp.ne.s32.totalorder %s75, %s76
      %p85 = scmp.eq.s32.totalorder %s23, 0
      %p86 = por %p84, %p85
      %p87 = scmp.ne.s32.totalorder %s75, %s76
      %p88 = scmp.eq.s32.totalorder %s24, 1
      %p89 = por %p87, %p88
      %p91 = scmp.ne.s32.totalorder %s76, %s90
      %p92 = scmp.eq.s32.totalorder %s24, 0
      %p93 = por %p91, %p92
      %s95 = sadd.s32 %s94, 1
      %p98 = scmp.eq.s32.totalorder %s18, 1
      %p99 = scmp.ne.s32.totalorder %s94, %s96
      %p100 = scmp.eq.s32.totalorder %s18, 0
      %p101 = por %p99, %p100
      %p102 = scmp.ne.s32.totalorder %s94, %s96
      %p103 = scmp.eq.s32.totalorder %s23, 1
      %p104 = por %p102, %p103
      %p105 = scmp.ne.s32.totalorder %s96, %s97
      %p106 = scmp.eq.s32.totalorder %s23, 0
      %p107 = por %p105, %p106
      %p108 = scmp.ne.s32.totalorder %s96, %s97
      %p109 = scmp.eq.s32.totalorder %s24, 1
      %p110 = por %p108, %p109
      %p112 = scmp.ne.s32.totalorder %s97, %s111
      %p113 = scmp.eq.s32.totalorder %s24, 0
      %p114 = por %p112, %p113
      %s116 = sadd.s32 %s115, 1
      %p119 = scmp.eq.s32.totalorder %s18, 1
      %p120 = scmp.ne.s32.totalorder %s115, %s117
      %p121 = scmp.eq.s32.totalorder %s18, 0
      %p122 = por %p120, %p121
      %p123 = scmp.ne.s32.totalorder %s115, %s117
      %p124 = scmp.eq.s32.totalorder %s23, 1
      %p125 = por %p123, %p124
      %p126 = scmp.ne.s32.totalorder %s117, %s118
      %p127 = scmp.eq.s32.totalorder %s23, 0
      %p128 = por %p126, %p127
      %p129 = scmp.ne.s32.totalorder %s117, %s118
      %p130 = scmp.eq.s32.totalorder %s24, 1
      %p131 = por %p129, %p130
      %p133 = scmp.ne.s32.totalorder %s118, %s132
      %p134 = scmp.eq.s32.totalorder %s24, 0
      %p135 = por %p133, %p134
      %s137 = sadd.s32 %s136, 1
      %p140 = scmp.eq.s32.totalorder %s18, 1
      %p141 = scmp.ne.s32.totalorder %s136, %s138
      %p142 = scmp.eq.s32.totalorder %s18, 0
      %p143 = por %p141, %p142
      %p144 = scmp.ne.s32.totalorder %s136, %s138
      %p145 = scmp.eq.s32.totalorder %s23, 1
      %p146 = por %p144, %p145
      %p147 = scmp.ne.s32.totalorder %s138, %s139
      %p148 = scmp.eq.s32.totalorder %s23, 0
      %p149 = por %p147, %p148
      %p150 = scmp.ne.s32.totalorder %s138, %s139
      %p151 = scmp.eq.s32.totalorder %s24, 1
      %p152 = por %p150, %p151
      %p154 = scmp.ne.s32.totalorder %s139, %s153
      %p155 = scmp.eq.s32.totalorder %s24, 0
      %p156 = por %p154, %p155
      %s158 = sadd.s32 %s157, 1
      %p161 = scmp.eq.s32.totalorder %s18, 1
      %p162 = scmp.ne.s32.totalorder %s157, %s159
      %p163 = scmp.eq.s32.totalorder %s18, 0
      %p164 = por %p162, %p163
      %p165 = scmp.ne.s32.totalorder %s157, %s159
      %p166 = scmp.eq.s32.totalorder %s23, 1
      %p167 = por %p165, %p166
      %p168 = scmp.ne.s32.totalorder %s159, %s160
      %p169 = scmp.eq.s32.totalorder %s23, 0
      %p170 = por %p168, %p169
      %p171 = scmp.ne.s32.totalorder %s159, %s160
      %p172 = scmp.eq.s32.totalorder %s24, 1
      %p173 = por %p171, %p172
      %p175 = scmp.ne.s32.totalorder %s160, %s174
      %p176 = scmp.eq.s32.totalorder %s24, 0
      %p177 = por %p175, %p176
      %s179 = sadd.s32 %s178, 1
      %p182 = scmp.eq.s32.totalorder %s18, 1
      %p183 = scmp.ne.s32.totalorder %s178, %s180
      %p184 = scmp.eq.s32.totalorder %s18, 0
      %p185 = por %p183, %p184
      %p186 = scmp.ne.s32.totalorder %s178, %s180
      %p187 = scmp.eq.s32.totalorder %s23, 1
      %p188 = por %p186, %p187
      %p189 = scmp.ne.s32.totalorder %s180, %s181
      %p190 = scmp.eq.s32.totalorder %s23, 0
      %p191 = por %p189, %p190
      %p192 = scmp.ne.s32.totalorder %s180, %s181
      %p193 = scmp.eq.s32.totalorder %s24, 1
      %p194 = por %p192, %p193
      %p196 = scmp.ne.s32.totalorder %s181, %s195
      %p197 = scmp.eq.s32.totalorder %s24, 0
      %p198 = por %p196, %p197
      %s200 = sadd.s32 %s199, 1
      %p203 = scmp.eq.s32.totalorder %s18, 1
      %p204 = scmp.ne.s32.totalorder %s199, %s201
      %p205 = scmp.eq.s32.totalorder %s18, 0
      %p206 = por %p204, %p205
      %p207 = scmp.ne.s32.totalorder %s199, %s201
      %p208 = scmp.eq.s32.totalorder %s23, 1
      %p209 = por %p207, %p208
      %p210 = scmp.ne.s32.totalorder %s201, %s202
      %p211 = scmp.eq.s32.totalorder %s23, 0
      %p212 = por %p210, %p211
      %p213 = scmp.ne.s32.totalorder %s201, %s202
      %p214 = scmp.eq.s32.totalorder %s24, 1
      %p215 = por %p213, %p214
      %p217 = scmp.ne.s32.totalorder %s202, %s216
      %p218 = scmp.eq.s32.totalorder %s24, 0
      %p219 = por %p217, %p218
      %s220 = ssub.s32 %s18, %s25
      %p221 = scmp.eq.s32.totalorder %s220, 0
      %s223 = sadd.s32 %s222, 1
      %s224 = scalar_select %p221, %s222, %s223
      %p227 = pneg %p221
      %p228 = scmp.eq.s32.totalorder %s18, 1
      %p229 = por %p227, %p228
      %p230 = scmp.ne.s32.totalorder %s222, %s225
      %p231 = scmp.eq.s32.totalorder %s18, 0
      %p232 = por %p230, %p231
      %p233 = scmp.ne.s32.totalorder %s222, %s225
      %p234 = scmp.eq.s32.totalorder %s23, 1
      %p235 = por %p233, %p234
      %p236 = scmp.ne.s32.totalorder %s225, %s226
      %p237 = scmp.eq.s32.totalorder %s23, 0
      %p238 = por %p236, %p237
      %p239 = scmp.ne.s32.totalorder %s225, %s226
      %p240 = scmp.eq.s32.totalorder %s24, 1
      %p241 = por %p239, %p240
      %p243 = scmp.ne.s32.totalorder %s226, %s242
      %p244 = scmp.eq.s32.totalorder %s24, 0
      %p245 = por %p243, %p244
      %p246 = scmp.le.s32.totalorder 1, %s18
      %p247 = scmp.lt.s32.totalorder %s18, 3
      %p248 = pnand %p246, %p247
      %p249 = pneg %p248
      // Predicated region
      $region9: #{_lambda_.9} parent=5 // pred_check
        _
      $region10: #{_lambda_.9} parent=5 // pred_check_branch
        %251 = sbr.rel (%p248) target = $region12
      $region11: #{_lambda_.9} parent=5 // pred_region
        %s252 = ssub.s32 %s18, 1
        // Predicated region
        $region13: #{_lambda_.9} parent=11 // pred_check
          %p253 = pneg %p65
        $region14: #{_lambda_.9} parent=11 // pred_check_branch
          %255 = sbr.rel (%p253) target = $region16
        $region15: #{_lambda_.9} parent=11 // pred_region
          _
        $region16: #{_lambda_.9} parent=11 // pred_fallthru
          _
        // Predicated region
        $region17: #{_lambda_.9} parent=11 // pred_check
          %p256 = pneg %p86
        $region18: #{_lambda_.9} parent=11 // pred_check_branch
          %258 = sbr.rel (%p256) target = $region20
        $region19: #{_lambda_.9} parent=11 // pred_region
          _
        $region20: #{_lambda_.9} parent=11 // pred_fallthru
          _
        // Predicated region
        $region21: #{_lambda_.9} parent=11 // pred_check
          %p259 = pneg %p107
        $region22: #{_lambda_.9} parent=11 // pred_check_branch
          %261 = sbr.rel (%p259) target = $region24
        $region23: #{_lambda_.9} parent=11 // pred_region
          _
        $region24: #{_lambda_.9} parent=11 // pred_fallthru
          _
        // Predicated region
        $region25: #{_lambda_.9} parent=11 // pred_check
          %p262 = pneg %p128
        $region26: #{_lambda_.9} parent=11 // pred_check_branch
          %264 = sbr.rel (%p262) target = $region28
        $region27: #{_lambda_.9} parent=11 // pred_region
          _
        $region28: #{_lambda_.9} parent=11 // pred_fallthru
          _
        // Predicated region
        $region29: #{_lambda_.9} parent=11 // pred_check
          %p265 = pneg %p149
        $region30: #{_lambda_.9} parent=11 // pred_check_branch
          %267 = sbr.rel (%p265) target = $region32
        $region31: #{_lambda_.9} parent=11 // pred_region
          _
        $region32: #{_lambda_.9} parent=11 // pred_fallthru
          _
        // Predicated region
        $region33: #{_lambda_.9} parent=11 // pred_check
          %p268 = pneg %p170
        $region34: #{_lambda_.9} parent=11 // pred_check_branch
          %270 = sbr.rel (%p268) target = $region36
        $region35: #{_lambda_.9} parent=11 // pred_region
          _
        $region36: #{_lambda_.9} parent=11 // pred_fallthru
          _
        // Predicated region
        $region37: #{_lambda_.9} parent=11 // pred_check
          %p271 = pneg %p191
        $region38: #{_lambda_.9} parent=11 // pred_check_branch
          %273 = sbr.rel (%p271) target = $region40
        $region39: #{_lambda_.9} parent=11 // pred_region
          _
        $region40: #{_lambda_.9} parent=11 // pred_fallthru
          _
        // Predicated region
        $region41: #{_lambda_.9} parent=11 // pred_check
          %p274 = pneg %p212
        $region42: #{_lambda_.9} parent=11 // pred_check_branch
          %276 = sbr.rel (%p274) target = $region44
        $region43: #{_lambda_.9} parent=11 // pred_region
          _
        $region44: #{_lambda_.9} parent=11 // pred_fallthru
          _
      $region12: #{_lambda_.9} parent=5 // pred_fallthru
        _
      %p277 = scmp.lt.s32.totalorder %s18, 2
      // Predicated region
      $region45: #{_lambda_.9} parent=5 // pred_check
        %p278 = pneg %p277
      $region46: #{_lambda_.9} parent=5 // pred_check_branch
        %280 = sbr.rel (%p278) target = $region48
      $region47: #{_lambda_.9} parent=5 // pred_region
        // Predicated region
        $region49: #{_lambda_.9} parent=47 // pred_check
          %p281 = pneg %p38
        $region50: #{_lambda_.9} parent=47 // pred_check_branch
          %283 = sbr.rel (%p281) target = $region52
        $region51: #{_lambda_.9} parent=47 // pred_region
          %p284 = scmp.lt.s32.totalorder %s18, 1
          %s285 = scalar_select %p284, %s18, 1
          %s286 = smul.addr %s285, 5
          %s287 = smul.addr %s286, 8
          %s288 = scalar_lea.vmem %s0, %s287
        $region52: #{_lambda_.9} parent=47 // pred_fallthru
          _
      $region48: #{_lambda_.9} parent=5 // pred_fallthru
        _
      %p289 = scmp.le.s32.totalorder 1, %s18
      %p290 = scmp.lt.s32.totalorder %s18, 3
      %p291 = pnand %p289, %p290
      %p292 = pneg %p291
      // Predicated region
      $region53: #{_lambda_.9} parent=5 // pred_check
        _
      $region54: #{_lambda_.9} parent=5 // pred_check_branch
        %294 = sbr.rel (%p291) target = $region56
      $region55: #{_lambda_.9} parent=5 // pred_region
        %s295 = ssub.s32 %s18, 1
        %p296 = scmp.lt.s32.totalorder %s23, 1
        %s297 = scalar_select %p296, %s23, 1
        %s298 = smul.addr %s297, 5
        %s299 = smul.addr %s298, 8
        %s300 = scalar_lea.vmem %s0, %s299
        %p301 = pneg %p44
        %p302 = pneg %p41
        %p303 = pneg %p65
        %p304 = pneg %p62
        %p305 = pneg %p86
        %p306 = pneg %p83
        %p307 = pneg %p107
        %p308 = pneg %p104
        %p309 = pneg %p128
        %p310 = pneg %p125
        %p311 = pneg %p149
        %p312 = pneg %p146
        %p313 = pneg %p170
        %p314 = pneg %p167
        %p315 = pneg %p191
        %p316 = pneg %p188
        %p317 = pneg %p212
        %p318 = pneg %p209
        %p319 = pneg %p238
        %p320 = pneg %p235
        %s321 = sand.u32 %s225, 1
        %s322 = scalar_lea.sflag [#allocation3], %s321
        %s323 = sand.u32 %s225, 1
        %s324 = scalar_lea.vmem [#allocation2], %s323
        %p325 = scmp.lt.s32.totalorder %s23, 1
        %s326 = scalar_select %p325, %s23, 1
        %s327 = smul.addr %s326, 5
        %s328 = smul.addr %s327, 8
        %s329 = scalar_lea.vmem %s0, %s328
        %v331 = vld [vmem:[%s329] sm:$0xff]
        %v332 = vld [vmem:[%s329 + $0x8] sm:$0xff]
        %v333 = vld [vmem:[%s329 + $0x10] sm:$0xff]
        %v334 = vld [vmem:[%s329 + $0x18] sm:$0xff]
        %v335 = vld [vmem:[%s329 + $0x20] sm:$0x7f]
        %v336 = vld [vmem:[%s1] sm:$0xf]
        %v337 = vld [vmem:[%s1 + $0x4] sm:$0xf]
        %v338 = vld [vmem:[%s1 + $0x8] sm:$0xf]
        %v339 = vld [vmem:[%s1 + $0xc] sm:$0xf]
        %v340 = vpack.c.bf16 %v332, %v331
        %v341 = vpack.c.bf16 %v334, %v333
        %v342 = vpack.c.bf16 %v335, %v335
        %v343 = vld [vmem:[%s2] sm:$0x1]
        %v345 = vlaneseq
        %v346 = vshrl.u32 %v345, 7
        %v347 = vsub.s32 0, %v346
        %v348 = vrot.slane %v343, %v347
        %v354 = vunpack.c.l.b16 %v336
        %v355 = vunpack.c.l.b16 %v337
        %v356 = vunpack.c.l.b16 %v338
        %v357 = vunpack.c.l.b16 %v339
        %v358 = vpack.c.b16 %v355, %v354
        %v359 = vpack.c.b16 %v357, %v356
        %vm362 = vcmask 261120
        %v364 = vsel %vm362, %v340, 0
        %v367 = vsel %vm362, %v341, 0
        %v370 = vsel %vm362, %v342, 0
        %372 = vmatprep.subr.bf16.mxu0 0
        %373 = vmatpush1.bf16.msra.mxu0 %v358
        %374 = vmatprep.subr.bf16.mxu0 0
        %375 = vmatpush1.bf16.msra.mxu0 %v359
        %376 = vmatprep.subr.bf16.mxu0 0
        %377 = vmatpush1.bf16.msra.mxu0 0
        %378 = vmatprep.subr.bf16.mxu0 0
        %379 = vmatpush1.bf16.msra.mxu0 0
        %380 = vmatprep.subr.bf16.mxu0 0
        %381 = vmatpush1.bf16.msra.mxu0 0
        %382 = vmatprep.subr.bf16.mxu0 0
        %383 = vmatpush1.bf16.msra.mxu0 0
        %384 = vmatprep.subr.bf16.mxu0 0
        %385 = vmatpush1.bf16.msra.mxu0 0
        %386 = vmatprep.subr.bf16.mxu0 0
        %387 = vmatpush1.bf16.msra.mxu0 0
        %388 = vmatprep.subr.bf16.mxu0 0
        %389 = vmatpush1.bf16.msra.mxu0 0
        %390 = vmatprep.subr.bf16.mxu0 0
        %391 = vmatpush1.bf16.msra.mxu0 0
        %392 = vmatprep.subr.bf16.mxu0 0
        %393 = vmatpush1.bf16.msra.mxu0 0
        %394 = vmatprep.subr.bf16.mxu0 0
        %395 = vmatpush1.bf16.msra.mxu0 0
        %396 = vmatprep.subr.bf16.mxu0 0
        %397 = vmatpush1.bf16.msra.mxu0 0
        %398 = vmatprep.subr.bf16.mxu0 0
        %399 = vmatpush1.bf16.msra.mxu0 0
        %400 = vmatprep.subr.bf16.mxu0 0
        %401 = vmatpush1.bf16.msra.mxu0 0
        %402 = vmatprep.subr.bf16.mxu0 0
        %403 = vmatpush1.bf16.msra.mxu0 0
        %404 = vmatprep.mubr.bf16.mxu0 0
        %405 = vmatmul.mubr.bf16.gmra.mrb[0].mxu0 %v364
        %v406 = vpop.f32.mrb[0].mxu0
        %v407 = vadd.f32 %v348, %v406
        %v408 = vpop.f32.mrb[0].mxu0
        %v409 = vpop.f32.mrb[0].mxu0
        %v410 = vadd.f32 %v348, %v409
        %v411 = vpop.f32.mrb[0].mxu0
        %412 = vmatprep.mubr.bf16.mxu0 0
        %413 = vmatmul.mubr.bf16.gmra.mrb[0].mxu0 %v367
        %v414 = vpop.f32.mrb[0].mxu0
        %v415 = vadd.f32 %v348, %v414
        %v416 = vpop.f32.mrb[0].mxu0
        %v417 = vpop.f32.mrb[0].mxu0
        %v418 = vadd.f32 %v348, %v417
        %v419 = vpop.f32.mrb[0].mxu0
        %420 = vmatprep.mubr.bf16.mxu0 0
        %421 = vmatmul.mubr.bf16.gmra.mrb[0].mxu0 %v370
        %v422 = vpop.f32.mrb[0].mxu0
        %v423 = vadd.f32 %v348, %v422
        %v424 = vpop.f32.mrb[0].mxu0
        %v425 = vpop.f32.mrb[0].mxu0
        %v426 = vpop.f32.mrb[0].mxu0
        %427 = vdwg.mxu0
        %v428 = vld [vmem:[%s3] sm:$0xff]
        %v429 = vld [vmem:[%s3 + $0x8] sm:$0xff]
        %v430 = vld [vmem:[%s3 + $0x10] sm:$0xff]
        %v431 = vld [vmem:[%s3 + $0x18] sm:$0xff]
        %v432 = vpack.c.bf16 %v410, %v407
        %v433 = vpack.c.bf16 %v418, %v415
        %v434 = vpack.c.bf16 %v423, %v423
        %v435 = vpack.c.bf16 %v429, %v428
        %v436 = vpack.c.bf16 %v431, %v430
        %v437 = vld [vmem:[%s3 + $0x20] sm:$0xff]
        %v438 = vld [vmem:[%s3 + $0x28] sm:$0xff]
        %v439 = vld [vmem:[%s3 + $0x30] sm:$0xff]
        %v440 = vld [vmem:[%s3 + $0x38] sm:$0xff]
        %v441 = vpack.c.bf16 %v438, %v437
        %v442 = vpack.c.bf16 %v440, %v439
        %vm443 = vsmask.f32 7424
        %v445 = vshrl.u32 %v432, 16
        %v447 = vshll.u32 %v432, 16
        %v449 = vrot.slane %v447, 1
        %v450 = vor.u32 %v445, %v449
        %v452 = vshll.u32 %v433, 16
        %v454 = vrot.slane %v452, 1
        %v455 = vsel %vm443, %v450, %v454
        %v456 = vshrl.u32 %v433, 16
        %v458 = vor.u32 %v456, %v454
        %v460 = vshll.u32 %v434, 16
        %v462 = vrot.slane %v460, 1
        %v463 = vsel %vm443, %v458, %v462
        %v464 = vshrl.u32 %v434, 16
        %v466 = vor.u32 %v464, %v462
        %v468 = vsel %vm362, %v455, 0
        %v471 = vsel %vm362, %v463, 0
        %v474 = vsel %vm362, %v466, 0
        %476 = vmatprep.subr.bf16.mxu0 0
        %477 = vmatpush1.bf16.msra.mxu0 %v441
        %478 = vmatprep.subr.bf16.mxu0 0
        %479 = vmatpush1.bf16.msra.mxu0 %v442
        %480 = vmatprep.subr.bf16.mxu0 0
        %481 = vmatpush1.bf16.msra.mxu0 0
        %482 = vmatprep.subr.bf16.mxu0 0
        %483 = vmatpush1.bf16.msra.mxu0 0
        %484 = vmatprep.subr.bf16.mxu0 0
        %485 = vmatpush1.bf16.msra.mxu0 0
        %486 = vmatprep.subr.bf16.mxu0 0
        %487 = vmatpush1.bf16.msra.mxu0 0
        %488 = vmatprep.subr.bf16.mxu0 0
        %489 = vmatpush1.bf16.msra.mxu0 0
        %490 = vmatprep.subr.bf16.mxu0 0
        %491 = vmatpush1.bf16.msra.mxu0 0
        %492 = vmatprep.subr.bf16.mxu0 0
        %493 = vmatpush1.bf16.msra.mxu0 0
        %494 = vmatprep.subr.bf16.mxu0 0
        %495 = vmatpush1.bf16.msra.mxu0 0
        %496 = vmatprep.subr.bf16.mxu0 0
        %497 = vmatpush1.bf16.msra.mxu0 0
        %498 = vmatprep.subr.bf16.mxu0 0
        %499 = vmatpush1.bf16.msra.mxu0 0
        %500 = vmatprep.subr.bf16.mxu0 0
        %501 = vmatpush1.bf16.msra.mxu0 0
        %502 = vmatprep.subr.bf16.mxu0 0
        %503 = vmatpush1.bf16.msra.mxu0 0
        %504 = vmatprep.subr.bf16.mxu0 0
        %505 = vmatpush1.bf16.msra.mxu0 0
        %506 = vmatprep.subr.bf16.mxu0 0
        %507 = vmatpush1.bf16.msra.mxu0 0
        %508 = vmatprep.mubr.bf16.mxu0 0
        %509 = vmatmul.mubr.bf16.gmra.mrb[0].mxu0 %v468
        %v510 = vpop.f32.mrb[0].mxu0
        %v511 = vadd.f32 0.0, %v510
        %v512 = vpop.f32.mrb[0].mxu0
        %v513 = vpop.f32.mrb[0].mxu0
        %v514 = vadd.f32 0.0, %v513
        %v515 = vpop.f32.mrb[0].mxu0
        %516 = vmatprep.mubr.bf16.mxu0 0
        %517 = vmatmul.mubr.bf16.gmra.mrb[0].mxu0 %v471
        %v518 = vpop.f32.mrb[0].mxu0
        %v519 = vadd.f32 0.0, %v518
        %v520 = vpop.f32.mrb[0].mxu0
        %v521 = vpop.f32.mrb[0].mxu0
        %v522 = vadd.f32 0.0, %v521
        %v523 = vpop.f32.mrb[0].mxu0
        %524 = vmatprep.mubr.bf16.mxu0 0
        %525 = vmatmul.mubr.bf16.gmra.mrb[0].mxu0 %v474
        %v526 = vpop.f32.mrb[0].mxu0
        %v527 = vadd.f32 0.0, %v526
        %v528 = vpop.f32.mrb[0].mxu0
        %v529 = vpop.f32.mrb[0].mxu0
        %v530 = vpop.f32.mrb[0].mxu0
        %531 = vdwg.mxu0
        %v532 = vsel %vm362, %v432, 0
        %v534 = vsel %vm362, %v433, 0
        %v536 = vsel %vm362, %v434, 0
        %538 = vmatprep.subr.bf16.mxu0 0
        %539 = vmatpush1.bf16.msra.mxu0 %v435
        %540 = vmatprep.subr.bf16.mxu0 0
        %541 = vmatpush1.bf16.msra.mxu0 %v436
        %542 = vmatprep.subr.bf16.mxu0 0
        %543 = vmatpush1.bf16.msra.mxu0 0
        %544 = vmatprep.subr.bf16.mxu0 0
        %545 = vmatpush1.bf16.msra.mxu0 0
        %546 = vmatprep.subr.bf16.mxu0 0
        %547 = vmatpush1.bf16.msra.mxu0 0
        %548 = vmatprep.subr.bf16.mxu0 0
        %549 = vmatpush1.bf16.msra.mxu0 0
        %550 = vmatprep.subr.bf16.mxu0 0
        %551 = vmatpush1.bf16.msra.mxu0 0
        %552 = vmatprep.subr.bf16.mxu0 0
        %553 = vmatpush1.bf16.msra.mxu0 0
        %554 = vmatprep.subr.bf16.mxu0 0
        %555 = vmatpush1.bf16.msra.mxu0 0
        %556 = vmatprep.subr.bf16.mxu0 0
        %557 = vmatpush1.bf16.msra.mxu0 0
        %558 = vmatprep.subr.bf16.mxu0 0
        %559 = vmatpush1.bf16.msra.mxu0 0
        %560 = vmatprep.subr.bf16.mxu0 0
        %561 = vmatpush1.bf16.msra.mxu0 0
        %562 = vmatprep.subr.bf16.mxu0 0
        %563 = vmatpush1.bf16.msra.mxu0 0
        %564 = vmatprep.subr.bf16.mxu0 0
        %565 = vmatpush1.bf16.msra.mxu0 0
        %566 = vmatprep.subr.bf16.mxu0 0
        %567 = vmatpush1.bf16.msra.mxu0 0
        %568 = vmatprep.subr.bf16.mxu0 0
        %569 = vmatpush1.bf16.msra.mxu0 0
        %570 = vmatprep.mubr.bf16.mxu0 0
        %571 = vmatmul.mubr.bf16.gmra.mrb[0].mxu0 %v532
        %v572 = vpop.f32.mrb[0].mxu0
        %v573 = vadd.f32 %v511, %v572
        %v574 = vpop.f32.mrb[0].mxu0
        %v575 = vpop.f32.mrb[0].mxu0
        %v576 = vadd.f32 %v514, %v575
        %v577 = vpop.f32.mrb[0].mxu0
        %578 = vmatprep.mubr.bf16.mxu0 0
        %579 = vmatmul.mubr.bf16.gmra.mrb[0].mxu0 %v534
        %v580 = vpop.f32.mrb[0].mxu0
        %v581 = vadd.f32 %v519, %v580
        %v582 = vpop.f32.mrb[0].mxu0
        %v583 = vpop.f32.mrb[0].mxu0
        %v584 = vadd.f32 %v522, %v583
        %v585 = vpop.f32.mrb[0].mxu0
        %586 = vmatprep.mubr.bf16.mxu0 0
        %587 = vmatmul.mubr.bf16.gmra.mrb[0].mxu0 %v536
        %v588 = vpop.f32.mrb[0].mxu0
        %v589 = vadd.f32 %v527, %v588
        %v590 = vpop.f32.mrb[0].mxu0
        %v591 = vpop.f32.mrb[0].mxu0
        %v592 = vpop.f32.mrb[0].mxu0
        %593 = vdwg.mxu0
        %v594 = vld [vmem:[%s3 + $0x40] sm:$0xff]
        %v595 = vld [vmem:[%s3 + $0x48] sm:$0xff]
        %v596 = vld [vmem:[%s3 + $0x50] sm:$0xff]
        %v597 = vld [vmem:[%s3 + $0x58] sm:$0xff]
        %v598 = vpack.c.bf16 %v595, %v594
        %v599 = vpack.c.bf16 %v597, %v596
        %vm603 = vcmask 1046528
        %v604 = vrot.slane %v432, 1
        %v605 = vrot.slane %v433, 1
        %v606 = vsel %vm603, %v604, %v605
        %v607 = vrot.slane %v434, 1
        %v608 = vsel %vm603, %v605, %v607
        %v610 = vsel %vm362, %v606, 0
        %v613 = vsel %vm362, %v608, 0
        %v616 = vsel %vm362, %v607, 0
        %618 = vmatprep.subr.bf16.mxu0 0
        %619 = vmatpush1.bf16.msra.mxu0 %v598
        %620 = vmatprep.subr.bf16.mxu0 0
        %621 = vmatpush1.bf16.msra.mxu0 %v599
        %622 = vmatprep.subr.bf16.mxu0 0
        %623 = vmatpush1.bf16.msra.mxu0 0
        %624 = vmatprep.subr.bf16.mxu0 0
        %625 = vmatpush1.bf16.msra.mxu0 0
        %626 = vmatprep.subr.bf16.mxu0 0
        %627 = vmatpush1.bf16.msra.mxu0 0
        %628 = vmatprep.subr.bf16.mxu0 0
        %629 = vmatpush1.bf16.msra.mxu0 0
        %630 = vmatprep.subr.bf16.mxu0 0
        %631 = vmatpush1.bf16.msra.mxu0 0
        %632 = vmatprep.subr.bf16.mxu0 0
        %633 = vmatpush1.bf16.msra.mxu0 0
        %634 = vmatprep.subr.bf16.mxu0 0
        %635 = vmatpush1.bf16.msra.mxu0 0
        %636 = vmatprep.subr.bf16.mxu0 0
        %637 = vmatpush1.bf16.msra.mxu0 0
        %638 = vmatprep.subr.bf16.mxu0 0
        %639 = vmatpush1.bf16.msra.mxu0 0
        %640 = vmatprep.subr.bf16.mxu0 0
        %641 = vmatpush1.bf16.msra.mxu0 0
        %642 = vmatprep.subr.bf16.mxu0 0
        %643 = vmatpush1.bf16.msra.mxu0 0
        %644 = vmatprep.subr.bf16.mxu0 0
        %645 = vmatpush1.bf16.msra.mxu0 0
        %646 = vmatprep.subr.bf16.mxu0 0
        %647 = vmatpush1.bf16.msra.mxu0 0
        %648 = vmatprep.subr.bf16.mxu0 0
        %649 = vmatpush1.bf16.msra.mxu0 0
        %650 = vmatprep.mubr.bf16.mxu0 0
        %651 = vmatmul.mubr.bf16.gmra.mrb[0].mxu0 %v610
        %v652 = vpop.f32.mrb[0].mxu0
        %v653 = vadd.f32 0.0, %v652
        %v654 = vpop.f32.mrb[0].mxu0
        %v655 = vpop.f32.mrb[0].mxu0
        %v656 = vadd.f32 0.0, %v655
        %v657 = vpop.f32.mrb[0].mxu0
        %658 = vmatprep.mubr.bf16.mxu0 0
        %659 = vmatmul.mubr.bf16.gmra.mrb[0].mxu0 %v613
        %v660 = vpop.f32.mrb[0].mxu0
        %v661 = vadd.f32 0.0, %v660
        %v662 = vpop.f32.mrb[0].mxu0
        %v663 = vpop.f32.mrb[0].mxu0
        %v664 = vadd.f32 0.0, %v663
        %v665 = vpop.f32.mrb[0].mxu0
        %666 = vmatprep.mubr.bf16.mxu0 0
        %667 = vmatmul.mubr.bf16.gmra.mrb[0].mxu0 %v616
        %v668 = vpop.f32.mrb[0].mxu0
        %v669 = vadd.f32 0.0, %v668
        %v670 = vpop.f32.mrb[0].mxu0
        %v671 = vpop.f32.mrb[0].mxu0
        %v672 = vpop.f32.mrb[0].mxu0
        %673 = vdwg.mxu0
        %v674 = vadd.f32 %v573, %v653
        %v675 = vadd.f32 %v576, %v656
        %v676 = vadd.f32 %v581, %v661
        %v677 = vadd.f32 %v584, %v664
        %v678 = vadd.f32 %v589, %v669
        %v679 = vld [vmem:[%s3 + $0x60] sm:$0xff]
        %v680 = vld [vmem:[%s3 + $0x68] sm:$0xff]
        %v681 = vld [vmem:[%s3 + $0x70] sm:$0xff]
        %v682 = vld [vmem:[%s3 + $0x78] sm:$0xff]
        %v683 = vpack.c.bf16 %v680, %v679
        %v684 = vpack.c.bf16 %v682, %v681
        %vm685 = vsmask.f32 6400
        %v686 = vrot.slane %v445, 1
        %v687 = vrot.slane %v447, 2
        %v688 = vor.u32 %v686, %v687
        %v689 = vrot.slane %v456, 1
        %v690 = vrot.slane %v452, 2
        %v691 = vor.u32 %v689, %v690
        %v692 = vsel %vm685, %v688, %v691
        %v693 = vrot.slane %v464, 1
        %v694 = vrot.slane %v460, 2
        %v695 = vor.u32 %v693, %v694
        %v696 = vsel %vm685, %v691, %v695
        %v698 = vsel %vm362, %v692, 0
        %v701 = vsel %vm362, %v696, 0
        %v704 = vsel %vm362, %v695, 0
        %706 = vmatprep.subr.bf16.mxu0 0
        %707 = vmatpush1.bf16.msra.mxu0 %v683
        %708 = vmatprep.subr.bf16.mxu0 0
        %709 = vmatpush1.bf16.msra.mxu0 %v684
        %710 = vmatprep.subr.bf16.mxu0 0
        %711 = vmatpush1.bf16.msra.mxu0 0
        %712 = vmatprep.subr.bf16.mxu0 0
        %713 = vmatpush1.bf16.msra.mxu0 0
        %714 = vmatprep.subr.bf16.mxu0 0
        %715 = vmatpush1.bf16.msra.mxu0 0
        %716 = vmatprep.subr.bf16.mxu0 0
        %717 = vmatpush1.bf16.msra.mxu0 0
        %718 = vmatprep.subr.bf16.mxu0 0
        %719 = vmatpush1.bf16.msra.mxu0 0
        %720 = vmatprep.subr.bf16.mxu0 0
        %721 = vmatpush1.bf16.msra.mxu0 0
        %722 = vmatprep.subr.bf16.mxu0 0
        %723 = vmatpush1.bf16.msra.mxu0 0
        %724 = vmatprep.subr.bf16.mxu0 0
        %725 = vmatpush1.bf16.msra.mxu0 0
        %726 = vmatprep.subr.bf16.mxu0 0
        %727 = vmatpush1.bf16.msra.mxu0 0
        %728 = vmatprep.subr.bf16.mxu0 0
        %729 = vmatpush1.bf16.msra.mxu0 0
        %730 = vmatprep.subr.bf16.mxu0 0
        %731 = vmatpush1.bf16.msra.mxu0 0
        %732 = vmatprep.subr.bf16.mxu0 0
        %733 = vmatpush1.bf16.msra.mxu0 0
        %734 = vmatprep.subr.bf16.mxu0 0
        %735 = vmatpush1.bf16.msra.mxu0 0
        %736 = vmatprep.subr.bf16.mxu0 0
        %737 = vmatpush1.bf16.msra.mxu0 0
        %738 = vmatprep.mubr.bf16.mxu0 0
        %739 = vmatmul.mubr.bf16.gmra.mrb[0].mxu0 %v698
        %v740 = vpop.f32.mrb[0].mxu0
        %v741 = vadd.f32 0.0, %v740
        %v742 = vpop.f32.mrb[0].mxu0
        %v743 = vpop.f32.mrb[0].mxu0
        %v744 = vadd.f32 0.0, %v743
        %v745 = vpop.f32.mrb[0].mxu0
        %746 = vmatprep.mubr.bf16.mxu0 0
        %747 = vmatmul.mubr.bf16.gmra.mrb[0].mxu0 %v701
        %v748 = vpop.f32.mrb[0].mxu0
        %v749 = vadd.f32 0.0, %v748
        %v750 = vpop.f32.mrb[0].mxu0
        %v751 = vpop.f32.mrb[0].mxu0
        %v752 = vadd.f32 0.0, %v751
        %v753 = vpop.f32.mrb[0].mxu0
        %754 = vmatprep.mubr.bf16.mxu0 0
        %755 = vmatmul.mubr.bf16.gmra.mrb[0].mxu0 %v704
        %v756 = vpop.f32.mrb[0].mxu0
        %v757 = vadd.f32 0.0, %v756
        %v758 = vpop.f32.mrb[0].mxu0
        %v759 = vpop.f32.mrb[0].mxu0
        %v760 = vpop.f32.mrb[0].mxu0
        %761 = vdwg.mxu0
        %v762 = vadd.f32 %v674, %v741
        %v763 = vadd.f32 %v675, %v744
        %v764 = vadd.f32 %v676, %v749
        %v765 = vadd.f32 %v677, %v752
        %v766 = vadd.f32 %v678, %v757
        %v767 = vld [vmem:[%s3 + $0x80] sm:$0xff]
        %v768 = vld [vmem:[%s3 + $0x88] sm:$0xff]
        %v769 = vld [vmem:[%s3 + $0x90] sm:$0xff]
        %v770 = vld [vmem:[%s3 + $0x98] sm:$0xff]
        %v771 = vpack.c.bf16 %v768, %v767
        %v772 = vpack.c.bf16 %v770, %v769
        %vm773 = vcmask 1045504
        %v774 = vrot.slane %v432, 2
        %v775 = vrot.slane %v433, 2
        %v776 = vsel %vm773, %v774, %v775
        %v777 = vrot.slane %v434, 2
        %v778 = vsel %vm773, %v775, %v777
        %v780 = vsel %vm362, %v776, 0
        %v783 = vsel %vm362, %v778, 0
        %v786 = vsel %vm362, %v777, 0
        %788 = vmatprep.subr.bf16.mxu0 0
        %789 = vmatpush1.bf16.msra.mxu0 %v771
        %790 = vmatprep.subr.bf16.mxu0 0
        %791 = vmatpush1.bf16.msra.mxu0 %v772
        %792 = vmatprep.subr.bf16.mxu0 0
        %793 = vmatpush1.bf16.msra.mxu0 0
        %794 = vmatprep.subr.bf16.mxu0 0
        %795 = vmatpush1.bf16.msra.mxu0 0
        %796 = vmatprep.subr.bf16.mxu0 0
        %797 = vmatpush1.bf16.msra.mxu0 0
        %798 = vmatprep.subr.bf16.mxu0 0
        %799 = vmatpush1.bf16.msra.mxu0 0
        %800 = vmatprep.subr.bf16.mxu0 0
        %801 = vmatpush1.bf16.msra.mxu0 0
        %802 = vmatprep.subr.bf16.mxu0 0
        %803 = vmatpush1.bf16.msra.mxu0 0
        %804 = vmatprep.subr.bf16.mxu0 0
        %805 = vmatpush1.bf16.msra.mxu0 0
        %806 = vmatprep.subr.bf16.mxu0 0
        %807 = vmatpush1.bf16.msra.mxu0 0
        %808 = vmatprep.subr.bf16.mxu0 0
        %809 = vmatpush1.bf16.msra.mxu0 0
        %810 = vmatprep.subr.bf16.mxu0 0
        %811 = vmatpush1.bf16.msra.mxu0 0
        %812 = vmatprep.subr.bf16.mxu0 0
        %813 = vmatpush1.bf16.msra.mxu0 0
        %814 = vmatprep.subr.bf16.mxu0 0
        %815 = vmatpush1.bf16.msra.mxu0 0
        %816 = vmatprep.subr.bf16.mxu0 0
        %817 = vmatpush1.bf16.msra.mxu0 0
        %818 = vmatprep.subr.bf16.mxu0 0
        %819 = vmatpush1.bf16.msra.mxu0 0
        %820 = vmatprep.mubr.bf16.mxu0 0
        %821 = vmatmul.mubr.bf16.gmra.mrb[0].mxu0 %v780
        %v822 = vpop.f32.mrb[0].mxu0
        %v823 = vadd.f32 0.0, %v822
        %v824 = vpop.f32.mrb[0].mxu0
        %v825 = vpop.f32.mrb[0].mxu0
        %v826 = vadd.f32 0.0, %v825
        %v827 = vpop.f32.mrb[0].mxu0
        %828 = vmatprep.mubr.bf16.mxu0 0
        %829 = vmatmul.mubr.bf16.gmra.mrb[0].mxu0 %v783
        %v830 = vpop.f32.mrb[0].mxu0
        %v831 = vadd.f32 0.0, %v830
        %v832 = vpop.f32.mrb[0].mxu0
        %v833 = vpop.f32.mrb[0].mxu0
        %v834 = vadd.f32 0.0, %v833
        %v835 = vpop.f32.mrb[0].mxu0
        %836 = vmatprep.mubr.bf16.mxu0 0
        %837 = vmatmul.mubr.bf16.gmra.mrb[0].mxu0 %v786
        %v838 = vpop.f32.mrb[0].mxu0
        %v839 = vadd.f32 0.0, %v838
        %v840 = vpop.f32.mrb[0].mxu0
        %v841 = vpop.f32.mrb[0].mxu0
        %v842 = vpop.f32.mrb[0].mxu0
        %843 = vdwg.mxu0
        %v844 = vadd.f32 %v762, %v823
        %v845 = vadd.f32 %v763, %v826
        %v846 = vadd.f32 %v764, %v831
        %v847 = vadd.f32 %v765, %v834
        %v848 = vadd.f32 %v766, %v839
        %v849 = vld [vmem:[%s4] sm:$0x1]
        %v851 = vlaneseq
        %v852 = vshrl.u32 %v851, 7
        %v853 = vsub.s32 0, %v852
        %v854 = vrot.slane %v849, %v853
        %v856 = vadd.f32 %v844, %v854
        %v857 = vadd.f32 %v845, %v854
        %v858 = vadd.f32 %v846, %v854
        %v859 = vadd.f32 %v847, %v854
        %v860 = vadd.f32 %v848, %v854
        %v861 = vmax.f32 %v856, 0.0
        %v862 = vmax.f32 %v857, 0.0
        %v863 = vmax.f32 %v858, 0.0
        %v864 = vmax.f32 %v859, 0.0
        %v865 = vmax.f32 %v860, 0.0
        %v866 = vld [vmem:[%s5] sm:$0xff]
        %v867 = vld [vmem:[%s5 + $0x8] sm:$0xff]
        %v868 = vld [vmem:[%s5 + $0x10] sm:$0xff]
        %v869 = vld [vmem:[%s5 + $0x18] sm:$0xff]
        %v870 = vpack.c.bf16 %v862, %v861
        %v871 = vpack.c.bf16 %v864, %v863
        %v872 = vpack.c.bf16 %v867, %v866
        %v873 = vpack.c.bf16 %v869, %v868
        %v874 = vld [vmem:[%s5 + $0x20] sm:$0xff]
        %v875 = vld [vmem:[%s5 + $0x28] sm:$0xff]
        %v876 = vld [vmem:[%s5 + $0x30] sm:$0xff]
        %v877 = vld [vmem:[%s5 + $0x38] sm:$0xff]
        %v878 = vpack.c.bf16 %v865, %v865
        %v879 = vpack.c.bf16 %v875, %v874
        %v880 = vpack.c.bf16 %v877, %v876
        %v884 = vrot.slane %v870, 1
        %v885 = vrot.slane %v871, 1
        %v886 = vsel %vm603, %v884, %v885
        %v887 = vrot.slane %v878, 1
        %v888 = vsel %vm603, %v885, %v887
        %v890 = vsel %vm362, %v886, 0
        %v893 = vsel %vm362, %v888, 0
        %895 = vmatprep.subr.bf16.mxu0 0
        %896 = vmatpush1.bf16.msra.mxu0 %v879
        %897 = vmatprep.subr.bf16.mxu0 0
        %898 = vmatpush1.bf16.msra.mxu0 %v880
        %899 = vmatprep.subr.bf16.mxu0 0
        %900 = vmatpush1.bf16.msra.mxu0 0
        %901 = vmatprep.subr.bf16.mxu0 0
        %902 = vmatpush1.bf16.msra.mxu0 0
        %903 = vmatprep.subr.bf16.mxu0 0
        %904 = vmatpush1.bf16.msra.mxu0 0
        %905 = vmatprep.subr.bf16.mxu0 0
        %906 = vmatpush1.bf16.msra.mxu0 0
        %907 = vmatprep.subr.bf16.mxu0 0
        %908 = vmatpush1.bf16.msra.mxu0 0
        %909 = vmatprep.subr.bf16.mxu0 0
        %910 = vmatpush1.bf16.msra.mxu0 0
        %911 = vmatprep.subr.bf16.mxu0 0
        %912 = vmatpush1.bf16.msra.mxu0 0
        %913 = vmatprep.subr.bf16.mxu0 0
        %914 = vmatpush1.bf16.msra.mxu0 0
        %915 = vmatprep.subr.bf16.mxu0 0
        %916 = vmatpush1.bf16.msra.mxu0 0
        %917 = vmatprep.subr.bf16.mxu0 0
        %918 = vmatpush1.bf16.msra.mxu0 0
        %919 = vmatprep.subr.bf16.mxu0 0
        %920 = vmatpush1.bf16.msra.mxu0 0
        %921 = vmatprep.subr.bf16.mxu0 0
        %922 = vmatpush1.bf16.msra.mxu0 0
        %923 = vmatprep.subr.bf16.mxu0 0
        %924 = vmatpush1.bf16.msra.mxu0 0
        %925 = vmatprep.subr.bf16.mxu0 0
        %926 = vmatpush1.bf16.msra.mxu0 0
        %927 = vmatprep.mubr.bf16.mxu0 0
        %928 = vmatmul.mubr.bf16.gmra.mrb[0].mxu0 %v890
        %v929 = vpop.f32.mrb[0].mxu0
        %v930 = vadd.f32 0.0, %v929
        %v931 = vpop.f32.mrb[0].mxu0
        %v932 = vpop.f32.mrb[0].mxu0
        %v933 = vadd.f32 0.0, %v932
        %v934 = vpop.f32.mrb[0].mxu0
        %935 = vmatprep.mubr.bf16.mxu0 0
        %936 = vmatmul.mubr.bf16.gmra.mrb[0].mxu0 %v893
        %v937 = vpop.f32.mrb[0].mxu0
        %v938 = vadd.f32 0.0, %v937
        %v939 = vpop.f32.mrb[0].mxu0
        %v940 = vpop.f32.mrb[0].mxu0
        %v941 = vadd.f32 0.0, %v940
        %v942 = vpop.f32.mrb[0].mxu0
        %943 = vdwg.mxu0
        %v945 = vsel %vm362, %v870, 0
        %v948 = vsel %vm362, %v871, 0
        %950 = vmatprep.subr.bf16.mxu0 0
        %951 = vmatpush1.bf16.msra.mxu0 %v872
        %952 = vmatprep.subr.bf16.mxu0 0
        %953 = vmatpush1.bf16.msra.mxu0 %v873
        %954 = vmatprep.subr.bf16.mxu0 0
        %955 = vmatpush1.bf16.msra.mxu0 0
        %956 = vmatprep.subr.bf16.mxu0 0
        %957 = vmatpush1.bf16.msra.mxu0 0
        %958 = vmatprep.subr.bf16.mxu0 0
        %959 = vmatpush1.bf16.msra.mxu0 0
        %960 = vmatprep.subr.bf16.mxu0 0
        %961 = vmatpush1.bf16.msra.mxu0 0
        %962 = vmatprep.subr.bf16.mxu0 0
        %963 = vmatpush1.bf16.msra.mxu0 0
        %964 = vmatprep.subr.bf16.mxu0 0
        %965 = vmatpush1.bf16.msra.mxu0 0
        %966 = vmatprep.subr.bf16.mxu0 0
        %967 = vmatpush1.bf16.msra.mxu0 0
        %968 = vmatprep.subr.bf16.mxu0 0
        %969 = vmatpush1.bf16.msra.mxu0 0
        %970 = vmatprep.subr.bf16.mxu0 0
        %971 = vmatpush1.bf16.msra.mxu0 0
        %972 = vmatprep.subr.bf16.mxu0 0
        %973 = vmatpush1.bf16.msra.mxu0 0
        %974 = vmatprep.subr.bf16.mxu0 0
        %975 = vmatpush1.bf16.msra.mxu0 0
        %976 = vmatprep.subr.bf16.mxu0 0
        %977 = vmatpush1.bf16.msra.mxu0 0
        %978 = vmatprep.subr.bf16.mxu0 0
        %979 = vmatpush1.bf16.msra.mxu0 0
        %980 = vmatprep.subr.bf16.mxu0 0
        %981 = vmatpush1.bf16.msra.mxu0 0
        %982 = vmatprep.mubr.bf16.mxu0 0
        %983 = vmatmul.mubr.bf16.gmra.mrb[0].mxu0 %v945
        %v984 = vpop.f32.mrb[0].mxu0
        %v985 = vadd.f32 %v930, %v984
        %v986 = vpop.f32.mrb[0].mxu0
        %v987 = vpop.f32.mrb[0].mxu0
        %v988 = vadd.f32 %v933, %v987
        %v989 = vpop.f32.mrb[0].mxu0
        %990 = vmatprep.mubr.bf16.mxu0 0
        %991 = vmatmul.mubr.bf16.gmra.mrb[0].mxu0 %v948
        %v992 = vpop.f32.mrb[0].mxu0
        %v993 = vadd.f32 %v938, %v992
        %v994 = vpop.f32.mrb[0].mxu0
        %v995 = vpop.f32.mrb[0].mxu0
        %v996 = vadd.f32 %v941, %v995
        %v997 = vpop.f32.mrb[0].mxu0
        %998 = vdwg.mxu0
        %v999 = vld [vmem:[%s5 + $0x40] sm:$0xff]
        %v1000 = vld [vmem:[%s5 + $0x48] sm:$0xff]
        %v1001 = vld [vmem:[%s5 + $0x50] sm:$0xff]
        %v1002 = vld [vmem:[%s5 + $0x58] sm:$0xff]
        %v1003 = vpack.c.bf16 %v1000, %v999
        %v1004 = vpack.c.bf16 %v1002, %v1001
        %v1005 = vrot.slane %v870, 2
        %v1006 = vrot.slane %v871, 2
        %v1007 = vsel %vm773, %v1005, %v1006
        %v1008 = vrot.slane %v878, 2
        %v1009 = vsel %vm773, %v1006, %v1008
        %v1011 = vsel %vm362, %v1007, 0
        %v1014 = vsel %vm362, %v1009, 0
        %1016 = vmatprep.subr.bf16.mxu0 0
        %1017 = vmatpush1.bf16.msra.mxu0 %v1003
        %1018 = vmatprep.subr.bf16.mxu0 0
        %1019 = vmatpush1.bf16.msra.mxu0 %v1004
        %1020 = vmatprep.subr.bf16.mxu0 0
        %1021 = vmatpush1.bf16.msra.mxu0 0
        %1022 = vmatprep.subr.bf16.mxu0 0
        %1023 = vmatpush1.bf16.msra.mxu0 0
        %1024 = vmatprep.subr.bf16.mxu0 0
        %1025 = vmatpush1.bf16.msra.mxu0 0
        %1026 = vmatprep.subr.bf16.mxu0 0
        %1027 = vmatpush1.bf16.msra.mxu0 0
        %1028 = vmatprep.subr.bf16.mxu0 0
        %1029 = vmatpush1.bf16.msra.mxu0 0
        %1030 = vmatprep.subr.bf16.mxu0 0
        %1031 = vmatpush1.bf16.msra.mxu0 0
        %1032 = vmatprep.subr.bf16.mxu0 0
        %1033 = vmatpush1.bf16.msra.mxu0 0
        %1034 = vmatprep.subr.bf16.mxu0 0
        %1035 = vmatpush1.bf16.msra.mxu0 0
        %1036 = vmatprep.subr.bf16.mxu0 0
        %1037 = vmatpush1.bf16.msra.mxu0 0
        %1038 = vmatprep.subr.bf16.mxu0 0
        %1039 = vmatpush1.bf16.msra.mxu0 0
        %1040 = vmatprep.subr.bf16.mxu0 0
        %1041 = vmatpush1.bf16.msra.mxu0 0
        %1042 = vmatprep.subr.bf16.mxu0 0
        %1043 = vmatpush1.bf16.msra.mxu0 0
        %1044 = vmatprep.subr.bf16.mxu0 0
        %1045 = vmatpush1.bf16.msra.mxu0 0
        %1046 = vmatprep.subr.bf16.mxu0 0
        %1047 = vmatpush1.bf16.msra.mxu0 0
        %1048 = vmatprep.mubr.bf16.mxu0 0
        %1049 = vmatmul.mubr.bf16.gmra.mrb[0].mxu0 %v1011
        %v1050 = vpop.f32.mrb[0].mxu0
        %v1051 = vadd.f32 0.0, %v1050
        %v1052 = vpop.f32.mrb[0].mxu0
        %v1053 = vpop.f32.mrb[0].mxu0
        %v1054 = vadd.f32 0.0, %v1053
        %v1055 = vpop.f32.mrb[0].mxu0
        %1056 = vmatprep.mubr.bf16.mxu0 0
        %1057 = vmatmul.mubr.bf16.gmra.mrb[0].mxu0 %v1014
        %v1058 = vpop.f32.mrb[0].mxu0
        %v1059 = vadd.f32 0.0, %v1058
        %v1060 = vpop.f32.mrb[0].mxu0
        %v1061 = vpop.f32.mrb[0].mxu0
        %v1062 = vadd.f32 0.0, %v1061
        %v1063 = vpop.f32.mrb[0].mxu0
        %1064 = vdwg.mxu0
        %v1065 = vadd.f32 %v985, %v1051
        %v1066 = vadd.f32 %v988, %v1054
        %v1067 = vadd.f32 %v993, %v1059
        %v1068 = vadd.f32 %v996, %v1062
        %v1069 = vld [vmem:[%s6] sm:$0x1]
        %v1071 = vlaneseq
        %v1072 = vshrl.u32 %v1071, 7
        %v1073 = vsub.s32 0, %v1072
        %v1074 = vrot.slane %v1069, %v1073
        %v1076 = vadd.f32 %v1065, %v1074
        %v1077 = vadd.f32 %v1066, %v1074
        %v1078 = vadd.f32 %v1067, %v1074
        %v1079 = vadd.f32 %v1068, %v1074
        %v1080 = vmax.f32 %v1076, 0.0
        %v1081 = vmax.f32 %v1077, 0.0
        %v1082 = vmax.f32 %v1078, 0.0
        %v1083 = vmax.f32 %v1079, 0.0
        %v1084 = vsel %vm362, %v1080, 0.0
        %v1085 = vsel %vm362, %v1081, 0.0
        %v1086 = vadd.f32 %v1084, %v1085
        %v1087 = vsel %vm362, %v1082, 0.0
        %v1088 = vadd.f32 %v1086, %v1087
        %vm1089 = vcmask 260096
        %v1090 = vsel %vm1089, %v1083, 0.0
        %v1091 = vadd.f32 %v1088, %v1090
        %v1092 = vrot.slane %v1091, 4
        %v1093 = vadd.f32 %v1091, %v1092
        %v1094 = vrot.slane %v1093, 2
        %v1095 = vadd.f32 %v1093, %v1094
        %v1096 = vrot.slane %v1095, 1
        %v1097 = vadd.f32 %v1095, %v1096
        %v1098 = vrcp.pop 31.0
        %v1099 = vmul.f32 %v1097, %v1098
        %v1100 = vsub.f32 %v1080, %v1099
        %v1101 = vsub.f32 %v1081, %v1099
        %v1102 = vsub.f32 %v1082, %v1099
        %v1103 = vsub.f32 %v1083, %v1099
        %v1104 = vmul.f32 %v1100, %v1100
        %v1105 = vmul.f32 %v1101, %v1101
        %v1106 = vmul.f32 %v1102, %v1102
        %v1107 = vmul.f32 %v1103, %v1103
        %v1108 = vsel %vm362, %v1104, 0.0
        %v1109 = vsel %vm362, %v1105, 0.0
        %v1110 = vadd.f32 %v1108, %v1109
        %v1111 = vsel %vm362, %v1106, 0.0
        %v1112 = vadd.f32 %v1110, %v1111
        %v1113 = vsel %vm1089, %v1107, 0.0
        %v1114 = vadd.f32 %v1112, %v1113
        %v1115 = vrot.slane %v1114, 4
        %v1116 = vadd.f32 %v1114, %v1115
        %v1117 = vrot.slane %v1116, 2
        %v1118 = vadd.f32 %v1116, %v1117
        %v1119 = vrot.slane %v1118, 1
        %v1120 = vadd.f32 %v1118, %v1119
        %v1121 = vrcp.pop 30.0
        %v1122 = vmul.f32 %v1120, %v1121
        %v1123 = vrsqrt.pop %v1122
        %v1124 = vmul.f32 %v1122, %v1123
        %vm1125 = vcmp.eq.f32.partialorder %v1122, inf
        %v1126 = vsel %vm1125, %v1122, %v1124
        %vm1127 = vcmp.eq.f32.partialorder %v1122, 0.0
        %v1128 = vand.u32 %v1122, 2147483648
        %v1129 = vsel %vm1127, %v1128, %v1126
        %v1130 = vld [vmem:[%s7] sm:$0xff]
        %v1131 = vld [vmem:[%s7 + $0x8] sm:$0xff]
        %v1132 = vld [vmem:[%s7 + $0x10] sm:$0xff]
        %v1133 = vld [vmem:[%s7 + $0x18] sm:$0xff]
        %v1134 = vpack.c.bf16 %v1099, %v1099
        %v1135 = vpack.c.bf16 %v1131, %v1130
        %v1136 = vpack.c.bf16 %v1133, %v1132
        %v1137 = vld [vmem:[%s7 + $0x20] sm:$0xff]
        %v1138 = vld [vmem:[%s7 + $0x28] sm:$0xff]
        %v1139 = vld [vmem:[%s7 + $0x30] sm:$0xff]
        %v1140 = vld [vmem:[%s7 + $0x38] sm:$0xff]
        %v1141 = vpack.c.bf16 %v1129, %v1129
        %v1142 = vpack.c.bf16 %v1138, %v1137
        %v1143 = vpack.c.bf16 %v1140, %v1139
        %v1145 = vsel %vm362, %v1141, 0
        %1147 = vmatprep.subr.bf16.mxu0 0
        %1148 = vmatpush1.bf16.msra.mxu0 %v1142
        %1149 = vmatprep.subr.bf16.mxu0 0
        %1150 = vmatpush1.bf16.msra.mxu0 %v1143
        %1151 = vmatprep.subr.bf16.mxu0 0
        %1152 = vmatpush1.bf16.msra.mxu0 0
        %1153 = vmatprep.subr.bf16.mxu0 0
        %1154 = vmatpush1.bf16.msra.mxu0 0
        %1155 = vmatprep.subr.bf16.mxu0 0
        %1156 = vmatpush1.bf16.msra.mxu0 0
        %1157 = vmatprep.subr.bf16.mxu0 0
        %1158 = vmatpush1.bf16.msra.mxu0 0
        %1159 = vmatprep.subr.bf16.mxu0 0
        %1160 = vmatpush1.bf16.msra.mxu0 0
        %1161 = vmatprep.subr.bf16.mxu0 0
        %1162 = vmatpush1.bf16.msra.mxu0 0
        %1163 = vmatprep.subr.bf16.mxu0 0
        %1164 = vmatpush1.bf16.msra.mxu0 0
        %1165 = vmatprep.subr.bf16.mxu0 0
        %1166 = vmatpush1.bf16.msra.mxu0 0
        %1167 = vmatprep.subr.bf16.mxu0 0
        %1168 = vmatpush1.bf16.msra.mxu0 0
        %1169 = vmatprep.subr.bf16.mxu0 0
        %1170 = vmatpush1.bf16.msra.mxu0 0
        %1171 = vmatprep.subr.bf16.mxu0 0
        %1172 = vmatpush1.bf16.msra.mxu0 0
        %1173 = vmatprep.subr.bf16.mxu0 0
        %1174 = vmatpush1.bf16.msra.mxu0 0
        %1175 = vmatprep.subr.bf16.mxu0 0
        %1176 = vmatpush1.bf16.msra.mxu0 0
        %1177 = vmatprep.subr.bf16.mxu0 0
        %1178 = vmatpush1.bf16.msra.mxu0 0
        %1179 = vmatprep.mubr.bf16.mxu0 0
        %1180 = vmatmul.mubr.bf16.gmra.mrb[0].mxu0 %v1145
        %v1181 = vpop.f32.mrb[0].mxu0
        %v1182 = vadd.f32 0.0, %v1181
        %v1183 = vpop.f32.mrb[0].mxu0
        %v1184 = vpop.f32.mrb[0].mxu0
        %v1185 = vpop.f32.mrb[0].mxu0
        %1186 = vdwg.mxu0
        %v1188 = vsel %vm362, %v1134, 0
        %1190 = vmatprep.subr.bf16.mxu0 0
        %1191 = vmatpush1.bf16.msra.mxu0 %v1135
        %1192 = vmatprep.subr.bf16.mxu0 0
        %1193 = vmatpush1.bf16.msra.mxu0 %v1136
        %1194 = vmatprep.subr.bf16.mxu0 0
        %1195 = vmatpush1.bf16.msra.mxu0 0
        %1196 = vmatprep.subr.bf16.mxu0 0
        %1197 = vmatpush1.bf16.msra.mxu0 0
        %1198 = vmatprep.subr.bf16.mxu0 0
        %1199 = vmatpush1.bf16.msra.mxu0 0
        %1200 = vmatprep.subr.bf16.mxu0 0
        %1201 = vmatpush1.bf16.msra.mxu0 0
        %1202 = vmatprep.subr.bf16.mxu0 0
        %1203 = vmatpush1.bf16.msra.mxu0 0
        %1204 = vmatprep.subr.bf16.mxu0 0
        %1205 = vmatpush1.bf16.msra.mxu0 0
        %1206 = vmatprep.subr.bf16.mxu0 0
        %1207 = vmatpush1.bf16.msra.mxu0 0
        %1208 = vmatprep.subr.bf16.mxu0 0
        %1209 = vmatpush1.bf16.msra.mxu0 0
        %1210 = vmatprep.subr.bf16.mxu0 0
        %1211 = vmatpush1.bf16.msra.mxu0 0
        %1212 = vmatprep.subr.bf16.mxu0 0
        %1213 = vmatpush1.bf16.msra.mxu0 0
        %1214 = vmatprep.subr.bf16.mxu0 0
        %1215 = vmatpush1.bf16.msra.mxu0 0
        %1216 = vmatprep.subr.bf16.mxu0 0
        %1217 = vmatpush1.bf16.msra.mxu0 0
        %1218 = vmatprep.subr.bf16.mxu0 0
        %1219 = vmatpush1.bf16.msra.mxu0 0
        %1220 = vmatprep.subr.bf16.mxu0 0
        %1221 = vmatpush1.bf16.msra.mxu0 0
        %1222 = vmatprep.mubr.bf16.mxu0 0
        %1223 = vmatmul.mubr.bf16.gmra.mrb[0].mxu0 %v1188
        %v1224 = vpop.f32.mrb[0].mxu0
        %v1225 = vadd.f32 %v1182, %v1224
        %v1226 = vpop.f32.mrb[0].mxu0
        %v1227 = vpop.f32.mrb[0].mxu0
        %v1228 = vpop.f32.mrb[0].mxu0
        %1229 = vdwg.mxu0
        %v1230 = vld [vmem:[%s8] sm:$0x1]
        %v1231 = vadd.f32 %v1225, %v1230
        %vm1232 = vcmask 253952
        %1233 = vst.msk [vmem:[%s324] sm:$0x1] %vm1232, %v1231
        %s1234 = sand.u32 %s225, 1
        %s1235 = scalar_lea.sflag [#allocation3], %s1234
        %s1236 = sand.u32 %s225, 1
        %s1237 = scalar_lea.vmem [#allocation2], %s1236
        // Predicated region
        $region57: #{_lambda_.9} parent=55 // pred_check
          %p1238 = pneg %p235
        $region58: #{_lambda_.9} parent=55 // pred_check_branch
          %1240 = sbr.rel (%p1238) target = $region60
        $region59: #{_lambda_.9} parent=55 // pred_region
          %s1242 = ssub.s32 16, 16
          %1243 = vsyncadd %s1235, %s1242
          %s1244 = smul.addr %s23, 16
          %s1245 = scalar_lea.hbm %s9, %s1244
          %s1247 = sshll.u32 %s1237, 4
          %s1248 = int_to_ptr.vmem [resolvable:$true] %s1247
          %1250 = dma.vmem_to_hbm [thread:$0]  %s1248, 16, %s1245, %s1235
        $region60: #{_lambda_.9} parent=55 // pred_fallthru
          _
      $region56: #{_lambda_.9} parent=5 // pred_fallthru
        _
      %p1251 = scmp.le.s32.totalorder 2, %s18
      // Predicated region
      $region61: #{_lambda_.9} parent=5 // pred_check
        %p1252 = pneg %p1251
      $region62: #{_lambda_.9} parent=5 // pred_check_branch
        %1254 = sbr.rel (%p1252) target = $region64
      $region63: #{_lambda_.9} parent=5 // pred_region
        %s1255 = ssub.s32 %s18, 2
        // Predicated region
        $region65: #{_lambda_.9} parent=63 // pred_check
          %p1256 = pneg %p241
        $region66: #{_lambda_.9} parent=63 // pred_check_branch
          %1258 = sbr.rel (%p1256) target = $region68
        $region67: #{_lambda_.9} parent=63 // pred_region
          %s1259 = sand.u32 %s226, 1
          %s1260 = scalar_lea.sflag [#allocation3], %s1259
          %s1261 = sand.u32 %s226, 1
          %s1262 = scalar_lea.vmem [#allocation2], %s1261
          %1263 = dma.done %s1260, 16
        $region68: #{_lambda_.9} parent=63 // pred_fallthru
          _
      $region64: #{_lambda_.9} parent=5 // pred_fallthru
        _
    $region6: #{_lambda_.9} parent=1 // loop_footer
      %s22 = sadd.s32 1, %s18
    $region7: #{_lambda_.9} parent=1 // loop_footer_branch
      %17 = sbr.rel target = $region3
    $region8: #{_lambda_.9} parent=1 // loop_exit
      _
    %1264 = vsyncpa [#allocation3], 1
    %s1265 = scalar_lea.sflag [#allocation3], 1
    %1266 = vsyncpa %s1265, 1

</llo_original>
